<compile_context>
chip_gen: v5e
topology: v5e:2x2
jax: 0.10.0
libtpu: 0.0.40
codegen_flags: <defaults>
</compile_context>

<pallas_src>
import functools

import jax
import jax.numpy as jnp
from jax.experimental import pallas as pl
from jax.experimental.pallas import tpu as pltpu

TM_MAX = 2048  # upper bound on output rows handled per grid step


# ----------------------------------------------------------------------------
# Pallas kernels
# ----------------------------------------------------------------------------
def _mm_bias_act_kernel(x_ref, w_ref, b_ref, o_ref, *, relu):
    # x:(tm,K) bf16, w:(K,N) bf16 (resident), b:(1,N) f32 -> o:(tm,N)
    acc = jnp.dot(x_ref[...], w_ref[...], preferred_element_type=jnp.float32)
    acc = acc + b_ref[...]
    if relu:
        acc = jnp.maximum(acc, 0.0)
    o_ref[...] = acc.astype(o_ref.dtype)


def _fc_fused_kernel(x_ref, w1_ref, b1_ref, w2_ref, b2_ref, o_ref):
    # fused fc2(relu(fc1(x))): x:(B,K1) bf16, w1:(K1,H) bf16, w2:(H,A) bf16
    h = jnp.dot(x_ref[...], w1_ref[...], preferred_element_type=jnp.float32)
    h = jnp.maximum(h + b1_ref[...], 0.0)
    o = jnp.dot(h.astype(jnp.bfloat16), w2_ref[...],
                preferred_element_type=jnp.float32)
    o_ref[...] = (o + b2_ref[...]).astype(o_ref.dtype)


# ----------------------------------------------------------------------------
# Pallas wrappers
# ----------------------------------------------------------------------------
def _pick_tm(m):
    """Row tile: full array if small, else >=2 grid steps, multiple of 16."""
    if m <= 256:
        return m
    tm = min(TM_MAX, -(-m // 2))
    return -(-tm // 16) * 16


def matmul_bias_act(x, w, b, *, relu, out_dtype):
    """act(x @ w + b).  x:(M,K) bf16, w:(K,N) bf16, b:(N,) f32."""
    M, K = x.shape
    N = w.shape[1]
    tm = _pick_tm(M)
    return pl.pallas_call(
        functools.partial(_mm_bias_act_kernel, relu=relu),
        out_shape=jax.ShapeDtypeStruct((M, N), out_dtype),
        grid_spec=pltpu.PrefetchScalarGridSpec(
            num_scalar_prefetch=0,
            grid=(pl.cdiv(M, tm),),
            in_specs=[
                pl.BlockSpec((tm, K), lambda i: (i, 0)),
                pl.BlockSpec((K, N), lambda i: (0, 0)),   # stays resident
                pl.BlockSpec((1, N), lambda i: (0, 0)),
            ],
            out_specs=pl.BlockSpec((tm, N), lambda i: (i, 0)),
        ),
        compiler_params=pltpu.CompilerParams(
            dimension_semantics=("parallel",)),
    )(x, w, b.reshape(1, N).astype(jnp.float32))


def fc_head(x, w1, b1, w2, b2):
    """fc2(relu(fc1(x))) in a single pallas_call.  x:(B,K1) bf16."""
    B, K1 = x.shape
    H = w1.shape[1]
    A = w2.shape[1]
    return pl.pallas_call(
        _fc_fused_kernel,
        out_shape=jax.ShapeDtypeStruct((B, A), jnp.float32),
        grid_spec=pltpu.PrefetchScalarGridSpec(
            num_scalar_prefetch=0,
            grid=(1,),
            in_specs=[
                pl.BlockSpec((B, K1), lambda i: (0, 0)),
                pl.BlockSpec((K1, H), lambda i: (0, 0)),
                pl.BlockSpec((1, H), lambda i: (0, 0)),
                pl.BlockSpec((H, A), lambda i: (0, 0)),
                pl.BlockSpec((1, A), lambda i: (0, 0)),
            ],
            out_specs=pl.BlockSpec((B, A), lambda i: (0, 0)),
        ),
    )(x, w1, b1.reshape(1, H).astype(jnp.float32),
      w2, b2.reshape(1, A).astype(jnp.float32))


# ----------------------------------------------------------------------------
# Conv2d via NHWC im2col (bf16, transpose-free) + Pallas matmul
# ----------------------------------------------------------------------------
def _im2col_nhwc(x, kh, kw, stride, pad):
    N, H, W, C = x.shape
    if pad:
        x = jnp.pad(x, ((0, 0), (pad, pad), (pad, pad), (0, 0)))
    Ho = (H + 2 * pad - kh) // stride + 1
    Wo = (W + 2 * pad - kw) // stride + 1
    cols = []
    for i in range(kh):
        for j in range(kw):
            cols.append(
                x[:, i:i + stride * Ho:stride, j:j + stride * Wo:stride, :])
    p = jnp.stack(cols, axis=3)                 # (N, Ho, Wo, kh*kw, C), no transpose
    return p.reshape(N * Ho * Wo, kh * kw * C), Ho, Wo


def conv2d_act(x_nhwc, w_mat, b, kh, kw, stride, pad):
    # TODO(synk): conv1's 3x3 im2col could be done in-kernel via shifted VMEM
    # reads (halo rows) to avoid the 9x patch materialization; kept as bf16 JAX
    # glue here since it is already transpose-free.
    N = x_nhwc.shape[0]
    Cout = w_mat.shape[1]
    patches, Ho, Wo = _im2col_nhwc(x_nhwc, kh, kw, stride, pad)
    y = matmul_bias_act(patches, w_mat, b, relu=True, out_dtype=jnp.bfloat16)
    return y.reshape(N, Ho, Wo, Cout)           # NHWC; reshape is layout-free


# ----------------------------------------------------------------------------
# CQNet parameters + forward
# ----------------------------------------------------------------------------
def init_params(key, input_dim, action_dim):
    def dense(k, shape, fan_in):
        bound = 1.0 / jnp.sqrt(fan_in)
        return jax.random.uniform(k, shape, jnp.float32, -bound, bound)

    ks = jax.random.split(key, 10)
    return {
        "conv1_w": dense(ks[0], (16, input_dim, 3, 3), input_dim * 9),
        "conv1_b": dense(ks[1], (16,), input_dim * 9),
        "conv2_w": dense(ks[2], (16, 16, 8, 8), 16 * 64),
        "conv2_b": dense(ks[3], (16,), 16 * 64),
        "conv3_w": dense(ks[4], (32, 16, 4, 4), 16 * 16),
        "conv3_b": dense(ks[5], (32,), 16 * 16),
        "fc1_w": dense(ks[6], (256, 32 * 9 * 9), 32 * 9 * 9),
        "fc1_b": dense(ks[7], (256,), 32 * 9 * 9),
        "fc2_w": dense(ks[8], (action_dim, 256), 256),
        "fc2_b": dense(ks[9], (action_dim,), 256),
    }


def prepare_params(params):
    """One-time layout/dtype prep so the forward does zero weight reshuffling."""
    def conv_w(w):              # (Cout,Cin,kh,kw) -> (kh*kw*Cin, Cout) bf16
        cout, cin, kh, kw = w.shape
        return (w.transpose(2, 3, 1, 0)
                 .reshape(kh * kw * cin, cout).astype(jnp.bfloat16))

    # fc1 consumes PyTorch's NCHW flatten (C,H,W); our activations are NHWC,
    # so permute fc1's columns once: (256,32,9,9) -> (256,9,9,32) -> (2592,256)
    fc1_w = params["fc1_w"].reshape(256, 32, 9, 9).transpose(0, 2, 3, 1)
    fc1_w = fc1_w.reshape(256, 32 * 9 * 9).T.astype(jnp.bfloat16)
    return {
        "conv1_w": conv_w(params["conv1_w"]), "conv1_b": params["conv1_b"],
        "conv2_w": conv_w(params["conv2_w"]), "conv2_b": params["conv2_b"],
        "conv3_w": conv_w(params["conv3_w"]), "conv3_b": params["conv3_b"],
        "fc1_w": fc1_w, "fc1_b": params["fc1_b"],
        "fc2_w": params["fc2_w"].T.astype(jnp.bfloat16), "fc2_b": params["fc2_b"],
    }


def cqnet_forward(prep, x):
    # x: (N, input_dim, 84, 84) f32 NCHW (PyTorch convention at the boundary).
    out = jnp.transpose(x.astype(jnp.bfloat16), (0, 2, 3, 1))    # NHWC, once
    out = conv2d_act(out, prep["conv1_w"], prep["conv1_b"], 3, 3, stride=1, pad=1)
    out = conv2d_act(out, prep["conv2_w"], prep["conv2_b"], 8, 8, stride=4, pad=0)
    out = conv2d_act(out, prep["conv3_w"], prep["conv3_b"], 4, 4, stride=2, pad=0)
    out = out.reshape(out.shape[0], -1)          # (N, 9*9*32), HWC order (free)
    return fc_head(out, prep["fc1_w"], prep["fc1_b"],
                   prep["fc2_w"], prep["fc2_b"])


# ----------------------------------------------------------------------------
# Pure-JAX f32 reference (PyTorch semantics) for a correctness check
# ----------------------------------------------------------------------------
def reference_forward(params, x):
    def conv(h, w, b, stride, pad):
        y = jax.lax.conv_general_dilated(
            h, w, window_strides=(stride, stride),
            padding=[(pad, pad), (pad, pad)],
            dimension_numbers=("NCHW", "OIHW", "NCHW"))
        return jax.nn.relu(y + b[None, :, None, None])

    out = conv(x, params["conv1_w"], params["conv1_b"], 1, 1)
    out = conv(out, params["conv2_w"], params["conv2_b"], 4, 0)
    out = conv(out, params["conv3_w"], params["conv3_b"], 2, 0)
    out = out.reshape(out.shape[0], -1)
    out = jax.nn.relu(out @ params["fc1_w"].T + params["fc1_b"])
    return out @ params["fc2_w"].T + params["fc2_b"]


if __name__ == "__main__":
    key = jax.random.PRNGKey(0)
    input_dim, action_dim = 4, 6          # 84x84 spatial is implied by fc1 = 32*9*9
    params = init_params(key, input_dim, action_dim)
    prep = prepare_params(params)

    x = jax.random.normal(jax.random.fold_in(key, 99),
                          (2, input_dim, 84, 84), dtype=jnp.float32)

    fwd = jax.jit(cqnet_forward)
    out = fwd(prep, x)
    jax.block_until_ready(out)

    assert out.shape == (2, action_dim), out.shape
    assert out.dtype == jnp.float32, out.dtype

    # Loose tolerance: bf16 matmul inputs / bf16 inter-layer activations,
    # f32 accumulation everywhere.
    ref = reference_forward(params, x)
    err = jnp.abs(out - ref)
    assert bool(jnp.all(err <= 5e-2 + 5e-2 * jnp.abs(ref))), (
        "max abs err", float(jnp.max(err)))
    print("KERNEL_OK")
</pallas_src>

<mosaic_0001>
module attributes {stable_mosaic.version = 11 : i64} {
  func.func @_mm_bias_act_kernel(%arg0: i32, %arg1: memref<2048x36xbf16, #tpu.memory_space<vmem>>, %arg2: memref<36x16xbf16, #tpu.memory_space<vmem>>, %arg3: memref<1x16xf32, #tpu.memory_space<vmem>>, %arg4: memref<2048x16xbf16, #tpu.memory_space<vmem>>) attributes {dimension_semantics = [#tpu.dimension_semantics<parallel>], iteration_bounds = array<i64: 7>, scalar_prefetch = 0 : i64, scratch_operands = 0 : i64, tpu.core_type = #tpu.core_type<tc>, window_params = [{transform_indices = @transform_0, window_bounds = array<i64: 2048, 36>}, {pipeline_mode = #tpu.pipeline_mode<synchronous>, transform_indices = @transform_1, window_bounds = array<i64: 36, 16>}, {pipeline_mode = #tpu.pipeline_mode<synchronous>, transform_indices = @transform_2, window_bounds = array<i64: 1, 16>}, {transform_indices = @transform_3, window_bounds = array<i64: 2048, 16>}]} {
    %c0 = arith.constant 0 : index
    %c0_0 = arith.constant 0 : index
    %0 = vector.load %arg1[%c0, %c0_0] : memref<2048x36xbf16, #tpu.memory_space<vmem>>, vector<2048x36xbf16>
    %c0_1 = arith.constant 0 : index
    %c0_2 = arith.constant 0 : index
    %1 = vector.load %arg2[%c0_1, %c0_2] : memref<36x16xbf16, #tpu.memory_space<vmem>>, vector<36x16xbf16>
    %cst = arith.constant dense<0.000000e+00> : vector<2048x16xf32>
    %2 = tpu.matmul %0, %1, %cst {dimension_numbers = #tpu.dot_dimension_numbers<[1], [0], [0], [1], [0, 0, 1, 1], [], []>} : vector<2048x36xbf16>, vector<36x16xbf16>, vector<2048x16xf32> -> vector<2048x16xf32>
    %c0_3 = arith.constant 0 : index
    %c0_4 = arith.constant 0 : index
    %3 = vector.load %arg3[%c0_3, %c0_4] : memref<1x16xf32, #tpu.memory_space<vmem>>, vector<1x16xf32>
    %4 = vector.broadcast %3 : vector<1x16xf32> to vector<2048x16xf32>
    %5 = arith.addf %2, %4 : vector<2048x16xf32>
    %cst_5 = arith.constant 0.000000e+00 : f32
    %6 = vector.broadcast %cst_5 : f32 to vector<2048x16xf32>
    %7 = arith.maximumf %5, %6 : vector<2048x16xf32>
    %8 = arith.truncf %7 : vector<2048x16xf32> to vector<2048x16xbf16>
    %c0_6 = arith.constant 0 : index
    %c0_7 = arith.constant 0 : index
    %9 = vector.load %arg4[%c0_6, %c0_7] : memref<2048x16xbf16, #tpu.memory_space<vmem>>, vector<2048x16xbf16>
    tpu.vector_store %arg4[%c0_6, %c0_7], %8 {strides = array<i32>} : memref<2048x16xbf16, #tpu.memory_space<vmem>>, vector<2048x16xbf16>,
    return
  }
  func.func @transform_0(%arg0: i32) -> (i32, i32) {
    %c0_i32 = arith.constant 0 : i32
    %c0_i32_0 = arith.constant 0 : i32
    return %arg0, %c0_i32 : i32, i32
  }
  func.func @transform_1(%arg0: i32) -> (i32, i32) {
    %c0_i32 = arith.constant 0 : i32
    %c0_i32_0 = arith.constant 0 : i32
    %c0_i32_1 = arith.constant 0 : i32
    return %c0_i32, %c0_i32_0 : i32, i32
  }
  func.func @transform_2(%arg0: i32) -> (i32, i32) {
    %c0_i32 = arith.constant 0 : i32
    %c0_i32_0 = arith.constant 0 : i32
    %c0_i32_1 = arith.constant 0 : i32
    return %c0_i32, %c0_i32_0 : i32, i32
  }
  func.func @transform_3(%arg0: i32) -> (i32, i32) {
    %c0_i32 = arith.constant 0 : i32
    %c0_i32_0 = arith.constant 0 : i32
    return %arg0, %c0_i32 : i32, i32
  }
}

module attributes {stable_mosaic.version = 11 : i64} {
  func.func @_mm_bias_act_kernel(%arg0: i32, %arg1: memref<400x1024xbf16, #tpu.memory_space<vmem>>, %arg2: memref<1024x16xbf16, #tpu.memory_space<vmem>>, %arg3: memref<1x16xf32, #tpu.memory_space<vmem>>, %arg4: memref<400x16xbf16, #tpu.memory_space<vmem>>) attributes {dimension_semantics = [#tpu.dimension_semantics<parallel>], iteration_bounds = array<i64: 2>, scalar_prefetch = 0 : i64, scratch_operands = 0 : i64, tpu.core_type = #tpu.core_type<tc>, window_params = [{transform_indices = @transform_0, window_bounds = array<i64: 400, 1024>}, {pipeline_mode = #tpu.pipeline_mode<synchronous>, transform_indices = @transform_1, window_bounds = array<i64: 1024, 16>}, {pipeline_mode = #tpu.pipeline_mode<synchronous>, transform_indices = @transform_2, window_bounds = array<i64: 1, 16>}, {transform_indices = @transform_3, window_bounds = array<i64: 400, 16>}]} {
    %c0 = arith.constant 0 : index
    %c0_0 = arith.constant 0 : index
    %0 = vector.load %arg1[%c0, %c0_0] : memref<400x1024xbf16, #tpu.memory_space<vmem>>, vector<400x1024xbf16>
    %c0_1 = arith.constant 0 : index
    %c0_2 = arith.constant 0 : index
    %1 = vector.load %arg2[%c0_1, %c0_2] : memref<1024x16xbf16, #tpu.memory_space<vmem>>, vector<1024x16xbf16>
    %cst = arith.constant dense<0.000000e+00> : vector<400x16xf32>
    %2 = tpu.matmul %0, %1, %cst {dimension_numbers = #tpu.dot_dimension_numbers<[1], [0], [0], [1], [0, 0, 1, 1], [], []>} : vector<400x1024xbf16>, vector<1024x16xbf16>, vector<400x16xf32> -> vector<400x16xf32>
    %c0_3 = arith.constant 0 : index
    %c0_4 = arith.constant 0 : index
    %3 = vector.load %arg3[%c0_3, %c0_4] : memref<1x16xf32, #tpu.memory_space<vmem>>, vector<1x16xf32>
    %4 = vector.broadcast %3 : vector<1x16xf32> to vector<400x16xf32>
    %5 = arith.addf %2, %4 : vector<400x16xf32>
    %cst_5 = arith.constant 0.000000e+00 : f32
    %6 = vector.broadcast %cst_5 : f32 to vector<400x16xf32>
    %7 = arith.maximumf %5, %6 : vector<400x16xf32>
    %8 = arith.truncf %7 : vector<400x16xf32> to vector<400x16xbf16>
    %c0_6 = arith.constant 0 : index
    %c0_7 = arith.constant 0 : index
    %9 = vector.load %arg4[%c0_6, %c0_7] : memref<400x16xbf16, #tpu.memory_space<vmem>>, vector<400x16xbf16>
    tpu.vector_store %arg4[%c0_6, %c0_7], %8 {strides = array<i32>} : memref<400x16xbf16, #tpu.memory_space<vmem>>, vector<400x16xbf16>,
    return
  }
  func.func @transform_0(%arg0: i32) -> (i32, i32) {
    %c0_i32 = arith.constant 0 : i32
    %c0_i32_0 = arith.constant 0 : i32
    return %arg0, %c0_i32 : i32, i32
  }
  func.func @transform_1(%arg0: i32) -> (i32, i32) {
    %c0_i32 = arith.constant 0 : i32
    %c0_i32_0 = arith.constant 0 : i32
    %c0_i32_1 = arith.constant 0 : i32
    return %c0_i32, %c0_i32_0 : i32, i32
  }
  func.func @transform_2(%arg0: i32) -> (i32, i32) {
    %c0_i32 = arith.constant 0 : i32
    %c0_i32_0 = arith.constant 0 : i32
    %c0_i32_1 = arith.constant 0 : i32
    return %c0_i32, %c0_i32_0 : i32, i32
  }
  func.func @transform_3(%arg0: i32) -> (i32, i32) {
    %c0_i32 = arith.constant 0 : i32
    %c0_i32_0 = arith.constant 0 : i32
    return %arg0, %c0_i32 : i32, i32
  }
}

module attributes {stable_mosaic.version = 11 : i64} {
  func.func @_mm_bias_act_kernel(%arg0: i32, %arg1: memref<162x256xbf16, #tpu.memory_space<vmem>>, %arg2: memref<256x32xbf16, #tpu.memory_space<vmem>>, %arg3: memref<1x32xf32, #tpu.memory_space<vmem>>, %arg4: memref<162x32xbf16, #tpu.memory_space<vmem>>) attributes {dimension_semantics = [#tpu.dimension_semantics<parallel>], iteration_bounds = array<i64: 1>, scalar_prefetch = 0 : i64, scratch_operands = 0 : i64, tpu.core_type = #tpu.core_type<tc>, window_params = [{transform_indices = @transform_0, window_bounds = array<i64: 162, 256>}, {pipeline_mode = #tpu.pipeline_mode<synchronous>, transform_indices = @transform_1, window_bounds = array<i64: 256, 32>}, {pipeline_mode = #tpu.pipeline_mode<synchronous>, transform_indices = @transform_2, window_bounds = array<i64: 1, 32>}, {transform_indices = @transform_3, window_bounds = array<i64: 162, 32>}]} {
    %c0 = arith.constant 0 : index
    %c0_0 = arith.constant 0 : index
    %0 = vector.load %arg1[%c0, %c0_0] : memref<162x256xbf16, #tpu.memory_space<vmem>>, vector<162x256xbf16>
    %c0_1 = arith.constant 0 : index
    %c0_2 = arith.constant 0 : index
    %1 = vector.load %arg2[%c0_1, %c0_2] : memref<256x32xbf16, #tpu.memory_space<vmem>>, vector<256x32xbf16>
    %cst = arith.constant dense<0.000000e+00> : vector<162x32xf32>
    %2 = tpu.matmul %0, %1, %cst {dimension_numbers = #tpu.dot_dimension_numbers<[1], [0], [0], [1], [0, 0, 1, 1], [], []>} : vector<162x256xbf16>, vector<256x32xbf16>, vector<162x32xf32> -> vector<162x32xf32>
    %c0_3 = arith.constant 0 : index
    %c0_4 = arith.constant 0 : index
    %3 = vector.load %arg3[%c0_3, %c0_4] : memref<1x32xf32, #tpu.memory_space<vmem>>, vector<1x32xf32>
    %4 = vector.broadcast %3 : vector<1x32xf32> to vector<162x32xf32>
    %5 = arith.addf %2, %4 : vector<162x32xf32>
    %cst_5 = arith.constant 0.000000e+00 : f32
    %6 = vector.broadcast %cst_5 : f32 to vector<162x32xf32>
    %7 = arith.maximumf %5, %6 : vector<162x32xf32>
    %8 = arith.truncf %7 : vector<162x32xf32> to vector<162x32xbf16>
    %c0_6 = arith.constant 0 : index
    %c0_7 = arith.constant 0 : index
    %9 = vector.load %arg4[%c0_6, %c0_7] : memref<162x32xbf16, #tpu.memory_space<vmem>>, vector<162x32xbf16>
    tpu.vector_store %arg4[%c0_6, %c0_7], %8 {strides = array<i32>} : memref<162x32xbf16, #tpu.memory_space<vmem>>, vector<162x32xbf16>,
    return
  }
  func.func @transform_0(%arg0: i32) -> (i32, i32) {
    %c0_i32 = arith.constant 0 : i32
    %c0_i32_0 = arith.constant 0 : i32
    return %arg0, %c0_i32 : i32, i32
  }
  func.func @transform_1(%arg0: i32) -> (i32, i32) {
    %c0_i32 = arith.constant 0 : i32
    %c0_i32_0 = arith.constant 0 : i32
    %c0_i32_1 = arith.constant 0 : i32
    return %c0_i32, %c0_i32_0 : i32, i32
  }
  func.func @transform_2(%arg0: i32) -> (i32, i32) {
    %c0_i32 = arith.constant 0 : i32
    %c0_i32_0 = arith.constant 0 : i32
    %c0_i32_1 = arith.constant 0 : i32
    return %c0_i32, %c0_i32_0 : i32, i32
  }
  func.func @transform_3(%arg0: i32) -> (i32, i32) {
    %c0_i32 = arith.constant 0 : i32
    %c0_i32_0 = arith.constant 0 : i32
    return %arg0, %c0_i32 : i32, i32
  }
}

module attributes {stable_mosaic.version = 11 : i64} {
  func.func @_fc_fused_kernel(%arg0: i32, %arg1: memref<2x2592xbf16, #tpu.memory_space<vmem>>, %arg2: memref<2592x256xbf16, #tpu.memory_space<vmem>>, %arg3: memref<1x256xf32, #tpu.memory_space<vmem>>, %arg4: memref<256x6xbf16, #tpu.memory_space<vmem>>, %arg5: memref<1x6xf32, #tpu.memory_space<vmem>>, %arg6: memref<2x6xf32, #tpu.memory_space<vmem>>) attributes {dimension_semantics = [#tpu.dimension_semantics<arbitrary>], iteration_bounds = array<i64: 1>, scalar_prefetch = 0 : i64, scratch_operands = 0 : i64, tpu.core_type = #tpu.core_type<tc>, window_params = [{pipeline_mode = #tpu.pipeline_mode<synchronous>, transform_indices = @transform_0, window_bounds = array<i64: 2, 2592>}, {pipeline_mode = #tpu.pipeline_mode<synchronous>, transform_indices = @transform_1, window_bounds = array<i64: 2592, 256>}, {pipeline_mode = #tpu.pipeline_mode<synchronous>, transform_indices = @transform_2, window_bounds = array<i64: 1, 256>}, {pipeline_mode = #tpu.pipeline_mode<synchronous>, transform_indices = @transform_3, window_bounds = array<i64: 256, 6>}, {pipeline_mode = #tpu.pipeline_mode<synchronous>, transform_indices = @transform_4, window_bounds = array<i64: 1, 6>}, {pipeline_mode = #tpu.pipeline_mode<synchronous>, transform_indices = @transform_5, window_bounds = array<i64: 2, 6>}]} {
    %c0 = arith.constant 0 : index
    %c0_0 = arith.constant 0 : index
    %0 = vector.load %arg1[%c0, %c0_0] : memref<2x2592xbf16, #tpu.memory_space<vmem>>, vector<2x2592xbf16>
    %c0_1 = arith.constant 0 : index
    %c0_2 = arith.constant 0 : index
    %1 = vector.load %arg2[%c0_1, %c0_2] : memref<2592x256xbf16, #tpu.memory_space<vmem>>, vector<2592x256xbf16>
    %cst = arith.constant dense<0.000000e+00> : vector<2x256xf32>
    %2 = tpu.matmul %0, %1, %cst {dimension_numbers = #tpu.dot_dimension_numbers<[1], [0], [0], [1], [0, 0, 1, 1], [], []>} : vector<2x2592xbf16>, vector<2592x256xbf16>, vector<2x256xf32> -> vector<2x256xf32>
    %c0_3 = arith.constant 0 : index
    %c0_4 = arith.constant 0 : index
    %3 = vector.load %arg3[%c0_3, %c0_4] : memref<1x256xf32, #tpu.memory_space<vmem>>, vector<1x256xf32>
    %4 = vector.broadcast %3 : vector<1x256xf32> to vector<2x256xf32>
    %5 = arith.addf %2, %4 : vector<2x256xf32>
    %cst_5 = arith.constant 0.000000e+00 : f32
    %6 = vector.broadcast %cst_5 : f32 to vector<2x256xf32>
    %7 = arith.maximumf %5, %6 : vector<2x256xf32>
    %8 = arith.truncf %7 : vector<2x256xf32> to vector<2x256xbf16>
    %c0_6 = arith.constant 0 : index
    %c0_7 = arith.constant 0 : index
    %9 = vector.load %arg4[%c0_6, %c0_7] : memref<256x6xbf16, #tpu.memory_space<vmem>>, vector<256x6xbf16>
    %cst_8 = arith.constant dense<0.000000e+00> : vector<2x6xf32>
    %10 = tpu.matmul %8, %9, %cst_8 {dimension_numbers = #tpu.dot_dimension_numbers<[1], [0], [0], [1], [0, 0, 1, 1], [], []>} : vector<2x256xbf16>, vector<256x6xbf16>, vector<2x6xf32> -> vector<2x6xf32>
    %c0_9 = arith.constant 0 : index
    %c0_10 = arith.constant 0 : index
    %11 = vector.load %arg5[%c0_9, %c0_10] : memref<1x6xf32, #tpu.memory_space<vmem>>, vector<1x6xf32>
    %12 = vector.broadcast %11 : vector<1x6xf32> to vector<2x6xf32>
    %13 = arith.addf %10, %12 : vector<2x6xf32>
    %c0_11 = arith.constant 0 : index
    %c0_12 = arith.constant 0 : index
    %14 = vector.load %arg6[%c0_11, %c0_12] : memref<2x6xf32, #tpu.memory_space<vmem>>, vector<2x6xf32>
    tpu.vector_store %arg6[%c0_11, %c0_12], %13 {strides = array<i32>} : memref<2x6xf32, #tpu.memory_space<vmem>>, vector<2x6xf32>,
    return
  }
  func.func @transform_0(%arg0: i32) -> (i32, i32) {
    %c0_i32 = arith.constant 0 : i32
    %c0_i32_0 = arith.constant 0 : i32
    %c0_i32_1 = arith.constant 0 : i32
    return %c0_i32, %c0_i32_0 : i32, i32
  }
  func.func @transform_1(%arg0: i32) -> (i32, i32) {
    %c0_i32 = arith.constant 0 : i32
    %c0_i32_0 = arith.constant 0 : i32
    %c0_i32_1 = arith.constant 0 : i32
    return %c0_i32, %c0_i32_0 : i32, i32
  }
  func.func @transform_2(%arg0: i32) -> (i32, i32) {
    %c0_i32 = arith.constant 0 : i32
    %c0_i32_0 = arith.constant 0 : i32
    %c0_i32_1 = arith.constant 0 : i32
    return %c0_i32, %c0_i32_0 : i32, i32
  }
  func.func @transform_3(%arg0: i32) -> (i32, i32) {
    %c0_i32 = arith.constant 0 : i32
    %c0_i32_0 = arith.constant 0 : i32
    %c0_i32_1 = arith.constant 0 : i32
    return %c0_i32, %c0_i32_0 : i32, i32
  }
  func.func @transform_4(%arg0: i32) -> (i32, i32) {
    %c0_i32 = arith.constant 0 : i32
    %c0_i32_0 = arith.constant 0 : i32
    %c0_i32_1 = arith.constant 0 : i32
    return %c0_i32, %c0_i32_0 : i32, i32
  }
  func.func @transform_5(%arg0: i32) -> (i32, i32) {
    %c0_i32 = arith.constant 0 : i32
    %c0_i32_0 = arith.constant 0 : i32
    %c0_i32_1 = arith.constant 0 : i32
    return %c0_i32, %c0_i32_0 : i32, i32
  }
}

</mosaic_0001>

<llo_original>
// kernel: cqnet_forward.4
$region0: #{cqnet_forward.4}
  #allocation0 [shape = 'u32[]', space=smem, size = 0x4, offset = 0x4, fixed_abs, tag = 'smem constant byte address 0x4 - core index']
  #allocation1 [shape = 'u32[72,128]{1,0:T(1,128)}', space=vmem, size = 0x9000, scoped, tag = 'internal scratch']
  %s0 = inlined_call_operand.vmem [shape: bf16[14112,36], index: 0, kind: input, shape index: {}]
  %s1 = inlined_call_operand.vmem [shape: bf16[36,16], index: 1, kind: input, shape index: {}]
  %s2 = inlined_call_operand.vmem [shape: f32[1,16], index: 2, kind: input, shape index: {}]
  %s3 = inlined_call_operand.vmem [shape: bf16[14112,16], index: 3, kind: output, shape index: {}]
  %s4 = sld [smem:[#allocation0]]
  $region89: #{cqnet_forward.4} parent=0
    _
  %s6 = ssub.s32 1, %s4
  %s7 = scalar_select 0, %s6, %s4
  $region1: #{cqnet_forward.4} parent=0
    #allocation2 [shape = 'u8[1048576]{0}', space=vmem, size = 0x100000, scoped, tag = 'output window, operand 0']
    loop: start=0, step=1, limit=9
    $region2: #{cqnet_forward.4} parent=1 // loop_pre_header
      _
    $region3: #{cqnet_forward.4} parent=1 // loop_header
      %s9 = sphi 0, %s13
      %p10 = scmp.ge.s32.totalorder %s9, 9
      %s19 = sphi 0, %s21
      %s22 = sphi 0, %s19
      %s23 = sphi 0, %s22
      %s39 = sphi 0, %s23
      %s43 = sphi 0, %s43
      %s45 = sphi 0, %s43
      %s46 = sphi 0, %s45
      %s60 = sphi 0, %s46
      %s64 = sphi 0, %s64
      %s66 = sphi 0, %s64
      %s67 = sphi 0, %s66
      %s81 = sphi 0, %s67
      %s87 = sphi 0, %s89
      %s90 = sphi 0, %s87
      %s91 = sphi 0, %s90
      %s107 = sphi 0, %s91
    $region4: #{cqnet_forward.4} parent=1 // loop_header_branch
      %12 = sbr.rel (%p10) target = $region8
    $region5: #{cqnet_forward.4} parent=1 // loop_body
      %s14 = ssub.s32 %s9, 1
      %s15 = ssub.s32 %s9, 2
      %s16 = sadd.s32 %s9, 1
      %s17 = ssub.s32 %s9, %s16
      %p18 = scmp.eq.s32.totalorder %s17, 0
      %s20 = sadd.s32 %s19, 1
      %s21 = scalar_select %p18, %s19, %s20
      %p24 = pneg %p18
      %p25 = scmp.eq.s32.totalorder %s9, 6
      %p26 = por %p24, %p25
      %p27 = scmp.ne.s32.totalorder %s19, %s22
      %p28 = scmp.eq.s32.totalorder %s9, 0
      %p29 = por %p27, %p28
      %p30 = scmp.ne.s32.totalorder %s19, %s22
      %p31 = scmp.eq.s32.totalorder %s14, 6
      %p32 = por %p30, %p31
      %p33 = scmp.ne.s32.totalorder %s22, %s23
      %p34 = scmp.eq.s32.totalorder %s14, 0
      %p35 = por %p33, %p34
      %p36 = scmp.ne.s32.totalorder %s22, %s23
      %p37 = scmp.eq.s32.totalorder %s15, 6
      %p38 = por %p36, %p37
      %p40 = scmp.ne.s32.totalorder %s23, %s39
      %p41 = scmp.eq.s32.totalorder %s15, 0
      %p42 = por %p40, %p41
      %s44 = sadd.s32 %s43, 1
      %p47 = scmp.eq.s32.totalorder %s9, 6
      %p48 = scmp.ne.s32.totalorder %s43, %s45
      %p49 = scmp.eq.s32.totalorder %s9, 0
      %p50 = por %p48, %p49
      %p51 = scmp.ne.s32.totalorder %s43, %s45
      %p52 = scmp.eq.s32.totalorder %s14, 6
      %p53 = por %p51, %p52
      %p54 = scmp.ne.s32.totalorder %s45, %s46
      %p55 = scmp.eq.s32.totalorder %s14, 0
      %p56 = por %p54, %p55
      %p57 = scmp.ne.s32.totalorder %s45, %s46
      %p58 = scmp.eq.s32.totalorder %s15, 6
      %p59 = por %p57, %p58
      %p61 = scmp.ne.s32.totalorder %s46, %s60
      %p62 = scmp.eq.s32.totalorder %s15, 0
      %p63 = por %p61, %p62
      %s65 = sadd.s32 %s64, 1
      %p68 = scmp.eq.s32.totalorder %s9, 6
      %p69 = scmp.ne.s32.totalorder %s64, %s66
      %p70 = scmp.eq.s32.totalorder %s9, 0
      %p71 = por %p69, %p70
      %p72 = scmp.ne.s32.totalorder %s64, %s66
      %p73 = scmp.eq.s32.totalorder %s14, 6
      %p74 = por %p72, %p73
      %p75 = scmp.ne.s32.totalorder %s66, %s67
      %p76 = scmp.eq.s32.totalorder %s14, 0
      %p77 = por %p75, %p76
      %p78 = scmp.ne.s32.totalorder %s66, %s67
      %p79 = scmp.eq.s32.totalorder %s15, 6
      %p80 = por %p78, %p79
      %p82 = scmp.ne.s32.totalorder %s67, %s81
      %p83 = scmp.eq.s32.totalorder %s15, 0
      %p84 = por %p82, %p83
      %s85 = ssub.s32 %s9, %s16
      %p86 = scmp.eq.s32.totalorder %s85, 0
      %s88 = sadd.s32 %s87, 1
      %s89 = scalar_select %p86, %s87, %s88
      %p92 = pneg %p86
      %p93 = scmp.eq.s32.totalorder %s9, 6
      %p94 = por %p92, %p93
      %p95 = scmp.ne.s32.totalorder %s87, %s90
      %p96 = scmp.eq.s32.totalorder %s9, 0
      %p97 = por %p95, %p96
      %p98 = scmp.ne.s32.totalorder %s87, %s90
      %p99 = scmp.eq.s32.totalorder %s14, 6
      %p100 = por %p98, %p99
      %p101 = scmp.ne.s32.totalorder %s90, %s91
      %p102 = scmp.eq.s32.totalorder %s14, 0
      %p103 = por %p101, %p102
      %p104 = scmp.ne.s32.totalorder %s90, %s91
      %p105 = scmp.eq.s32.totalorder %s15, 6
      %p106 = por %p104, %p105
      %p108 = scmp.ne.s32.totalorder %s91, %s107
      %p109 = scmp.eq.s32.totalorder %s15, 0
      %p110 = por %p108, %p109
      %p111 = scmp.le.s32.totalorder 1, %s9
      %p112 = scmp.lt.s32.totalorder %s9, 8
      %p113 = pnand %p111, %p112
      %p114 = pneg %p113
      // Predicated region
      $region9: #{cqnet_forward.4} parent=5 // pred_check
        _
      $region10: #{cqnet_forward.4} parent=5 // pred_check_branch
        %116 = sbr.rel (%p113) target = $region12
      $region11: #{cqnet_forward.4} parent=5 // pred_region
        %s117 = ssub.s32 %s9, 1
        // Predicated region
        $region13: #{cqnet_forward.4} parent=11 // pred_check
          %p118 = pneg %p56
        $region14: #{cqnet_forward.4} parent=11 // pred_check_branch
          %120 = sbr.rel (%p118) target = $region16
        $region15: #{cqnet_forward.4} parent=11 // pred_region
          _
        $region16: #{cqnet_forward.4} parent=11 // pred_fallthru
          _
        // Predicated region
        $region17: #{cqnet_forward.4} parent=11 // pred_check
          %p121 = pneg %p77
        $region18: #{cqnet_forward.4} parent=11 // pred_check_branch
          %123 = sbr.rel (%p121) target = $region20
        $region19: #{cqnet_forward.4} parent=11 // pred_region
          _
        $region20: #{cqnet_forward.4} parent=11 // pred_fallthru
          _
      $region12: #{cqnet_forward.4} parent=5 // pred_fallthru
        _
      %p124 = scmp.lt.s32.totalorder %s9, 7
      // Predicated region
      $region21: #{cqnet_forward.4} parent=5 // pred_check
        %p125 = pneg %p124
      $region22: #{cqnet_forward.4} parent=5 // pred_check_branch
        %127 = sbr.rel (%p125) target = $region24
      $region23: #{cqnet_forward.4} parent=5 // pred_region
        // Predicated region
        $region25: #{cqnet_forward.4} parent=23 // pred_check
          %p128 = pneg %p29
        $region26: #{cqnet_forward.4} parent=23 // pred_check_branch
          %130 = sbr.rel (%p128) target = $region28
        $region27: #{cqnet_forward.4} parent=23 // pred_region
          %s131 = smul.u32 256, %s9
          %s132 = ssub.s32 1764, %s131
          %p133 = scmp.lt.s32.totalorder %s132, 256
          %s134 = scalar_select %p133, %s132, 256
          %s135 = smul.u32 4, %s134
          %p136 = scmp.lt.s32.totalorder %s131, 1763
          %s137 = scalar_select %p136, %s131, 1763
          %s138 = smul.addr %s137, 4
          %s139 = scalar_lea.vmem %s0, %s138
          %s140 = smul.u32 256, %s9
          %s141 = ssub.s32 1764, %s140
          %p142 = scmp.lt.s32.totalorder %s141, 256
          %s143 = scalar_select %p142, %s141, 256
          %s144 = smul.u32 4, %s143
        $region28: #{cqnet_forward.4} parent=23 // pred_fallthru
          _
      $region24: #{cqnet_forward.4} parent=5 // pred_fallthru
        _
      %p145 = scmp.le.s32.totalorder 1, %s9
      %p146 = scmp.lt.s32.totalorder %s9, 8
      %p147 = pnand %p145, %p146
      %p148 = pneg %p147
      // Predicated region
      $region29: #{cqnet_forward.4} parent=5 // pred_check
        _
      $region30: #{cqnet_forward.4} parent=5 // pred_check_branch
        %150 = sbr.rel (%p147) target = $region32
      $region31: #{cqnet_forward.4} parent=5 // pred_region
        %s151 = ssub.s32 %s9, 1
        %s152 = smul.u32 256, %s14
        %s153 = ssub.s32 1764, %s152
        %p154 = scmp.lt.s32.totalorder %s153, 256
        %s155 = scalar_select %p154, %s153, 256
        %s156 = smul.u32 4, %s155
        %p157 = scmp.lt.s32.totalorder %s152, 1763
        %s158 = scalar_select %p157, %s152, 1763
        %s159 = smul.addr %s158, 4
        %s160 = scalar_lea.vmem %s0, %s159
        %p161 = pneg %p35
        %p162 = pneg %p32
        %p163 = pneg %p56
        %p164 = pneg %p53
        %p165 = pneg %p77
        %p166 = pneg %p74
        %p167 = pneg %p103
        %p168 = pneg %p100
        %s169 = sand.u32 %s90, 1
        %s170 = sand.u32 %s90, 1
        %s171 = smul.addr %s170, 1024
        %s172 = scalar_lea.vmem [#allocation2], %s171
        %s173 = smul.u32 256, %s14
        %s174 = ssub.s32 1764, %s173
        %p175 = scmp.lt.s32.totalorder %s174, 256
        %s176 = scalar_select %p175, %s174, 256
        %s177 = smul.u32 4, %s176
        %p178 = scmp.lt.s32.totalorder %s173, 1763
        %s179 = scalar_select %p178, %s173, 1763
        %s180 = smul.addr %s179, 4
        %s181 = scalar_lea.vmem %s0, %s180
        %s182 = smul.u32 256, %s14
        %s183 = ssub.s32 1764, %s182
        %p184 = scmp.lt.s32.totalorder %s183, 256
        %s185 = scalar_select %p184, %s183, 256
        %s186 = smul.u32 4, %s185
        %s187 = smul.u32 256, %s14
        %s188 = ssub.s32 1764, %s187
        %p189 = scmp.lt.s32.totalorder %s188, 256
        %s190 = scalar_select %p189, %s188, 256
        %s191 = smul.u32 4, %s190
        %v193 = vld [vmem:[%s181] sm:$0xf]
        %v194 = vld [vmem:[%s181 + $0x4] sm:$0xf]
        %v195 = vld [vmem:[%s181 + $0x8] sm:$0xf]
        %v196 = vld [vmem:[%s181 + $0xc] sm:$0xf]
        %v197 = vld [vmem:[%s181 + $0x10] sm:$0xf]
        %v198 = vld [vmem:[%s181 + $0x14] sm:$0xf]
        %v199 = vld [vmem:[%s181 + $0x18] sm:$0xf]
        %v200 = vld [vmem:[%s181 + $0x1c] sm:$0xf]
        %v201 = vld [vmem:[%s181 + $0x20] sm:$0xf]
        %v202 = vld [vmem:[%s181 + $0x24] sm:$0xf]
        %v203 = vld [vmem:[%s181 + $0x28] sm:$0xf]
        %v204 = vld [vmem:[%s181 + $0x2c] sm:$0xf]
        %v205 = vld [vmem:[%s181 + $0x30] sm:$0xf]
        %v206 = vld [vmem:[%s181 + $0x34] sm:$0xf]
        %v207 = vld [vmem:[%s181 + $0x38] sm:$0xf]
        %v208 = vld [vmem:[%s181 + $0x3c] sm:$0xf]
        %v209 = vld [vmem:[%s181 + $0x40] sm:$0xf]
        %v210 = vld [vmem:[%s181 + $0x44] sm:$0xf]
        %v211 = vld [vmem:[%s181 + $0x48] sm:$0xf]
        %v212 = vld [vmem:[%s181 + $0x4c] sm:$0xf]
        %v213 = vld [vmem:[%s181 + $0x50] sm:$0xf]
        %v214 = vld [vmem:[%s181 + $0x54] sm:$0xf]
        %v215 = vld [vmem:[%s181 + $0x58] sm:$0xf]
        %v216 = vld [vmem:[%s181 + $0x5c] sm:$0xf]
        %v217 = vld [vmem:[%s181 + $0x60] sm:$0xf]
        %v218 = vld [vmem:[%s181 + $0x64] sm:$0xf]
        %v219 = vld [vmem:[%s181 + $0x68] sm:$0xf]
        %v220 = vld [vmem:[%s181 + $0x6c] sm:$0xf]
        %v221 = vld [vmem:[%s181 + $0x70] sm:$0xf]
        %v222 = vld [vmem:[%s181 + $0x74] sm:$0xf]
        %v223 = vld [vmem:[%s181 + $0x78] sm:$0xf]
        %v224 = vld [vmem:[%s181 + $0x7c] sm:$0xf]
        %v225 = vld [vmem:[%s181 + $0x80] sm:$0xf]
        %v226 = vld [vmem:[%s181 + $0x84] sm:$0xf]
        %v227 = vld [vmem:[%s181 + $0x88] sm:$0xf]
        %v228 = vld [vmem:[%s181 + $0x8c] sm:$0xf]
        %v229 = vld [vmem:[%s181 + $0x90] sm:$0xf]
        %v230 = vld [vmem:[%s181 + $0x94] sm:$0xf]
        %v231 = vld [vmem:[%s181 + $0x98] sm:$0xf]
        %v232 = vld [vmem:[%s181 + $0x9c] sm:$0xf]
        %v233 = vld [vmem:[%s181 + $0xa0] sm:$0xf]
        %v234 = vld [vmem:[%s181 + $0xa4] sm:$0xf]
        %v235 = vld [vmem:[%s181 + $0xa8] sm:$0xf]
        %v236 = vld [vmem:[%s181 + $0xac] sm:$0xf]
        %v237 = vld [vmem:[%s181 + $0xb0] sm:$0xf]
        %v238 = vld [vmem:[%s181 + $0xb4] sm:$0xf]
        %v239 = vld [vmem:[%s181 + $0xb8] sm:$0xf]
        %v240 = vld [vmem:[%s181 + $0xbc] sm:$0xf]
        %v241 = vld [vmem:[%s181 + $0xc0] sm:$0xf]
        %v242 = vld [vmem:[%s181 + $0xc4] sm:$0xf]
        %v243 = vld [vmem:[%s181 + $0xc8] sm:$0xf]
        %v244 = vld [vmem:[%s181 + $0xcc] sm:$0xf]
        %v245 = vld [vmem:[%s181 + $0xd0] sm:$0xf]
        %v246 = vld [vmem:[%s181 + $0xd4] sm:$0xf]
        %v247 = vld [vmem:[%s181 + $0xd8] sm:$0xf]
        %v248 = vld [vmem:[%s181 + $0xdc] sm:$0xf]
        %v249 = vld [vmem:[%s181 + $0xe0] sm:$0xf]
        %v250 = vld [vmem:[%s181 + $0xe4] sm:$0xf]
        %v251 = vld [vmem:[%s181 + $0xe8] sm:$0xf]
        %v252 = vld [vmem:[%s181 + $0xec] sm:$0xf]
        %v253 = vld [vmem:[%s181 + $0xf0] sm:$0xf]
        %v254 = vld [vmem:[%s181 + $0xf4] sm:$0xf]
        %v255 = vld [vmem:[%s181 + $0xf8] sm:$0xf]
        %v256 = vld [vmem:[%s181 + $0xfc] sm:$0xf]
        %v257 = vld [vmem:[%s181 + $0x100] sm:$0xf]
        %v258 = vld [vmem:[%s181 + $0x104] sm:$0xf]
        %v259 = vld [vmem:[%s181 + $0x108] sm:$0xf]
        %v260 = vld [vmem:[%s181 + $0x10c] sm:$0xf]
        %v261 = vld [vmem:[%s181 + $0x110] sm:$0xf]
        %v262 = vld [vmem:[%s181 + $0x114] sm:$0xf]
        %v263 = vld [vmem:[%s181 + $0x118] sm:$0xf]
        %v264 = vld [vmem:[%s181 + $0x11c] sm:$0xf]
        %v265 = vld [vmem:[%s181 + $0x120] sm:$0xf]
        %v266 = vld [vmem:[%s181 + $0x124] sm:$0xf]
        %v267 = vld [vmem:[%s181 + $0x128] sm:$0xf]
        %v268 = vld [vmem:[%s181 + $0x12c] sm:$0xf]
        %v269 = vld [vmem:[%s181 + $0x130] sm:$0xf]
        %v270 = vld [vmem:[%s181 + $0x134] sm:$0xf]
        %v271 = vld [vmem:[%s181 + $0x138] sm:$0xf]
        %v272 = vld [vmem:[%s181 + $0x13c] sm:$0xf]
        %v273 = vld [vmem:[%s181 + $0x140] sm:$0xf]
        %v274 = vld [vmem:[%s181 + $0x144] sm:$0xf]
        %v275 = vld [vmem:[%s181 + $0x148] sm:$0xf]
        %v276 = vld [vmem:[%s181 + $0x14c] sm:$0xf]
        %v277 = vld [vmem:[%s181 + $0x150] sm:$0xf]
        %v278 = vld [vmem:[%s181 + $0x154] sm:$0xf]
        %v279 = vld [vmem:[%s181 + $0x158] sm:$0xf]
        %v280 = vld [vmem:[%s181 + $0x15c] sm:$0xf]
        %v281 = vld [vmem:[%s181 + $0x160] sm:$0xf]
        %v282 = vld [vmem:[%s181 + $0x164] sm:$0xf]
        %v283 = vld [vmem:[%s181 + $0x168] sm:$0xf]
        %v284 = vld [vmem:[%s181 + $0x16c] sm:$0xf]
        %v285 = vld [vmem:[%s181 + $0x170] sm:$0xf]
        %v286 = vld [vmem:[%s181 + $0x174] sm:$0xf]
        %v287 = vld [vmem:[%s181 + $0x178] sm:$0xf]
        %v288 = vld [vmem:[%s181 + $0x17c] sm:$0xf]
        %v289 = vld [vmem:[%s181 + $0x180] sm:$0xf]
        %v290 = vld [vmem:[%s181 + $0x184] sm:$0xf]
        %v291 = vld [vmem:[%s181 + $0x188] sm:$0xf]
        %v292 = vld [vmem:[%s181 + $0x18c] sm:$0xf]
        %v293 = vld [vmem:[%s181 + $0x190] sm:$0xf]
        %v294 = vld [vmem:[%s181 + $0x194] sm:$0xf]
        %v295 = vld [vmem:[%s181 + $0x198] sm:$0xf]
        %v296 = vld [vmem:[%s181 + $0x19c] sm:$0xf]
        %v297 = vld [vmem:[%s181 + $0x1a0] sm:$0xf]
        %v298 = vld [vmem:[%s181 + $0x1a4] sm:$0xf]
        %v299 = vld [vmem:[%s181 + $0x1a8] sm:$0xf]
        %v300 = vld [vmem:[%s181 + $0x1ac] sm:$0xf]
        %v301 = vld [vmem:[%s181 + $0x1b0] sm:$0xf]
        %v302 = vld [vmem:[%s181 + $0x1b4] sm:$0xf]
        %v303 = vld [vmem:[%s181 + $0x1b8] sm:$0xf]
        %v304 = vld [vmem:[%s181 + $0x1bc] sm:$0xf]
        %v305 = vld [vmem:[%s181 + $0x1c0] sm:$0xf]
        %v306 = vld [vmem:[%s181 + $0x1c4] sm:$0xf]
        %v307 = vld [vmem:[%s181 + $0x1c8] sm:$0xf]
        %v308 = vld [vmem:[%s181 + $0x1cc] sm:$0xf]
        %v309 = vld [vmem:[%s181 + $0x1d0] sm:$0xf]
        %v310 = vld [vmem:[%s181 + $0x1d4] sm:$0xf]
        %v311 = vld [vmem:[%s181 + $0x1d8] sm:$0xf]
        %v312 = vld [vmem:[%s181 + $0x1dc] sm:$0xf]
        %v313 = vld [vmem:[%s181 + $0x1e0] sm:$0xf]
        %v314 = vld [vmem:[%s181 + $0x1e4] sm:$0xf]
        %v315 = vld [vmem:[%s181 + $0x1e8] sm:$0xf]
        %v316 = vld [vmem:[%s181 + $0x1ec] sm:$0xf]
        %v317 = vld [vmem:[%s181 + $0x1f0] sm:$0xf]
        %v318 = vld [vmem:[%s181 + $0x1f4] sm:$0xf]
        %v319 = vld [vmem:[%s181 + $0x1f8] sm:$0xf]
        %v320 = vld [vmem:[%s181 + $0x1fc] sm:$0xf]
        %v321 = vld [vmem:[%s181 + $0x200] sm:$0xf]
        %v322 = vld [vmem:[%s181 + $0x204] sm:$0xf]
        %v323 = vld [vmem:[%s181 + $0x208] sm:$0xf]
        %v324 = vld [vmem:[%s181 + $0x20c] sm:$0xf]
        %v325 = vld [vmem:[%s181 + $0x210] sm:$0xf]
        %v326 = vld [vmem:[%s181 + $0x214] sm:$0xf]
        %v327 = vld [vmem:[%s181 + $0x218] sm:$0xf]
        %v328 = vld [vmem:[%s181 + $0x21c] sm:$0xf]
        %v329 = vld [vmem:[%s181 + $0x220] sm:$0xf]
        %v330 = vld [vmem:[%s181 + $0x224] sm:$0xf]
        %v331 = vld [vmem:[%s181 + $0x228] sm:$0xf]
        %v332 = vld [vmem:[%s181 + $0x22c] sm:$0xf]
        %v333 = vld [vmem:[%s181 + $0x230] sm:$0xf]
        %v334 = vld [vmem:[%s181 + $0x234] sm:$0xf]
        %v335 = vld [vmem:[%s181 + $0x238] sm:$0xf]
        %v336 = vld [vmem:[%s181 + $0x23c] sm:$0xf]
        %v337 = vld [vmem:[%s181 + $0x240] sm:$0xf]
        %v338 = vld [vmem:[%s181 + $0x244] sm:$0xf]
        %v339 = vld [vmem:[%s181 + $0x248] sm:$0xf]
        %v340 = vld [vmem:[%s181 + $0x24c] sm:$0xf]
        %v341 = vld [vmem:[%s181 + $0x250] sm:$0xf]
        %v342 = vld [vmem:[%s181 + $0x254] sm:$0xf]
        %v343 = vld [vmem:[%s181 + $0x258] sm:$0xf]
        %v344 = vld [vmem:[%s181 + $0x25c] sm:$0xf]
        %v345 = vld [vmem:[%s181 + $0x260] sm:$0xf]
        %v346 = vld [vmem:[%s181 + $0x264] sm:$0xf]
        %v347 = vld [vmem:[%s181 + $0x268] sm:$0xf]
        %v348 = vld [vmem:[%s181 + $0x26c] sm:$0xf]
        %v349 = vld [vmem:[%s181 + $0x270] sm:$0xf]
        %v350 = vld [vmem:[%s181 + $0x274] sm:$0xf]
        %v351 = vld [vmem:[%s181 + $0x278] sm:$0xf]
        %v352 = vld [vmem:[%s181 + $0x27c] sm:$0xf]
        %v353 = vld [vmem:[%s181 + $0x280] sm:$0xf]
        %v354 = vld [vmem:[%s181 + $0x284] sm:$0xf]
        %v355 = vld [vmem:[%s181 + $0x288] sm:$0xf]
        %v356 = vld [vmem:[%s181 + $0x28c] sm:$0xf]
        %v357 = vld [vmem:[%s181 + $0x290] sm:$0xf]
        %v358 = vld [vmem:[%s181 + $0x294] sm:$0xf]
        %v359 = vld [vmem:[%s181 + $0x298] sm:$0xf]
        %v360 = vld [vmem:[%s181 + $0x29c] sm:$0xf]
        %v361 = vld [vmem:[%s181 + $0x2a0] sm:$0xf]
        %v362 = vld [vmem:[%s181 + $0x2a4] sm:$0xf]
        %v363 = vld [vmem:[%s181 + $0x2a8] sm:$0xf]
        %v364 = vld [vmem:[%s181 + $0x2ac] sm:$0xf]
        %v365 = vld [vmem:[%s181 + $0x2b0] sm:$0xf]
        %v366 = vld [vmem:[%s181 + $0x2b4] sm:$0xf]
        %v367 = vld [vmem:[%s181 + $0x2b8] sm:$0xf]
        %v368 = vld [vmem:[%s181 + $0x2bc] sm:$0xf]
        %v369 = vld [vmem:[%s181 + $0x2c0] sm:$0xf]
        %v370 = vld [vmem:[%s181 + $0x2c4] sm:$0xf]
        %v371 = vld [vmem:[%s181 + $0x2c8] sm:$0xf]
        %v372 = vld [vmem:[%s181 + $0x2cc] sm:$0xf]
        %v373 = vld [vmem:[%s181 + $0x2d0] sm:$0xf]
        %v374 = vld [vmem:[%s181 + $0x2d4] sm:$0xf]
        %v375 = vld [vmem:[%s181 + $0x2d8] sm:$0xf]
        %v376 = vld [vmem:[%s181 + $0x2dc] sm:$0xf]
        %v377 = vld [vmem:[%s181 + $0x2e0] sm:$0xf]
        %v378 = vld [vmem:[%s181 + $0x2e4] sm:$0xf]
        %v379 = vld [vmem:[%s181 + $0x2e8] sm:$0xf]
        %v380 = vld [vmem:[%s181 + $0x2ec] sm:$0xf]
        %v381 = vld [vmem:[%s181 + $0x2f0] sm:$0xf]
        %v382 = vld [vmem:[%s181 + $0x2f4] sm:$0xf]
        %v383 = vld [vmem:[%s181 + $0x2f8] sm:$0xf]
        %v384 = vld [vmem:[%s181 + $0x2fc] sm:$0xf]
        %v385 = vld [vmem:[%s181 + $0x300] sm:$0xf]
        %v386 = vld [vmem:[%s181 + $0x304] sm:$0xf]
        %v387 = vld [vmem:[%s181 + $0x308] sm:$0xf]
        %v388 = vld [vmem:[%s181 + $0x30c] sm:$0xf]
        %v389 = vld [vmem:[%s181 + $0x310] sm:$0xf]
        %v390 = vld [vmem:[%s181 + $0x314] sm:$0xf]
        %v391 = vld [vmem:[%s181 + $0x318] sm:$0xf]
        %v392 = vld [vmem:[%s181 + $0x31c] sm:$0xf]
        %v393 = vld [vmem:[%s181 + $0x320] sm:$0xf]
        %v394 = vld [vmem:[%s181 + $0x324] sm:$0xf]
        %v395 = vld [vmem:[%s181 + $0x328] sm:$0xf]
        %v396 = vld [vmem:[%s181 + $0x32c] sm:$0xf]
        %v397 = vld [vmem:[%s181 + $0x330] sm:$0xf]
        %v398 = vld [vmem:[%s181 + $0x334] sm:$0xf]
        %v399 = vld [vmem:[%s181 + $0x338] sm:$0xf]
        %v400 = vld [vmem:[%s181 + $0x33c] sm:$0xf]
        %v401 = vld [vmem:[%s181 + $0x340] sm:$0xf]
        %v402 = vld [vmem:[%s181 + $0x344] sm:$0xf]
        %v403 = vld [vmem:[%s181 + $0x348] sm:$0xf]
        %v404 = vld [vmem:[%s181 + $0x34c] sm:$0xf]
        %v405 = vld [vmem:[%s181 + $0x350] sm:$0xf]
        %v406 = vld [vmem:[%s181 + $0x354] sm:$0xf]
        %v407 = vld [vmem:[%s181 + $0x358] sm:$0xf]
        %v408 = vld [vmem:[%s181 + $0x35c] sm:$0xf]
        %v409 = vld [vmem:[%s181 + $0x360] sm:$0xf]
        %v410 = vld [vmem:[%s181 + $0x364] sm:$0xf]
        %v411 = vld [vmem:[%s181 + $0x368] sm:$0xf]
        %v412 = vld [vmem:[%s181 + $0x36c] sm:$0xf]
        %v413 = vld [vmem:[%s181 + $0x370] sm:$0xf]
        %v414 = vld [vmem:[%s181 + $0x374] sm:$0xf]
        %v415 = vld [vmem:[%s181 + $0x378] sm:$0xf]
        %v416 = vld [vmem:[%s181 + $0x37c] sm:$0xf]
        %v417 = vld [vmem:[%s181 + $0x380] sm:$0xf]
        %v418 = vld [vmem:[%s181 + $0x384] sm:$0xf]
        %v419 = vld [vmem:[%s181 + $0x388] sm:$0xf]
        %v420 = vld [vmem:[%s181 + $0x38c] sm:$0xf]
        %v421 = vld [vmem:[%s181 + $0x390] sm:$0xf]
        %v422 = vld [vmem:[%s181 + $0x394] sm:$0xf]
        %v423 = vld [vmem:[%s181 + $0x398] sm:$0xf]
        %v424 = vld [vmem:[%s181 + $0x39c] sm:$0xf]
        %v425 = vld [vmem:[%s181 + $0x3a0] sm:$0xf]
        %v426 = vld [vmem:[%s181 + $0x3a4] sm:$0xf]
        %v427 = vld [vmem:[%s181 + $0x3a8] sm:$0xf]
        %v428 = vld [vmem:[%s181 + $0x3ac] sm:$0xf]
        %v429 = vld [vmem:[%s181 + $0x3b0] sm:$0xf]
        %v430 = vld [vmem:[%s181 + $0x3b4] sm:$0xf]
        %v431 = vld [vmem:[%s181 + $0x3b8] sm:$0xf]
        %v432 = vld [vmem:[%s181 + $0x3bc] sm:$0xf]
        %v433 = vld [vmem:[%s181 + $0x3c0] sm:$0xf]
        %v434 = vld [vmem:[%s181 + $0x3c4] sm:$0xf]
        %v435 = vld [vmem:[%s181 + $0x3c8] sm:$0xf]
        %v436 = vld [vmem:[%s181 + $0x3cc] sm:$0xf]
        %v437 = vld [vmem:[%s181 + $0x3d0] sm:$0xf]
        %v438 = vld [vmem:[%s181 + $0x3d4] sm:$0xf]
        %v439 = vld [vmem:[%s181 + $0x3d8] sm:$0xf]
        %v440 = vld [vmem:[%s181 + $0x3dc] sm:$0xf]
        %v441 = vld [vmem:[%s181 + $0x3e0] sm:$0xf]
        %v442 = vld [vmem:[%s181 + $0x3e4] sm:$0xf]
        %v443 = vld [vmem:[%s181 + $0x3e8] sm:$0xf]
        %v444 = vld [vmem:[%s181 + $0x3ec] sm:$0xf]
        %v445 = vld [vmem:[%s181 + $0x3f0] sm:$0xf]
        %v446 = vld [vmem:[%s181 + $0x3f4] sm:$0xf]
        %v447 = vld [vmem:[%s181 + $0x3f8] sm:$0xf]
        %v448 = vld [vmem:[%s181 + $0x3fc] sm:$0xf]
        %v449 = vld [vmem:[%s1] sm:$0xf]
        %v450 = vld [vmem:[%s1 + $0x4] sm:$0xf]
        %v451 = vld [vmem:[%s1 + $0x8] sm:$0xf]
        %v452 = vld [vmem:[%s1 + $0xc] sm:$0xf]
        %v453 = vld [vmem:[%s1 + $0x10] sm:$0x3]
        %v454 = vld [vmem:[%s2] sm:$0x1]
        %v456 = vperm.slane %v454, 0
        %v714 = vunpack.c.l.b16 %v193
        %v715 = vunpack.c.l.b16 %v194
        %v716 = vunpack.c.l.b16 %v195
        %v717 = vunpack.c.l.b16 %v196
        %v718 = vunpack.c.l.b16 %v197
        %v719 = vunpack.c.l.b16 %v198
        %v720 = vunpack.c.l.b16 %v199
        %v721 = vunpack.c.l.b16 %v200
        %v722 = vunpack.c.l.b16 %v201
        %v723 = vunpack.c.l.b16 %v202
        %v724 = vunpack.c.l.b16 %v203
        %v725 = vunpack.c.l.b16 %v204
        %v726 = vunpack.c.l.b16 %v205
        %v727 = vunpack.c.l.b16 %v206
        %v728 = vunpack.c.l.b16 %v207
        %v729 = vunpack.c.l.b16 %v208
        %v730 = vunpack.c.l.b16 %v209
        %v731 = vunpack.c.l.b16 %v210
        %v732 = vunpack.c.l.b16 %v211
        %v733 = vunpack.c.l.b16 %v212
        %v734 = vunpack.c.l.b16 %v213
        %v735 = vunpack.c.l.b16 %v214
        %v736 = vunpack.c.l.b16 %v215
        %v737 = vunpack.c.l.b16 %v216
        %v738 = vunpack.c.l.b16 %v217
        %v739 = vunpack.c.l.b16 %v218
        %v740 = vunpack.c.l.b16 %v219
        %v741 = vunpack.c.l.b16 %v220
        %v742 = vunpack.c.l.b16 %v221
        %v743 = vunpack.c.l.b16 %v222
        %v744 = vunpack.c.l.b16 %v223
        %v745 = vunpack.c.l.b16 %v224
        %v746 = vunpack.c.l.b16 %v225
        %v747 = vunpack.c.l.b16 %v226
        %v748 = vunpack.c.l.b16 %v227
        %v749 = vunpack.c.l.b16 %v228
        %v750 = vunpack.c.l.b16 %v229
        %v751 = vunpack.c.l.b16 %v230
        %v752 = vunpack.c.l.b16 %v231
        %v753 = vunpack.c.l.b16 %v232
        %v754 = vunpack.c.l.b16 %v233
        %v755 = vunpack.c.l.b16 %v234
        %v756 = vunpack.c.l.b16 %v235
        %v757 = vunpack.c.l.b16 %v236
        %v758 = vunpack.c.l.b16 %v237
        %v759 = vunpack.c.l.b16 %v238
        %v760 = vunpack.c.l.b16 %v239
        %v761 = vunpack.c.l.b16 %v240
        %v762 = vunpack.c.l.b16 %v241
        %v763 = vunpack.c.l.b16 %v242
        %v764 = vunpack.c.l.b16 %v243
        %v765 = vunpack.c.l.b16 %v244
        %v766 = vunpack.c.l.b16 %v245
        %v767 = vunpack.c.l.b16 %v246
        %v768 = vunpack.c.l.b16 %v247
        %v769 = vunpack.c.l.b16 %v248
        %v770 = vunpack.c.l.b16 %v249
        %v771 = vunpack.c.l.b16 %v250
        %v772 = vunpack.c.l.b16 %v251
        %v773 = vunpack.c.l.b16 %v252
        %v774 = vunpack.c.l.b16 %v253
        %v775 = vunpack.c.l.b16 %v254
        %v776 = vunpack.c.l.b16 %v255
        %v777 = vunpack.c.l.b16 %v256
        %v778 = vunpack.c.l.b16 %v257
        %v779 = vunpack.c.l.b16 %v258
        %v780 = vunpack.c.l.b16 %v259
        %v781 = vunpack.c.l.b16 %v260
        %v782 = vunpack.c.l.b16 %v261
        %v783 = vunpack.c.l.b16 %v262
        %v784 = vunpack.c.l.b16 %v263
        %v785 = vunpack.c.l.b16 %v264
        %v786 = vunpack.c.l.b16 %v265
        %v787 = vunpack.c.l.b16 %v266
        %v788 = vunpack.c.l.b16 %v267
        %v789 = vunpack.c.l.b16 %v268
        %v790 = vunpack.c.l.b16 %v269
        %v791 = vunpack.c.l.b16 %v270
        %v792 = vunpack.c.l.b16 %v271
        %v793 = vunpack.c.l.b16 %v272
        %v794 = vunpack.c.l.b16 %v273
        %v795 = vunpack.c.l.b16 %v274
        %v796 = vunpack.c.l.b16 %v275
        %v797 = vunpack.c.l.b16 %v276
        %v798 = vunpack.c.l.b16 %v277
        %v799 = vunpack.c.l.b16 %v278
        %v800 = vunpack.c.l.b16 %v279
        %v801 = vunpack.c.l.b16 %v280
        %v802 = vunpack.c.l.b16 %v281
        %v803 = vunpack.c.l.b16 %v282
        %v804 = vunpack.c.l.b16 %v283
        %v805 = vunpack.c.l.b16 %v284
        %v806 = vunpack.c.l.b16 %v285
        %v807 = vunpack.c.l.b16 %v286
        %v808 = vunpack.c.l.b16 %v287
        %v809 = vunpack.c.l.b16 %v288
        %v810 = vunpack.c.l.b16 %v289
        %v811 = vunpack.c.l.b16 %v290
        %v812 = vunpack.c.l.b16 %v291
        %v813 = vunpack.c.l.b16 %v292
        %v814 = vunpack.c.l.b16 %v293
        %v815 = vunpack.c.l.b16 %v294
        %v816 = vunpack.c.l.b16 %v295
        %v817 = vunpack.c.l.b16 %v296
        %v818 = vunpack.c.l.b16 %v297
        %v819 = vunpack.c.l.b16 %v298
        %v820 = vunpack.c.l.b16 %v299
        %v821 = vunpack.c.l.b16 %v300
        %v822 = vunpack.c.l.b16 %v301
        %v823 = vunpack.c.l.b16 %v302
        %v824 = vunpack.c.l.b16 %v303
        %v825 = vunpack.c.l.b16 %v304
        %v826 = vunpack.c.l.b16 %v305
        %v827 = vunpack.c.l.b16 %v306
        %v828 = vunpack.c.l.b16 %v307
        %v829 = vunpack.c.l.b16 %v308
        %v830 = vunpack.c.l.b16 %v309
        %v831 = vunpack.c.l.b16 %v310
        %v832 = vunpack.c.l.b16 %v311
        %v833 = vunpack.c.l.b16 %v312
        %v834 = vunpack.c.l.b16 %v313
        %v835 = vunpack.c.l.b16 %v314
        %v836 = vunpack.c.l.b16 %v315
        %v837 = vunpack.c.l.b16 %v316
        %v838 = vunpack.c.l.b16 %v317
        %v839 = vunpack.c.l.b16 %v318
        %v840 = vunpack.c.l.b16 %v319
        %v841 = vunpack.c.l.b16 %v320
        %v842 = vunpack.c.l.b16 %v321
        %v843 = vunpack.c.l.b16 %v322
        %v844 = vunpack.c.l.b16 %v323
        %v845 = vunpack.c.l.b16 %v324
        %v846 = vunpack.c.l.b16 %v325
        %v847 = vunpack.c.l.b16 %v326
        %v848 = vunpack.c.l.b16 %v327
        %v849 = vunpack.c.l.b16 %v328
        %v850 = vunpack.c.l.b16 %v329
        %v851 = vunpack.c.l.b16 %v330
        %v852 = vunpack.c.l.b16 %v331
        %v853 = vunpack.c.l.b16 %v332
        %v854 = vunpack.c.l.b16 %v333
        %v855 = vunpack.c.l.b16 %v334
        %v856 = vunpack.c.l.b16 %v335
        %v857 = vunpack.c.l.b16 %v336
        %v858 = vunpack.c.l.b16 %v337
        %v859 = vunpack.c.l.b16 %v338
        %v860 = vunpack.c.l.b16 %v339
        %v861 = vunpack.c.l.b16 %v340
        %v862 = vunpack.c.l.b16 %v341
        %v863 = vunpack.c.l.b16 %v342
        %v864 = vunpack.c.l.b16 %v343
        %v865 = vunpack.c.l.b16 %v344
        %v866 = vunpack.c.l.b16 %v345
        %v867 = vunpack.c.l.b16 %v346
        %v868 = vunpack.c.l.b16 %v347
        %v869 = vunpack.c.l.b16 %v348
        %v870 = vunpack.c.l.b16 %v349
        %v871 = vunpack.c.l.b16 %v350
        %v872 = vunpack.c.l.b16 %v351
        %v873 = vunpack.c.l.b16 %v352
        %v874 = vunpack.c.l.b16 %v353
        %v875 = vunpack.c.l.b16 %v354
        %v876 = vunpack.c.l.b16 %v355
        %v877 = vunpack.c.l.b16 %v356
        %v878 = vunpack.c.l.b16 %v357
        %v879 = vunpack.c.l.b16 %v358
        %v880 = vunpack.c.l.b16 %v359
        %v881 = vunpack.c.l.b16 %v360
        %v882 = vunpack.c.l.b16 %v361
        %v883 = vunpack.c.l.b16 %v362
        %v884 = vunpack.c.l.b16 %v363
        %v885 = vunpack.c.l.b16 %v364
        %v886 = vunpack.c.l.b16 %v365
        %v887 = vunpack.c.l.b16 %v366
        %v888 = vunpack.c.l.b16 %v367
        %v889 = vunpack.c.l.b16 %v368
        %v890 = vunpack.c.l.b16 %v369
        %v891 = vunpack.c.l.b16 %v370
        %v892 = vunpack.c.l.b16 %v371
        %v893 = vunpack.c.l.b16 %v372
        %v894 = vunpack.c.l.b16 %v373
        %v895 = vunpack.c.l.b16 %v374
        %v896 = vunpack.c.l.b16 %v375
        %v897 = vunpack.c.l.b16 %v376
        %v898 = vunpack.c.l.b16 %v377
        %v899 = vunpack.c.l.b16 %v378
        %v900 = vunpack.c.l.b16 %v379
        %v901 = vunpack.c.l.b16 %v380
        %v902 = vunpack.c.l.b16 %v381
        %v903 = vunpack.c.l.b16 %v382
        %v904 = vunpack.c.l.b16 %v383
        %v905 = vunpack.c.l.b16 %v384
        %v906 = vunpack.c.l.b16 %v385
        %v907 = vunpack.c.l.b16 %v386
        %v908 = vunpack.c.l.b16 %v387
        %v909 = vunpack.c.l.b16 %v388
        %v910 = vunpack.c.l.b16 %v389
        %v911 = vunpack.c.l.b16 %v390
        %v912 = vunpack.c.l.b16 %v391
        %v913 = vunpack.c.l.b16 %v392
        %v914 = vunpack.c.l.b16 %v393
        %v915 = vunpack.c.l.b16 %v394
        %v916 = vunpack.c.l.b16 %v395
        %v917 = vunpack.c.l.b16 %v396
        %v918 = vunpack.c.l.b16 %v397
        %v919 = vunpack.c.l.b16 %v398
        %v920 = vunpack.c.l.b16 %v399
        %v921 = vunpack.c.l.b16 %v400
        %v922 = vunpack.c.l.b16 %v401
        %v923 = vunpack.c.l.b16 %v402
        %v924 = vunpack.c.l.b16 %v403
        %v925 = vunpack.c.l.b16 %v404
        %v926 = vunpack.c.l.b16 %v405
        %v927 = vunpack.c.l.b16 %v406
        %v928 = vunpack.c.l.b16 %v407
        %v929 = vunpack.c.l.b16 %v408
        %v930 = vunpack.c.l.b16 %v409
        %v931 = vunpack.c.l.b16 %v410
        %v932 = vunpack.c.l.b16 %v411
        %v933 = vunpack.c.l.b16 %v412
        %v934 = vunpack.c.l.b16 %v413
        %v935 = vunpack.c.l.b16 %v414
        %v936 = vunpack.c.l.b16 %v415
        %v937 = vunpack.c.l.b16 %v416
        %v938 = vunpack.c.l.b16 %v417
        %v939 = vunpack.c.l.b16 %v418
        %v940 = vunpack.c.l.b16 %v419
        %v941 = vunpack.c.l.b16 %v420
        %v942 = vunpack.c.l.b16 %v421
        %v943 = vunpack.c.l.b16 %v422
        %v944 = vunpack.c.l.b16 %v423
        %v945 = vunpack.c.l.b16 %v424
        %v946 = vunpack.c.l.b16 %v425
        %v947 = vunpack.c.l.b16 %v426
        %v948 = vunpack.c.l.b16 %v427
        %v949 = vunpack.c.l.b16 %v428
        %v950 = vunpack.c.l.b16 %v429
        %v951 = vunpack.c.l.b16 %v430
        %v952 = vunpack.c.l.b16 %v431
        %v953 = vunpack.c.l.b16 %v432
        %v954 = vunpack.c.l.b16 %v433
        %v955 = vunpack.c.l.b16 %v434
        %v956 = vunpack.c.l.b16 %v435
        %v957 = vunpack.c.l.b16 %v436
        %v958 = vunpack.c.l.b16 %v437
        %v959 = vunpack.c.l.b16 %v438
        %v960 = vunpack.c.l.b16 %v439
        %v961 = vunpack.c.l.b16 %v440
        %v962 = vunpack.c.l.b16 %v441
        %v963 = vunpack.c.l.b16 %v442
        %v964 = vunpack.c.l.b16 %v443
        %v965 = vunpack.c.l.b16 %v444
        %v966 = vunpack.c.l.b16 %v445
        %v967 = vunpack.c.l.b16 %v446
        %v968 = vunpack.c.l.b16 %v447
        %v969 = vunpack.c.l.b16 %v448
        %v970 = vpack.c.b16 %v715, %v714
        %v971 = vpack.c.b16 %v717, %v716
        %v972 = vpack.c.b16 %v719, %v718
        %v973 = vpack.c.b16 %v721, %v720
        %v974 = vpack.c.b16 %v723, %v722
        %v975 = vpack.c.b16 %v725, %v724
        %v976 = vpack.c.b16 %v727, %v726
        %v977 = vpack.c.b16 %v729, %v728
        %v978 = vpack.c.b16 %v731, %v730
        %v979 = vpack.c.b16 %v733, %v732
        %v980 = vpack.c.b16 %v735, %v734
        %v981 = vpack.c.b16 %v737, %v736
        %v982 = vpack.c.b16 %v739, %v738
        %v983 = vpack.c.b16 %v741, %v740
        %v984 = vpack.c.b16 %v743, %v742
        %v985 = vpack.c.b16 %v745, %v744
        %v986 = vpack.c.b16 %v747, %v746
        %v987 = vpack.c.b16 %v749, %v748
        %v988 = vpack.c.b16 %v751, %v750
        %v989 = vpack.c.b16 %v753, %v752
        %v990 = vpack.c.b16 %v755, %v754
        %v991 = vpack.c.b16 %v757, %v756
        %v992 = vpack.c.b16 %v759, %v758
        %v993 = vpack.c.b16 %v761, %v760
        %v994 = vpack.c.b16 %v763, %v762
        %v995 = vpack.c.b16 %v765, %v764
        %v996 = vpack.c.b16 %v767, %v766
        %v997 = vpack.c.b16 %v769, %v768
        %v998 = vpack.c.b16 %v771, %v770
        %v999 = vpack.c.b16 %v773, %v772
        %v1000 = vpack.c.b16 %v775, %v774
        %v1001 = vpack.c.b16 %v777, %v776
        %v1002 = vpack.c.b16 %v779, %v778
        %v1003 = vpack.c.b16 %v781, %v780
        %v1004 = vpack.c.b16 %v783, %v782
        %v1005 = vpack.c.b16 %v785, %v784
        %v1006 = vpack.c.b16 %v787, %v786
        %v1007 = vpack.c.b16 %v789, %v788
        %v1008 = vpack.c.b16 %v791, %v790
        %v1009 = vpack.c.b16 %v793, %v792
        %v1010 = vpack.c.b16 %v795, %v794
        %v1011 = vpack.c.b16 %v797, %v796
        %v1012 = vpack.c.b16 %v799, %v798
        %v1013 = vpack.c.b16 %v801, %v800
        %v1014 = vpack.c.b16 %v803, %v802
        %v1015 = vpack.c.b16 %v805, %v804
        %v1016 = vpack.c.b16 %v807, %v806
        %v1017 = vpack.c.b16 %v809, %v808
        %v1018 = vpack.c.b16 %v811, %v810
        %v1019 = vpack.c.b16 %v813, %v812
        %v1020 = vpack.c.b16 %v815, %v814
        %v1021 = vpack.c.b16 %v817, %v816
        %v1022 = vpack.c.b16 %v819, %v818
        %v1023 = vpack.c.b16 %v821, %v820
        %v1024 = vpack.c.b16 %v823, %v822
        %v1025 = vpack.c.b16 %v825, %v824
        %v1026 = vpack.c.b16 %v827, %v826
        %v1027 = vpack.c.b16 %v829, %v828
        %v1028 = vpack.c.b16 %v831, %v830
        %v1029 = vpack.c.b16 %v833, %v832
        %v1030 = vpack.c.b16 %v835, %v834
        %v1031 = vpack.c.b16 %v837, %v836
        %v1032 = vpack.c.b16 %v839, %v838
        %v1033 = vpack.c.b16 %v841, %v840
        %v1034 = vpack.c.b16 %v843, %v842
        %v1035 = vpack.c.b16 %v845, %v844
        %v1036 = vpack.c.b16 %v847, %v846
        %v1037 = vpack.c.b16 %v849, %v848
        %v1038 = vpack.c.b16 %v851, %v850
        %v1039 = vpack.c.b16 %v853, %v852
        %v1040 = vpack.c.b16 %v855, %v854
        %v1041 = vpack.c.b16 %v857, %v856
        %v1042 = vpack.c.b16 %v859, %v858
        %v1043 = vpack.c.b16 %v861, %v860
        %v1044 = vpack.c.b16 %v863, %v862
        %v1045 = vpack.c.b16 %v865, %v864
        %v1046 = vpack.c.b16 %v867, %v866
        %v1047 = vpack.c.b16 %v869, %v868
        %v1048 = vpack.c.b16 %v871, %v870
        %v1049 = vpack.c.b16 %v873, %v872
        %v1050 = vpack.c.b16 %v875, %v874
        %v1051 = vpack.c.b16 %v877, %v876
        %v1052 = vpack.c.b16 %v879, %v878
        %v1053 = vpack.c.b16 %v881, %v880
        %v1054 = vpack.c.b16 %v883, %v882
        %v1055 = vpack.c.b16 %v885, %v884
        %v1056 = vpack.c.b16 %v887, %v886
        %v1057 = vpack.c.b16 %v889, %v888
        %v1058 = vpack.c.b16 %v891, %v890
        %v1059 = vpack.c.b16 %v893, %v892
        %v1060 = vpack.c.b16 %v895, %v894
        %v1061 = vpack.c.b16 %v897, %v896
        %v1062 = vpack.c.b16 %v899, %v898
        %v1063 = vpack.c.b16 %v901, %v900
        %v1064 = vpack.c.b16 %v903, %v902
        %v1065 = vpack.c.b16 %v905, %v904
        %v1066 = vpack.c.b16 %v907, %v906
        %v1067 = vpack.c.b16 %v909, %v908
        %v1068 = vpack.c.b16 %v911, %v910
        %v1069 = vpack.c.b16 %v913, %v912
        %v1070 = vpack.c.b16 %v915, %v914
        %v1071 = vpack.c.b16 %v917, %v916
        %v1072 = vpack.c.b16 %v919, %v918
        %v1073 = vpack.c.b16 %v921, %v920
        %v1074 = vpack.c.b16 %v923, %v922
        %v1075 = vpack.c.b16 %v925, %v924
        %v1076 = vpack.c.b16 %v927, %v926
        %v1077 = vpack.c.b16 %v929, %v928
        %v1078 = vpack.c.b16 %v931, %v930
        %v1079 = vpack.c.b16 %v933, %v932
        %v1080 = vpack.c.b16 %v935, %v934
        %v1081 = vpack.c.b16 %v937, %v936
        %v1082 = vpack.c.b16 %v939, %v938
        %v1083 = vpack.c.b16 %v941, %v940
        %v1084 = vpack.c.b16 %v943, %v942
        %v1085 = vpack.c.b16 %v945, %v944
        %v1086 = vpack.c.b16 %v947, %v946
        %v1087 = vpack.c.b16 %v949, %v948
        %v1088 = vpack.c.b16 %v951, %v950
        %v1089 = vpack.c.b16 %v953, %v952
        %v1090 = vpack.c.b16 %v955, %v954
        %v1091 = vpack.c.b16 %v957, %v956
        %v1092 = vpack.c.b16 %v959, %v958
        %v1093 = vpack.c.b16 %v961, %v960
        %v1094 = vpack.c.b16 %v963, %v962
        %v1095 = vpack.c.b16 %v965, %v964
        %v1096 = vpack.c.b16 %v967, %v966
        %v1097 = vpack.c.b16 %v969, %v968
        %v1103 = vunpack.c.l.b16 %v449
        %v1104 = vunpack.c.l.b16 %v450
        %v1105 = vunpack.c.l.b16 %v451
        %v1106 = vunpack.c.l.b16 %v452
        %v1107 = vunpack.c.l.b16 %v453
        %v1108 = vpack.c.b16 %v1104, %v1103
        %v1109 = vpack.c.b16 %v1106, %v1105
        %v1110 = vpack.c.b16 %v1107, %v1107
        %vm1113 = vcmask 293888
        %v1115 = vsel %vm1113, %v970, 0
        %v1118 = vsel %vm1113, %v971, 0
        %v1121 = vsel %vm1113, %v972, 0
        %v1124 = vsel %vm1113, %v973, 0
        %v1127 = vsel %vm1113, %v974, 0
        %v1130 = vsel %vm1113, %v975, 0
        %v1133 = vsel %vm1113, %v976, 0
        %v1136 = vsel %vm1113, %v977, 0
        %v1139 = vsel %vm1113, %v978, 0
        %v1142 = vsel %vm1113, %v979, 0
        %v1145 = vsel %vm1113, %v980, 0
        %v1148 = vsel %vm1113, %v981, 0
        %v1151 = vsel %vm1113, %v982, 0
        %v1154 = vsel %vm1113, %v983, 0
        %v1157 = vsel %vm1113, %v984, 0
        %v1160 = vsel %vm1113, %v985, 0
        %v1163 = vsel %vm1113, %v986, 0
        %v1166 = vsel %vm1113, %v987, 0
        %v1169 = vsel %vm1113, %v988, 0
        %v1172 = vsel %vm1113, %v989, 0
        %v1175 = vsel %vm1113, %v990, 0
        %v1178 = vsel %vm1113, %v991, 0
        %v1181 = vsel %vm1113, %v992, 0
        %v1184 = vsel %vm1113, %v993, 0
        %v1187 = vsel %vm1113, %v994, 0
        %v1190 = vsel %vm1113, %v995, 0
        %v1193 = vsel %vm1113, %v996, 0
        %v1196 = vsel %vm1113, %v997, 0
        %v1199 = vsel %vm1113, %v998, 0
        %v1202 = vsel %vm1113, %v999, 0
        %v1205 = vsel %vm1113, %v1000, 0
        %v1208 = vsel %vm1113, %v1001, 0
        %v1211 = vsel %vm1113, %v1002, 0
        %v1214 = vsel %vm1113, %v1003, 0
        %v1217 = vsel %vm1113, %v1004, 0
        %v1220 = vsel %vm1113, %v1005, 0
        %v1223 = vsel %vm1113, %v1006, 0
        %v1226 = vsel %vm1113, %v1007, 0
        %v1229 = vsel %vm1113, %v1008, 0
        %v1232 = vsel %vm1113, %v1009, 0
        %v1235 = vsel %vm1113, %v1010, 0
        %v1238 = vsel %vm1113, %v1011, 0
        %v1241 = vsel %vm1113, %v1012, 0
        %v1244 = vsel %vm1113, %v1013, 0
        %v1247 = vsel %vm1113, %v1014, 0
        %v1250 = vsel %vm1113, %v1015, 0
        %v1253 = vsel %vm1113, %v1016, 0
        %v1256 = vsel %vm1113, %v1017, 0
        %v1259 = vsel %vm1113, %v1018, 0
        %v1262 = vsel %vm1113, %v1019, 0
        %v1265 = vsel %vm1113, %v1020, 0
        %v1268 = vsel %vm1113, %v1021, 0
        %v1271 = vsel %vm1113, %v1022, 0
        %v1274 = vsel %vm1113, %v1023, 0
        %v1277 = vsel %vm1113, %v1024, 0
        %v1280 = vsel %vm1113, %v1025, 0
        %v1283 = vsel %vm1113, %v1026, 0
        %v1286 = vsel %vm1113, %v1027, 0
        %v1289 = vsel %vm1113, %v1028, 0
        %v1292 = vsel %vm1113, %v1029, 0
        %v1295 = vsel %vm1113, %v1030, 0
        %v1298 = vsel %vm1113, %v1031, 0
        %v1301 = vsel %vm1113, %v1032, 0
        %v1304 = vsel %vm1113, %v1033, 0
        %v1307 = vsel %vm1113, %v1034, 0
        %v1310 = vsel %vm1113, %v1035, 0
        %v1313 = vsel %vm1113, %v1036, 0
        %v1316 = vsel %vm1113, %v1037, 0
        %v1319 = vsel %vm1113, %v1038, 0
        %v1322 = vsel %vm1113, %v1039, 0
        %v1325 = vsel %vm1113, %v1040, 0
        %v1328 = vsel %vm1113, %v1041, 0
        %v1331 = vsel %vm1113, %v1042, 0
        %v1334 = vsel %vm1113, %v1043, 0
        %v1337 = vsel %vm1113, %v1044, 0
        %v1340 = vsel %vm1113, %v1045, 0
        %v1343 = vsel %vm1113, %v1046, 0
        %v1346 = vsel %vm1113, %v1047, 0
        %v1349 = vsel %vm1113, %v1048, 0
        %v1352 = vsel %vm1113, %v1049, 0
        %v1355 = vsel %vm1113, %v1050, 0
        %v1358 = vsel %vm1113, %v1051, 0
        %v1361 = vsel %vm1113, %v1052, 0
        %v1364 = vsel %vm1113, %v1053, 0
        %v1367 = vsel %vm1113, %v1054, 0
        %v1370 = vsel %vm1113, %v1055, 0
        %v1373 = vsel %vm1113, %v1056, 0
        %v1376 = vsel %vm1113, %v1057, 0
        %v1379 = vsel %vm1113, %v1058, 0
        %v1382 = vsel %vm1113, %v1059, 0
        %v1385 = vsel %vm1113, %v1060, 0
        %v1388 = vsel %vm1113, %v1061, 0
        %v1391 = vsel %vm1113, %v1062, 0
        %v1394 = vsel %vm1113, %v1063, 0
        %v1397 = vsel %vm1113, %v1064, 0
        %v1400 = vsel %vm1113, %v1065, 0
        %v1403 = vsel %vm1113, %v1066, 0
        %v1406 = vsel %vm1113, %v1067, 0
        %v1409 = vsel %vm1113, %v1068, 0
        %v1412 = vsel %vm1113, %v1069, 0
        %v1415 = vsel %vm1113, %v1070, 0
        %v1418 = vsel %vm1113, %v1071, 0
        %v1421 = vsel %vm1113, %v1072, 0
        %v1424 = vsel %vm1113, %v1073, 0
        %v1427 = vsel %vm1113, %v1074, 0
        %v1430 = vsel %vm1113, %v1075, 0
        %v1433 = vsel %vm1113, %v1076, 0
        %v1436 = vsel %vm1113, %v1077, 0
        %v1439 = vsel %vm1113, %v1078, 0
        %v1442 = vsel %vm1113, %v1079, 0
        %v1445 = vsel %vm1113, %v1080, 0
        %v1448 = vsel %vm1113, %v1081, 0
        %v1451 = vsel %vm1113, %v1082, 0
        %v1454 = vsel %vm1113, %v1083, 0
        %v1457 = vsel %vm1113, %v1084, 0
        %v1460 = vsel %vm1113, %v1085, 0
        %v1463 = vsel %vm1113, %v1086, 0
        %v1466 = vsel %vm1113, %v1087, 0
        %v1469 = vsel %vm1113, %v1088, 0
        %v1472 = vsel %vm1113, %v1089, 0
        %v1475 = vsel %vm1113, %v1090, 0
        %v1478 = vsel %vm1113, %v1091, 0
        %v1481 = vsel %vm1113, %v1092, 0
        %v1484 = vsel %vm1113, %v1093, 0
        %v1487 = vsel %vm1113, %v1094, 0
        %v1490 = vsel %vm1113, %v1095, 0
        %v1493 = vsel %vm1113, %v1096, 0
        %v1496 = vsel %vm1113, %v1097, 0
        %vm1498 = vcmask 1041408
        %v1500 = vsel %vm1498, %v1110, 0
        %1502 = vmatpush.bf16.msra.mxu0 0
        %1503 = vmatpush.bf16.msra.mxu0 0
        %1504 = vmatpush.bf16.msra.mxu0 0
        %1505 = vmatpush.bf16.msra.mxu0 0
        %1506 = vmatpush.bf16.msra.mxu0 0
        %1507 = vmatpush.bf16.msra.mxu0 %v1500
        %1508 = vmatpush.bf16.msra.mxu0 %v1109
        %1509 = vmatpush.bf16.msra.mxu0 %v1108
        %1510 = vmatmul.bf16.gmra.mxu0 %v1115
        %v1511 = vpop.f32.mrf.mxu0
        %v1512 = vadd.f32 %v456, %v1511
        %v1513 = vpop.f32.mrf.mxu0
        %v1514 = vadd.f32 %v456, %v1513
        %1515 = vmatmul.bf16.gmra.mxu0 %v1118
        %v1516 = vpop.f32.mrf.mxu0
        %v1517 = vadd.f32 %v456, %v1516
        %v1518 = vpop.f32.mrf.mxu0
        %v1519 = vadd.f32 %v456, %v1518
        %1520 = vmatmul.bf16.gmra.mxu0 %v1121
        %v1521 = vpop.f32.mrf.mxu0
        %v1522 = vadd.f32 %v456, %v1521
        %v1523 = vpop.f32.mrf.mxu0
        %v1524 = vadd.f32 %v456, %v1523
        %1525 = vmatmul.bf16.gmra.mxu0 %v1124
        %v1526 = vpop.f32.mrf.mxu0
        %v1527 = vadd.f32 %v456, %v1526
        %v1528 = vpop.f32.mrf.mxu0
        %v1529 = vadd.f32 %v456, %v1528
        %1530 = vmatmul.bf16.gmra.mxu0 %v1127
        %v1531 = vpop.f32.mrf.mxu0
        %v1532 = vadd.f32 %v456, %v1531
        %v1533 = vpop.f32.mrf.mxu0
        %v1534 = vadd.f32 %v456, %v1533
        %1535 = vmatmul.bf16.gmra.mxu0 %v1130
        %v1536 = vpop.f32.mrf.mxu0
        %v1537 = vadd.f32 %v456, %v1536
        %v1538 = vpop.f32.mrf.mxu0
        %v1539 = vadd.f32 %v456, %v1538
        %1540 = vmatmul.bf16.gmra.mxu0 %v1133
        %v1541 = vpop.f32.mrf.mxu0
        %v1542 = vadd.f32 %v456, %v1541
        %v1543 = vpop.f32.mrf.mxu0
        %v1544 = vadd.f32 %v456, %v1543
        %1545 = vmatmul.bf16.gmra.mxu0 %v1136
        %v1546 = vpop.f32.mrf.mxu0
        %v1547 = vadd.f32 %v456, %v1546
        %v1548 = vpop.f32.mrf.mxu0
        %v1549 = vadd.f32 %v456, %v1548
        %1550 = vmatmul.bf16.gmra.mxu0 %v1139
        %v1551 = vpop.f32.mrf.mxu0
        %v1552 = vadd.f32 %v456, %v1551
        %v1553 = vpop.f32.mrf.mxu0
        %v1554 = vadd.f32 %v456, %v1553
        %1555 = vmatmul.bf16.gmra.mxu0 %v1142
        %v1556 = vpop.f32.mrf.mxu0
        %v1557 = vadd.f32 %v456, %v1556
        %v1558 = vpop.f32.mrf.mxu0
        %v1559 = vadd.f32 %v456, %v1558
        %1560 = vmatmul.bf16.gmra.mxu0 %v1145
        %v1561 = vpop.f32.mrf.mxu0
        %v1562 = vadd.f32 %v456, %v1561
        %v1563 = vpop.f32.mrf.mxu0
        %v1564 = vadd.f32 %v456, %v1563
        %1565 = vmatmul.bf16.gmra.mxu0 %v1148
        %v1566 = vpop.f32.mrf.mxu0
        %v1567 = vadd.f32 %v456, %v1566
        %v1568 = vpop.f32.mrf.mxu0
        %v1569 = vadd.f32 %v456, %v1568
        %1570 = vmatmul.bf16.gmra.mxu0 %v1151
        %v1571 = vpop.f32.mrf.mxu0
        %v1572 = vadd.f32 %v456, %v1571
        %v1573 = vpop.f32.mrf.mxu0
        %v1574 = vadd.f32 %v456, %v1573
        %1575 = vmatmul.bf16.gmra.mxu0 %v1154
        %v1576 = vpop.f32.mrf.mxu0
        %v1577 = vadd.f32 %v456, %v1576
        %v1578 = vpop.f32.mrf.mxu0
        %v1579 = vadd.f32 %v456, %v1578
        %1580 = vmatmul.bf16.gmra.mxu0 %v1157
        %v1581 = vpop.f32.mrf.mxu0
        %v1582 = vadd.f32 %v456, %v1581
        %v1583 = vpop.f32.mrf.mxu0
        %v1584 = vadd.f32 %v456, %v1583
        %1585 = vmatmul.bf16.gmra.mxu0 %v1160
        %v1586 = vpop.f32.mrf.mxu0
        %v1587 = vadd.f32 %v456, %v1586
        %v1588 = vpop.f32.mrf.mxu0
        %v1589 = vadd.f32 %v456, %v1588
        %1590 = vmatmul.bf16.gmra.mxu0 %v1163
        %v1591 = vpop.f32.mrf.mxu0
        %v1592 = vadd.f32 %v456, %v1591
        %v1593 = vpop.f32.mrf.mxu0
        %v1594 = vadd.f32 %v456, %v1593
        %1595 = vmatmul.bf16.gmra.mxu0 %v1166
        %v1596 = vpop.f32.mrf.mxu0
        %v1597 = vadd.f32 %v456, %v1596
        %v1598 = vpop.f32.mrf.mxu0
        %v1599 = vadd.f32 %v456, %v1598
        %1600 = vmatmul.bf16.gmra.mxu0 %v1169
        %v1601 = vpop.f32.mrf.mxu0
        %v1602 = vadd.f32 %v456, %v1601
        %v1603 = vpop.f32.mrf.mxu0
        %v1604 = vadd.f32 %v456, %v1603
        %1605 = vmatmul.bf16.gmra.mxu0 %v1172
        %v1606 = vpop.f32.mrf.mxu0
        %v1607 = vadd.f32 %v456, %v1606
        %v1608 = vpop.f32.mrf.mxu0
        %v1609 = vadd.f32 %v456, %v1608
        %1610 = vmatmul.bf16.gmra.mxu0 %v1175
        %v1611 = vpop.f32.mrf.mxu0
        %v1612 = vadd.f32 %v456, %v1611
        %v1613 = vpop.f32.mrf.mxu0
        %v1614 = vadd.f32 %v456, %v1613
        %1615 = vmatmul.bf16.gmra.mxu0 %v1178
        %v1616 = vpop.f32.mrf.mxu0
        %v1617 = vadd.f32 %v456, %v1616
        %v1618 = vpop.f32.mrf.mxu0
        %v1619 = vadd.f32 %v456, %v1618
        %1620 = vmatmul.bf16.gmra.mxu0 %v1181
        %v1621 = vpop.f32.mrf.mxu0
        %v1622 = vadd.f32 %v456, %v1621
        %v1623 = vpop.f32.mrf.mxu0
        %v1624 = vadd.f32 %v456, %v1623
        %1625 = vmatmul.bf16.gmra.mxu0 %v1184
        %v1626 = vpop.f32.mrf.mxu0
        %v1627 = vadd.f32 %v456, %v1626
        %v1628 = vpop.f32.mrf.mxu0
        %v1629 = vadd.f32 %v456, %v1628
        %1630 = vmatmul.bf16.gmra.mxu0 %v1187
        %v1631 = vpop.f32.mrf.mxu0
        %v1632 = vadd.f32 %v456, %v1631
        %v1633 = vpop.f32.mrf.mxu0
        %v1634 = vadd.f32 %v456, %v1633
        %1635 = vmatmul.bf16.gmra.mxu0 %v1190
        %v1636 = vpop.f32.mrf.mxu0
        %v1637 = vadd.f32 %v456, %v1636
        %v1638 = vpop.f32.mrf.mxu0
        %v1639 = vadd.f32 %v456, %v1638
        %1640 = vmatmul.bf16.gmra.mxu0 %v1193
        %v1641 = vpop.f32.mrf.mxu0
        %v1642 = vadd.f32 %v456, %v1641
        %v1643 = vpop.f32.mrf.mxu0
        %v1644 = vadd.f32 %v456, %v1643
        %1645 = vmatmul.bf16.gmra.mxu0 %v1196
        %v1646 = vpop.f32.mrf.mxu0
        %v1647 = vadd.f32 %v456, %v1646
        %v1648 = vpop.f32.mrf.mxu0
        %v1649 = vadd.f32 %v456, %v1648
        %1650 = vmatmul.bf16.gmra.mxu0 %v1199
        %v1651 = vpop.f32.mrf.mxu0
        %v1652 = vadd.f32 %v456, %v1651
        %v1653 = vpop.f32.mrf.mxu0
        %v1654 = vadd.f32 %v456, %v1653
        %1655 = vmatmul.bf16.gmra.mxu0 %v1202
        %v1656 = vpop.f32.mrf.mxu0
        %v1657 = vadd.f32 %v456, %v1656
        %v1658 = vpop.f32.mrf.mxu0
        %v1659 = vadd.f32 %v456, %v1658
        %1660 = vmatmul.bf16.gmra.mxu0 %v1205
        %v1661 = vpop.f32.mrf.mxu0
        %v1662 = vadd.f32 %v456, %v1661
        %v1663 = vpop.f32.mrf.mxu0
        %v1664 = vadd.f32 %v456, %v1663
        %1665 = vmatmul.bf16.gmra.mxu0 %v1208
        %v1666 = vpop.f32.mrf.mxu0
        %v1667 = vadd.f32 %v456, %v1666
        %v1668 = vpop.f32.mrf.mxu0
        %v1669 = vadd.f32 %v456, %v1668
        %1670 = vmatmul.bf16.gmra.mxu0 %v1211
        %v1671 = vpop.f32.mrf.mxu0
        %v1672 = vadd.f32 %v456, %v1671
        %v1673 = vpop.f32.mrf.mxu0
        %v1674 = vadd.f32 %v456, %v1673
        %1675 = vmatmul.bf16.gmra.mxu0 %v1214
        %v1676 = vpop.f32.mrf.mxu0
        %v1677 = vadd.f32 %v456, %v1676
        %v1678 = vpop.f32.mrf.mxu0
        %v1679 = vadd.f32 %v456, %v1678
        %1680 = vmatmul.bf16.gmra.mxu0 %v1217
        %v1681 = vpop.f32.mrf.mxu0
        %v1682 = vadd.f32 %v456, %v1681
        %v1683 = vpop.f32.mrf.mxu0
        %v1684 = vadd.f32 %v456, %v1683
        %1685 = vmatmul.bf16.gmra.mxu0 %v1220
        %v1686 = vpop.f32.mrf.mxu0
        %v1687 = vadd.f32 %v456, %v1686
        %v1688 = vpop.f32.mrf.mxu0
        %v1689 = vadd.f32 %v456, %v1688
        %1690 = vmatmul.bf16.gmra.mxu0 %v1223
        %v1691 = vpop.f32.mrf.mxu0
        %v1692 = vadd.f32 %v456, %v1691
        %v1693 = vpop.f32.mrf.mxu0
        %v1694 = vadd.f32 %v456, %v1693
        %1695 = vmatmul.bf16.gmra.mxu0 %v1226
        %v1696 = vpop.f32.mrf.mxu0
        %v1697 = vadd.f32 %v456, %v1696
        %v1698 = vpop.f32.mrf.mxu0
        %v1699 = vadd.f32 %v456, %v1698
        %1700 = vmatmul.bf16.gmra.mxu0 %v1229
        %v1701 = vpop.f32.mrf.mxu0
        %v1702 = vadd.f32 %v456, %v1701
        %v1703 = vpop.f32.mrf.mxu0
        %v1704 = vadd.f32 %v456, %v1703
        %1705 = vmatmul.bf16.gmra.mxu0 %v1232
        %v1706 = vpop.f32.mrf.mxu0
        %v1707 = vadd.f32 %v456, %v1706
        %v1708 = vpop.f32.mrf.mxu0
        %v1709 = vadd.f32 %v456, %v1708
        %1710 = vmatmul.bf16.gmra.mxu0 %v1235
        %v1711 = vpop.f32.mrf.mxu0
        %v1712 = vadd.f32 %v456, %v1711
        %v1713 = vpop.f32.mrf.mxu0
        %v1714 = vadd.f32 %v456, %v1713
        %1715 = vmatmul.bf16.gmra.mxu0 %v1238
        %v1716 = vpop.f32.mrf.mxu0
        %v1717 = vadd.f32 %v456, %v1716
        %v1718 = vpop.f32.mrf.mxu0
        %v1719 = vadd.f32 %v456, %v1718
        %1720 = vmatmul.bf16.gmra.mxu0 %v1241
        %v1721 = vpop.f32.mrf.mxu0
        %v1722 = vadd.f32 %v456, %v1721
        %v1723 = vpop.f32.mrf.mxu0
        %v1724 = vadd.f32 %v456, %v1723
        %1725 = vmatmul.bf16.gmra.mxu0 %v1244
        %v1726 = vpop.f32.mrf.mxu0
        %v1727 = vadd.f32 %v456, %v1726
        %v1728 = vpop.f32.mrf.mxu0
        %v1729 = vadd.f32 %v456, %v1728
        %1730 = vmatmul.bf16.gmra.mxu0 %v1247
        %v1731 = vpop.f32.mrf.mxu0
        %v1732 = vadd.f32 %v456, %v1731
        %v1733 = vpop.f32.mrf.mxu0
        %v1734 = vadd.f32 %v456, %v1733
        %1735 = vmatmul.bf16.gmra.mxu0 %v1250
        %v1736 = vpop.f32.mrf.mxu0
        %v1737 = vadd.f32 %v456, %v1736
        %v1738 = vpop.f32.mrf.mxu0
        %v1739 = vadd.f32 %v456, %v1738
        %1740 = vmatmul.bf16.gmra.mxu0 %v1253
        %v1741 = vpop.f32.mrf.mxu0
        %v1742 = vadd.f32 %v456, %v1741
        %v1743 = vpop.f32.mrf.mxu0
        %v1744 = vadd.f32 %v456, %v1743
        %1745 = vmatmul.bf16.gmra.mxu0 %v1256
        %v1746 = vpop.f32.mrf.mxu0
        %v1747 = vadd.f32 %v456, %v1746
        %v1748 = vpop.f32.mrf.mxu0
        %v1749 = vadd.f32 %v456, %v1748
        %1750 = vmatmul.bf16.gmra.mxu0 %v1259
        %v1751 = vpop.f32.mrf.mxu0
        %v1752 = vadd.f32 %v456, %v1751
        %v1753 = vpop.f32.mrf.mxu0
        %v1754 = vadd.f32 %v456, %v1753
        %1755 = vmatmul.bf16.gmra.mxu0 %v1262
        %v1756 = vpop.f32.mrf.mxu0
        %v1757 = vadd.f32 %v456, %v1756
        %v1758 = vpop.f32.mrf.mxu0
        %v1759 = vadd.f32 %v456, %v1758
        %1760 = vmatmul.bf16.gmra.mxu0 %v1265
        %v1761 = vpop.f32.mrf.mxu0
        %v1762 = vadd.f32 %v456, %v1761
        %v1763 = vpop.f32.mrf.mxu0
        %v1764 = vadd.f32 %v456, %v1763
        %1765 = vmatmul.bf16.gmra.mxu0 %v1268
        %v1766 = vpop.f32.mrf.mxu0
        %v1767 = vadd.f32 %v456, %v1766
        %v1768 = vpop.f32.mrf.mxu0
        %v1769 = vadd.f32 %v456, %v1768
        %1770 = vmatmul.bf16.gmra.mxu0 %v1271
        %v1771 = vpop.f32.mrf.mxu0
        %v1772 = vadd.f32 %v456, %v1771
        %v1773 = vpop.f32.mrf.mxu0
        %v1774 = vadd.f32 %v456, %v1773
        %1775 = vmatmul.bf16.gmra.mxu0 %v1274
        %v1776 = vpop.f32.mrf.mxu0
        %v1777 = vadd.f32 %v456, %v1776
        %v1778 = vpop.f32.mrf.mxu0
        %v1779 = vadd.f32 %v456, %v1778
        %1780 = vmatmul.bf16.gmra.mxu0 %v1277
        %v1781 = vpop.f32.mrf.mxu0
        %v1782 = vadd.f32 %v456, %v1781
        %v1783 = vpop.f32.mrf.mxu0
        %v1784 = vadd.f32 %v456, %v1783
        %1785 = vmatmul.bf16.gmra.mxu0 %v1280
        %v1786 = vpop.f32.mrf.mxu0
        %v1787 = vadd.f32 %v456, %v1786
        %v1788 = vpop.f32.mrf.mxu0
        %v1789 = vadd.f32 %v456, %v1788
        %1790 = vmatmul.bf16.gmra.mxu0 %v1283
        %v1791 = vpop.f32.mrf.mxu0
        %v1792 = vadd.f32 %v456, %v1791
        %v1793 = vpop.f32.mrf.mxu0
        %v1794 = vadd.f32 %v456, %v1793
        %1795 = vmatmul.bf16.gmra.mxu0 %v1286
        %v1796 = vpop.f32.mrf.mxu0
        %v1797 = vadd.f32 %v456, %v1796
        %v1798 = vpop.f32.mrf.mxu0
        %v1799 = vadd.f32 %v456, %v1798
        %1800 = vmatmul.bf16.gmra.mxu0 %v1289
        %v1801 = vpop.f32.mrf.mxu0
        %v1802 = vadd.f32 %v456, %v1801
        %v1803 = vpop.f32.mrf.mxu0
        %v1804 = vadd.f32 %v456, %v1803
        %1805 = vmatmul.bf16.gmra.mxu0 %v1292
        %v1806 = vpop.f32.mrf.mxu0
        %v1807 = vadd.f32 %v456, %v1806
        %v1808 = vpop.f32.mrf.mxu0
        %v1809 = vadd.f32 %v456, %v1808
        %1810 = vmatmul.bf16.gmra.mxu0 %v1295
        %v1811 = vpop.f32.mrf.mxu0
        %v1812 = vadd.f32 %v456, %v1811
        %v1813 = vpop.f32.mrf.mxu0
        %v1814 = vadd.f32 %v456, %v1813
        %1815 = vmatmul.bf16.gmra.mxu0 %v1298
        %v1816 = vpop.f32.mrf.mxu0
        %v1817 = vadd.f32 %v456, %v1816
        %v1818 = vpop.f32.mrf.mxu0
        %v1819 = vadd.f32 %v456, %v1818
        %1820 = vmatmul.bf16.gmra.mxu0 %v1301
        %v1821 = vpop.f32.mrf.mxu0
        %v1822 = vadd.f32 %v456, %v1821
        %v1823 = vpop.f32.mrf.mxu0
        %v1824 = vadd.f32 %v456, %v1823
        %1825 = vmatmul.bf16.gmra.mxu0 %v1304
        %v1826 = vpop.f32.mrf.mxu0
        %v1827 = vadd.f32 %v456, %v1826
        %v1828 = vpop.f32.mrf.mxu0
        %v1829 = vadd.f32 %v456, %v1828
        %1830 = vmatmul.bf16.gmra.mxu0 %v1307
        %v1831 = vpop.f32.mrf.mxu0
        %v1832 = vadd.f32 %v456, %v1831
        %v1833 = vpop.f32.mrf.mxu0
        %v1834 = vadd.f32 %v456, %v1833
        %1835 = vmatmul.bf16.gmra.mxu0 %v1310
        %v1836 = vpop.f32.mrf.mxu0
        %v1837 = vadd.f32 %v456, %v1836
        %v1838 = vpop.f32.mrf.mxu0
        %v1839 = vadd.f32 %v456, %v1838
        %1840 = vmatmul.bf16.gmra.mxu0 %v1313
        %v1841 = vpop.f32.mrf.mxu0
        %v1842 = vadd.f32 %v456, %v1841
        %v1843 = vpop.f32.mrf.mxu0
        %v1844 = vadd.f32 %v456, %v1843
        %1845 = vmatmul.bf16.gmra.mxu0 %v1316
        %v1846 = vpop.f32.mrf.mxu0
        %v1847 = vadd.f32 %v456, %v1846
        %v1848 = vpop.f32.mrf.mxu0
        %v1849 = vadd.f32 %v456, %v1848
        %1850 = vmatmul.bf16.gmra.mxu0 %v1319
        %v1851 = vpop.f32.mrf.mxu0
        %v1852 = vadd.f32 %v456, %v1851
        %v1853 = vpop.f32.mrf.mxu0
        %v1854 = vadd.f32 %v456, %v1853
        %1855 = vmatmul.bf16.gmra.mxu0 %v1322
        %v1856 = vpop.f32.mrf.mxu0
        %v1857 = vadd.f32 %v456, %v1856
        %v1858 = vpop.f32.mrf.mxu0
        %v1859 = vadd.f32 %v456, %v1858
        %1860 = vmatmul.bf16.gmra.mxu0 %v1325
        %v1861 = vpop.f32.mrf.mxu0
        %v1862 = vadd.f32 %v456, %v1861
        %v1863 = vpop.f32.mrf.mxu0
        %v1864 = vadd.f32 %v456, %v1863
        %1865 = vmatmul.bf16.gmra.mxu0 %v1328
        %v1866 = vpop.f32.mrf.mxu0
        %v1867 = vadd.f32 %v456, %v1866
        %v1868 = vpop.f32.mrf.mxu0
        %v1869 = vadd.f32 %v456, %v1868
        %1870 = vmatmul.bf16.gmra.mxu0 %v1331
        %v1871 = vpop.f32.mrf.mxu0
        %v1872 = vadd.f32 %v456, %v1871
        %v1873 = vpop.f32.mrf.mxu0
        %v1874 = vadd.f32 %v456, %v1873
        %1875 = vmatmul.bf16.gmra.mxu0 %v1334
        %v1876 = vpop.f32.mrf.mxu0
        %v1877 = vadd.f32 %v456, %v1876
        %v1878 = vpop.f32.mrf.mxu0
        %v1879 = vadd.f32 %v456, %v1878
        %1880 = vmatmul.bf16.gmra.mxu0 %v1337
        %v1881 = vpop.f32.mrf.mxu0
        %v1882 = vadd.f32 %v456, %v1881
        %v1883 = vpop.f32.mrf.mxu0
        %v1884 = vadd.f32 %v456, %v1883
        %1885 = vmatmul.bf16.gmra.mxu0 %v1340
        %v1886 = vpop.f32.mrf.mxu0
        %v1887 = vadd.f32 %v456, %v1886
        %v1888 = vpop.f32.mrf.mxu0
        %v1889 = vadd.f32 %v456, %v1888
        %1890 = vmatmul.bf16.gmra.mxu0 %v1343
        %v1891 = vpop.f32.mrf.mxu0
        %v1892 = vadd.f32 %v456, %v1891
        %v1893 = vpop.f32.mrf.mxu0
        %v1894 = vadd.f32 %v456, %v1893
        %1895 = vmatmul.bf16.gmra.mxu0 %v1346
        %v1896 = vpop.f32.mrf.mxu0
        %v1897 = vadd.f32 %v456, %v1896
        %v1898 = vpop.f32.mrf.mxu0
        %v1899 = vadd.f32 %v456, %v1898
        %1900 = vmatmul.bf16.gmra.mxu0 %v1349
        %v1901 = vpop.f32.mrf.mxu0
        %v1902 = vadd.f32 %v456, %v1901
        %v1903 = vpop.f32.mrf.mxu0
        %v1904 = vadd.f32 %v456, %v1903
        %1905 = vmatmul.bf16.gmra.mxu0 %v1352
        %v1906 = vpop.f32.mrf.mxu0
        %v1907 = vadd.f32 %v456, %v1906
        %v1908 = vpop.f32.mrf.mxu0
        %v1909 = vadd.f32 %v456, %v1908
        %1910 = vmatmul.bf16.gmra.mxu0 %v1355
        %v1911 = vpop.f32.mrf.mxu0
        %v1912 = vadd.f32 %v456, %v1911
        %v1913 = vpop.f32.mrf.mxu0
        %v1914 = vadd.f32 %v456, %v1913
        %1915 = vmatmul.bf16.gmra.mxu0 %v1358
        %v1916 = vpop.f32.mrf.mxu0
        %v1917 = vadd.f32 %v456, %v1916
        %v1918 = vpop.f32.mrf.mxu0
        %v1919 = vadd.f32 %v456, %v1918
        %1920 = vmatmul.bf16.gmra.mxu0 %v1361
        %v1921 = vpop.f32.mrf.mxu0
        %v1922 = vadd.f32 %v456, %v1921
        %v1923 = vpop.f32.mrf.mxu0
        %v1924 = vadd.f32 %v456, %v1923
        %1925 = vmatmul.bf16.gmra.mxu0 %v1364
        %v1926 = vpop.f32.mrf.mxu0
        %v1927 = vadd.f32 %v456, %v1926
        %v1928 = vpop.f32.mrf.mxu0
        %v1929 = vadd.f32 %v456, %v1928
        %1930 = vmatmul.bf16.gmra.mxu0 %v1367
        %v1931 = vpop.f32.mrf.mxu0
        %v1932 = vadd.f32 %v456, %v1931
        %v1933 = vpop.f32.mrf.mxu0
        %v1934 = vadd.f32 %v456, %v1933
        %1935 = vmatmul.bf16.gmra.mxu0 %v1370
        %v1936 = vpop.f32.mrf.mxu0
        %v1937 = vadd.f32 %v456, %v1936
        %v1938 = vpop.f32.mrf.mxu0
        %v1939 = vadd.f32 %v456, %v1938
        %1940 = vmatmul.bf16.gmra.mxu0 %v1373
        %v1941 = vpop.f32.mrf.mxu0
        %v1942 = vadd.f32 %v456, %v1941
        %v1943 = vpop.f32.mrf.mxu0
        %v1944 = vadd.f32 %v456, %v1943
        %1945 = vmatmul.bf16.gmra.mxu0 %v1376
        %v1946 = vpop.f32.mrf.mxu0
        %v1947 = vadd.f32 %v456, %v1946
        %v1948 = vpop.f32.mrf.mxu0
        %v1949 = vadd.f32 %v456, %v1948
        %1950 = vmatmul.bf16.gmra.mxu0 %v1379
        %v1951 = vpop.f32.mrf.mxu0
        %v1952 = vadd.f32 %v456, %v1951
        %v1953 = vpop.f32.mrf.mxu0
        %v1954 = vadd.f32 %v456, %v1953
        %1955 = vmatmul.bf16.gmra.mxu0 %v1382
        %v1956 = vpop.f32.mrf.mxu0
        %v1957 = vadd.f32 %v456, %v1956
        %v1958 = vpop.f32.mrf.mxu0
        %v1959 = vadd.f32 %v456, %v1958
        %1960 = vmatmul.bf16.gmra.mxu0 %v1385
        %v1961 = vpop.f32.mrf.mxu0
        %v1962 = vadd.f32 %v456, %v1961
        %v1963 = vpop.f32.mrf.mxu0
        %v1964 = vadd.f32 %v456, %v1963
        %1965 = vmatmul.bf16.gmra.mxu0 %v1388
        %v1966 = vpop.f32.mrf.mxu0
        %v1967 = vadd.f32 %v456, %v1966
        %v1968 = vpop.f32.mrf.mxu0
        %v1969 = vadd.f32 %v456, %v1968
        %1970 = vmatmul.bf16.gmra.mxu0 %v1391
        %v1971 = vpop.f32.mrf.mxu0
        %v1972 = vadd.f32 %v456, %v1971
        %v1973 = vpop.f32.mrf.mxu0
        %v1974 = vadd.f32 %v456, %v1973
        %1975 = vmatmul.bf16.gmra.mxu0 %v1394
        %v1976 = vpop.f32.mrf.mxu0
        %v1977 = vadd.f32 %v456, %v1976
        %v1978 = vpop.f32.mrf.mxu0
        %v1979 = vadd.f32 %v456, %v1978
        %1980 = vmatmul.bf16.gmra.mxu0 %v1397
        %v1981 = vpop.f32.mrf.mxu0
        %v1982 = vadd.f32 %v456, %v1981
        %v1983 = vpop.f32.mrf.mxu0
        %v1984 = vadd.f32 %v456, %v1983
        %1985 = vmatmul.bf16.gmra.mxu0 %v1400
        %v1986 = vpop.f32.mrf.mxu0
        %v1987 = vadd.f32 %v456, %v1986
        %v1988 = vpop.f32.mrf.mxu0
        %v1989 = vadd.f32 %v456, %v1988
        %1990 = vmatmul.bf16.gmra.mxu0 %v1403
        %v1991 = vpop.f32.mrf.mxu0
        %v1992 = vadd.f32 %v456, %v1991
        %v1993 = vpop.f32.mrf.mxu0
        %v1994 = vadd.f32 %v456, %v1993
        %1995 = vmatmul.bf16.gmra.mxu0 %v1406
        %v1996 = vpop.f32.mrf.mxu0
        %v1997 = vadd.f32 %v456, %v1996
        %v1998 = vpop.f32.mrf.mxu0
        %v1999 = vadd.f32 %v456, %v1998
        %2000 = vmatmul.bf16.gmra.mxu0 %v1409
        %v2001 = vpop.f32.mrf.mxu0
        %v2002 = vadd.f32 %v456, %v2001
        %v2003 = vpop.f32.mrf.mxu0
        %v2004 = vadd.f32 %v456, %v2003
        %2005 = vmatmul.bf16.gmra.mxu0 %v1412
        %v2006 = vpop.f32.mrf.mxu0
        %v2007 = vadd.f32 %v456, %v2006
        %v2008 = vpop.f32.mrf.mxu0
        %v2009 = vadd.f32 %v456, %v2008
        %2010 = vmatmul.bf16.gmra.mxu0 %v1415
        %v2011 = vpop.f32.mrf.mxu0
        %v2012 = vadd.f32 %v456, %v2011
        %v2013 = vpop.f32.mrf.mxu0
        %v2014 = vadd.f32 %v456, %v2013
        %2015 = vmatmul.bf16.gmra.mxu0 %v1418
        %v2016 = vpop.f32.mrf.mxu0
        %v2017 = vadd.f32 %v456, %v2016
        %v2018 = vpop.f32.mrf.mxu0
        %v2019 = vadd.f32 %v456, %v2018
        %2020 = vmatmul.bf16.gmra.mxu0 %v1421
        %v2021 = vpop.f32.mrf.mxu0
        %v2022 = vadd.f32 %v456, %v2021
        %v2023 = vpop.f32.mrf.mxu0
        %v2024 = vadd.f32 %v456, %v2023
        %2025 = vmatmul.bf16.gmra.mxu0 %v1424
        %v2026 = vpop.f32.mrf.mxu0
        %v2027 = vadd.f32 %v456, %v2026
        %v2028 = vpop.f32.mrf.mxu0
        %v2029 = vadd.f32 %v456, %v2028
        %2030 = vmatmul.bf16.gmra.mxu0 %v1427
        %v2031 = vpop.f32.mrf.mxu0
        %v2032 = vadd.f32 %v456, %v2031
        %v2033 = vpop.f32.mrf.mxu0
        %v2034 = vadd.f32 %v456, %v2033
        %2035 = vmatmul.bf16.gmra.mxu0 %v1430
        %v2036 = vpop.f32.mrf.mxu0
        %v2037 = vadd.f32 %v456, %v2036
        %v2038 = vpop.f32.mrf.mxu0
        %v2039 = vadd.f32 %v456, %v2038
        %2040 = vmatmul.bf16.gmra.mxu0 %v1433
        %v2041 = vpop.f32.mrf.mxu0
        %v2042 = vadd.f32 %v456, %v2041
        %v2043 = vpop.f32.mrf.mxu0
        %v2044 = vadd.f32 %v456, %v2043
        %2045 = vmatmul.bf16.gmra.mxu0 %v1436
        %v2046 = vpop.f32.mrf.mxu0
        %v2047 = vadd.f32 %v456, %v2046
        %v2048 = vpop.f32.mrf.mxu0
        %v2049 = vadd.f32 %v456, %v2048
        %2050 = vmatmul.bf16.gmra.mxu0 %v1439
        %v2051 = vpop.f32.mrf.mxu0
        %v2052 = vadd.f32 %v456, %v2051
        %v2053 = vpop.f32.mrf.mxu0
        %v2054 = vadd.f32 %v456, %v2053
        %2055 = vmatmul.bf16.gmra.mxu0 %v1442
        %v2056 = vpop.f32.mrf.mxu0
        %v2057 = vadd.f32 %v456, %v2056
        %v2058 = vpop.f32.mrf.mxu0
        %v2059 = vadd.f32 %v456, %v2058
        %2060 = vmatmul.bf16.gmra.mxu0 %v1445
        %v2061 = vpop.f32.mrf.mxu0
        %v2062 = vadd.f32 %v456, %v2061
        %v2063 = vpop.f32.mrf.mxu0
        %v2064 = vadd.f32 %v456, %v2063
        %2065 = vmatmul.bf16.gmra.mxu0 %v1448
        %v2066 = vpop.f32.mrf.mxu0
        %v2067 = vadd.f32 %v456, %v2066
        %v2068 = vpop.f32.mrf.mxu0
        %v2069 = vadd.f32 %v456, %v2068
        %2070 = vmatmul.bf16.gmra.mxu0 %v1451
        %v2071 = vpop.f32.mrf.mxu0
        %v2072 = vadd.f32 %v456, %v2071
        %v2073 = vpop.f32.mrf.mxu0
        %v2074 = vadd.f32 %v456, %v2073
        %2075 = vmatmul.bf16.gmra.mxu0 %v1454
        %v2076 = vpop.f32.mrf.mxu0
        %v2077 = vadd.f32 %v456, %v2076
        %v2078 = vpop.f32.mrf.mxu0
        %v2079 = vadd.f32 %v456, %v2078
        %2080 = vmatmul.bf16.gmra.mxu0 %v1457
        %v2081 = vpop.f32.mrf.mxu0
        %v2082 = vadd.f32 %v456, %v2081
        %v2083 = vpop.f32.mrf.mxu0
        %v2084 = vadd.f32 %v456, %v2083
        %2085 = vmatmul.bf16.gmra.mxu0 %v1460
        %v2086 = vpop.f32.mrf.mxu0
        %v2087 = vadd.f32 %v456, %v2086
        %v2088 = vpop.f32.mrf.mxu0
        %v2089 = vadd.f32 %v456, %v2088
        %2090 = vmatmul.bf16.gmra.mxu0 %v1463
        %v2091 = vpop.f32.mrf.mxu0
        %v2092 = vadd.f32 %v456, %v2091
        %v2093 = vpop.f32.mrf.mxu0
        %v2094 = vadd.f32 %v456, %v2093
        %2095 = vmatmul.bf16.gmra.mxu0 %v1466
        %v2096 = vpop.f32.mrf.mxu0
        %v2097 = vadd.f32 %v456, %v2096
        %v2098 = vpop.f32.mrf.mxu0
        %v2099 = vadd.f32 %v456, %v2098
        %2100 = vmatmul.bf16.gmra.mxu0 %v1469
        %v2101 = vpop.f32.mrf.mxu0
        %v2102 = vadd.f32 %v456, %v2101
        %v2103 = vpop.f32.mrf.mxu0
        %v2104 = vadd.f32 %v456, %v2103
        %2105 = vmatmul.bf16.gmra.mxu0 %v1472
        %v2106 = vpop.f32.mrf.mxu0
        %v2107 = vadd.f32 %v456, %v2106
        %v2108 = vpop.f32.mrf.mxu0
        %v2109 = vadd.f32 %v456, %v2108
        %2110 = vmatmul.bf16.gmra.mxu0 %v1475
        %v2111 = vpop.f32.mrf.mxu0
        %v2112 = vadd.f32 %v456, %v2111
        %v2113 = vpop.f32.mrf.mxu0
        %v2114 = vadd.f32 %v456, %v2113
        %2115 = vmatmul.bf16.gmra.mxu0 %v1478
        %v2116 = vpop.f32.mrf.mxu0
        %v2117 = vadd.f32 %v456, %v2116
        %v2118 = vpop.f32.mrf.mxu0
        %v2119 = vadd.f32 %v456, %v2118
        %2120 = vmatmul.bf16.gmra.mxu0 %v1481
        %v2121 = vpop.f32.mrf.mxu0
        %v2122 = vadd.f32 %v456, %v2121
        %v2123 = vpop.f32.mrf.mxu0
        %v2124 = vadd.f32 %v456, %v2123
        %2125 = vmatmul.bf16.gmra.mxu0 %v1484
        %v2126 = vpop.f32.mrf.mxu0
        %v2127 = vadd.f32 %v456, %v2126
        %v2128 = vpop.f32.mrf.mxu0
        %v2129 = vadd.f32 %v456, %v2128
        %2130 = vmatmul.bf16.gmra.mxu0 %v1487
        %v2131 = vpop.f32.mrf.mxu0
        %v2132 = vadd.f32 %v456, %v2131
        %v2133 = vpop.f32.mrf.mxu0
        %v2134 = vadd.f32 %v456, %v2133
        %2135 = vmatmul.bf16.gmra.mxu0 %v1490
        %v2136 = vpop.f32.mrf.mxu0
        %v2137 = vadd.f32 %v456, %v2136
        %v2138 = vpop.f32.mrf.mxu0
        %v2139 = vadd.f32 %v456, %v2138
        %2140 = vmatmul.bf16.gmra.mxu0 %v1493
        %v2141 = vpop.f32.mrf.mxu0
        %v2142 = vadd.f32 %v456, %v2141
        %v2143 = vpop.f32.mrf.mxu0
        %v2144 = vadd.f32 %v456, %v2143
        %2145 = vmatmul.bf16.gmra.mxu0 %v1496
        %v2146 = vpop.f32.mrf.mxu0
        %v2147 = vadd.f32 %v456, %v2146
        %v2148 = vpop.f32.mrf.mxu0
        %v2149 = vadd.f32 %v456, %v2148
        %2150 = vdwg.mxu0
        %v2151 = vmax.f32 %v1512, 0.0
        %v2152 = vmax.f32 %v1514, 0.0
        %v2153 = vmax.f32 %v1517, 0.0
        %v2154 = vmax.f32 %v1519, 0.0
        %v2155 = vmax.f32 %v1522, 0.0
        %v2156 = vmax.f32 %v1524, 0.0
        %v2157 = vmax.f32 %v1527, 0.0
        %v2158 = vmax.f32 %v1529, 0.0
        %v2159 = vmax.f32 %v1532, 0.0
        %v2160 = vmax.f32 %v1534, 0.0
        %v2161 = vmax.f32 %v1537, 0.0
        %v2162 = vmax.f32 %v1539, 0.0
        %v2163 = vmax.f32 %v1542, 0.0
        %v2164 = vmax.f32 %v1544, 0.0
        %v2165 = vmax.f32 %v1547, 0.0
        %v2166 = vmax.f32 %v1549, 0.0
        %v2167 = vmax.f32 %v1552, 0.0
        %v2168 = vmax.f32 %v1554, 0.0
        %v2169 = vmax.f32 %v1557, 0.0
        %v2170 = vmax.f32 %v1559, 0.0
        %v2171 = vmax.f32 %v1562, 0.0
        %v2172 = vmax.f32 %v1564, 0.0
        %v2173 = vmax.f32 %v1567, 0.0
        %v2174 = vmax.f32 %v1569, 0.0
        %v2175 = vmax.f32 %v1572, 0.0
        %v2176 = vmax.f32 %v1574, 0.0
        %v2177 = vmax.f32 %v1577, 0.0
        %v2178 = vmax.f32 %v1579, 0.0
        %v2179 = vmax.f32 %v1582, 0.0
        %v2180 = vmax.f32 %v1584, 0.0
        %v2181 = vmax.f32 %v1587, 0.0
        %v2182 = vmax.f32 %v1589, 0.0
        %v2183 = vmax.f32 %v1592, 0.0
        %v2184 = vmax.f32 %v1594, 0.0
        %v2185 = vmax.f32 %v1597, 0.0
        %v2186 = vmax.f32 %v1599, 0.0
        %v2187 = vmax.f32 %v1602, 0.0
        %v2188 = vmax.f32 %v1604, 0.0
        %v2189 = vmax.f32 %v1607, 0.0
        %v2190 = vmax.f32 %v1609, 0.0
        %v2191 = vmax.f32 %v1612, 0.0
        %v2192 = vmax.f32 %v1614, 0.0
        %v2193 = vmax.f32 %v1617, 0.0
        %v2194 = vmax.f32 %v1619, 0.0
        %v2195 = vmax.f32 %v1622, 0.0
        %v2196 = vmax.f32 %v1624, 0.0
        %v2197 = vmax.f32 %v1627, 0.0
        %v2198 = vmax.f32 %v1629, 0.0
        %v2199 = vmax.f32 %v1632, 0.0
        %v2200 = vmax.f32 %v1634, 0.0
        %v2201 = vmax.f32 %v1637, 0.0
        %v2202 = vmax.f32 %v1639, 0.0
        %v2203 = vmax.f32 %v1642, 0.0
        %v2204 = vmax.f32 %v1644, 0.0
        %v2205 = vmax.f32 %v1647, 0.0
        %v2206 = vmax.f32 %v1649, 0.0
        %v2207 = vmax.f32 %v1652, 0.0
        %v2208 = vmax.f32 %v1654, 0.0
        %v2209 = vmax.f32 %v1657, 0.0
        %v2210 = vmax.f32 %v1659, 0.0
        %v2211 = vmax.f32 %v1662, 0.0
        %v2212 = vmax.f32 %v1664, 0.0
        %v2213 = vmax.f32 %v1667, 0.0
        %v2214 = vmax.f32 %v1669, 0.0
        %v2215 = vmax.f32 %v1672, 0.0
        %v2216 = vmax.f32 %v1674, 0.0
        %v2217 = vmax.f32 %v1677, 0.0
        %v2218 = vmax.f32 %v1679, 0.0
        %v2219 = vmax.f32 %v1682, 0.0
        %v2220 = vmax.f32 %v1684, 0.0
        %v2221 = vmax.f32 %v1687, 0.0
        %v2222 = vmax.f32 %v1689, 0.0
        %v2223 = vmax.f32 %v1692, 0.0
        %v2224 = vmax.f32 %v1694, 0.0
        %v2225 = vmax.f32 %v1697, 0.0
        %v2226 = vmax.f32 %v1699, 0.0
        %v2227 = vmax.f32 %v1702, 0.0
        %v2228 = vmax.f32 %v1704, 0.0
        %v2229 = vmax.f32 %v1707, 0.0
        %v2230 = vmax.f32 %v1709, 0.0
        %v2231 = vmax.f32 %v1712, 0.0
        %v2232 = vmax.f32 %v1714, 0.0
        %v2233 = vmax.f32 %v1717, 0.0
        %v2234 = vmax.f32 %v1719, 0.0
        %v2235 = vmax.f32 %v1722, 0.0
        %v2236 = vmax.f32 %v1724, 0.0
        %v2237 = vmax.f32 %v1727, 0.0
        %v2238 = vmax.f32 %v1729, 0.0
        %v2239 = vmax.f32 %v1732, 0.0
        %v2240 = vmax.f32 %v1734, 0.0
        %v2241 = vmax.f32 %v1737, 0.0
        %v2242 = vmax.f32 %v1739, 0.0
        %v2243 = vmax.f32 %v1742, 0.0
        %v2244 = vmax.f32 %v1744, 0.0
        %v2245 = vmax.f32 %v1747, 0.0
        %v2246 = vmax.f32 %v1749, 0.0
        %v2247 = vmax.f32 %v1752, 0.0
        %v2248 = vmax.f32 %v1754, 0.0
        %v2249 = vmax.f32 %v1757, 0.0
        %v2250 = vmax.f32 %v1759, 0.0
        %v2251 = vmax.f32 %v1762, 0.0
        %v2252 = vmax.f32 %v1764, 0.0
        %v2253 = vmax.f32 %v1767, 0.0
        %v2254 = vmax.f32 %v1769, 0.0
        %v2255 = vmax.f32 %v1772, 0.0
        %v2256 = vmax.f32 %v1774, 0.0
        %v2257 = vmax.f32 %v1777, 0.0
        %v2258 = vmax.f32 %v1779, 0.0
        %v2259 = vmax.f32 %v1782, 0.0
        %v2260 = vmax.f32 %v1784, 0.0
        %v2261 = vmax.f32 %v1787, 0.0
        %v2262 = vmax.f32 %v1789, 0.0
        %v2263 = vmax.f32 %v1792, 0.0
        %v2264 = vmax.f32 %v1794, 0.0
        %v2265 = vmax.f32 %v1797, 0.0
        %v2266 = vmax.f32 %v1799, 0.0
        %v2267 = vmax.f32 %v1802, 0.0
        %v2268 = vmax.f32 %v1804, 0.0
        %v2269 = vmax.f32 %v1807, 0.0
        %v2270 = vmax.f32 %v1809, 0.0
        %v2271 = vmax.f32 %v1812, 0.0
        %v2272 = vmax.f32 %v1814, 0.0
        %v2273 = vmax.f32 %v1817, 0.0
        %v2274 = vmax.f32 %v1819, 0.0
        %v2275 = vmax.f32 %v1822, 0.0
        %v2276 = vmax.f32 %v1824, 0.0
        %v2277 = vmax.f32 %v1827, 0.0
        %v2278 = vmax.f32 %v1829, 0.0
        %v2279 = vmax.f32 %v1832, 0.0
        %v2280 = vmax.f32 %v1834, 0.0
        %v2281 = vmax.f32 %v1837, 0.0
        %v2282 = vmax.f32 %v1839, 0.0
        %v2283 = vmax.f32 %v1842, 0.0
        %v2284 = vmax.f32 %v1844, 0.0
        %v2285 = vmax.f32 %v1847, 0.0
        %v2286 = vmax.f32 %v1849, 0.0
        %v2287 = vmax.f32 %v1852, 0.0
        %v2288 = vmax.f32 %v1854, 0.0
        %v2289 = vmax.f32 %v1857, 0.0
        %v2290 = vmax.f32 %v1859, 0.0
        %v2291 = vmax.f32 %v1862, 0.0
        %v2292 = vmax.f32 %v1864, 0.0
        %v2293 = vmax.f32 %v1867, 0.0
        %v2294 = vmax.f32 %v1869, 0.0
        %v2295 = vmax.f32 %v1872, 0.0
        %v2296 = vmax.f32 %v1874, 0.0
        %v2297 = vmax.f32 %v1877, 0.0
        %v2298 = vmax.f32 %v1879, 0.0
        %v2299 = vmax.f32 %v1882, 0.0
        %v2300 = vmax.f32 %v1884, 0.0
        %v2301 = vmax.f32 %v1887, 0.0
        %v2302 = vmax.f32 %v1889, 0.0
        %v2303 = vmax.f32 %v1892, 0.0
        %v2304 = vmax.f32 %v1894, 0.0
        %v2305 = vmax.f32 %v1897, 0.0
        %v2306 = vmax.f32 %v1899, 0.0
        %v2307 = vmax.f32 %v1902, 0.0
        %v2308 = vmax.f32 %v1904, 0.0
        %v2309 = vmax.f32 %v1907, 0.0
        %v2310 = vmax.f32 %v1909, 0.0
        %v2311 = vmax.f32 %v1912, 0.0
        %v2312 = vmax.f32 %v1914, 0.0
        %v2313 = vmax.f32 %v1917, 0.0
        %v2314 = vmax.f32 %v1919, 0.0
        %v2315 = vmax.f32 %v1922, 0.0
        %v2316 = vmax.f32 %v1924, 0.0
        %v2317 = vmax.f32 %v1927, 0.0
        %v2318 = vmax.f32 %v1929, 0.0
        %v2319 = vmax.f32 %v1932, 0.0
        %v2320 = vmax.f32 %v1934, 0.0
        %v2321 = vmax.f32 %v1937, 0.0
        %v2322 = vmax.f32 %v1939, 0.0
        %v2323 = vmax.f32 %v1942, 0.0
        %v2324 = vmax.f32 %v1944, 0.0
        %v2325 = vmax.f32 %v1947, 0.0
        %v2326 = vmax.f32 %v1949, 0.0
        %v2327 = vmax.f32 %v1952, 0.0
        %v2328 = vmax.f32 %v1954, 0.0
        %v2329 = vmax.f32 %v1957, 0.0
        %v2330 = vmax.f32 %v1959, 0.0
        %v2331 = vmax.f32 %v1962, 0.0
        %v2332 = vmax.f32 %v1964, 0.0
        %v2333 = vmax.f32 %v1967, 0.0
        %v2334 = vmax.f32 %v1969, 0.0
        %v2335 = vmax.f32 %v1972, 0.0
        %v2336 = vmax.f32 %v1974, 0.0
        %v2337 = vmax.f32 %v1977, 0.0
        %v2338 = vmax.f32 %v1979, 0.0
        %v2339 = vmax.f32 %v1982, 0.0
        %v2340 = vmax.f32 %v1984, 0.0
        %v2341 = vmax.f32 %v1987, 0.0
        %v2342 = vmax.f32 %v1989, 0.0
        %v2343 = vmax.f32 %v1992, 0.0
        %v2344 = vmax.f32 %v1994, 0.0
        %v2345 = vmax.f32 %v1997, 0.0
        %v2346 = vmax.f32 %v1999, 0.0
        %v2347 = vmax.f32 %v2002, 0.0
        %v2348 = vmax.f32 %v2004, 0.0
        %v2349 = vmax.f32 %v2007, 0.0
        %v2350 = vmax.f32 %v2009, 0.0
        %v2351 = vmax.f32 %v2012, 0.0
        %v2352 = vmax.f32 %v2014, 0.0
        %v2353 = vmax.f32 %v2017, 0.0
        %v2354 = vmax.f32 %v2019, 0.0
        %v2355 = vmax.f32 %v2022, 0.0
        %v2356 = vmax.f32 %v2024, 0.0
        %v2357 = vmax.f32 %v2027, 0.0
        %v2358 = vmax.f32 %v2029, 0.0
        %v2359 = vmax.f32 %v2032, 0.0
        %v2360 = vmax.f32 %v2034, 0.0
        %v2361 = vmax.f32 %v2037, 0.0
        %v2362 = vmax.f32 %v2039, 0.0
        %v2363 = vmax.f32 %v2042, 0.0
        %v2364 = vmax.f32 %v2044, 0.0
        %v2365 = vmax.f32 %v2047, 0.0
        %v2366 = vmax.f32 %v2049, 0.0
        %v2367 = vmax.f32 %v2052, 0.0
        %v2368 = vmax.f32 %v2054, 0.0
        %v2369 = vmax.f32 %v2057, 0.0
        %v2370 = vmax.f32 %v2059, 0.0
        %v2371 = vmax.f32 %v2062, 0.0
        %v2372 = vmax.f32 %v2064, 0.0
        %v2373 = vmax.f32 %v2067, 0.0
        %v2374 = vmax.f32 %v2069, 0.0
        %v2375 = vmax.f32 %v2072, 0.0
        %v2376 = vmax.f32 %v2074, 0.0
        %v2377 = vmax.f32 %v2077, 0.0
        %v2378 = vmax.f32 %v2079, 0.0
        %v2379 = vmax.f32 %v2082, 0.0
        %v2380 = vmax.f32 %v2084, 0.0
        %v2381 = vmax.f32 %v2087, 0.0
        %v2382 = vmax.f32 %v2089, 0.0
        %v2383 = vmax.f32 %v2092, 0.0
        %v2384 = vmax.f32 %v2094, 0.0
        %v2385 = vmax.f32 %v2097, 0.0
        %v2386 = vmax.f32 %v2099, 0.0
        %v2387 = vmax.f32 %v2102, 0.0
        %v2388 = vmax.f32 %v2104, 0.0
        %v2389 = vmax.f32 %v2107, 0.0
        %v2390 = vmax.f32 %v2109, 0.0
        %v2391 = vmax.f32 %v2112, 0.0
        %v2392 = vmax.f32 %v2114, 0.0
        %v2393 = vmax.f32 %v2117, 0.0
        %v2394 = vmax.f32 %v2119, 0.0
        %v2395 = vmax.f32 %v2122, 0.0
        %v2396 = vmax.f32 %v2124, 0.0
        %v2397 = vmax.f32 %v2127, 0.0
        %v2398 = vmax.f32 %v2129, 0.0
        %v2399 = vmax.f32 %v2132, 0.0
        %v2400 = vmax.f32 %v2134, 0.0
        %v2401 = vmax.f32 %v2137, 0.0
        %v2402 = vmax.f32 %v2139, 0.0
        %v2403 = vmax.f32 %v2142, 0.0
        %v2404 = vmax.f32 %v2144, 0.0
        %v2405 = vmax.f32 %v2147, 0.0
        %v2406 = vmax.f32 %v2149, 0.0
        %v2407 = vpack.c.bf16 %v2151, %v2151
        %v2408 = vpack.c.bf16 %v2152, %v2152
        %v2409 = vpack.c.bf16 %v2153, %v2153
        %v2410 = vpack.c.bf16 %v2154, %v2154
        %v2411 = vpack.c.bf16 %v2155, %v2155
        %v2412 = vpack.c.bf16 %v2156, %v2156
        %v2413 = vpack.c.bf16 %v2157, %v2157
        %v2414 = vpack.c.bf16 %v2158, %v2158
        %v2415 = vpack.c.bf16 %v2159, %v2159
        %v2416 = vpack.c.bf16 %v2160, %v2160
        %v2417 = vpack.c.bf16 %v2161, %v2161
        %v2418 = vpack.c.bf16 %v2162, %v2162
        %v2419 = vpack.c.bf16 %v2163, %v2163
        %v2420 = vpack.c.bf16 %v2164, %v2164
        %v2421 = vpack.c.bf16 %v2165, %v2165
        %v2422 = vpack.c.bf16 %v2166, %v2166
        %v2423 = vpack.c.bf16 %v2167, %v2167
        %v2424 = vpack.c.bf16 %v2168, %v2168
        %v2425 = vpack.c.bf16 %v2169, %v2169
        %v2426 = vpack.c.bf16 %v2170, %v2170
        %v2427 = vpack.c.bf16 %v2171, %v2171
        %v2428 = vpack.c.bf16 %v2172, %v2172
        %v2429 = vpack.c.bf16 %v2173, %v2173
        %v2430 = vpack.c.bf16 %v2174, %v2174
        %v2431 = vpack.c.bf16 %v2175, %v2175
        %v2432 = vpack.c.bf16 %v2176, %v2176
        %v2433 = vpack.c.bf16 %v2177, %v2177
        %v2434 = vpack.c.bf16 %v2178, %v2178
        %v2435 = vpack.c.bf16 %v2179, %v2179
        %v2436 = vpack.c.bf16 %v2180, %v2180
        %v2437 = vpack.c.bf16 %v2181, %v2181
        %v2438 = vpack.c.bf16 %v2182, %v2182
        %v2439 = vpack.c.bf16 %v2183, %v2183
        %v2440 = vpack.c.bf16 %v2184, %v2184
        %v2441 = vpack.c.bf16 %v2185, %v2185
        %v2442 = vpack.c.bf16 %v2186, %v2186
        %v2443 = vpack.c.bf16 %v2187, %v2187
        %v2444 = vpack.c.bf16 %v2188, %v2188
        %v2445 = vpack.c.bf16 %v2189, %v2189
        %v2446 = vpack.c.bf16 %v2190, %v2190
        %v2447 = vpack.c.bf16 %v2191, %v2191
        %v2448 = vpack.c.bf16 %v2192, %v2192
        %v2449 = vpack.c.bf16 %v2193, %v2193
        %v2450 = vpack.c.bf16 %v2194, %v2194
        %v2451 = vpack.c.bf16 %v2195, %v2195
        %v2452 = vpack.c.bf16 %v2196, %v2196
        %v2453 = vpack.c.bf16 %v2197, %v2197
        %v2454 = vpack.c.bf16 %v2198, %v2198
        %v2455 = vpack.c.bf16 %v2199, %v2199
        %v2456 = vpack.c.bf16 %v2200, %v2200
        %v2457 = vpack.c.bf16 %v2201, %v2201
        %v2458 = vpack.c.bf16 %v2202, %v2202
        %v2459 = vpack.c.bf16 %v2203, %v2203
        %v2460 = vpack.c.bf16 %v2204, %v2204
        %v2461 = vpack.c.bf16 %v2205, %v2205
        %v2462 = vpack.c.bf16 %v2206, %v2206
        %v2463 = vpack.c.bf16 %v2207, %v2207
        %v2464 = vpack.c.bf16 %v2208, %v2208
        %v2465 = vpack.c.bf16 %v2209, %v2209
        %v2466 = vpack.c.bf16 %v2210, %v2210
        %v2467 = vpack.c.bf16 %v2211, %v2211
        %v2468 = vpack.c.bf16 %v2212, %v2212
        %v2469 = vpack.c.bf16 %v2213, %v2213
        %v2470 = vpack.c.bf16 %v2214, %v2214
        %v2471 = vpack.c.bf16 %v2215, %v2215
        %v2472 = vpack.c.bf16 %v2216, %v2216
        %v2473 = vpack.c.bf16 %v2217, %v2217
        %v2474 = vpack.c.bf16 %v2218, %v2218
        %v2475 = vpack.c.bf16 %v2219, %v2219
        %v2476 = vpack.c.bf16 %v2220, %v2220
        %v2477 = vpack.c.bf16 %v2221, %v2221
        %v2478 = vpack.c.bf16 %v2222, %v2222
        %v2479 = vpack.c.bf16 %v2223, %v2223
        %v2480 = vpack.c.bf16 %v2224, %v2224
        %v2481 = vpack.c.bf16 %v2225, %v2225
        %v2482 = vpack.c.bf16 %v2226, %v2226
        %v2483 = vpack.c.bf16 %v2227, %v2227
        %v2484 = vpack.c.bf16 %v2228, %v2228
        %v2485 = vpack.c.bf16 %v2229, %v2229
        %v2486 = vpack.c.bf16 %v2230, %v2230
        %v2487 = vpack.c.bf16 %v2231, %v2231
        %v2488 = vpack.c.bf16 %v2232, %v2232
        %v2489 = vpack.c.bf16 %v2233, %v2233
        %v2490 = vpack.c.bf16 %v2234, %v2234
        %v2491 = vpack.c.bf16 %v2235, %v2235
        %v2492 = vpack.c.bf16 %v2236, %v2236
        %v2493 = vpack.c.bf16 %v2237, %v2237
        %v2494 = vpack.c.bf16 %v2238, %v2238
        %v2495 = vpack.c.bf16 %v2239, %v2239
        %v2496 = vpack.c.bf16 %v2240, %v2240
        %v2497 = vpack.c.bf16 %v2241, %v2241
        %v2498 = vpack.c.bf16 %v2242, %v2242
        %v2499 = vpack.c.bf16 %v2243, %v2243
        %v2500 = vpack.c.bf16 %v2244, %v2244
        %v2501 = vpack.c.bf16 %v2245, %v2245
        %v2502 = vpack.c.bf16 %v2246, %v2246
        %v2503 = vpack.c.bf16 %v2247, %v2247
        %v2504 = vpack.c.bf16 %v2248, %v2248
        %v2505 = vpack.c.bf16 %v2249, %v2249
        %v2506 = vpack.c.bf16 %v2250, %v2250
        %v2507 = vpack.c.bf16 %v2251, %v2251
        %v2508 = vpack.c.bf16 %v2252, %v2252
        %v2509 = vpack.c.bf16 %v2253, %v2253
        %v2510 = vpack.c.bf16 %v2254, %v2254
        %v2511 = vpack.c.bf16 %v2255, %v2255
        %v2512 = vpack.c.bf16 %v2256, %v2256
        %v2513 = vpack.c.bf16 %v2257, %v2257
        %v2514 = vpack.c.bf16 %v2258, %v2258
        %v2515 = vpack.c.bf16 %v2259, %v2259
        %v2516 = vpack.c.bf16 %v2260, %v2260
        %v2517 = vpack.c.bf16 %v2261, %v2261
        %v2518 = vpack.c.bf16 %v2262, %v2262
        %v2519 = vpack.c.bf16 %v2263, %v2263
        %v2520 = vpack.c.bf16 %v2264, %v2264
        %v2521 = vpack.c.bf16 %v2265, %v2265
        %v2522 = vpack.c.bf16 %v2266, %v2266
        %v2523 = vpack.c.bf16 %v2267, %v2267
        %v2524 = vpack.c.bf16 %v2268, %v2268
        %v2525 = vpack.c.bf16 %v2269, %v2269
        %v2526 = vpack.c.bf16 %v2270, %v2270
        %v2527 = vpack.c.bf16 %v2271, %v2271
        %v2528 = vpack.c.bf16 %v2272, %v2272
        %v2529 = vpack.c.bf16 %v2273, %v2273
        %v2530 = vpack.c.bf16 %v2274, %v2274
        %v2531 = vpack.c.bf16 %v2275, %v2275
        %v2532 = vpack.c.bf16 %v2276, %v2276
        %v2533 = vpack.c.bf16 %v2277, %v2277
        %v2534 = vpack.c.bf16 %v2278, %v2278
        %v2535 = vpack.c.bf16 %v2279, %v2279
        %v2536 = vpack.c.bf16 %v2280, %v2280
        %v2537 = vpack.c.bf16 %v2281, %v2281
        %v2538 = vpack.c.bf16 %v2282, %v2282
        %v2539 = vpack.c.bf16 %v2283, %v2283
        %v2540 = vpack.c.bf16 %v2284, %v2284
        %v2541 = vpack.c.bf16 %v2285, %v2285
        %v2542 = vpack.c.bf16 %v2286, %v2286
        %v2543 = vpack.c.bf16 %v2287, %v2287
        %v2544 = vpack.c.bf16 %v2288, %v2288
        %v2545 = vpack.c.bf16 %v2289, %v2289
        %v2546 = vpack.c.bf16 %v2290, %v2290
        %v2547 = vpack.c.bf16 %v2291, %v2291
        %v2548 = vpack.c.bf16 %v2292, %v2292
        %v2549 = vpack.c.bf16 %v2293, %v2293
        %v2550 = vpack.c.bf16 %v2294, %v2294
        %v2551 = vpack.c.bf16 %v2295, %v2295
        %v2552 = vpack.c.bf16 %v2296, %v2296
        %v2553 = vpack.c.bf16 %v2297, %v2297
        %v2554 = vpack.c.bf16 %v2298, %v2298
        %v2555 = vpack.c.bf16 %v2299, %v2299
        %v2556 = vpack.c.bf16 %v2300, %v2300
        %v2557 = vpack.c.bf16 %v2301, %v2301
        %v2558 = vpack.c.bf16 %v2302, %v2302
        %v2559 = vpack.c.bf16 %v2303, %v2303
        %v2560 = vpack.c.bf16 %v2304, %v2304
        %v2561 = vpack.c.bf16 %v2305, %v2305
        %v2562 = vpack.c.bf16 %v2306, %v2306
        %v2563 = vpack.c.bf16 %v2307, %v2307
        %v2564 = vpack.c.bf16 %v2308, %v2308
        %v2565 = vpack.c.bf16 %v2309, %v2309
        %v2566 = vpack.c.bf16 %v2310, %v2310
        %v2567 = vpack.c.bf16 %v2311, %v2311
        %v2568 = vpack.c.bf16 %v2312, %v2312
        %v2569 = vpack.c.bf16 %v2313, %v2313
        %v2570 = vpack.c.bf16 %v2314, %v2314
        %v2571 = vpack.c.bf16 %v2315, %v2315
        %v2572 = vpack.c.bf16 %v2316, %v2316
        %v2573 = vpack.c.bf16 %v2317, %v2317
        %v2574 = vpack.c.bf16 %v2318, %v2318
        %v2575 = vpack.c.bf16 %v2319, %v2319
        %v2576 = vpack.c.bf16 %v2320, %v2320
        %v2577 = vpack.c.bf16 %v2321, %v2321
        %v2578 = vpack.c.bf16 %v2322, %v2322
        %v2579 = vpack.c.bf16 %v2323, %v2323
        %v2580 = vpack.c.bf16 %v2324, %v2324
        %v2581 = vpack.c.bf16 %v2325, %v2325
        %v2582 = vpack.c.bf16 %v2326, %v2326
        %v2583 = vpack.c.bf16 %v2327, %v2327
        %v2584 = vpack.c.bf16 %v2328, %v2328
        %v2585 = vpack.c.bf16 %v2329, %v2329
        %v2586 = vpack.c.bf16 %v2330, %v2330
        %v2587 = vpack.c.bf16 %v2331, %v2331
        %v2588 = vpack.c.bf16 %v2332, %v2332
        %v2589 = vpack.c.bf16 %v2333, %v2333
        %v2590 = vpack.c.bf16 %v2334, %v2334
        %v2591 = vpack.c.bf16 %v2335, %v2335
        %v2592 = vpack.c.bf16 %v2336, %v2336
        %v2593 = vpack.c.bf16 %v2337, %v2337
        %v2594 = vpack.c.bf16 %v2338, %v2338
        %v2595 = vpack.c.bf16 %v2339, %v2339
        %v2596 = vpack.c.bf16 %v2340, %v2340
        %v2597 = vpack.c.bf16 %v2341, %v2341
        %v2598 = vpack.c.bf16 %v2342, %v2342
        %v2599 = vpack.c.bf16 %v2343, %v2343
        %v2600 = vpack.c.bf16 %v2344, %v2344
        %v2601 = vpack.c.bf16 %v2345, %v2345
        %v2602 = vpack.c.bf16 %v2346, %v2346
        %v2603 = vpack.c.bf16 %v2347, %v2347
        %v2604 = vpack.c.bf16 %v2348, %v2348
        %v2605 = vpack.c.bf16 %v2349, %v2349
        %v2606 = vpack.c.bf16 %v2350, %v2350
        %v2607 = vpack.c.bf16 %v2351, %v2351
        %v2608 = vpack.c.bf16 %v2352, %v2352
        %v2609 = vpack.c.bf16 %v2353, %v2353
        %v2610 = vpack.c.bf16 %v2354, %v2354
        %v2611 = vpack.c.bf16 %v2355, %v2355
        %v2612 = vpack.c.bf16 %v2356, %v2356
        %v2613 = vpack.c.bf16 %v2357, %v2357
        %v2614 = vpack.c.bf16 %v2358, %v2358
        %v2615 = vpack.c.bf16 %v2359, %v2359
        %v2616 = vpack.c.bf16 %v2360, %v2360
        %v2617 = vpack.c.bf16 %v2361, %v2361
        %v2618 = vpack.c.bf16 %v2362, %v2362
        %v2619 = vpack.c.bf16 %v2363, %v2363
        %v2620 = vpack.c.bf16 %v2364, %v2364
        %v2621 = vpack.c.bf16 %v2365, %v2365
        %v2622 = vpack.c.bf16 %v2366, %v2366
        %v2623 = vpack.c.bf16 %v2367, %v2367
        %v2624 = vpack.c.bf16 %v2368, %v2368
        %v2625 = vpack.c.bf16 %v2369, %v2369
        %v2626 = vpack.c.bf16 %v2370, %v2370
        %v2627 = vpack.c.bf16 %v2371, %v2371
        %v2628 = vpack.c.bf16 %v2372, %v2372
        %v2629 = vpack.c.bf16 %v2373, %v2373
        %v2630 = vpack.c.bf16 %v2374, %v2374
        %v2631 = vpack.c.bf16 %v2375, %v2375
        %v2632 = vpack.c.bf16 %v2376, %v2376
        %v2633 = vpack.c.bf16 %v2377, %v2377
        %v2634 = vpack.c.bf16 %v2378, %v2378
        %v2635 = vpack.c.bf16 %v2379, %v2379
        %v2636 = vpack.c.bf16 %v2380, %v2380
        %v2637 = vpack.c.bf16 %v2381, %v2381
        %v2638 = vpack.c.bf16 %v2382, %v2382
        %v2639 = vpack.c.bf16 %v2383, %v2383
        %v2640 = vpack.c.bf16 %v2384, %v2384
        %v2641 = vpack.c.bf16 %v2385, %v2385
        %v2642 = vpack.c.bf16 %v2386, %v2386
        %v2643 = vpack.c.bf16 %v2387, %v2387
        %v2644 = vpack.c.bf16 %v2388, %v2388
        %v2645 = vpack.c.bf16 %v2389, %v2389
        %v2646 = vpack.c.bf16 %v2390, %v2390
        %v2647 = vpack.c.bf16 %v2391, %v2391
        %v2648 = vpack.c.bf16 %v2392, %v2392
        %v2649 = vpack.c.bf16 %v2393, %v2393
        %v2650 = vpack.c.bf16 %v2394, %v2394
        %v2651 = vpack.c.bf16 %v2395, %v2395
        %v2652 = vpack.c.bf16 %v2396, %v2396
        %v2653 = vpack.c.bf16 %v2397, %v2397
        %v2654 = vpack.c.bf16 %v2398, %v2398
        %v2655 = vpack.c.bf16 %v2399, %v2399
        %v2656 = vpack.c.bf16 %v2400, %v2400
        %v2657 = vpack.c.bf16 %v2401, %v2401
        %v2658 = vpack.c.bf16 %v2402, %v2402
        %v2659 = vpack.c.bf16 %v2403, %v2403
        %v2660 = vpack.c.bf16 %v2404, %v2404
        %v2661 = vpack.c.bf16 %v2405, %v2405
        %v2662 = vpack.c.bf16 %v2406, %v2406
        %vm2663 = vcmask 125952
        %2664 = vst.msk [vmem:[%s172] sm:$0xf] %vm2663, %v2407
        %2665 = vst.msk [vmem:[%s172 + $0x4] sm:$0xf] %vm2663, %v2408
        %2666 = vst.msk [vmem:[%s172 + $0x8] sm:$0xf] %vm2663, %v2409
        %2667 = vst.msk [vmem:[%s172 + $0xc] sm:$0xf] %vm2663, %v2410
        %2668 = vst.msk [vmem:[%s172 + $0x10] sm:$0xf] %vm2663, %v2411
        %2669 = vst.msk [vmem:[%s172 + $0x14] sm:$0xf] %vm2663, %v2412
        %2670 = vst.msk [vmem:[%s172 + $0x18] sm:$0xf] %vm2663, %v2413
        %2671 = vst.msk [vmem:[%s172 + $0x1c] sm:$0xf] %vm2663, %v2414
        %2672 = vst.msk [vmem:[%s172 + $0x20] sm:$0xf] %vm2663, %v2415
        %2673 = vst.msk [vmem:[%s172 + $0x24] sm:$0xf] %vm2663, %v2416
        %2674 = vst.msk [vmem:[%s172 + $0x28] sm:$0xf] %vm2663, %v2417
        %2675 = vst.msk [vmem:[%s172 + $0x2c] sm:$0xf] %vm2663, %v2418
        %2676 = vst.msk [vmem:[%s172 + $0x30] sm:$0xf] %vm2663, %v2419
        %2677 = vst.msk [vmem:[%s172 + $0x34] sm:$0xf] %vm2663, %v2420
        %2678 = vst.msk [vmem:[%s172 + $0x38] sm:$0xf] %vm2663, %v2421
        %2679 = vst.msk [vmem:[%s172 + $0x3c] sm:$0xf] %vm2663, %v2422
        %2680 = vst.msk [vmem:[%s172 + $0x40] sm:$0xf] %vm2663, %v2423
        %2681 = vst.msk [vmem:[%s172 + $0x44] sm:$0xf] %vm2663, %v2424
        %2682 = vst.msk [vmem:[%s172 + $0x48] sm:$0xf] %vm2663, %v2425
        %2683 = vst.msk [vmem:[%s172 + $0x4c] sm:$0xf] %vm2663, %v2426
        %2684 = vst.msk [vmem:[%s172 + $0x50] sm:$0xf] %vm2663, %v2427
        %2685 = vst.msk [vmem:[%s172 + $0x54] sm:$0xf] %vm2663, %v2428
        %2686 = vst.msk [vmem:[%s172 + $0x58] sm:$0xf] %vm2663, %v2429
        %2687 = vst.msk [vmem:[%s172 + $0x5c] sm:$0xf] %vm2663, %v2430
        %2688 = vst.msk [vmem:[%s172 + $0x60] sm:$0xf] %vm2663, %v2431
        %2689 = vst.msk [vmem:[%s172 + $0x64] sm:$0xf] %vm2663, %v2432
        %2690 = vst.msk [vmem:[%s172 + $0x68] sm:$0xf] %vm2663, %v2433
        %2691 = vst.msk [vmem:[%s172 + $0x6c] sm:$0xf] %vm2663, %v2434
        %2692 = vst.msk [vmem:[%s172 + $0x70] sm:$0xf] %vm2663, %v2435
        %2693 = vst.msk [vmem:[%s172 + $0x74] sm:$0xf] %vm2663, %v2436
        %2694 = vst.msk [vmem:[%s172 + $0x78] sm:$0xf] %vm2663, %v2437
        %2695 = vst.msk [vmem:[%s172 + $0x7c] sm:$0xf] %vm2663, %v2438
        %2696 = vst.msk [vmem:[%s172 + $0x80] sm:$0xf] %vm2663, %v2439
        %2697 = vst.msk [vmem:[%s172 + $0x84] sm:$0xf] %vm2663, %v2440
        %2698 = vst.msk [vmem:[%s172 + $0x88] sm:$0xf] %vm2663, %v2441
        %2699 = vst.msk [vmem:[%s172 + $0x8c] sm:$0xf] %vm2663, %v2442
        %2700 = vst.msk [vmem:[%s172 + $0x90] sm:$0xf] %vm2663, %v2443
        %2701 = vst.msk [vmem:[%s172 + $0x94] sm:$0xf] %vm2663, %v2444
        %2702 = vst.msk [vmem:[%s172 + $0x98] sm:$0xf] %vm2663, %v2445
        %2703 = vst.msk [vmem:[%s172 + $0x9c] sm:$0xf] %vm2663, %v2446
        %2704 = vst.msk [vmem:[%s172 + $0xa0] sm:$0xf] %vm2663, %v2447
        %2705 = vst.msk [vmem:[%s172 + $0xa4] sm:$0xf] %vm2663, %v2448
        %2706 = vst.msk [vmem:[%s172 + $0xa8] sm:$0xf] %vm2663, %v2449
        %2707 = vst.msk [vmem:[%s172 + $0xac] sm:$0xf] %vm2663, %v2450
        %2708 = vst.msk [vmem:[%s172 + $0xb0] sm:$0xf] %vm2663, %v2451
        %2709 = vst.msk [vmem:[%s172 + $0xb4] sm:$0xf] %vm2663, %v2452
        %2710 = vst.msk [vmem:[%s172 + $0xb8] sm:$0xf] %vm2663, %v2453
        %2711 = vst.msk [vmem:[%s172 + $0xbc] sm:$0xf] %vm2663, %v2454
        %2712 = vst.msk [vmem:[%s172 + $0xc0] sm:$0xf] %vm2663, %v2455
        %2713 = vst.msk [vmem:[%s172 + $0xc4] sm:$0xf] %vm2663, %v2456
        %2714 = vst.msk [vmem:[%s172 + $0xc8] sm:$0xf] %vm2663, %v2457
        %2715 = vst.msk [vmem:[%s172 + $0xcc] sm:$0xf] %vm2663, %v2458
        %2716 = vst.msk [vmem:[%s172 + $0xd0] sm:$0xf] %vm2663, %v2459
        %2717 = vst.msk [vmem:[%s172 + $0xd4] sm:$0xf] %vm2663, %v2460
        %2718 = vst.msk [vmem:[%s172 + $0xd8] sm:$0xf] %vm2663, %v2461
        %2719 = vst.msk [vmem:[%s172 + $0xdc] sm:$0xf] %vm2663, %v2462
        %2720 = vst.msk [vmem:[%s172 + $0xe0] sm:$0xf] %vm2663, %v2463
        %2721 = vst.msk [vmem:[%s172 + $0xe4] sm:$0xf] %vm2663, %v2464
        %2722 = vst.msk [vmem:[%s172 + $0xe8] sm:$0xf] %vm2663, %v2465
        %2723 = vst.msk [vmem:[%s172 + $0xec] sm:$0xf] %vm2663, %v2466
        %2724 = vst.msk [vmem:[%s172 + $0xf0] sm:$0xf] %vm2663, %v2467
        %2725 = vst.msk [vmem:[%s172 + $0xf4] sm:$0xf] %vm2663, %v2468
        %2726 = vst.msk [vmem:[%s172 + $0xf8] sm:$0xf] %vm2663, %v2469
        %2727 = vst.msk [vmem:[%s172 + $0xfc] sm:$0xf] %vm2663, %v2470
        %2728 = vst.msk [vmem:[%s172 + $0x100] sm:$0xf] %vm2663, %v2471
        %2729 = vst.msk [vmem:[%s172 + $0x104] sm:$0xf] %vm2663, %v2472
        %2730 = vst.msk [vmem:[%s172 + $0x108] sm:$0xf] %vm2663, %v2473
        %2731 = vst.msk [vmem:[%s172 + $0x10c] sm:$0xf] %vm2663, %v2474
        %2732 = vst.msk [vmem:[%s172 + $0x110] sm:$0xf] %vm2663, %v2475
        %2733 = vst.msk [vmem:[%s172 + $0x114] sm:$0xf] %vm2663, %v2476
        %2734 = vst.msk [vmem:[%s172 + $0x118] sm:$0xf] %vm2663, %v2477
        %2735 = vst.msk [vmem:[%s172 + $0x11c] sm:$0xf] %vm2663, %v2478
        %2736 = vst.msk [vmem:[%s172 + $0x120] sm:$0xf] %vm2663, %v2479
        %2737 = vst.msk [vmem:[%s172 + $0x124] sm:$0xf] %vm2663, %v2480
        %2738 = vst.msk [vmem:[%s172 + $0x128] sm:$0xf] %vm2663, %v2481
        %2739 = vst.msk [vmem:[%s172 + $0x12c] sm:$0xf] %vm2663, %v2482
        %2740 = vst.msk [vmem:[%s172 + $0x130] sm:$0xf] %vm2663, %v2483
        %2741 = vst.msk [vmem:[%s172 + $0x134] sm:$0xf] %vm2663, %v2484
        %2742 = vst.msk [vmem:[%s172 + $0x138] sm:$0xf] %vm2663, %v2485
        %2743 = vst.msk [vmem:[%s172 + $0x13c] sm:$0xf] %vm2663, %v2486
        %2744 = vst.msk [vmem:[%s172 + $0x140] sm:$0xf] %vm2663, %v2487
        %2745 = vst.msk [vmem:[%s172 + $0x144] sm:$0xf] %vm2663, %v2488
        %2746 = vst.msk [vmem:[%s172 + $0x148] sm:$0xf] %vm2663, %v2489
        %2747 = vst.msk [vmem:[%s172 + $0x14c] sm:$0xf] %vm2663, %v2490
        %2748 = vst.msk [vmem:[%s172 + $0x150] sm:$0xf] %vm2663, %v2491
        %2749 = vst.msk [vmem:[%s172 + $0x154] sm:$0xf] %vm2663, %v2492
        %2750 = vst.msk [vmem:[%s172 + $0x158] sm:$0xf] %vm2663, %v2493
        %2751 = vst.msk [vmem:[%s172 + $0x15c] sm:$0xf] %vm2663, %v2494
        %2752 = vst.msk [vmem:[%s172 + $0x160] sm:$0xf] %vm2663, %v2495
        %2753 = vst.msk [vmem:[%s172 + $0x164] sm:$0xf] %vm2663, %v2496
        %2754 = vst.msk [vmem:[%s172 + $0x168] sm:$0xf] %vm2663, %v2497
        %2755 = vst.msk [vmem:[%s172 + $0x16c] sm:$0xf] %vm2663, %v2498
        %2756 = vst.msk [vmem:[%s172 + $0x170] sm:$0xf] %vm2663, %v2499
        %2757 = vst.msk [vmem:[%s172 + $0x174] sm:$0xf] %vm2663, %v2500
        %2758 = vst.msk [vmem:[%s172 + $0x178] sm:$0xf] %vm2663, %v2501
        %2759 = vst.msk [vmem:[%s172 + $0x17c] sm:$0xf] %vm2663, %v2502
        %2760 = vst.msk [vmem:[%s172 + $0x180] sm:$0xf] %vm2663, %v2503
        %2761 = vst.msk [vmem:[%s172 + $0x184] sm:$0xf] %vm2663, %v2504
        %2762 = vst.msk [vmem:[%s172 + $0x188] sm:$0xf] %vm2663, %v2505
        %2763 = vst.msk [vmem:[%s172 + $0x18c] sm:$0xf] %vm2663, %v2506
        %2764 = vst.msk [vmem:[%s172 + $0x190] sm:$0xf] %vm2663, %v2507
        %2765 = vst.msk [vmem:[%s172 + $0x194] sm:$0xf] %vm2663, %v2508
        %2766 = vst.msk [vmem:[%s172 + $0x198] sm:$0xf] %vm2663, %v2509
        %2767 = vst.msk [vmem:[%s172 + $0x19c] sm:$0xf] %vm2663, %v2510
        %2768 = vst.msk [vmem:[%s172 + $0x1a0] sm:$0xf] %vm2663, %v2511
        %2769 = vst.msk [vmem:[%s172 + $0x1a4] sm:$0xf] %vm2663, %v2512
        %2770 = vst.msk [vmem:[%s172 + $0x1a8] sm:$0xf] %vm2663, %v2513
        %2771 = vst.msk [vmem:[%s172 + $0x1ac] sm:$0xf] %vm2663, %v2514
        %2772 = vst.msk [vmem:[%s172 + $0x1b0] sm:$0xf] %vm2663, %v2515
        %2773 = vst.msk [vmem:[%s172 + $0x1b4] sm:$0xf] %vm2663, %v2516
        %2774 = vst.msk [vmem:[%s172 + $0x1b8] sm:$0xf] %vm2663, %v2517
        %2775 = vst.msk [vmem:[%s172 + $0x1bc] sm:$0xf] %vm2663, %v2518
        %2776 = vst.msk [vmem:[%s172 + $0x1c0] sm:$0xf] %vm2663, %v2519
        %2777 = vst.msk [vmem:[%s172 + $0x1c4] sm:$0xf] %vm2663, %v2520
        %2778 = vst.msk [vmem:[%s172 + $0x1c8] sm:$0xf] %vm2663, %v2521
        %2779 = vst.msk [vmem:[%s172 + $0x1cc] sm:$0xf] %vm2663, %v2522
        %2780 = vst.msk [vmem:[%s172 + $0x1d0] sm:$0xf] %vm2663, %v2523
        %2781 = vst.msk [vmem:[%s172 + $0x1d4] sm:$0xf] %vm2663, %v2524
        %2782 = vst.msk [vmem:[%s172 + $0x1d8] sm:$0xf] %vm2663, %v2525
        %2783 = vst.msk [vmem:[%s172 + $0x1dc] sm:$0xf] %vm2663, %v2526
        %2784 = vst.msk [vmem:[%s172 + $0x1e0] sm:$0xf] %vm2663, %v2527
        %2785 = vst.msk [vmem:[%s172 + $0x1e4] sm:$0xf] %vm2663, %v2528
        %2786 = vst.msk [vmem:[%s172 + $0x1e8] sm:$0xf] %vm2663, %v2529
        %2787 = vst.msk [vmem:[%s172 + $0x1ec] sm:$0xf] %vm2663, %v2530
        %2788 = vst.msk [vmem:[%s172 + $0x1f0] sm:$0xf] %vm2663, %v2531
        %2789 = vst.msk [vmem:[%s172 + $0x1f4] sm:$0xf] %vm2663, %v2532
        %2790 = vst.msk [vmem:[%s172 + $0x1f8] sm:$0xf] %vm2663, %v2533
        %2791 = vst.msk [vmem:[%s172 + $0x1fc] sm:$0xf] %vm2663, %v2534
        %2792 = vst.msk [vmem:[%s172 + $0x200] sm:$0xf] %vm2663, %v2535
        %2793 = vst.msk [vmem:[%s172 + $0x204] sm:$0xf] %vm2663, %v2536
        %2794 = vst.msk [vmem:[%s172 + $0x208] sm:$0xf] %vm2663, %v2537
        %2795 = vst.msk [vmem:[%s172 + $0x20c] sm:$0xf] %vm2663, %v2538
        %2796 = vst.msk [vmem:[%s172 + $0x210] sm:$0xf] %vm2663, %v2539
        %2797 = vst.msk [vmem:[%s172 + $0x214] sm:$0xf] %vm2663, %v2540
        %2798 = vst.msk [vmem:[%s172 + $0x218] sm:$0xf] %vm2663, %v2541
        %2799 = vst.msk [vmem:[%s172 + $0x21c] sm:$0xf] %vm2663, %v2542
        %2800 = vst.msk [vmem:[%s172 + $0x220] sm:$0xf] %vm2663, %v2543
        %2801 = vst.msk [vmem:[%s172 + $0x224] sm:$0xf] %vm2663, %v2544
        %2802 = vst.msk [vmem:[%s172 + $0x228] sm:$0xf] %vm2663, %v2545
        %2803 = vst.msk [vmem:[%s172 + $0x22c] sm:$0xf] %vm2663, %v2546
        %2804 = vst.msk [vmem:[%s172 + $0x230] sm:$0xf] %vm2663, %v2547
        %2805 = vst.msk [vmem:[%s172 + $0x234] sm:$0xf] %vm2663, %v2548
        %2806 = vst.msk [vmem:[%s172 + $0x238] sm:$0xf] %vm2663, %v2549
        %2807 = vst.msk [vmem:[%s172 + $0x23c] sm:$0xf] %vm2663, %v2550
        %2808 = vst.msk [vmem:[%s172 + $0x240] sm:$0xf] %vm2663, %v2551
        %2809 = vst.msk [vmem:[%s172 + $0x244] sm:$0xf] %vm2663, %v2552
        %2810 = vst.msk [vmem:[%s172 + $0x248] sm:$0xf] %vm2663, %v2553
        %2811 = vst.msk [vmem:[%s172 + $0x24c] sm:$0xf] %vm2663, %v2554
        %2812 = vst.msk [vmem:[%s172 + $0x250] sm:$0xf] %vm2663, %v2555
        %2813 = vst.msk [vmem:[%s172 + $0x254] sm:$0xf] %vm2663, %v2556
        %2814 = vst.msk [vmem:[%s172 + $0x258] sm:$0xf] %vm2663, %v2557
        %2815 = vst.msk [vmem:[%s172 + $0x25c] sm:$0xf] %vm2663, %v2558
        %2816 = vst.msk [vmem:[%s172 + $0x260] sm:$0xf] %vm2663, %v2559
        %2817 = vst.msk [vmem:[%s172 + $0x264] sm:$0xf] %vm2663, %v2560
        %2818 = vst.msk [vmem:[%s172 + $0x268] sm:$0xf] %vm2663, %v2561
        %2819 = vst.msk [vmem:[%s172 + $0x26c] sm:$0xf] %vm2663, %v2562
        %2820 = vst.msk [vmem:[%s172 + $0x270] sm:$0xf] %vm2663, %v2563
        %2821 = vst.msk [vmem:[%s172 + $0x274] sm:$0xf] %vm2663, %v2564
        %2822 = vst.msk [vmem:[%s172 + $0x278] sm:$0xf] %vm2663, %v2565
        %2823 = vst.msk [vmem:[%s172 + $0x27c] sm:$0xf] %vm2663, %v2566
        %2824 = vst.msk [vmem:[%s172 + $0x280] sm:$0xf] %vm2663, %v2567
        %2825 = vst.msk [vmem:[%s172 + $0x284] sm:$0xf] %vm2663, %v2568
        %2826 = vst.msk [vmem:[%s172 + $0x288] sm:$0xf] %vm2663, %v2569
        %2827 = vst.msk [vmem:[%s172 + $0x28c] sm:$0xf] %vm2663, %v2570
        %2828 = vst.msk [vmem:[%s172 + $0x290] sm:$0xf] %vm2663, %v2571
        %2829 = vst.msk [vmem:[%s172 + $0x294] sm:$0xf] %vm2663, %v2572
        %2830 = vst.msk [vmem:[%s172 + $0x298] sm:$0xf] %vm2663, %v2573
        %2831 = vst.msk [vmem:[%s172 + $0x29c] sm:$0xf] %vm2663, %v2574
        %2832 = vst.msk [vmem:[%s172 + $0x2a0] sm:$0xf] %vm2663, %v2575
        %2833 = vst.msk [vmem:[%s172 + $0x2a4] sm:$0xf] %vm2663, %v2576
        %2834 = vst.msk [vmem:[%s172 + $0x2a8] sm:$0xf] %vm2663, %v2577
        %2835 = vst.msk [vmem:[%s172 + $0x2ac] sm:$0xf] %vm2663, %v2578
        %2836 = vst.msk [vmem:[%s172 + $0x2b0] sm:$0xf] %vm2663, %v2579
        %2837 = vst.msk [vmem:[%s172 + $0x2b4] sm:$0xf] %vm2663, %v2580
        %2838 = vst.msk [vmem:[%s172 + $0x2b8] sm:$0xf] %vm2663, %v2581
        %2839 = vst.msk [vmem:[%s172 + $0x2bc] sm:$0xf] %vm2663, %v2582
        %2840 = vst.msk [vmem:[%s172 + $0x2c0] sm:$0xf] %vm2663, %v2583
        %2841 = vst.msk [vmem:[%s172 + $0x2c4] sm:$0xf] %vm2663, %v2584
        %2842 = vst.msk [vmem:[%s172 + $0x2c8] sm:$0xf] %vm2663, %v2585
        %2843 = vst.msk [vmem:[%s172 + $0x2cc] sm:$0xf] %vm2663, %v2586
        %2844 = vst.msk [vmem:[%s172 + $0x2d0] sm:$0xf] %vm2663, %v2587
        %2845 = vst.msk [vmem:[%s172 + $0x2d4] sm:$0xf] %vm2663, %v2588
        %2846 = vst.msk [vmem:[%s172 + $0x2d8] sm:$0xf] %vm2663, %v2589
        %2847 = vst.msk [vmem:[%s172 + $0x2dc] sm:$0xf] %vm2663, %v2590
        %2848 = vst.msk [vmem:[%s172 + $0x2e0] sm:$0xf] %vm2663, %v2591
        %2849 = vst.msk [vmem:[%s172 + $0x2e4] sm:$0xf] %vm2663, %v2592
        %2850 = vst.msk [vmem:[%s172 + $0x2e8] sm:$0xf] %vm2663, %v2593
        %2851 = vst.msk [vmem:[%s172 + $0x2ec] sm:$0xf] %vm2663, %v2594
        %2852 = vst.msk [vmem:[%s172 + $0x2f0] sm:$0xf] %vm2663, %v2595
        %2853 = vst.msk [vmem:[%s172 + $0x2f4] sm:$0xf] %vm2663, %v2596
        %2854 = vst.msk [vmem:[%s172 + $0x2f8] sm:$0xf] %vm2663, %v2597
        %2855 = vst.msk [vmem:[%s172 + $0x2fc] sm:$0xf] %vm2663, %v2598
        %2856 = vst.msk [vmem:[%s172 + $0x300] sm:$0xf] %vm2663, %v2599
        %2857 = vst.msk [vmem:[%s172 + $0x304] sm:$0xf] %vm2663, %v2600
        %2858 = vst.msk [vmem:[%s172 + $0x308] sm:$0xf] %vm2663, %v2601
        %2859 = vst.msk [vmem:[%s172 + $0x30c] sm:$0xf] %vm2663, %v2602
        %2860 = vst.msk [vmem:[%s172 + $0x310] sm:$0xf] %vm2663, %v2603
        %2861 = vst.msk [vmem:[%s172 + $0x314] sm:$0xf] %vm2663, %v2604
        %2862 = vst.msk [vmem:[%s172 + $0x318] sm:$0xf] %vm2663, %v2605
        %2863 = vst.msk [vmem:[%s172 + $0x31c] sm:$0xf] %vm2663, %v2606
        %2864 = vst.msk [vmem:[%s172 + $0x320] sm:$0xf] %vm2663, %v2607
        %2865 = vst.msk [vmem:[%s172 + $0x324] sm:$0xf] %vm2663, %v2608
        %2866 = vst.msk [vmem:[%s172 + $0x328] sm:$0xf] %vm2663, %v2609
        %2867 = vst.msk [vmem:[%s172 + $0x32c] sm:$0xf] %vm2663, %v2610
        %2868 = vst.msk [vmem:[%s172 + $0x330] sm:$0xf] %vm2663, %v2611
        %2869 = vst.msk [vmem:[%s172 + $0x334] sm:$0xf] %vm2663, %v2612
        %2870 = vst.msk [vmem:[%s172 + $0x338] sm:$0xf] %vm2663, %v2613
        %2871 = vst.msk [vmem:[%s172 + $0x33c] sm:$0xf] %vm2663, %v2614
        %2872 = vst.msk [vmem:[%s172 + $0x340] sm:$0xf] %vm2663, %v2615
        %2873 = vst.msk [vmem:[%s172 + $0x344] sm:$0xf] %vm2663, %v2616
        %2874 = vst.msk [vmem:[%s172 + $0x348] sm:$0xf] %vm2663, %v2617
        %2875 = vst.msk [vmem:[%s172 + $0x34c] sm:$0xf] %vm2663, %v2618
        %2876 = vst.msk [vmem:[%s172 + $0x350] sm:$0xf] %vm2663, %v2619
        %2877 = vst.msk [vmem:[%s172 + $0x354] sm:$0xf] %vm2663, %v2620
        %2878 = vst.msk [vmem:[%s172 + $0x358] sm:$0xf] %vm2663, %v2621
        %2879 = vst.msk [vmem:[%s172 + $0x35c] sm:$0xf] %vm2663, %v2622
        %2880 = vst.msk [vmem:[%s172 + $0x360] sm:$0xf] %vm2663, %v2623
        %2881 = vst.msk [vmem:[%s172 + $0x364] sm:$0xf] %vm2663, %v2624
        %2882 = vst.msk [vmem:[%s172 + $0x368] sm:$0xf] %vm2663, %v2625
        %2883 = vst.msk [vmem:[%s172 + $0x36c] sm:$0xf] %vm2663, %v2626
        %2884 = vst.msk [vmem:[%s172 + $0x370] sm:$0xf] %vm2663, %v2627
        %2885 = vst.msk [vmem:[%s172 + $0x374] sm:$0xf] %vm2663, %v2628
        %2886 = vst.msk [vmem:[%s172 + $0x378] sm:$0xf] %vm2663, %v2629
        %2887 = vst.msk [vmem:[%s172 + $0x37c] sm:$0xf] %vm2663, %v2630
        %2888 = vst.msk [vmem:[%s172 + $0x380] sm:$0xf] %vm2663, %v2631
        %2889 = vst.msk [vmem:[%s172 + $0x384] sm:$0xf] %vm2663, %v2632
        %2890 = vst.msk [vmem:[%s172 + $0x388] sm:$0xf] %vm2663, %v2633
        %2891 = vst.msk [vmem:[%s172 + $0x38c] sm:$0xf] %vm2663, %v2634
        %2892 = vst.msk [vmem:[%s172 + $0x390] sm:$0xf] %vm2663, %v2635
        %2893 = vst.msk [vmem:[%s172 + $0x394] sm:$0xf] %vm2663, %v2636
        %2894 = vst.msk [vmem:[%s172 + $0x398] sm:$0xf] %vm2663, %v2637
        %2895 = vst.msk [vmem:[%s172 + $0x39c] sm:$0xf] %vm2663, %v2638
        %2896 = vst.msk [vmem:[%s172 + $0x3a0] sm:$0xf] %vm2663, %v2639
        %2897 = vst.msk [vmem:[%s172 + $0x3a4] sm:$0xf] %vm2663, %v2640
        %2898 = vst.msk [vmem:[%s172 + $0x3a8] sm:$0xf] %vm2663, %v2641
        %2899 = vst.msk [vmem:[%s172 + $0x3ac] sm:$0xf] %vm2663, %v2642
        %2900 = vst.msk [vmem:[%s172 + $0x3b0] sm:$0xf] %vm2663, %v2643
        %2901 = vst.msk [vmem:[%s172 + $0x3b4] sm:$0xf] %vm2663, %v2644
        %2902 = vst.msk [vmem:[%s172 + $0x3b8] sm:$0xf] %vm2663, %v2645
        %2903 = vst.msk [vmem:[%s172 + $0x3bc] sm:$0xf] %vm2663, %v2646
        %2904 = vst.msk [vmem:[%s172 + $0x3c0] sm:$0xf] %vm2663, %v2647
        %2905 = vst.msk [vmem:[%s172 + $0x3c4] sm:$0xf] %vm2663, %v2648
        %2906 = vst.msk [vmem:[%s172 + $0x3c8] sm:$0xf] %vm2663, %v2649
        %2907 = vst.msk [vmem:[%s172 + $0x3cc] sm:$0xf] %vm2663, %v2650
        %2908 = vst.msk [vmem:[%s172 + $0x3d0] sm:$0xf] %vm2663, %v2651
        %2909 = vst.msk [vmem:[%s172 + $0x3d4] sm:$0xf] %vm2663, %v2652
        %2910 = vst.msk [vmem:[%s172 + $0x3d8] sm:$0xf] %vm2663, %v2653
        %2911 = vst.msk [vmem:[%s172 + $0x3dc] sm:$0xf] %vm2663, %v2654
        %2912 = vst.msk [vmem:[%s172 + $0x3e0] sm:$0xf] %vm2663, %v2655
        %2913 = vst.msk [vmem:[%s172 + $0x3e4] sm:$0xf] %vm2663, %v2656
        %2914 = vst.msk [vmem:[%s172 + $0x3e8] sm:$0xf] %vm2663, %v2657
        %2915 = vst.msk [vmem:[%s172 + $0x3ec] sm:$0xf] %vm2663, %v2658
        %2916 = vst.msk [vmem:[%s172 + $0x3f0] sm:$0xf] %vm2663, %v2659
        %2917 = vst.msk [vmem:[%s172 + $0x3f4] sm:$0xf] %vm2663, %v2660
        %2918 = vst.msk [vmem:[%s172 + $0x3f8] sm:$0xf] %vm2663, %v2661
        %2919 = vst.msk [vmem:[%s172 + $0x3fc] sm:$0xf] %vm2663, %v2662
        %s2920 = sand.u32 %s90, 1
        %s2921 = sand.u32 %s90, 1
        %s2922 = smul.addr %s2921, 1024
        %s2923 = scalar_lea.vmem [#allocation2], %s2922
        // Predicated region
        $region33: #{cqnet_forward.4} parent=31 // pred_check
          %p2924 = pneg %p100
        $region34: #{cqnet_forward.4} parent=31 // pred_check_branch
          %2926 = sbr.rel (%p2924) target = $region36
        $region35: #{cqnet_forward.4} parent=31 // pred_region
          %s2927 = smul.u32 256, %s14
          %s2928 = ssub.s32 1764, %s2927
          %p2929 = scmp.lt.s32.totalorder %s2928, 256
          %s2930 = scalar_select %p2929, %s2928, 256
          %s2931 = smul.u32 4, %s2930
          %p2932 = scmp.ne.s32.totalorder 0, %s2931
          %s2933 = smul.addr %s2927, 4
          %s2934 = scalar_lea.vmem %s3, %s2933
          // Predicated region
          $region37: #{cqnet_forward.4} parent=35 // pred_check
            %p2935 = pneg %p2932
          $region38: #{cqnet_forward.4} parent=35 // pred_check_branch
            %2937 = sbr.rel (%p2935) target = $region40
          $region39: #{cqnet_forward.4} parent=35 // pred_region
            // Predicated region
            $region41: #{cqnet_forward.4} parent=39 // pred_check
              _
            $region42: #{cqnet_forward.4} parent=39 // pred_check_branch
              %2939 = sbr.rel target = $region44
            $region43: #{cqnet_forward.4} parent=39 // pred_region
              // Predicated region
              $region63: #{cqnet_forward.4} parent=43 // pred_check
                _
              $region64: #{cqnet_forward.4} parent=43 // pred_check_branch
                %3051 = sbr.rel (0) target = $region66
              $region65: #{cqnet_forward.4} parent=43 // pred_region
                %s3053 = ssub.s32 16, 1
                %s3054 = sshrl.u32 %s2930, 5
                // While loop
                $region67: #{cqnet_forward.4} parent=65 // loop_pre_header
                  _
                $region68: #{cqnet_forward.4} parent=65 // loop_header
                  %s3056 = sphi 0, %s3058
                  %p3057 = scmp.ge.s32.totalorder %s3056, %s3054
                  %s3061 = sphi 0, %s3130
                  %s3062 = sphi %s2923, %s3133
                  %s3063 = sphi %s2934, %s3134
                $region69: #{cqnet_forward.4} parent=65 // loop_header_branch
                  %3060 = sbr.rel (%p3057) target = $region73
                $region70: #{cqnet_forward.4} parent=65 // loop_body
                  %v3064 = vld [vmem:[%s3062] sm:%s3053]
                  %3065 = vst [vmem:[%s3063] sm:%s3053] %v3064
                  %v3066 = vld [vmem:[%s3062 + $0x4] sm:%s3053]
                  %3067 = vst [vmem:[%s3063 + $0x4] sm:%s3053] %v3066
                  %v3068 = vld [vmem:[%s3062 + $0x8] sm:%s3053]
                  %3069 = vst [vmem:[%s3063 + $0x8] sm:%s3053] %v3068
                  %v3070 = vld [vmem:[%s3062 + $0xc] sm:%s3053]
                  %3071 = vst [vmem:[%s3063 + $0xc] sm:%s3053] %v3070
                  %v3072 = vld [vmem:[%s3062 + $0x10] sm:%s3053]
                  %3073 = vst [vmem:[%s3063 + $0x10] sm:%s3053] %v3072
                  %v3074 = vld [vmem:[%s3062 + $0x14] sm:%s3053]
                  %3075 = vst [vmem:[%s3063 + $0x14] sm:%s3053] %v3074
                  %v3076 = vld [vmem:[%s3062 + $0x18] sm:%s3053]
                  %3077 = vst [vmem:[%s3063 + $0x18] sm:%s3053] %v3076
                  %v3078 = vld [vmem:[%s3062 + $0x1c] sm:%s3053]
                  %3079 = vst [vmem:[%s3063 + $0x1c] sm:%s3053] %v3078
                  %v3080 = vld [vmem:[%s3062 + $0x20] sm:%s3053]
                  %3081 = vst [vmem:[%s3063 + $0x20] sm:%s3053] %v3080
                  %v3082 = vld [vmem:[%s3062 + $0x24] sm:%s3053]
                  %3083 = vst [vmem:[%s3063 + $0x24] sm:%s3053] %v3082
                  %v3084 = vld [vmem:[%s3062 + $0x28] sm:%s3053]
                  %3085 = vst [vmem:[%s3063 + $0x28] sm:%s3053] %v3084
                  %v3086 = vld [vmem:[%s3062 + $0x2c] sm:%s3053]
                  %3087 = vst [vmem:[%s3063 + $0x2c] sm:%s3053] %v3086
                  %v3088 = vld [vmem:[%s3062 + $0x30] sm:%s3053]
                  %3089 = vst [vmem:[%s3063 + $0x30] sm:%s3053] %v3088
                  %v3090 = vld [vmem:[%s3062 + $0x34] sm:%s3053]
                  %3091 = vst [vmem:[%s3063 + $0x34] sm:%s3053] %v3090
                  %v3092 = vld [vmem:[%s3062 + $0x38] sm:%s3053]
                  %3093 = vst [vmem:[%s3063 + $0x38] sm:%s3053] %v3092
                  %v3094 = vld [vmem:[%s3062 + $0x3c] sm:%s3053]
                  %3095 = vst [vmem:[%s3063 + $0x3c] sm:%s3053] %v3094
                  %v3096 = vld [vmem:[%s3062 + $0x40] sm:%s3053]
                  %3097 = vst [vmem:[%s3063 + $0x40] sm:%s3053] %v3096
                  %v3098 = vld [vmem:[%s3062 + $0x44] sm:%s3053]
                  %3099 = vst [vmem:[%s3063 + $0x44] sm:%s3053] %v3098
                  %v3100 = vld [vmem:[%s3062 + $0x48] sm:%s3053]
                  %3101 = vst [vmem:[%s3063 + $0x48] sm:%s3053] %v3100
                  %v3102 = vld [vmem:[%s3062 + $0x4c] sm:%s3053]
                  %3103 = vst [vmem:[%s3063 + $0x4c] sm:%s3053] %v3102
                  %v3104 = vld [vmem:[%s3062 + $0x50] sm:%s3053]
                  %3105 = vst [vmem:[%s3063 + $0x50] sm:%s3053] %v3104
                  %v3106 = vld [vmem:[%s3062 + $0x54] sm:%s3053]
                  %3107 = vst [vmem:[%s3063 + $0x54] sm:%s3053] %v3106
                  %v3108 = vld [vmem:[%s3062 + $0x58] sm:%s3053]
                  %3109 = vst [vmem:[%s3063 + $0x58] sm:%s3053] %v3108
                  %v3110 = vld [vmem:[%s3062 + $0x5c] sm:%s3053]
                  %3111 = vst [vmem:[%s3063 + $0x5c] sm:%s3053] %v3110
                  %v3112 = vld [vmem:[%s3062 + $0x60] sm:%s3053]
                  %3113 = vst [vmem:[%s3063 + $0x60] sm:%s3053] %v3112
                  %v3114 = vld [vmem:[%s3062 + $0x64] sm:%s3053]
                  %3115 = vst [vmem:[%s3063 + $0x64] sm:%s3053] %v3114
                  %v3116 = vld [vmem:[%s3062 + $0x68] sm:%s3053]
                  %3117 = vst [vmem:[%s3063 + $0x68] sm:%s3053] %v3116
                  %v3118 = vld [vmem:[%s3062 + $0x6c] sm:%s3053]
                  %3119 = vst [vmem:[%s3063 + $0x6c] sm:%s3053] %v3118
                  %v3120 = vld [vmem:[%s3062 + $0x70] sm:%s3053]
                  %3121 = vst [vmem:[%s3063 + $0x70] sm:%s3053] %v3120
                  %v3122 = vld [vmem:[%s3062 + $0x74] sm:%s3053]
                  %3123 = vst [vmem:[%s3063 + $0x74] sm:%s3053] %v3122
                  %v3124 = vld [vmem:[%s3062 + $0x78] sm:%s3053]
                  %3125 = vst [vmem:[%s3063 + $0x78] sm:%s3053] %v3124
                  %v3126 = vld [vmem:[%s3062 + $0x7c] sm:%s3053]
                  %3127 = vst [vmem:[%s3063 + $0x7c] sm:%s3053] %v3126
                  %s3128 = sadd.s32 1, %s3061
                  %p3129 = scmp.ge.s32.totalorder %s3128, %s3054
                  %s3130 = scalar_select %p3129, 0, %s3128
                  %s3131 = smul.u32 %s3130, 128
                  %s3132 = smul.u32 %s3130, 128
                  %s3133 = scalar_lea.vmem %s2923, %s3131 [#allocation2]
                  %s3134 = scalar_lea.vmem %s2934, %s3132
                $region71: #{cqnet_forward.4} parent=65 // loop_footer
                  %s3058 = sadd.s32 %s3056, 1
                $region72: #{cqnet_forward.4} parent=65 // loop_footer_branch
                  %3055 = sbr.rel target = $region68
                $region73: #{cqnet_forward.4} parent=65 // loop_exit
                  _
                %s3135 = sshrl.u32 %s2930, 5
                %s3136 = sand.u32 %s2930, 31
                %s3137 = smul.u32 %s3135, 32
                %s3138 = smul.u32 4, %s3137
                %s3139 = scalar_lea.vmem %s2923, %s3138 [#allocation2]
                %s3140 = smul.u32 4, %s3137
                %s3141 = scalar_lea.vmem %s2934, %s3140
                // While loop
                $region74: #{cqnet_forward.4} parent=65 // loop_pre_header
                  _
                $region75: #{cqnet_forward.4} parent=65 // loop_header
                  %s3143 = sphi 0, %s3145
                  %p3144 = scmp.ge.s32.totalorder %s3143, %s3136
                  %s3148 = sphi 0, %s3155
                  %s3149 = sphi %s3139, %s3158
                  %s3150 = sphi %s3141, %s3159
                $region76: #{cqnet_forward.4} parent=65 // loop_header_branch
                  %3147 = sbr.rel (%p3144) target = $region80
                $region77: #{cqnet_forward.4} parent=65 // loop_body
                  %v3151 = vld [vmem:[%s3149] sm:%s3053]
                  %3152 = vst [vmem:[%s3150] sm:%s3053] %v3151
                  %s3153 = sadd.s32 1, %s3148
                  %p3154 = scmp.ge.s32.totalorder %s3153, %s3136
                  %s3155 = scalar_select %p3154, 0, %s3153
                  %s3156 = smul.u32 %s3155, 4
                  %s3157 = smul.u32 %s3155, 4
                  %s3158 = scalar_lea.vmem %s3139, %s3156 [#allocation2]
                  %s3159 = scalar_lea.vmem %s3141, %s3157
                $region78: #{cqnet_forward.4} parent=65 // loop_footer
                  %s3145 = sadd.s32 %s3143, 1
                $region79: #{cqnet_forward.4} parent=65 // loop_footer_branch
                  %3142 = sbr.rel target = $region75
                $region80: #{cqnet_forward.4} parent=65 // loop_exit
                  _
              $region66: #{cqnet_forward.4} parent=43 // pred_fallthru
                _
            $region44: #{cqnet_forward.4} parent=39 // pred_fallthru
              _
            // Predicated region
            $region45: #{cqnet_forward.4} parent=39 // pred_check
              _
            $region46: #{cqnet_forward.4} parent=39 // pred_check_branch
              %2941 = sbr.rel (0) target = $region48
            $region47: #{cqnet_forward.4} parent=39 // pred_region
              %s2943 = ssub.s32 16, 1
              %s2944 = sshrl.u32 %s2930, 5
              // While loop
              $region49: #{cqnet_forward.4} parent=47 // loop_pre_header
                _
              $region50: #{cqnet_forward.4} parent=47 // loop_header
                %s2946 = sphi 0, %s2948
                %p2947 = scmp.ge.s32.totalorder %s2946, %s2944
                %s2951 = sphi 0, %s3020
                %s2952 = sphi %s2923, %s3023
                %s2953 = sphi %s2934, %s3024
              $region51: #{cqnet_forward.4} parent=47 // loop_header_branch
                %2950 = sbr.rel (%p2947) target = $region55
              $region52: #{cqnet_forward.4} parent=47 // loop_body
                %v2954 = vld [vmem:[%s2952] sm:%s2943]
                %2955 = vst [vmem:[%s2953] sm:%s2943] %v2954
                %v2956 = vld [vmem:[%s2952 + $0x4] sm:%s2943]
                %2957 = vst [vmem:[%s2953 + $0x4] sm:%s2943] %v2956
                %v2958 = vld [vmem:[%s2952 + $0x8] sm:%s2943]
                %2959 = vst [vmem:[%s2953 + $0x8] sm:%s2943] %v2958
                %v2960 = vld [vmem:[%s2952 + $0xc] sm:%s2943]
                %2961 = vst [vmem:[%s2953 + $0xc] sm:%s2943] %v2960
                %v2962 = vld [vmem:[%s2952 + $0x10] sm:%s2943]
                %2963 = vst [vmem:[%s2953 + $0x10] sm:%s2943] %v2962
                %v2964 = vld [vmem:[%s2952 + $0x14] sm:%s2943]
                %2965 = vst [vmem:[%s2953 + $0x14] sm:%s2943] %v2964
                %v2966 = vld [vmem:[%s2952 + $0x18] sm:%s2943]
                %2967 = vst [vmem:[%s2953 + $0x18] sm:%s2943] %v2966
                %v2968 = vld [vmem:[%s2952 + $0x1c] sm:%s2943]
                %2969 = vst [vmem:[%s2953 + $0x1c] sm:%s2943] %v2968
                %v2970 = vld [vmem:[%s2952 + $0x20] sm:%s2943]
                %2971 = vst [vmem:[%s2953 + $0x20] sm:%s2943] %v2970
                %v2972 = vld [vmem:[%s2952 + $0x24] sm:%s2943]
                %2973 = vst [vmem:[%s2953 + $0x24] sm:%s2943] %v2972
                %v2974 = vld [vmem:[%s2952 + $0x28] sm:%s2943]
                %2975 = vst [vmem:[%s2953 + $0x28] sm:%s2943] %v2974
                %v2976 = vld [vmem:[%s2952 + $0x2c] sm:%s2943]
                %2977 = vst [vmem:[%s2953 + $0x2c] sm:%s2943] %v2976
                %v2978 = vld [vmem:[%s2952 + $0x30] sm:%s2943]
                %2979 = vst [vmem:[%s2953 + $0x30] sm:%s2943] %v2978
                %v2980 = vld [vmem:[%s2952 + $0x34] sm:%s2943]
                %2981 = vst [vmem:[%s2953 + $0x34] sm:%s2943] %v2980
                %v2982 = vld [vmem:[%s2952 + $0x38] sm:%s2943]
                %2983 = vst [vmem:[%s2953 + $0x38] sm:%s2943] %v2982
                %v2984 = vld [vmem:[%s2952 + $0x3c] sm:%s2943]
                %2985 = vst [vmem:[%s2953 + $0x3c] sm:%s2943] %v2984
                %v2986 = vld [vmem:[%s2952 + $0x40] sm:%s2943]
                %2987 = vst [vmem:[%s2953 + $0x40] sm:%s2943] %v2986
                %v2988 = vld [vmem:[%s2952 + $0x44] sm:%s2943]
                %2989 = vst [vmem:[%s2953 + $0x44] sm:%s2943] %v2988
                %v2990 = vld [vmem:[%s2952 + $0x48] sm:%s2943]
                %2991 = vst [vmem:[%s2953 + $0x48] sm:%s2943] %v2990
                %v2992 = vld [vmem:[%s2952 + $0x4c] sm:%s2943]
                %2993 = vst [vmem:[%s2953 + $0x4c] sm:%s2943] %v2992
                %v2994 = vld [vmem:[%s2952 + $0x50] sm:%s2943]
                %2995 = vst [vmem:[%s2953 + $0x50] sm:%s2943] %v2994
                %v2996 = vld [vmem:[%s2952 + $0x54] sm:%s2943]
                %2997 = vst [vmem:[%s2953 + $0x54] sm:%s2943] %v2996
                %v2998 = vld [vmem:[%s2952 + $0x58] sm:%s2943]
                %2999 = vst [vmem:[%s2953 + $0x58] sm:%s2943] %v2998
                %v3000 = vld [vmem:[%s2952 + $0x5c] sm:%s2943]
                %3001 = vst [vmem:[%s2953 + $0x5c] sm:%s2943] %v3000
                %v3002 = vld [vmem:[%s2952 + $0x60] sm:%s2943]
                %3003 = vst [vmem:[%s2953 + $0x60] sm:%s2943] %v3002
                %v3004 = vld [vmem:[%s2952 + $0x64] sm:%s2943]
                %3005 = vst [vmem:[%s2953 + $0x64] sm:%s2943] %v3004
                %v3006 = vld [vmem:[%s2952 + $0x68] sm:%s2943]
                %3007 = vst [vmem:[%s2953 + $0x68] sm:%s2943] %v3006
                %v3008 = vld [vmem:[%s2952 + $0x6c] sm:%s2943]
                %3009 = vst [vmem:[%s2953 + $0x6c] sm:%s2943] %v3008
                %v3010 = vld [vmem:[%s2952 + $0x70] sm:%s2943]
                %3011 = vst [vmem:[%s2953 + $0x70] sm:%s2943] %v3010
                %v3012 = vld [vmem:[%s2952 + $0x74] sm:%s2943]
                %3013 = vst [vmem:[%s2953 + $0x74] sm:%s2943] %v3012
                %v3014 = vld [vmem:[%s2952 + $0x78] sm:%s2943]
                %3015 = vst [vmem:[%s2953 + $0x78] sm:%s2943] %v3014
                %v3016 = vld [vmem:[%s2952 + $0x7c] sm:%s2943]
                %3017 = vst [vmem:[%s2953 + $0x7c] sm:%s2943] %v3016
                %s3018 = sadd.s32 1, %s2951
                %p3019 = scmp.ge.s32.totalorder %s3018, %s2944
                %s3020 = scalar_select %p3019, 0, %s3018
                %s3021 = smul.u32 %s3020, 128
                %s3022 = smul.u32 %s3020, 128
                %s3023 = scalar_lea.vmem %s2923, %s3021 [#allocation2]
                %s3024 = scalar_lea.vmem %s2934, %s3022
              $region53: #{cqnet_forward.4} parent=47 // loop_footer
                %s2948 = sadd.s32 %s2946, 1
              $region54: #{cqnet_forward.4} parent=47 // loop_footer_branch
                %2945 = sbr.rel target = $region50
              $region55: #{cqnet_forward.4} parent=47 // loop_exit
                _
              %s3025 = sshrl.u32 %s2930, 5
              %s3026 = sand.u32 %s2930, 31
              %s3027 = smul.u32 %s3025, 32
              %s3028 = smul.u32 4, %s3027
              %s3029 = scalar_lea.vmem %s2923, %s3028 [#allocation2]
              %s3030 = smul.u32 4, %s3027
              %s3031 = scalar_lea.vmem %s2934, %s3030
              // While loop
              $region56: #{cqnet_forward.4} parent=47 // loop_pre_header
                _
              $region57: #{cqnet_forward.4} parent=47 // loop_header
                %s3033 = sphi 0, %s3035
                %p3034 = scmp.ge.s32.totalorder %s3033, %s3026
                %s3038 = sphi 0, %s3045
                %s3039 = sphi %s3029, %s3048
                %s3040 = sphi %s3031, %s3049
              $region58: #{cqnet_forward.4} parent=47 // loop_header_branch
                %3037 = sbr.rel (%p3034) target = $region62
              $region59: #{cqnet_forward.4} parent=47 // loop_body
                %v3041 = vld [vmem:[%s3039] sm:%s2943]
                %3042 = vst [vmem:[%s3040] sm:%s2943] %v3041
                %s3043 = sadd.s32 1, %s3038
                %p3044 = scmp.ge.s32.totalorder %s3043, %s3026
                %s3045 = scalar_select %p3044, 0, %s3043
                %s3046 = smul.u32 %s3045, 4
                %s3047 = smul.u32 %s3045, 4
                %s3048 = scalar_lea.vmem %s3029, %s3046 [#allocation2]
                %s3049 = scalar_lea.vmem %s3031, %s3047
              $region60: #{cqnet_forward.4} parent=47 // loop_footer
                %s3035 = sadd.s32 %s3033, 1
              $region61: #{cqnet_forward.4} parent=47 // loop_footer_branch
                %3032 = sbr.rel target = $region57
              $region62: #{cqnet_forward.4} parent=47 // loop_exit
                _
            $region48: #{cqnet_forward.4} parent=39 // pred_fallthru
              _
          $region40: #{cqnet_forward.4} parent=35 // pred_fallthru
            _
          %3160 = vnop
        $region36: #{cqnet_forward.4} parent=31 // pred_fallthru
          _
      $region32: #{cqnet_forward.4} parent=5 // pred_fallthru
        _
      %p3161 = scmp.le.s32.totalorder 2, %s9
      // Predicated region
      $region81: #{cqnet_forward.4} parent=5 // pred_check
        %p3162 = pneg %p3161
      $region82: #{cqnet_forward.4} parent=5 // pred_check_branch
        %3164 = sbr.rel (%p3162) target = $region84
      $region83: #{cqnet_forward.4} parent=5 // pred_region
        %s3165 = ssub.s32 %s9, 2
        // Predicated region
        $region85: #{cqnet_forward.4} parent=83 // pred_check
          %p3166 = pneg %p106
        $region86: #{cqnet_forward.4} parent=83 // pred_check_branch
          %3168 = sbr.rel (%p3166) target = $region88
        $region87: #{cqnet_forward.4} parent=83 // pred_region
          %s3169 = sand.u32 %s91, 1
          %s3170 = sand.u32 %s91, 1
          %s3171 = smul.addr %s3170, 1024
          %s3172 = scalar_lea.vmem [#allocation2], %s3171
        $region88: #{cqnet_forward.4} parent=83 // pred_fallthru
          _
      $region84: #{cqnet_forward.4} parent=5 // pred_fallthru
        _
    $region6: #{cqnet_forward.4} parent=1 // loop_footer
      %s13 = sadd.s32 1, %s9
    $region7: #{cqnet_forward.4} parent=1 // loop_footer_branch
      %8 = sbr.rel target = $region3
    $region8: #{cqnet_forward.4} parent=1 // loop_exit
      _

// kernel: cqnet_forward.5
$region0: #{cqnet_forward.5}
  #allocation0 [shape = 'u32[]', space=smem, size = 0x4, offset = 0x4, fixed_abs, tag = 'smem constant byte address 0x4 - core index']
  #allocation1 [shape = 'u32[72,128]{1,0:T(1,128)}', space=vmem, size = 0x9000, scoped, tag = 'internal scratch']
  %s0 = inlined_call_operand.vmem [shape: bf16[800,1024], index: 0, kind: input, shape index: {}]
  %s1 = inlined_call_operand.vmem [shape: bf16[1024,16], index: 1, kind: input, shape index: {}]
  %s2 = inlined_call_operand.vmem [shape: f32[1,16], index: 2, kind: input, shape index: {}]
  %s3 = inlined_call_operand.vmem [shape: bf16[800,16], index: 3, kind: output, shape index: {}]
  %s4 = sld [smem:[#allocation0]]
  $region45: #{cqnet_forward.5} parent=0
    _
  %s6 = ssub.s32 1, %s4
  %s7 = scalar_select 0, %s6, %s4
  loop: start=0, step=1, limit=4
  $region2: #{cqnet_forward.5} parent=0 // loop_pre_header
    _
  $region3: #{cqnet_forward.5} parent=0 // loop_header
    %s9 = sphi 0, %s13
    %p10 = scmp.ge.s32.totalorder %s9, 4
    %s19 = sphi 0, %s21
    %s22 = sphi 0, %s19
    %s23 = sphi 0, %s22
    %s39 = sphi 0, %s23
    %s43 = sphi 0, %s43
    %s45 = sphi 0, %s43
    %s46 = sphi 0, %s45
    %s60 = sphi 0, %s46
    %s64 = sphi 0, %s64
    %s66 = sphi 0, %s64
    %s67 = sphi 0, %s66
    %s81 = sphi 0, %s67
    %s87 = sphi 0, %s89
    %s90 = sphi 0, %s87
    %s91 = sphi 0, %s90
    %s107 = sphi 0, %s91
  $region4: #{cqnet_forward.5} parent=0 // loop_header_branch
    %12 = sbr.rel (%p10) target = $region8
  $region5: #{cqnet_forward.5} parent=0 // loop_body
    %s14 = ssub.s32 %s9, 1
    %s15 = ssub.s32 %s9, 2
    %s16 = sadd.s32 %s9, 1
    %s17 = ssub.s32 %s9, %s16
    %p18 = scmp.eq.s32.totalorder %s17, 0
    %s20 = sadd.s32 %s19, 1
    %s21 = scalar_select %p18, %s19, %s20
    %p24 = pneg %p18
    %p25 = scmp.eq.s32.totalorder %s9, 1
    %p26 = por %p24, %p25
    %p27 = scmp.ne.s32.totalorder %s19, %s22
    %p28 = scmp.eq.s32.totalorder %s9, 0
    %p29 = por %p27, %p28
    %p30 = scmp.ne.s32.totalorder %s19, %s22
    %p31 = scmp.eq.s32.totalorder %s14, 1
    %p32 = por %p30, %p31
    %p33 = scmp.ne.s32.totalorder %s22, %s23
    %p34 = scmp.eq.s32.totalorder %s14, 0
    %p35 = por %p33, %p34
    %p36 = scmp.ne.s32.totalorder %s22, %s23
    %p37 = scmp.eq.s32.totalorder %s15, 1
    %p38 = por %p36, %p37
    %p40 = scmp.ne.s32.totalorder %s23, %s39
    %p41 = scmp.eq.s32.totalorder %s15, 0
    %p42 = por %p40, %p41
    %s44 = sadd.s32 %s43, 1
    %p47 = scmp.eq.s32.totalorder %s9, 1
    %p48 = scmp.ne.s32.totalorder %s43, %s45
    %p49 = scmp.eq.s32.totalorder %s9, 0
    %p50 = por %p48, %p49
    %p51 = scmp.ne.s32.totalorder %s43, %s45
    %p52 = scmp.eq.s32.totalorder %s14, 1
    %p53 = por %p51, %p52
    %p54 = scmp.ne.s32.totalorder %s45, %s46
    %p55 = scmp.eq.s32.totalorder %s14, 0
    %p56 = por %p54, %p55
    %p57 = scmp.ne.s32.totalorder %s45, %s46
    %p58 = scmp.eq.s32.totalorder %s15, 1
    %p59 = por %p57, %p58
    %p61 = scmp.ne.s32.totalorder %s46, %s60
    %p62 = scmp.eq.s32.totalorder %s15, 0
    %p63 = por %p61, %p62
    %s65 = sadd.s32 %s64, 1
    %p68 = scmp.eq.s32.totalorder %s9, 1
    %p69 = scmp.ne.s32.totalorder %s64, %s66
    %p70 = scmp.eq.s32.totalorder %s9, 0
    %p71 = por %p69, %p70
    %p72 = scmp.ne.s32.totalorder %s64, %s66
    %p73 = scmp.eq.s32.totalorder %s14, 1
    %p74 = por %p72, %p73
    %p75 = scmp.ne.s32.totalorder %s66, %s67
    %p76 = scmp.eq.s32.totalorder %s14, 0
    %p77 = por %p75, %p76
    %p78 = scmp.ne.s32.totalorder %s66, %s67
    %p79 = scmp.eq.s32.totalorder %s15, 1
    %p80 = por %p78, %p79
    %p82 = scmp.ne.s32.totalorder %s67, %s81
    %p83 = scmp.eq.s32.totalorder %s15, 0
    %p84 = por %p82, %p83
    %s85 = ssub.s32 %s9, %s16
    %p86 = scmp.eq.s32.totalorder %s85, 0
    %s88 = sadd.s32 %s87, 1
    %s89 = scalar_select %p86, %s87, %s88
    %p92 = pneg %p86
    %p93 = scmp.eq.s32.totalorder %s9, 1
    %p94 = por %p92, %p93
    %p95 = scmp.ne.s32.totalorder %s87, %s90
    %p96 = scmp.eq.s32.totalorder %s9, 0
    %p97 = por %p95, %p96
    %p98 = scmp.ne.s32.totalorder %s87, %s90
    %p99 = scmp.eq.s32.totalorder %s14, 1
    %p100 = por %p98, %p99
    %p101 = scmp.ne.s32.totalorder %s90, %s91
    %p102 = scmp.eq.s32.totalorder %s14, 0
    %p103 = por %p101, %p102
    %p104 = scmp.ne.s32.totalorder %s90, %s91
    %p105 = scmp.eq.s32.totalorder %s15, 1
    %p106 = por %p104, %p105
    %p108 = scmp.ne.s32.totalorder %s91, %s107
    %p109 = scmp.eq.s32.totalorder %s15, 0
    %p110 = por %p108, %p109
    %p111 = scmp.le.s32.totalorder 1, %s9
    %p112 = scmp.lt.s32.totalorder %s9, 3
    %p113 = pnand %p111, %p112
    %p114 = pneg %p113
    // Predicated region
    $region9: #{cqnet_forward.5} parent=5 // pred_check
      _
    $region10: #{cqnet_forward.5} parent=5 // pred_check_branch
      %116 = sbr.rel (%p113) target = $region12
    $region11: #{cqnet_forward.5} parent=5 // pred_region
      %s117 = ssub.s32 %s9, 1
      // Predicated region
      $region13: #{cqnet_forward.5} parent=11 // pred_check
        %p118 = pneg %p56
      $region14: #{cqnet_forward.5} parent=11 // pred_check_branch
        %120 = sbr.rel (%p118) target = $region16
      $region15: #{cqnet_forward.5} parent=11 // pred_region
        _
      $region16: #{cqnet_forward.5} parent=11 // pred_fallthru
        _
      // Predicated region
      $region17: #{cqnet_forward.5} parent=11 // pred_check
        %p121 = pneg %p77
      $region18: #{cqnet_forward.5} parent=11 // pred_check_branch
        %123 = sbr.rel (%p121) target = $region20
      $region19: #{cqnet_forward.5} parent=11 // pred_region
        _
      $region20: #{cqnet_forward.5} parent=11 // pred_fallthru
        _
    $region12: #{cqnet_forward.5} parent=5 // pred_fallthru
      _
    %p124 = scmp.lt.s32.totalorder %s9, 2
    // Predicated region
    $region21: #{cqnet_forward.5} parent=5 // pred_check
      %p125 = pneg %p124
    $region22: #{cqnet_forward.5} parent=5 // pred_check_branch
      %127 = sbr.rel (%p125) target = $region24
    $region23: #{cqnet_forward.5} parent=5 // pred_region
      // Predicated region
      $region25: #{cqnet_forward.5} parent=23 // pred_check
        %p128 = pneg %p29
      $region26: #{cqnet_forward.5} parent=23 // pred_check_branch
        %130 = sbr.rel (%p128) target = $region28
      $region27: #{cqnet_forward.5} parent=23 // pred_region
        %s131 = smul.u32 50, %s9
        %p132 = scmp.lt.s32.totalorder %s131, 99
        %s133 = scalar_select %p132, %s131, 99
        %s134 = smul.addr %s133, 8
        %s135 = smul.addr %s134, 4
        %s136 = scalar_lea.vmem %s0, %s135
        %s137 = smul.u32 50, %s9
      $region28: #{cqnet_forward.5} parent=23 // pred_fallthru
        _
    $region24: #{cqnet_forward.5} parent=5 // pred_fallthru
      _
    %p138 = scmp.le.s32.totalorder 1, %s9
    %p139 = scmp.lt.s32.totalorder %s9, 3
    %p140 = pnand %p138, %p139
    %p141 = pneg %p140
    // Predicated region
    $region29: #{cqnet_forward.5} parent=5 // pred_check
      _
    $region30: #{cqnet_forward.5} parent=5 // pred_check_branch
      %143 = sbr.rel (%p140) target = $region32
    $region31: #{cqnet_forward.5} parent=5 // pred_region
      %s144 = ssub.s32 %s9, 1
      %s145 = smul.u32 50, %s14
      %p146 = scmp.lt.s32.totalorder %s145, 99
      %s147 = scalar_select %p146, %s145, 99
      %s148 = smul.addr %s147, 8
      %s149 = smul.addr %s148, 4
      %s150 = scalar_lea.vmem %s0, %s149
      %p151 = pneg %p35
      %p152 = pneg %p32
      %p153 = pneg %p56
      %p154 = pneg %p53
      %p155 = pneg %p77
      %p156 = pneg %p74
      %p157 = pneg %p103
      %p158 = pneg %p100
      %s159 = smul.u32 50, %s14
      %p160 = scmp.lt.s32.totalorder %s159, 99
      %s161 = scalar_select %p160, %s159, 99
      %s162 = smul.addr %s161, 4
      %s163 = scalar_lea.vmem %s3, %s162
      %s164 = smul.u32 50, %s14
      %p165 = scmp.lt.s32.totalorder %s164, 99
      %s166 = scalar_select %p165, %s164, 99
      %s167 = smul.addr %s166, 8
      %s168 = smul.addr %s167, 4
      %s169 = scalar_lea.vmem %s0, %s168
      %s170 = smul.u32 50, %s14
      %s171 = smul.u32 50, %s14
      %p172 = scmp.lt.s32.totalorder %s171, 99
      %s173 = scalar_select %p172, %s171, 99
      %s174 = smul.addr %s173, 4
      %s175 = scalar_lea.vmem %s3, %s174
      %s176 = smul.u32 50, %s14
      %v177 = vld [vmem:[%s169] sm:$0xff]
      %v178 = vld [vmem:[%s169 + $0x8] sm:$0xff]
      %v179 = vld [vmem:[%s169 + $0x10] sm:$0xff]
      %v180 = vld [vmem:[%s169 + $0x18] sm:$0xff]
      %v181 = vld [vmem:[%s169 + $0x20] sm:$0xff]
      %v182 = vld [vmem:[%s169 + $0x28] sm:$0xff]
      %v183 = vld [vmem:[%s169 + $0x30] sm:$0xff]
      %v184 = vld [vmem:[%s169 + $0x38] sm:$0xff]
      %v185 = vld [vmem:[%s169 + $0x40] sm:$0xff]
      %v186 = vld [vmem:[%s169 + $0x48] sm:$0xff]
      %v187 = vld [vmem:[%s169 + $0x50] sm:$0xff]
      %v188 = vld [vmem:[%s169 + $0x58] sm:$0xff]
      %v189 = vld [vmem:[%s169 + $0x60] sm:$0xff]
      %v190 = vld [vmem:[%s169 + $0x68] sm:$0xff]
      %v191 = vld [vmem:[%s169 + $0x70] sm:$0xff]
      %v192 = vld [vmem:[%s169 + $0x78] sm:$0xff]
      %v193 = vld [vmem:[%s169 + $0x80] sm:$0xff]
      %v194 = vld [vmem:[%s169 + $0x88] sm:$0xff]
      %v195 = vld [vmem:[%s169 + $0x90] sm:$0xff]
      %v196 = vld [vmem:[%s169 + $0x98] sm:$0xff]
      %v197 = vld [vmem:[%s169 + $0xa0] sm:$0xff]
      %v198 = vld [vmem:[%s169 + $0xa8] sm:$0xff]
      %v199 = vld [vmem:[%s169 + $0xb0] sm:$0xff]
      %v200 = vld [vmem:[%s169 + $0xb8] sm:$0xff]
      %v201 = vld [vmem:[%s169 + $0xc0] sm:$0xff]
      %v202 = vld [vmem:[%s169 + $0xc8] sm:$0xff]
      %v203 = vld [vmem:[%s169 + $0xd0] sm:$0xff]
      %v204 = vld [vmem:[%s169 + $0xd8] sm:$0xff]
      %v205 = vld [vmem:[%s169 + $0xe0] sm:$0xff]
      %v206 = vld [vmem:[%s169 + $0xe8] sm:$0xff]
      %v207 = vld [vmem:[%s169 + $0xf0] sm:$0xff]
      %v208 = vld [vmem:[%s169 + $0xf8] sm:$0xff]
      %v209 = vld [vmem:[%s169 + $0x100] sm:$0xff]
      %v210 = vld [vmem:[%s169 + $0x108] sm:$0xff]
      %v211 = vld [vmem:[%s169 + $0x110] sm:$0xff]
      %v212 = vld [vmem:[%s169 + $0x118] sm:$0xff]
      %v213 = vld [vmem:[%s169 + $0x120] sm:$0xff]
      %v214 = vld [vmem:[%s169 + $0x128] sm:$0xff]
      %v215 = vld [vmem:[%s169 + $0x130] sm:$0xff]
      %v216 = vld [vmem:[%s169 + $0x138] sm:$0xff]
      %v217 = vld [vmem:[%s169 + $0x140] sm:$0xff]
      %v218 = vld [vmem:[%s169 + $0x148] sm:$0xff]
      %v219 = vld [vmem:[%s169 + $0x150] sm:$0xff]
      %v220 = vld [vmem:[%s169 + $0x158] sm:$0xff]
      %v221 = vld [vmem:[%s169 + $0x160] sm:$0xff]
      %v222 = vld [vmem:[%s169 + $0x168] sm:$0xff]
      %v223 = vld [vmem:[%s169 + $0x170] sm:$0xff]
      %v224 = vld [vmem:[%s169 + $0x178] sm:$0xff]
      %v225 = vld [vmem:[%s169 + $0x180] sm:$0xff]
      %v226 = vld [vmem:[%s169 + $0x188] sm:$0xff]
      %v227 = vld [vmem:[%s169 + $0x190] sm:$0xff]
      %v228 = vld [vmem:[%s169 + $0x198] sm:$0xff]
      %v229 = vld [vmem:[%s169 + $0x1a0] sm:$0xff]
      %v230 = vld [vmem:[%s169 + $0x1a8] sm:$0xff]
      %v231 = vld [vmem:[%s169 + $0x1b0] sm:$0xff]
      %v232 = vld [vmem:[%s169 + $0x1b8] sm:$0xff]
      %v233 = vld [vmem:[%s169 + $0x1c0] sm:$0xff]
      %v234 = vld [vmem:[%s169 + $0x1c8] sm:$0xff]
      %v235 = vld [vmem:[%s169 + $0x1d0] sm:$0xff]
      %v236 = vld [vmem:[%s169 + $0x1d8] sm:$0xff]
      %v237 = vld [vmem:[%s169 + $0x1e0] sm:$0xff]
      %v238 = vld [vmem:[%s169 + $0x1e8] sm:$0xff]
      %v239 = vld [vmem:[%s169 + $0x1f0] sm:$0xff]
      %v240 = vld [vmem:[%s169 + $0x1f8] sm:$0xff]
      %v241 = vld [vmem:[%s169 + $0x200] sm:$0xff]
      %v242 = vld [vmem:[%s169 + $0x208] sm:$0xff]
      %v243 = vld [vmem:[%s169 + $0x210] sm:$0xff]
      %v244 = vld [vmem:[%s169 + $0x218] sm:$0xff]
      %v245 = vld [vmem:[%s169 + $0x220] sm:$0xff]
      %v246 = vld [vmem:[%s169 + $0x228] sm:$0xff]
      %v247 = vld [vmem:[%s169 + $0x230] sm:$0xff]
      %v248 = vld [vmem:[%s169 + $0x238] sm:$0xff]
      %v249 = vld [vmem:[%s169 + $0x240] sm:$0xff]
      %v250 = vld [vmem:[%s169 + $0x248] sm:$0xff]
      %v251 = vld [vmem:[%s169 + $0x250] sm:$0xff]
      %v252 = vld [vmem:[%s169 + $0x258] sm:$0xff]
      %v253 = vld [vmem:[%s169 + $0x260] sm:$0xff]
      %v254 = vld [vmem:[%s169 + $0x268] sm:$0xff]
      %v255 = vld [vmem:[%s169 + $0x270] sm:$0xff]
      %v256 = vld [vmem:[%s169 + $0x278] sm:$0xff]
      %v257 = vld [vmem:[%s169 + $0x280] sm:$0xff]
      %v258 = vld [vmem:[%s169 + $0x288] sm:$0xff]
      %v259 = vld [vmem:[%s169 + $0x290] sm:$0xff]
      %v260 = vld [vmem:[%s169 + $0x298] sm:$0xff]
      %v261 = vld [vmem:[%s169 + $0x2a0] sm:$0xff]
      %v262 = vld [vmem:[%s169 + $0x2a8] sm:$0xff]
      %v263 = vld [vmem:[%s169 + $0x2b0] sm:$0xff]
      %v264 = vld [vmem:[%s169 + $0x2b8] sm:$0xff]
      %v265 = vld [vmem:[%s169 + $0x2c0] sm:$0xff]
      %v266 = vld [vmem:[%s169 + $0x2c8] sm:$0xff]
      %v267 = vld [vmem:[%s169 + $0x2d0] sm:$0xff]
      %v268 = vld [vmem:[%s169 + $0x2d8] sm:$0xff]
      %v269 = vld [vmem:[%s169 + $0x2e0] sm:$0xff]
      %v270 = vld [vmem:[%s169 + $0x2e8] sm:$0xff]
      %v271 = vld [vmem:[%s169 + $0x2f0] sm:$0xff]
      %v272 = vld [vmem:[%s169 + $0x2f8] sm:$0xff]
      %v273 = vld [vmem:[%s169 + $0x300] sm:$0xff]
      %v274 = vld [vmem:[%s169 + $0x308] sm:$0xff]
      %v275 = vld [vmem:[%s169 + $0x310] sm:$0xff]
      %v276 = vld [vmem:[%s169 + $0x318] sm:$0xff]
      %v277 = vld [vmem:[%s169 + $0x320] sm:$0xff]
      %v278 = vld [vmem:[%s169 + $0x328] sm:$0xff]
      %v279 = vld [vmem:[%s169 + $0x330] sm:$0xff]
      %v280 = vld [vmem:[%s169 + $0x338] sm:$0xff]
      %v281 = vld [vmem:[%s169 + $0x340] sm:$0xff]
      %v282 = vld [vmem:[%s169 + $0x348] sm:$0xff]
      %v283 = vld [vmem:[%s169 + $0x350] sm:$0xff]
      %v284 = vld [vmem:[%s169 + $0x358] sm:$0xff]
      %v285 = vld [vmem:[%s169 + $0x360] sm:$0xff]
      %v286 = vld [vmem:[%s169 + $0x368] sm:$0xff]
      %v287 = vld [vmem:[%s169 + $0x370] sm:$0xff]
      %v288 = vld [vmem:[%s169 + $0x378] sm:$0xff]
      %v289 = vld [vmem:[%s169 + $0x380] sm:$0xff]
      %v290 = vld [vmem:[%s169 + $0x388] sm:$0xff]
      %v291 = vld [vmem:[%s169 + $0x390] sm:$0xff]
      %v292 = vld [vmem:[%s169 + $0x398] sm:$0xff]
      %v293 = vld [vmem:[%s169 + $0x3a0] sm:$0xff]
      %v294 = vld [vmem:[%s169 + $0x3a8] sm:$0xff]
      %v295 = vld [vmem:[%s169 + $0x3b0] sm:$0xff]
      %v296 = vld [vmem:[%s169 + $0x3b8] sm:$0xff]
      %v297 = vld [vmem:[%s169 + $0x3c0] sm:$0xff]
      %v298 = vld [vmem:[%s169 + $0x3c8] sm:$0xff]
      %v299 = vld [vmem:[%s169 + $0x3d0] sm:$0xff]
      %v300 = vld [vmem:[%s169 + $0x3d8] sm:$0xff]
      %v301 = vld [vmem:[%s169 + $0x3e0] sm:$0xff]
      %v302 = vld [vmem:[%s169 + $0x3e8] sm:$0xff]
      %v303 = vld [vmem:[%s169 + $0x3f0] sm:$0xff]
      %v304 = vld [vmem:[%s169 + $0x3f8] sm:$0xff]
      %v305 = vld [vmem:[%s169 + $0x400] sm:$0xff]
      %v306 = vld [vmem:[%s169 + $0x408] sm:$0xff]
      %v307 = vld [vmem:[%s169 + $0x410] sm:$0xff]
      %v308 = vld [vmem:[%s169 + $0x418] sm:$0xff]
      %v309 = vld [vmem:[%s169 + $0x420] sm:$0xff]
      %v310 = vld [vmem:[%s169 + $0x428] sm:$0xff]
      %v311 = vld [vmem:[%s169 + $0x430] sm:$0xff]
      %v312 = vld [vmem:[%s169 + $0x438] sm:$0xff]
      %v313 = vld [vmem:[%s169 + $0x440] sm:$0xff]
      %v314 = vld [vmem:[%s169 + $0x448] sm:$0xff]
      %v315 = vld [vmem:[%s169 + $0x450] sm:$0xff]
      %v316 = vld [vmem:[%s169 + $0x458] sm:$0xff]
      %v317 = vld [vmem:[%s169 + $0x460] sm:$0xff]
      %v318 = vld [vmem:[%s169 + $0x468] sm:$0xff]
      %v319 = vld [vmem:[%s169 + $0x470] sm:$0xff]
      %v320 = vld [vmem:[%s169 + $0x478] sm:$0xff]
      %v321 = vld [vmem:[%s169 + $0x480] sm:$0xff]
      %v322 = vld [vmem:[%s169 + $0x488] sm:$0xff]
      %v323 = vld [vmem:[%s169 + $0x490] sm:$0xff]
      %v324 = vld [vmem:[%s169 + $0x498] sm:$0xff]
      %v325 = vld [vmem:[%s169 + $0x4a0] sm:$0xff]
      %v326 = vld [vmem:[%s169 + $0x4a8] sm:$0xff]
      %v327 = vld [vmem:[%s169 + $0x4b0] sm:$0xff]
      %v328 = vld [vmem:[%s169 + $0x4b8] sm:$0xff]
      %v329 = vld [vmem:[%s169 + $0x4c0] sm:$0xff]
      %v330 = vld [vmem:[%s169 + $0x4c8] sm:$0xff]
      %v331 = vld [vmem:[%s169 + $0x4d0] sm:$0xff]
      %v332 = vld [vmem:[%s169 + $0x4d8] sm:$0xff]
      %v333 = vld [vmem:[%s169 + $0x4e0] sm:$0xff]
      %v334 = vld [vmem:[%s169 + $0x4e8] sm:$0xff]
      %v335 = vld [vmem:[%s169 + $0x4f0] sm:$0xff]
      %v336 = vld [vmem:[%s169 + $0x4f8] sm:$0xff]
      %v337 = vld [vmem:[%s169 + $0x500] sm:$0xff]
      %v338 = vld [vmem:[%s169 + $0x508] sm:$0xff]
      %v339 = vld [vmem:[%s169 + $0x510] sm:$0xff]
      %v340 = vld [vmem:[%s169 + $0x518] sm:$0xff]
      %v341 = vld [vmem:[%s169 + $0x520] sm:$0xff]
      %v342 = vld [vmem:[%s169 + $0x528] sm:$0xff]
      %v343 = vld [vmem:[%s169 + $0x530] sm:$0xff]
      %v344 = vld [vmem:[%s169 + $0x538] sm:$0xff]
      %v345 = vld [vmem:[%s169 + $0x540] sm:$0xff]
      %v346 = vld [vmem:[%s169 + $0x548] sm:$0xff]
      %v347 = vld [vmem:[%s169 + $0x550] sm:$0xff]
      %v348 = vld [vmem:[%s169 + $0x558] sm:$0xff]
      %v349 = vld [vmem:[%s169 + $0x560] sm:$0xff]
      %v350 = vld [vmem:[%s169 + $0x568] sm:$0xff]
      %v351 = vld [vmem:[%s169 + $0x570] sm:$0xff]
      %v352 = vld [vmem:[%s169 + $0x578] sm:$0xff]
      %v353 = vld [vmem:[%s169 + $0x580] sm:$0xff]
      %v354 = vld [vmem:[%s169 + $0x588] sm:$0xff]
      %v355 = vld [vmem:[%s169 + $0x590] sm:$0xff]
      %v356 = vld [vmem:[%s169 + $0x598] sm:$0xff]
      %v357 = vld [vmem:[%s169 + $0x5a0] sm:$0xff]
      %v358 = vld [vmem:[%s169 + $0x5a8] sm:$0xff]
      %v359 = vld [vmem:[%s169 + $0x5b0] sm:$0xff]
      %v360 = vld [vmem:[%s169 + $0x5b8] sm:$0xff]
      %v361 = vld [vmem:[%s169 + $0x5c0] sm:$0xff]
      %v362 = vld [vmem:[%s169 + $0x5c8] sm:$0xff]
      %v363 = vld [vmem:[%s169 + $0x5d0] sm:$0xff]
      %v364 = vld [vmem:[%s169 + $0x5d8] sm:$0xff]
      %v365 = vld [vmem:[%s169 + $0x5e0] sm:$0xff]
      %v366 = vld [vmem:[%s169 + $0x5e8] sm:$0xff]
      %v367 = vld [vmem:[%s169 + $0x5f0] sm:$0xff]
      %v368 = vld [vmem:[%s169 + $0x5f8] sm:$0xff]
      %v369 = vld [vmem:[%s169 + $0x600] sm:$0xff]
      %v370 = vld [vmem:[%s169 + $0x608] sm:$0xff]
      %v371 = vld [vmem:[%s169 + $0x610] sm:$0xff]
      %v372 = vld [vmem:[%s169 + $0x618] sm:$0xff]
      %v373 = vld [vmem:[%s169 + $0x620] sm:$0xff]
      %v374 = vld [vmem:[%s169 + $0x628] sm:$0xff]
      %v375 = vld [vmem:[%s169 + $0x630] sm:$0xff]
      %v376 = vld [vmem:[%s169 + $0x638] sm:$0xff]
      %v377 = vld [vmem:[%s1] sm:$0xf]
      %v378 = vld [vmem:[%s1 + $0x4] sm:$0xf]
      %v379 = vld [vmem:[%s1 + $0x8] sm:$0xf]
      %v380 = vld [vmem:[%s1 + $0xc] sm:$0xf]
      %v381 = vld [vmem:[%s1 + $0x10] sm:$0xf]
      %v382 = vld [vmem:[%s1 + $0x14] sm:$0xf]
      %v383 = vld [vmem:[%s1 + $0x18] sm:$0xf]
      %v384 = vld [vmem:[%s1 + $0x1c] sm:$0xf]
      %v385 = vld [vmem:[%s1 + $0x20] sm:$0xf]
      %v386 = vld [vmem:[%s1 + $0x24] sm:$0xf]
      %v387 = vld [vmem:[%s1 + $0x28] sm:$0xf]
      %v388 = vld [vmem:[%s1 + $0x2c] sm:$0xf]
      %v389 = vld [vmem:[%s1 + $0x30] sm:$0xf]
      %v390 = vld [vmem:[%s1 + $0x34] sm:$0xf]
      %v391 = vld [vmem:[%s1 + $0x38] sm:$0xf]
      %v392 = vld [vmem:[%s1 + $0x3c] sm:$0xf]
      %v393 = vld [vmem:[%s1 + $0x40] sm:$0xf]
      %v394 = vld [vmem:[%s1 + $0x44] sm:$0xf]
      %v395 = vld [vmem:[%s1 + $0x48] sm:$0xf]
      %v396 = vld [vmem:[%s1 + $0x4c] sm:$0xf]
      %v397 = vld [vmem:[%s1 + $0x50] sm:$0xf]
      %v398 = vld [vmem:[%s1 + $0x54] sm:$0xf]
      %v399 = vld [vmem:[%s1 + $0x58] sm:$0xf]
      %v400 = vld [vmem:[%s1 + $0x5c] sm:$0xf]
      %v401 = vld [vmem:[%s1 + $0x60] sm:$0xf]
      %v402 = vld [vmem:[%s1 + $0x64] sm:$0xf]
      %v403 = vld [vmem:[%s1 + $0x68] sm:$0xf]
      %v404 = vld [vmem:[%s1 + $0x6c] sm:$0xf]
      %v405 = vld [vmem:[%s1 + $0x70] sm:$0xf]
      %v406 = vld [vmem:[%s1 + $0x74] sm:$0xf]
      %v407 = vld [vmem:[%s1 + $0x78] sm:$0xf]
      %v408 = vld [vmem:[%s1 + $0x7c] sm:$0xf]
      %v409 = vld [vmem:[%s1 + $0x80] sm:$0xf]
      %v410 = vld [vmem:[%s1 + $0x84] sm:$0xf]
      %v411 = vld [vmem:[%s1 + $0x88] sm:$0xf]
      %v412 = vld [vmem:[%s1 + $0x8c] sm:$0xf]
      %v413 = vld [vmem:[%s1 + $0x90] sm:$0xf]
      %v414 = vld [vmem:[%s1 + $0x94] sm:$0xf]
      %v415 = vld [vmem:[%s1 + $0x98] sm:$0xf]
      %v416 = vld [vmem:[%s1 + $0x9c] sm:$0xf]
      %v417 = vld [vmem:[%s1 + $0xa0] sm:$0xf]
      %v418 = vld [vmem:[%s1 + $0xa4] sm:$0xf]
      %v419 = vld [vmem:[%s1 + $0xa8] sm:$0xf]
      %v420 = vld [vmem:[%s1 + $0xac] sm:$0xf]
      %v421 = vld [vmem:[%s1 + $0xb0] sm:$0xf]
      %v422 = vld [vmem:[%s1 + $0xb4] sm:$0xf]
      %v423 = vld [vmem:[%s1 + $0xb8] sm:$0xf]
      %v424 = vld [vmem:[%s1 + $0xbc] sm:$0xf]
      %v425 = vld [vmem:[%s1 + $0xc0] sm:$0xf]
      %v426 = vld [vmem:[%s1 + $0xc4] sm:$0xf]
      %v427 = vld [vmem:[%s1 + $0xc8] sm:$0xf]
      %v428 = vld [vmem:[%s1 + $0xcc] sm:$0xf]
      %v429 = vld [vmem:[%s1 + $0xd0] sm:$0xf]
      %v430 = vld [vmem:[%s1 + $0xd4] sm:$0xf]
      %v431 = vld [vmem:[%s1 + $0xd8] sm:$0xf]
      %v432 = vld [vmem:[%s1 + $0xdc] sm:$0xf]
      %v433 = vld [vmem:[%s1 + $0xe0] sm:$0xf]
      %v434 = vld [vmem:[%s1 + $0xe4] sm:$0xf]
      %v435 = vld [vmem:[%s1 + $0xe8] sm:$0xf]
      %v436 = vld [vmem:[%s1 + $0xec] sm:$0xf]
      %v437 = vld [vmem:[%s1 + $0xf0] sm:$0xf]
      %v438 = vld [vmem:[%s1 + $0xf4] sm:$0xf]
      %v439 = vld [vmem:[%s1 + $0xf8] sm:$0xf]
      %v440 = vld [vmem:[%s1 + $0xfc] sm:$0xf]
      %v441 = vld [vmem:[%s1 + $0x100] sm:$0xf]
      %v442 = vld [vmem:[%s1 + $0x104] sm:$0xf]
      %v443 = vld [vmem:[%s1 + $0x108] sm:$0xf]
      %v444 = vld [vmem:[%s1 + $0x10c] sm:$0xf]
      %v445 = vld [vmem:[%s1 + $0x110] sm:$0xf]
      %v446 = vld [vmem:[%s1 + $0x114] sm:$0xf]
      %v447 = vld [vmem:[%s1 + $0x118] sm:$0xf]
      %v448 = vld [vmem:[%s1 + $0x11c] sm:$0xf]
      %v449 = vld [vmem:[%s1 + $0x120] sm:$0xf]
      %v450 = vld [vmem:[%s1 + $0x124] sm:$0xf]
      %v451 = vld [vmem:[%s1 + $0x128] sm:$0xf]
      %v452 = vld [vmem:[%s1 + $0x12c] sm:$0xf]
      %v453 = vld [vmem:[%s1 + $0x130] sm:$0xf]
      %v454 = vld [vmem:[%s1 + $0x134] sm:$0xf]
      %v455 = vld [vmem:[%s1 + $0x138] sm:$0xf]
      %v456 = vld [vmem:[%s1 + $0x13c] sm:$0xf]
      %v457 = vld [vmem:[%s1 + $0x140] sm:$0xf]
      %v458 = vld [vmem:[%s1 + $0x144] sm:$0xf]
      %v459 = vld [vmem:[%s1 + $0x148] sm:$0xf]
      %v460 = vld [vmem:[%s1 + $0x14c] sm:$0xf]
      %v461 = vld [vmem:[%s1 + $0x150] sm:$0xf]
      %v462 = vld [vmem:[%s1 + $0x154] sm:$0xf]
      %v463 = vld [vmem:[%s1 + $0x158] sm:$0xf]
      %v464 = vld [vmem:[%s1 + $0x15c] sm:$0xf]
      %v465 = vld [vmem:[%s1 + $0x160] sm:$0xf]
      %v466 = vld [vmem:[%s1 + $0x164] sm:$0xf]
      %v467 = vld [vmem:[%s1 + $0x168] sm:$0xf]
      %v468 = vld [vmem:[%s1 + $0x16c] sm:$0xf]
      %v469 = vld [vmem:[%s1 + $0x170] sm:$0xf]
      %v470 = vld [vmem:[%s1 + $0x174] sm:$0xf]
      %v471 = vld [vmem:[%s1 + $0x178] sm:$0xf]
      %v472 = vld [vmem:[%s1 + $0x17c] sm:$0xf]
      %v473 = vld [vmem:[%s1 + $0x180] sm:$0xf]
      %v474 = vld [vmem:[%s1 + $0x184] sm:$0xf]
      %v475 = vld [vmem:[%s1 + $0x188] sm:$0xf]
      %v476 = vld [vmem:[%s1 + $0x18c] sm:$0xf]
      %v477 = vld [vmem:[%s1 + $0x190] sm:$0xf]
      %v478 = vld [vmem:[%s1 + $0x194] sm:$0xf]
      %v479 = vld [vmem:[%s1 + $0x198] sm:$0xf]
      %v480 = vld [vmem:[%s1 + $0x19c] sm:$0xf]
      %v481 = vld [vmem:[%s1 + $0x1a0] sm:$0xf]
      %v482 = vld [vmem:[%s1 + $0x1a4] sm:$0xf]
      %v483 = vld [vmem:[%s1 + $0x1a8] sm:$0xf]
      %v484 = vld [vmem:[%s1 + $0x1ac] sm:$0xf]
      %v485 = vld [vmem:[%s1 + $0x1b0] sm:$0xf]
      %v486 = vld [vmem:[%s1 + $0x1b4] sm:$0xf]
      %v487 = vld [vmem:[%s1 + $0x1b8] sm:$0xf]
      %v488 = vld [vmem:[%s1 + $0x1bc] sm:$0xf]
      %v489 = vld [vmem:[%s1 + $0x1c0] sm:$0xf]
      %v490 = vld [vmem:[%s1 + $0x1c4] sm:$0xf]
      %v491 = vld [vmem:[%s1 + $0x1c8] sm:$0xf]
      %v492 = vld [vmem:[%s1 + $0x1cc] sm:$0xf]
      %v493 = vld [vmem:[%s1 + $0x1d0] sm:$0xf]
      %v494 = vld [vmem:[%s1 + $0x1d4] sm:$0xf]
      %v495 = vld [vmem:[%s1 + $0x1d8] sm:$0xf]
      %v496 = vld [vmem:[%s1 + $0x1dc] sm:$0xf]
      %v497 = vld [vmem:[%s1 + $0x1e0] sm:$0xf]
      %v498 = vld [vmem:[%s1 + $0x1e4] sm:$0xf]
      %v499 = vld [vmem:[%s1 + $0x1e8] sm:$0xf]
      %v500 = vld [vmem:[%s1 + $0x1ec] sm:$0xf]
      %v501 = vld [vmem:[%s1 + $0x1f0] sm:$0xf]
      %v502 = vld [vmem:[%s1 + $0x1f4] sm:$0xf]
      %v503 = vld [vmem:[%s1 + $0x1f8] sm:$0xf]
      %v504 = vld [vmem:[%s1 + $0x1fc] sm:$0xf]
      %v505 = vld [vmem:[%s2] sm:$0x1]
      %v507 = vperm.slane %v505, 0
      %v709 = vunpack.c.l.b16 %v177
      %v710 = vunpack.c.h.b16 %v177
      %v711 = vunpack.c.l.b16 %v178
      %v712 = vunpack.c.h.b16 %v178
      %v713 = vunpack.c.l.b16 %v179
      %v714 = vunpack.c.h.b16 %v179
      %v715 = vunpack.c.l.b16 %v180
      %v716 = vunpack.c.h.b16 %v180
      %v717 = vunpack.c.l.b16 %v181
      %v718 = vunpack.c.h.b16 %v181
      %v719 = vunpack.c.l.b16 %v182
      %v720 = vunpack.c.h.b16 %v182
      %v721 = vunpack.c.l.b16 %v183
      %v722 = vunpack.c.h.b16 %v183
      %v723 = vunpack.c.l.b16 %v184
      %v724 = vunpack.c.h.b16 %v184
      %v725 = vunpack.c.l.b16 %v185
      %v726 = vunpack.c.h.b16 %v185
      %v727 = vunpack.c.l.b16 %v186
      %v728 = vunpack.c.h.b16 %v186
      %v729 = vunpack.c.l.b16 %v187
      %v730 = vunpack.c.h.b16 %v187
      %v731 = vunpack.c.l.b16 %v188
      %v732 = vunpack.c.h.b16 %v188
      %v733 = vunpack.c.l.b16 %v189
      %v734 = vunpack.c.h.b16 %v189
      %v735 = vunpack.c.l.b16 %v190
      %v736 = vunpack.c.h.b16 %v190
      %v737 = vunpack.c.l.b16 %v191
      %v738 = vunpack.c.h.b16 %v191
      %v739 = vunpack.c.l.b16 %v192
      %v740 = vunpack.c.h.b16 %v192
      %v741 = vunpack.c.l.b16 %v193
      %v742 = vunpack.c.h.b16 %v193
      %v743 = vunpack.c.l.b16 %v194
      %v744 = vunpack.c.h.b16 %v194
      %v745 = vunpack.c.l.b16 %v195
      %v746 = vunpack.c.h.b16 %v195
      %v747 = vunpack.c.l.b16 %v196
      %v748 = vunpack.c.h.b16 %v196
      %v749 = vunpack.c.l.b16 %v197
      %v750 = vunpack.c.h.b16 %v197
      %v751 = vunpack.c.l.b16 %v198
      %v752 = vunpack.c.h.b16 %v198
      %v753 = vunpack.c.l.b16 %v199
      %v754 = vunpack.c.h.b16 %v199
      %v755 = vunpack.c.l.b16 %v200
      %v756 = vunpack.c.h.b16 %v200
      %v757 = vunpack.c.l.b16 %v201
      %v758 = vunpack.c.h.b16 %v201
      %v759 = vunpack.c.l.b16 %v202
      %v760 = vunpack.c.h.b16 %v202
      %v761 = vunpack.c.l.b16 %v203
      %v762 = vunpack.c.h.b16 %v203
      %v763 = vunpack.c.l.b16 %v204
      %v764 = vunpack.c.h.b16 %v204
      %v765 = vunpack.c.l.b16 %v205
      %v766 = vunpack.c.h.b16 %v205
      %v767 = vunpack.c.l.b16 %v206
      %v768 = vunpack.c.h.b16 %v206
      %v769 = vunpack.c.l.b16 %v207
      %v770 = vunpack.c.h.b16 %v207
      %v771 = vunpack.c.l.b16 %v208
      %v772 = vunpack.c.h.b16 %v208
      %v773 = vunpack.c.l.b16 %v209
      %v774 = vunpack.c.h.b16 %v209
      %v775 = vunpack.c.l.b16 %v210
      %v776 = vunpack.c.h.b16 %v210
      %v777 = vunpack.c.l.b16 %v211
      %v778 = vunpack.c.h.b16 %v211
      %v779 = vunpack.c.l.b16 %v212
      %v780 = vunpack.c.h.b16 %v212
      %v781 = vunpack.c.l.b16 %v213
      %v782 = vunpack.c.h.b16 %v213
      %v783 = vunpack.c.l.b16 %v214
      %v784 = vunpack.c.h.b16 %v214
      %v785 = vunpack.c.l.b16 %v215
      %v786 = vunpack.c.h.b16 %v215
      %v787 = vunpack.c.l.b16 %v216
      %v788 = vunpack.c.h.b16 %v216
      %v789 = vunpack.c.l.b16 %v217
      %v790 = vunpack.c.h.b16 %v217
      %v791 = vunpack.c.l.b16 %v218
      %v792 = vunpack.c.h.b16 %v218
      %v793 = vunpack.c.l.b16 %v219
      %v794 = vunpack.c.h.b16 %v219
      %v795 = vunpack.c.l.b16 %v220
      %v796 = vunpack.c.h.b16 %v220
      %v797 = vunpack.c.l.b16 %v221
      %v798 = vunpack.c.h.b16 %v221
      %v799 = vunpack.c.l.b16 %v222
      %v800 = vunpack.c.h.b16 %v222
      %v801 = vunpack.c.l.b16 %v223
      %v802 = vunpack.c.h.b16 %v223
      %v803 = vunpack.c.l.b16 %v224
      %v804 = vunpack.c.h.b16 %v224
      %v805 = vunpack.c.l.b16 %v225
      %v806 = vunpack.c.h.b16 %v225
      %v807 = vunpack.c.l.b16 %v226
      %v808 = vunpack.c.h.b16 %v226
      %v809 = vunpack.c.l.b16 %v227
      %v810 = vunpack.c.h.b16 %v227
      %v811 = vunpack.c.l.b16 %v228
      %v812 = vunpack.c.h.b16 %v228
      %v813 = vunpack.c.l.b16 %v229
      %v814 = vunpack.c.h.b16 %v229
      %v815 = vunpack.c.l.b16 %v230
      %v816 = vunpack.c.h.b16 %v230
      %v817 = vunpack.c.l.b16 %v231
      %v818 = vunpack.c.h.b16 %v231
      %v819 = vunpack.c.l.b16 %v232
      %v820 = vunpack.c.h.b16 %v232
      %v821 = vunpack.c.l.b16 %v233
      %v822 = vunpack.c.h.b16 %v233
      %v823 = vunpack.c.l.b16 %v234
      %v824 = vunpack.c.h.b16 %v234
      %v825 = vunpack.c.l.b16 %v235
      %v826 = vunpack.c.h.b16 %v235
      %v827 = vunpack.c.l.b16 %v236
      %v828 = vunpack.c.h.b16 %v236
      %v829 = vunpack.c.l.b16 %v237
      %v830 = vunpack.c.h.b16 %v237
      %v831 = vunpack.c.l.b16 %v238
      %v832 = vunpack.c.h.b16 %v238
      %v833 = vunpack.c.l.b16 %v239
      %v834 = vunpack.c.h.b16 %v239
      %v835 = vunpack.c.l.b16 %v240
      %v836 = vunpack.c.h.b16 %v240
      %v837 = vunpack.c.l.b16 %v241
      %v838 = vunpack.c.h.b16 %v241
      %v839 = vunpack.c.l.b16 %v242
      %v840 = vunpack.c.h.b16 %v242
      %v841 = vunpack.c.l.b16 %v243
      %v842 = vunpack.c.h.b16 %v243
      %v843 = vunpack.c.l.b16 %v244
      %v844 = vunpack.c.h.b16 %v244
      %v845 = vunpack.c.l.b16 %v245
      %v846 = vunpack.c.h.b16 %v245
      %v847 = vunpack.c.l.b16 %v246
      %v848 = vunpack.c.h.b16 %v246
      %v849 = vunpack.c.l.b16 %v247
      %v850 = vunpack.c.h.b16 %v247
      %v851 = vunpack.c.l.b16 %v248
      %v852 = vunpack.c.h.b16 %v248
      %v853 = vunpack.c.l.b16 %v249
      %v854 = vunpack.c.h.b16 %v249
      %v855 = vunpack.c.l.b16 %v250
      %v856 = vunpack.c.h.b16 %v250
      %v857 = vunpack.c.l.b16 %v251
      %v858 = vunpack.c.h.b16 %v251
      %v859 = vunpack.c.l.b16 %v252
      %v860 = vunpack.c.h.b16 %v252
      %v861 = vunpack.c.l.b16 %v253
      %v862 = vunpack.c.h.b16 %v253
      %v863 = vunpack.c.l.b16 %v254
      %v864 = vunpack.c.h.b16 %v254
      %v865 = vunpack.c.l.b16 %v255
      %v866 = vunpack.c.h.b16 %v255
      %v867 = vunpack.c.l.b16 %v256
      %v868 = vunpack.c.h.b16 %v256
      %v869 = vunpack.c.l.b16 %v257
      %v870 = vunpack.c.h.b16 %v257
      %v871 = vunpack.c.l.b16 %v258
      %v872 = vunpack.c.h.b16 %v258
      %v873 = vunpack.c.l.b16 %v259
      %v874 = vunpack.c.h.b16 %v259
      %v875 = vunpack.c.l.b16 %v260
      %v876 = vunpack.c.h.b16 %v260
      %v877 = vunpack.c.l.b16 %v261
      %v878 = vunpack.c.h.b16 %v261
      %v879 = vunpack.c.l.b16 %v262
      %v880 = vunpack.c.h.b16 %v262
      %v881 = vunpack.c.l.b16 %v263
      %v882 = vunpack.c.h.b16 %v263
      %v883 = vunpack.c.l.b16 %v264
      %v884 = vunpack.c.h.b16 %v264
      %v885 = vunpack.c.l.b16 %v265
      %v886 = vunpack.c.h.b16 %v265
      %v887 = vunpack.c.l.b16 %v266
      %v888 = vunpack.c.h.b16 %v266
      %v889 = vunpack.c.l.b16 %v267
      %v890 = vunpack.c.h.b16 %v267
      %v891 = vunpack.c.l.b16 %v268
      %v892 = vunpack.c.h.b16 %v268
      %v893 = vunpack.c.l.b16 %v269
      %v894 = vunpack.c.h.b16 %v269
      %v895 = vunpack.c.l.b16 %v270
      %v896 = vunpack.c.h.b16 %v270
      %v897 = vunpack.c.l.b16 %v271
      %v898 = vunpack.c.h.b16 %v271
      %v899 = vunpack.c.l.b16 %v272
      %v900 = vunpack.c.h.b16 %v272
      %v901 = vunpack.c.l.b16 %v273
      %v902 = vunpack.c.h.b16 %v273
      %v903 = vunpack.c.l.b16 %v274
      %v904 = vunpack.c.h.b16 %v274
      %v905 = vunpack.c.l.b16 %v275
      %v906 = vunpack.c.h.b16 %v275
      %v907 = vunpack.c.l.b16 %v276
      %v908 = vunpack.c.h.b16 %v276
      %v909 = vunpack.c.l.b16 %v277
      %v910 = vunpack.c.h.b16 %v277
      %v911 = vunpack.c.l.b16 %v278
      %v912 = vunpack.c.h.b16 %v278
      %v913 = vunpack.c.l.b16 %v279
      %v914 = vunpack.c.h.b16 %v279
      %v915 = vunpack.c.l.b16 %v280
      %v916 = vunpack.c.h.b16 %v280
      %v917 = vunpack.c.l.b16 %v281
      %v918 = vunpack.c.h.b16 %v281
      %v919 = vunpack.c.l.b16 %v282
      %v920 = vunpack.c.h.b16 %v282
      %v921 = vunpack.c.l.b16 %v283
      %v922 = vunpack.c.h.b16 %v283
      %v923 = vunpack.c.l.b16 %v284
      %v924 = vunpack.c.h.b16 %v284
      %v925 = vunpack.c.l.b16 %v285
      %v926 = vunpack.c.h.b16 %v285
      %v927 = vunpack.c.l.b16 %v286
      %v928 = vunpack.c.h.b16 %v286
      %v929 = vunpack.c.l.b16 %v287
      %v930 = vunpack.c.h.b16 %v287
      %v931 = vunpack.c.l.b16 %v288
      %v932 = vunpack.c.h.b16 %v288
      %v933 = vunpack.c.l.b16 %v289
      %v934 = vunpack.c.h.b16 %v289
      %v935 = vunpack.c.l.b16 %v290
      %v936 = vunpack.c.h.b16 %v290
      %v937 = vunpack.c.l.b16 %v291
      %v938 = vunpack.c.h.b16 %v291
      %v939 = vunpack.c.l.b16 %v292
      %v940 = vunpack.c.h.b16 %v292
      %v941 = vunpack.c.l.b16 %v293
      %v942 = vunpack.c.h.b16 %v293
      %v943 = vunpack.c.l.b16 %v294
      %v944 = vunpack.c.h.b16 %v294
      %v945 = vunpack.c.l.b16 %v295
      %v946 = vunpack.c.h.b16 %v295
      %v947 = vunpack.c.l.b16 %v296
      %v948 = vunpack.c.h.b16 %v296
      %v949 = vunpack.c.l.b16 %v297
      %v950 = vunpack.c.h.b16 %v297
      %v951 = vunpack.c.l.b16 %v298
      %v952 = vunpack.c.h.b16 %v298
      %v953 = vunpack.c.l.b16 %v299
      %v954 = vunpack.c.h.b16 %v299
      %v955 = vunpack.c.l.b16 %v300
      %v956 = vunpack.c.h.b16 %v300
      %v957 = vunpack.c.l.b16 %v301
      %v958 = vunpack.c.h.b16 %v301
      %v959 = vunpack.c.l.b16 %v302
      %v960 = vunpack.c.h.b16 %v302
      %v961 = vunpack.c.l.b16 %v303
      %v962 = vunpack.c.h.b16 %v303
      %v963 = vunpack.c.l.b16 %v304
      %v964 = vunpack.c.h.b16 %v304
      %v965 = vunpack.c.l.b16 %v305
      %v966 = vunpack.c.h.b16 %v305
      %v967 = vunpack.c.l.b16 %v306
      %v968 = vunpack.c.h.b16 %v306
      %v969 = vunpack.c.l.b16 %v307
      %v970 = vunpack.c.h.b16 %v307
      %v971 = vunpack.c.l.b16 %v308
      %v972 = vunpack.c.h.b16 %v308
      %v973 = vunpack.c.l.b16 %v309
      %v974 = vunpack.c.h.b16 %v309
      %v975 = vunpack.c.l.b16 %v310
      %v976 = vunpack.c.h.b16 %v310
      %v977 = vunpack.c.l.b16 %v311
      %v978 = vunpack.c.h.b16 %v311
      %v979 = vunpack.c.l.b16 %v312
      %v980 = vunpack.c.h.b16 %v312
      %v981 = vunpack.c.l.b16 %v313
      %v982 = vunpack.c.h.b16 %v313
      %v983 = vunpack.c.l.b16 %v314
      %v984 = vunpack.c.h.b16 %v314
      %v985 = vunpack.c.l.b16 %v315
      %v986 = vunpack.c.h.b16 %v315
      %v987 = vunpack.c.l.b16 %v316
      %v988 = vunpack.c.h.b16 %v316
      %v989 = vunpack.c.l.b16 %v317
      %v990 = vunpack.c.h.b16 %v317
      %v991 = vunpack.c.l.b16 %v318
      %v992 = vunpack.c.h.b16 %v318
      %v993 = vunpack.c.l.b16 %v319
      %v994 = vunpack.c.h.b16 %v319
      %v995 = vunpack.c.l.b16 %v320
      %v996 = vunpack.c.h.b16 %v320
      %v997 = vunpack.c.l.b16 %v321
      %v998 = vunpack.c.h.b16 %v321
      %v999 = vunpack.c.l.b16 %v322
      %v1000 = vunpack.c.h.b16 %v322
      %v1001 = vunpack.c.l.b16 %v323
      %v1002 = vunpack.c.h.b16 %v323
      %v1003 = vunpack.c.l.b16 %v324
      %v1004 = vunpack.c.h.b16 %v324
      %v1005 = vunpack.c.l.b16 %v325
      %v1006 = vunpack.c.h.b16 %v325
      %v1007 = vunpack.c.l.b16 %v326
      %v1008 = vunpack.c.h.b16 %v326
      %v1009 = vunpack.c.l.b16 %v327
      %v1010 = vunpack.c.h.b16 %v327
      %v1011 = vunpack.c.l.b16 %v328
      %v1012 = vunpack.c.h.b16 %v328
      %v1013 = vunpack.c.l.b16 %v329
      %v1014 = vunpack.c.h.b16 %v329
      %v1015 = vunpack.c.l.b16 %v330
      %v1016 = vunpack.c.h.b16 %v330
      %v1017 = vunpack.c.l.b16 %v331
      %v1018 = vunpack.c.h.b16 %v331
      %v1019 = vunpack.c.l.b16 %v332
      %v1020 = vunpack.c.h.b16 %v332
      %v1021 = vunpack.c.l.b16 %v333
      %v1022 = vunpack.c.h.b16 %v333
      %v1023 = vunpack.c.l.b16 %v334
      %v1024 = vunpack.c.h.b16 %v334
      %v1025 = vunpack.c.l.b16 %v335
      %v1026 = vunpack.c.h.b16 %v335
      %v1027 = vunpack.c.l.b16 %v336
      %v1028 = vunpack.c.h.b16 %v336
      %v1029 = vunpack.c.l.b16 %v337
      %v1030 = vunpack.c.h.b16 %v337
      %v1031 = vunpack.c.l.b16 %v338
      %v1032 = vunpack.c.h.b16 %v338
      %v1033 = vunpack.c.l.b16 %v339
      %v1034 = vunpack.c.h.b16 %v339
      %v1035 = vunpack.c.l.b16 %v340
      %v1036 = vunpack.c.h.b16 %v340
      %v1037 = vunpack.c.l.b16 %v341
      %v1038 = vunpack.c.h.b16 %v341
      %v1039 = vunpack.c.l.b16 %v342
      %v1040 = vunpack.c.h.b16 %v342
      %v1041 = vunpack.c.l.b16 %v343
      %v1042 = vunpack.c.h.b16 %v343
      %v1043 = vunpack.c.l.b16 %v344
      %v1044 = vunpack.c.h.b16 %v344
      %v1045 = vunpack.c.l.b16 %v345
      %v1046 = vunpack.c.h.b16 %v345
      %v1047 = vunpack.c.l.b16 %v346
      %v1048 = vunpack.c.h.b16 %v346
      %v1049 = vunpack.c.l.b16 %v347
      %v1050 = vunpack.c.h.b16 %v347
      %v1051 = vunpack.c.l.b16 %v348
      %v1052 = vunpack.c.h.b16 %v348
      %v1053 = vunpack.c.l.b16 %v349
      %v1054 = vunpack.c.h.b16 %v349
      %v1055 = vunpack.c.l.b16 %v350
      %v1056 = vunpack.c.h.b16 %v350
      %v1057 = vunpack.c.l.b16 %v351
      %v1058 = vunpack.c.h.b16 %v351
      %v1059 = vunpack.c.l.b16 %v352
      %v1060 = vunpack.c.h.b16 %v352
      %v1061 = vunpack.c.l.b16 %v353
      %v1062 = vunpack.c.h.b16 %v353
      %v1063 = vunpack.c.l.b16 %v354
      %v1064 = vunpack.c.h.b16 %v354
      %v1065 = vunpack.c.l.b16 %v355
      %v1066 = vunpack.c.h.b16 %v355
      %v1067 = vunpack.c.l.b16 %v356
      %v1068 = vunpack.c.h.b16 %v356
      %v1069 = vunpack.c.l.b16 %v357
      %v1070 = vunpack.c.h.b16 %v357
      %v1071 = vunpack.c.l.b16 %v358
      %v1072 = vunpack.c.h.b16 %v358
      %v1073 = vunpack.c.l.b16 %v359
      %v1074 = vunpack.c.h.b16 %v359
      %v1075 = vunpack.c.l.b16 %v360
      %v1076 = vunpack.c.h.b16 %v360
      %v1077 = vunpack.c.l.b16 %v361
      %v1078 = vunpack.c.h.b16 %v361
      %v1079 = vunpack.c.l.b16 %v362
      %v1080 = vunpack.c.h.b16 %v362
      %v1081 = vunpack.c.l.b16 %v363
      %v1082 = vunpack.c.h.b16 %v363
      %v1083 = vunpack.c.l.b16 %v364
      %v1084 = vunpack.c.h.b16 %v364
      %v1085 = vunpack.c.l.b16 %v365
      %v1086 = vunpack.c.h.b16 %v365
      %v1087 = vunpack.c.l.b16 %v366
      %v1088 = vunpack.c.h.b16 %v366
      %v1089 = vunpack.c.l.b16 %v367
      %v1090 = vunpack.c.h.b16 %v367
      %v1091 = vunpack.c.l.b16 %v368
      %v1092 = vunpack.c.h.b16 %v368
      %v1093 = vunpack.c.l.b16 %v369
      %v1094 = vunpack.c.h.b16 %v369
      %v1095 = vunpack.c.l.b16 %v370
      %v1096 = vunpack.c.h.b16 %v370
      %v1097 = vunpack.c.l.b16 %v371
      %v1098 = vunpack.c.h.b16 %v371
      %v1099 = vunpack.c.l.b16 %v372
      %v1100 = vunpack.c.h.b16 %v372
      %v1101 = vunpack.c.l.b16 %v373
      %v1102 = vunpack.c.h.b16 %v373
      %v1103 = vunpack.c.l.b16 %v374
      %v1104 = vunpack.c.h.b16 %v374
      %v1105 = vunpack.c.l.b16 %v375
      %v1106 = vunpack.c.h.b16 %v375
      %v1107 = vunpack.c.l.b16 %v376
      %v1108 = vunpack.c.h.b16 %v376
      %v1109 = vpack.c.b16 %v717, %v709
      %v1110 = vpack.c.b16 %v718, %v710
      %v1111 = vpack.c.b16 %v719, %v711
      %v1112 = vpack.c.b16 %v720, %v712
      %v1113 = vpack.c.b16 %v721, %v713
      %v1114 = vpack.c.b16 %v722, %v714
      %v1115 = vpack.c.b16 %v723, %v715
      %v1116 = vpack.c.b16 %v724, %v716
      %v1117 = vpack.c.b16 %v733, %v725
      %v1118 = vpack.c.b16 %v734, %v726
      %v1119 = vpack.c.b16 %v735, %v727
      %v1120 = vpack.c.b16 %v736, %v728
      %v1121 = vpack.c.b16 %v737, %v729
      %v1122 = vpack.c.b16 %v738, %v730
      %v1123 = vpack.c.b16 %v739, %v731
      %v1124 = vpack.c.b16 %v740, %v732
      %v1125 = vpack.c.b16 %v749, %v741
      %v1126 = vpack.c.b16 %v750, %v742
      %v1127 = vpack.c.b16 %v751, %v743
      %v1128 = vpack.c.b16 %v752, %v744
      %v1129 = vpack.c.b16 %v753, %v745
      %v1130 = vpack.c.b16 %v754, %v746
      %v1131 = vpack.c.b16 %v755, %v747
      %v1132 = vpack.c.b16 %v756, %v748
      %v1133 = vpack.c.b16 %v765, %v757
      %v1134 = vpack.c.b16 %v766, %v758
      %v1135 = vpack.c.b16 %v767, %v759
      %v1136 = vpack.c.b16 %v768, %v760
      %v1137 = vpack.c.b16 %v769, %v761
      %v1138 = vpack.c.b16 %v770, %v762
      %v1139 = vpack.c.b16 %v771, %v763
      %v1140 = vpack.c.b16 %v772, %v764
      %v1141 = vpack.c.b16 %v781, %v773
      %v1142 = vpack.c.b16 %v782, %v774
      %v1143 = vpack.c.b16 %v783, %v775
      %v1144 = vpack.c.b16 %v784, %v776
      %v1145 = vpack.c.b16 %v785, %v777
      %v1146 = vpack.c.b16 %v786, %v778
      %v1147 = vpack.c.b16 %v787, %v779
      %v1148 = vpack.c.b16 %v788, %v780
      %v1149 = vpack.c.b16 %v797, %v789
      %v1150 = vpack.c.b16 %v798, %v790
      %v1151 = vpack.c.b16 %v799, %v791
      %v1152 = vpack.c.b16 %v800, %v792
      %v1153 = vpack.c.b16 %v801, %v793
      %v1154 = vpack.c.b16 %v802, %v794
      %v1155 = vpack.c.b16 %v803, %v795
      %v1156 = vpack.c.b16 %v804, %v796
      %v1157 = vpack.c.b16 %v813, %v805
      %v1158 = vpack.c.b16 %v814, %v806
      %v1159 = vpack.c.b16 %v815, %v807
      %v1160 = vpack.c.b16 %v816, %v808
      %v1161 = vpack.c.b16 %v817, %v809
      %v1162 = vpack.c.b16 %v818, %v810
      %v1163 = vpack.c.b16 %v819, %v811
      %v1164 = vpack.c.b16 %v820, %v812
      %v1165 = vpack.c.b16 %v829, %v821
      %v1166 = vpack.c.b16 %v830, %v822
      %v1167 = vpack.c.b16 %v831, %v823
      %v1168 = vpack.c.b16 %v832, %v824
      %v1169 = vpack.c.b16 %v833, %v825
      %v1170 = vpack.c.b16 %v834, %v826
      %v1171 = vpack.c.b16 %v835, %v827
      %v1172 = vpack.c.b16 %v836, %v828
      %v1173 = vpack.c.b16 %v845, %v837
      %v1174 = vpack.c.b16 %v846, %v838
      %v1175 = vpack.c.b16 %v847, %v839
      %v1176 = vpack.c.b16 %v848, %v840
      %v1177 = vpack.c.b16 %v849, %v841
      %v1178 = vpack.c.b16 %v850, %v842
      %v1179 = vpack.c.b16 %v851, %v843
      %v1180 = vpack.c.b16 %v852, %v844
      %v1181 = vpack.c.b16 %v861, %v853
      %v1182 = vpack.c.b16 %v862, %v854
      %v1183 = vpack.c.b16 %v863, %v855
      %v1184 = vpack.c.b16 %v864, %v856
      %v1185 = vpack.c.b16 %v865, %v857
      %v1186 = vpack.c.b16 %v866, %v858
      %v1187 = vpack.c.b16 %v867, %v859
      %v1188 = vpack.c.b16 %v868, %v860
      %v1189 = vpack.c.b16 %v877, %v869
      %v1190 = vpack.c.b16 %v878, %v870
      %v1191 = vpack.c.b16 %v879, %v871
      %v1192 = vpack.c.b16 %v880, %v872
      %v1193 = vpack.c.b16 %v881, %v873
      %v1194 = vpack.c.b16 %v882, %v874
      %v1195 = vpack.c.b16 %v883, %v875
      %v1196 = vpack.c.b16 %v884, %v876
      %v1197 = vpack.c.b16 %v893, %v885
      %v1198 = vpack.c.b16 %v894, %v886
      %v1199 = vpack.c.b16 %v895, %v887
      %v1200 = vpack.c.b16 %v896, %v888
      %v1201 = vpack.c.b16 %v897, %v889
      %v1202 = vpack.c.b16 %v898, %v890
      %v1203 = vpack.c.b16 %v899, %v891
      %v1204 = vpack.c.b16 %v900, %v892
      %v1205 = vpack.c.b16 %v909, %v901
      %v1206 = vpack.c.b16 %v910, %v902
      %v1207 = vpack.c.b16 %v911, %v903
      %v1208 = vpack.c.b16 %v912, %v904
      %v1209 = vpack.c.b16 %v913, %v905
      %v1210 = vpack.c.b16 %v914, %v906
      %v1211 = vpack.c.b16 %v915, %v907
      %v1212 = vpack.c.b16 %v916, %v908
      %v1213 = vpack.c.b16 %v925, %v917
      %v1214 = vpack.c.b16 %v926, %v918
      %v1215 = vpack.c.b16 %v927, %v919
      %v1216 = vpack.c.b16 %v928, %v920
      %v1217 = vpack.c.b16 %v929, %v921
      %v1218 = vpack.c.b16 %v930, %v922
      %v1219 = vpack.c.b16 %v931, %v923
      %v1220 = vpack.c.b16 %v932, %v924
      %v1221 = vpack.c.b16 %v941, %v933
      %v1222 = vpack.c.b16 %v942, %v934
      %v1223 = vpack.c.b16 %v943, %v935
      %v1224 = vpack.c.b16 %v944, %v936
      %v1225 = vpack.c.b16 %v945, %v937
      %v1226 = vpack.c.b16 %v946, %v938
      %v1227 = vpack.c.b16 %v947, %v939
      %v1228 = vpack.c.b16 %v948, %v940
      %v1229 = vpack.c.b16 %v957, %v949
      %v1230 = vpack.c.b16 %v958, %v950
      %v1231 = vpack.c.b16 %v959, %v951
      %v1232 = vpack.c.b16 %v960, %v952
      %v1233 = vpack.c.b16 %v961, %v953
      %v1234 = vpack.c.b16 %v962, %v954
      %v1235 = vpack.c.b16 %v963, %v955
      %v1236 = vpack.c.b16 %v964, %v956
      %v1237 = vpack.c.b16 %v973, %v965
      %v1238 = vpack.c.b16 %v974, %v966
      %v1239 = vpack.c.b16 %v975, %v967
      %v1240 = vpack.c.b16 %v976, %v968
      %v1241 = vpack.c.b16 %v977, %v969
      %v1242 = vpack.c.b16 %v978, %v970
      %v1243 = vpack.c.b16 %v979, %v971
      %v1244 = vpack.c.b16 %v980, %v972
      %v1245 = vpack.c.b16 %v989, %v981
      %v1246 = vpack.c.b16 %v990, %v982
      %v1247 = vpack.c.b16 %v991, %v983
      %v1248 = vpack.c.b16 %v992, %v984
      %v1249 = vpack.c.b16 %v993, %v985
      %v1250 = vpack.c.b16 %v994, %v986
      %v1251 = vpack.c.b16 %v995, %v987
      %v1252 = vpack.c.b16 %v996, %v988
      %v1253 = vpack.c.b16 %v1005, %v997
      %v1254 = vpack.c.b16 %v1006, %v998
      %v1255 = vpack.c.b16 %v1007, %v999
      %v1256 = vpack.c.b16 %v1008, %v1000
      %v1257 = vpack.c.b16 %v1009, %v1001
      %v1258 = vpack.c.b16 %v1010, %v1002
      %v1259 = vpack.c.b16 %v1011, %v1003
      %v1260 = vpack.c.b16 %v1012, %v1004
      %v1261 = vpack.c.b16 %v1021, %v1013
      %v1262 = vpack.c.b16 %v1022, %v1014
      %v1263 = vpack.c.b16 %v1023, %v1015
      %v1264 = vpack.c.b16 %v1024, %v1016
      %v1265 = vpack.c.b16 %v1025, %v1017
      %v1266 = vpack.c.b16 %v1026, %v1018
      %v1267 = vpack.c.b16 %v1027, %v1019
      %v1268 = vpack.c.b16 %v1028, %v1020
      %v1269 = vpack.c.b16 %v1037, %v1029
      %v1270 = vpack.c.b16 %v1038, %v1030
      %v1271 = vpack.c.b16 %v1039, %v1031
      %v1272 = vpack.c.b16 %v1040, %v1032
      %v1273 = vpack.c.b16 %v1041, %v1033
      %v1274 = vpack.c.b16 %v1042, %v1034
      %v1275 = vpack.c.b16 %v1043, %v1035
      %v1276 = vpack.c.b16 %v1044, %v1036
      %v1277 = vpack.c.b16 %v1053, %v1045
      %v1278 = vpack.c.b16 %v1054, %v1046
      %v1279 = vpack.c.b16 %v1055, %v1047
      %v1280 = vpack.c.b16 %v1056, %v1048
      %v1281 = vpack.c.b16 %v1057, %v1049
      %v1282 = vpack.c.b16 %v1058, %v1050
      %v1283 = vpack.c.b16 %v1059, %v1051
      %v1284 = vpack.c.b16 %v1060, %v1052
      %v1285 = vpack.c.b16 %v1069, %v1061
      %v1286 = vpack.c.b16 %v1070, %v1062
      %v1287 = vpack.c.b16 %v1071, %v1063
      %v1288 = vpack.c.b16 %v1072, %v1064
      %v1289 = vpack.c.b16 %v1073, %v1065
      %v1290 = vpack.c.b16 %v1074, %v1066
      %v1291 = vpack.c.b16 %v1075, %v1067
      %v1292 = vpack.c.b16 %v1076, %v1068
      %v1293 = vpack.c.b16 %v1085, %v1077
      %v1294 = vpack.c.b16 %v1086, %v1078
      %v1295 = vpack.c.b16 %v1087, %v1079
      %v1296 = vpack.c.b16 %v1088, %v1080
      %v1297 = vpack.c.b16 %v1089, %v1081
      %v1298 = vpack.c.b16 %v1090, %v1082
      %v1299 = vpack.c.b16 %v1091, %v1083
      %v1300 = vpack.c.b16 %v1092, %v1084
      %v1301 = vpack.c.b16 %v1101, %v1093
      %v1302 = vpack.c.b16 %v1102, %v1094
      %v1303 = vpack.c.b16 %v1103, %v1095
      %v1304 = vpack.c.b16 %v1104, %v1096
      %v1305 = vpack.c.b16 %v1105, %v1097
      %v1306 = vpack.c.b16 %v1106, %v1098
      %v1307 = vpack.c.b16 %v1107, %v1099
      %v1308 = vpack.c.b16 %v1108, %v1100
      %v1637 = vunpack.c.l.b16 %v377
      %v1638 = vunpack.c.l.b16 %v378
      %v1639 = vunpack.c.l.b16 %v379
      %v1640 = vunpack.c.l.b16 %v380
      %v1641 = vunpack.c.l.b16 %v381
      %v1642 = vunpack.c.l.b16 %v382
      %v1643 = vunpack.c.l.b16 %v383
      %v1644 = vunpack.c.l.b16 %v384
      %v1645 = vunpack.c.l.b16 %v385
      %v1646 = vunpack.c.l.b16 %v386
      %v1647 = vunpack.c.l.b16 %v387
      %v1648 = vunpack.c.l.b16 %v388
      %v1649 = vunpack.c.l.b16 %v389
      %v1650 = vunpack.c.l.b16 %v390
      %v1651 = vunpack.c.l.b16 %v391
      %v1652 = vunpack.c.l.b16 %v392
      %v1653 = vunpack.c.l.b16 %v393
      %v1654 = vunpack.c.l.b16 %v394
      %v1655 = vunpack.c.l.b16 %v395
      %v1656 = vunpack.c.l.b16 %v396
      %v1657 = vunpack.c.l.b16 %v397
      %v1658 = vunpack.c.l.b16 %v398
      %v1659 = vunpack.c.l.b16 %v399
      %v1660 = vunpack.c.l.b16 %v400
      %v1661 = vunpack.c.l.b16 %v401
      %v1662 = vunpack.c.l.b16 %v402
      %v1663 = vunpack.c.l.b16 %v403
      %v1664 = vunpack.c.l.b16 %v404
      %v1665 = vunpack.c.l.b16 %v405
      %v1666 = vunpack.c.l.b16 %v406
      %v1667 = vunpack.c.l.b16 %v407
      %v1668 = vunpack.c.l.b16 %v408
      %v1669 = vunpack.c.l.b16 %v409
      %v1670 = vunpack.c.l.b16 %v410
      %v1671 = vunpack.c.l.b16 %v411
      %v1672 = vunpack.c.l.b16 %v412
      %v1673 = vunpack.c.l.b16 %v413
      %v1674 = vunpack.c.l.b16 %v414
      %v1675 = vunpack.c.l.b16 %v415
      %v1676 = vunpack.c.l.b16 %v416
      %v1677 = vunpack.c.l.b16 %v417
      %v1678 = vunpack.c.l.b16 %v418
      %v1679 = vunpack.c.l.b16 %v419
      %v1680 = vunpack.c.l.b16 %v420
      %v1681 = vunpack.c.l.b16 %v421
      %v1682 = vunpack.c.l.b16 %v422
      %v1683 = vunpack.c.l.b16 %v423
      %v1684 = vunpack.c.l.b16 %v424
      %v1685 = vunpack.c.l.b16 %v425
      %v1686 = vunpack.c.l.b16 %v426
      %v1687 = vunpack.c.l.b16 %v427
      %v1688 = vunpack.c.l.b16 %v428
      %v1689 = vunpack.c.l.b16 %v429
      %v1690 = vunpack.c.l.b16 %v430
      %v1691 = vunpack.c.l.b16 %v431
      %v1692 = vunpack.c.l.b16 %v432
      %v1693 = vunpack.c.l.b16 %v433
      %v1694 = vunpack.c.l.b16 %v434
      %v1695 = vunpack.c.l.b16 %v435
      %v1696 = vunpack.c.l.b16 %v436
      %v1697 = vunpack.c.l.b16 %v437
      %v1698 = vunpack.c.l.b16 %v438
      %v1699 = vunpack.c.l.b16 %v439
      %v1700 = vunpack.c.l.b16 %v440
      %v1701 = vunpack.c.l.b16 %v441
      %v1702 = vunpack.c.l.b16 %v442
      %v1703 = vunpack.c.l.b16 %v443
      %v1704 = vunpack.c.l.b16 %v444
      %v1705 = vunpack.c.l.b16 %v445
      %v1706 = vunpack.c.l.b16 %v446
      %v1707 = vunpack.c.l.b16 %v447
      %v1708 = vunpack.c.l.b16 %v448
      %v1709 = vunpack.c.l.b16 %v449
      %v1710 = vunpack.c.l.b16 %v450
      %v1711 = vunpack.c.l.b16 %v451
      %v1712 = vunpack.c.l.b16 %v452
      %v1713 = vunpack.c.l.b16 %v453
      %v1714 = vunpack.c.l.b16 %v454
      %v1715 = vunpack.c.l.b16 %v455
      %v1716 = vunpack.c.l.b16 %v456
      %v1717 = vunpack.c.l.b16 %v457
      %v1718 = vunpack.c.l.b16 %v458
      %v1719 = vunpack.c.l.b16 %v459
      %v1720 = vunpack.c.l.b16 %v460
      %v1721 = vunpack.c.l.b16 %v461
      %v1722 = vunpack.c.l.b16 %v462
      %v1723 = vunpack.c.l.b16 %v463
      %v1724 = vunpack.c.l.b16 %v464
      %v1725 = vunpack.c.l.b16 %v465
      %v1726 = vunpack.c.l.b16 %v466
      %v1727 = vunpack.c.l.b16 %v467
      %v1728 = vunpack.c.l.b16 %v468
      %v1729 = vunpack.c.l.b16 %v469
      %v1730 = vunpack.c.l.b16 %v470
      %v1731 = vunpack.c.l.b16 %v471
      %v1732 = vunpack.c.l.b16 %v472
      %v1733 = vunpack.c.l.b16 %v473
      %v1734 = vunpack.c.l.b16 %v474
      %v1735 = vunpack.c.l.b16 %v475
      %v1736 = vunpack.c.l.b16 %v476
      %v1737 = vunpack.c.l.b16 %v477
      %v1738 = vunpack.c.l.b16 %v478
      %v1739 = vunpack.c.l.b16 %v479
      %v1740 = vunpack.c.l.b16 %v480
      %v1741 = vunpack.c.l.b16 %v481
      %v1742 = vunpack.c.l.b16 %v482
      %v1743 = vunpack.c.l.b16 %v483
      %v1744 = vunpack.c.l.b16 %v484
      %v1745 = vunpack.c.l.b16 %v485
      %v1746 = vunpack.c.l.b16 %v486
      %v1747 = vunpack.c.l.b16 %v487
      %v1748 = vunpack.c.l.b16 %v488
      %v1749 = vunpack.c.l.b16 %v489
      %v1750 = vunpack.c.l.b16 %v490
      %v1751 = vunpack.c.l.b16 %v491
      %v1752 = vunpack.c.l.b16 %v492
      %v1753 = vunpack.c.l.b16 %v493
      %v1754 = vunpack.c.l.b16 %v494
      %v1755 = vunpack.c.l.b16 %v495
      %v1756 = vunpack.c.l.b16 %v496
      %v1757 = vunpack.c.l.b16 %v497
      %v1758 = vunpack.c.l.b16 %v498
      %v1759 = vunpack.c.l.b16 %v499
      %v1760 = vunpack.c.l.b16 %v500
      %v1761 = vunpack.c.l.b16 %v501
      %v1762 = vunpack.c.l.b16 %v502
      %v1763 = vunpack.c.l.b16 %v503
      %v1764 = vunpack.c.l.b16 %v504
      %v1765 = vpack.c.b16 %v1638, %v1637
      %v1766 = vpack.c.b16 %v1640, %v1639
      %v1767 = vpack.c.b16 %v1642, %v1641
      %v1768 = vpack.c.b16 %v1644, %v1643
      %v1769 = vpack.c.b16 %v1646, %v1645
      %v1770 = vpack.c.b16 %v1648, %v1647
      %v1771 = vpack.c.b16 %v1650, %v1649
      %v1772 = vpack.c.b16 %v1652, %v1651
      %v1773 = vpack.c.b16 %v1654, %v1653
      %v1774 = vpack.c.b16 %v1656, %v1655
      %v1775 = vpack.c.b16 %v1658, %v1657
      %v1776 = vpack.c.b16 %v1660, %v1659
      %v1777 = vpack.c.b16 %v1662, %v1661
      %v1778 = vpack.c.b16 %v1664, %v1663
      %v1779 = vpack.c.b16 %v1666, %v1665
      %v1780 = vpack.c.b16 %v1668, %v1667
      %v1781 = vpack.c.b16 %v1670, %v1669
      %v1782 = vpack.c.b16 %v1672, %v1671
      %v1783 = vpack.c.b16 %v1674, %v1673
      %v1784 = vpack.c.b16 %v1676, %v1675
      %v1785 = vpack.c.b16 %v1678, %v1677
      %v1786 = vpack.c.b16 %v1680, %v1679
      %v1787 = vpack.c.b16 %v1682, %v1681
      %v1788 = vpack.c.b16 %v1684, %v1683
      %v1789 = vpack.c.b16 %v1686, %v1685
      %v1790 = vpack.c.b16 %v1688, %v1687
      %v1791 = vpack.c.b16 %v1690, %v1689
      %v1792 = vpack.c.b16 %v1692, %v1691
      %v1793 = vpack.c.b16 %v1694, %v1693
      %v1794 = vpack.c.b16 %v1696, %v1695
      %v1795 = vpack.c.b16 %v1698, %v1697
      %v1796 = vpack.c.b16 %v1700, %v1699
      %v1797 = vpack.c.b16 %v1702, %v1701
      %v1798 = vpack.c.b16 %v1704, %v1703
      %v1799 = vpack.c.b16 %v1706, %v1705
      %v1800 = vpack.c.b16 %v1708, %v1707
      %v1801 = vpack.c.b16 %v1710, %v1709
      %v1802 = vpack.c.b16 %v1712, %v1711
      %v1803 = vpack.c.b16 %v1714, %v1713
      %v1804 = vpack.c.b16 %v1716, %v1715
      %v1805 = vpack.c.b16 %v1718, %v1717
      %v1806 = vpack.c.b16 %v1720, %v1719
      %v1807 = vpack.c.b16 %v1722, %v1721
      %v1808 = vpack.c.b16 %v1724, %v1723
      %v1809 = vpack.c.b16 %v1726, %v1725
      %v1810 = vpack.c.b16 %v1728, %v1727
      %v1811 = vpack.c.b16 %v1730, %v1729
      %v1812 = vpack.c.b16 %v1732, %v1731
      %v1813 = vpack.c.b16 %v1734, %v1733
      %v1814 = vpack.c.b16 %v1736, %v1735
      %v1815 = vpack.c.b16 %v1738, %v1737
      %v1816 = vpack.c.b16 %v1740, %v1739
      %v1817 = vpack.c.b16 %v1742, %v1741
      %v1818 = vpack.c.b16 %v1744, %v1743
      %v1819 = vpack.c.b16 %v1746, %v1745
      %v1820 = vpack.c.b16 %v1748, %v1747
      %v1821 = vpack.c.b16 %v1750, %v1749
      %v1822 = vpack.c.b16 %v1752, %v1751
      %v1823 = vpack.c.b16 %v1754, %v1753
      %v1824 = vpack.c.b16 %v1756, %v1755
      %v1825 = vpack.c.b16 %v1758, %v1757
      %v1826 = vpack.c.b16 %v1760, %v1759
      %v1827 = vpack.c.b16 %v1762, %v1761
      %v1828 = vpack.c.b16 %v1764, %v1763
      %1893 = vmatpush.bf16.msra.mxu0 %v1772
      %1894 = vmatpush.bf16.msra.mxu0 %v1771
      %1895 = vmatpush.bf16.msra.mxu0 %v1770
      %1896 = vmatpush.bf16.msra.mxu0 %v1769
      %1897 = vmatpush.bf16.msra.mxu0 %v1768
      %1898 = vmatpush.bf16.msra.mxu0 %v1767
      %1899 = vmatpush.bf16.msra.mxu0 %v1766
      %1900 = vmatpush.bf16.msra.mxu0 %v1765
      %1901 = vmatmul.bf16.gmra.mxu0 %v1109
      %v1902 = vpop.f32.mrf.mxu0
      %v1903 = vadd.f32 %v507, %v1902
      %v1904 = vpop.f32.mrf.mxu0
      %v1905 = vadd.f32 %v507, %v1904
      %1906 = vmatmul.bf16.gmra.mxu0 %v1117
      %v1907 = vpop.f32.mrf.mxu0
      %v1908 = vadd.f32 %v507, %v1907
      %v1909 = vpop.f32.mrf.mxu0
      %v1910 = vadd.f32 %v507, %v1909
      %1911 = vmatmul.bf16.gmra.mxu0 %v1125
      %v1912 = vpop.f32.mrf.mxu0
      %v1913 = vadd.f32 %v507, %v1912
      %v1914 = vpop.f32.mrf.mxu0
      %v1915 = vadd.f32 %v507, %v1914
      %1916 = vmatmul.bf16.gmra.mxu0 %v1133
      %v1917 = vpop.f32.mrf.mxu0
      %v1918 = vadd.f32 %v507, %v1917
      %v1919 = vpop.f32.mrf.mxu0
      %v1920 = vadd.f32 %v507, %v1919
      %1921 = vmatmul.bf16.gmra.mxu0 %v1141
      %v1922 = vpop.f32.mrf.mxu0
      %v1923 = vadd.f32 %v507, %v1922
      %v1924 = vpop.f32.mrf.mxu0
      %v1925 = vadd.f32 %v507, %v1924
      %1926 = vmatmul.bf16.gmra.mxu0 %v1149
      %v1927 = vpop.f32.mrf.mxu0
      %v1928 = vadd.f32 %v507, %v1927
      %v1929 = vpop.f32.mrf.mxu0
      %v1930 = vadd.f32 %v507, %v1929
      %1931 = vmatmul.bf16.gmra.mxu0 %v1157
      %v1932 = vpop.f32.mrf.mxu0
      %v1933 = vadd.f32 %v507, %v1932
      %v1934 = vpop.f32.mrf.mxu0
      %v1935 = vadd.f32 %v507, %v1934
      %1936 = vmatmul.bf16.gmra.mxu0 %v1165
      %v1937 = vpop.f32.mrf.mxu0
      %v1938 = vadd.f32 %v507, %v1937
      %v1939 = vpop.f32.mrf.mxu0
      %v1940 = vadd.f32 %v507, %v1939
      %1941 = vmatmul.bf16.gmra.mxu0 %v1173
      %v1942 = vpop.f32.mrf.mxu0
      %v1943 = vadd.f32 %v507, %v1942
      %v1944 = vpop.f32.mrf.mxu0
      %v1945 = vadd.f32 %v507, %v1944
      %1946 = vmatmul.bf16.gmra.mxu0 %v1181
      %v1947 = vpop.f32.mrf.mxu0
      %v1948 = vadd.f32 %v507, %v1947
      %v1949 = vpop.f32.mrf.mxu0
      %v1950 = vadd.f32 %v507, %v1949
      %1951 = vmatmul.bf16.gmra.mxu0 %v1189
      %v1952 = vpop.f32.mrf.mxu0
      %v1953 = vadd.f32 %v507, %v1952
      %v1954 = vpop.f32.mrf.mxu0
      %v1955 = vadd.f32 %v507, %v1954
      %1956 = vmatmul.bf16.gmra.mxu0 %v1197
      %v1957 = vpop.f32.mrf.mxu0
      %v1958 = vadd.f32 %v507, %v1957
      %v1959 = vpop.f32.mrf.mxu0
      %v1960 = vadd.f32 %v507, %v1959
      %1961 = vmatmul.bf16.gmra.mxu0 %v1205
      %v1962 = vpop.f32.mrf.mxu0
      %v1963 = vadd.f32 %v507, %v1962
      %v1964 = vpop.f32.mrf.mxu0
      %v1965 = vadd.f32 %v507, %v1964
      %1966 = vmatmul.bf16.gmra.mxu0 %v1213
      %v1967 = vpop.f32.mrf.mxu0
      %v1968 = vadd.f32 %v507, %v1967
      %v1969 = vpop.f32.mrf.mxu0
      %v1970 = vadd.f32 %v507, %v1969
      %1971 = vmatmul.bf16.gmra.mxu0 %v1221
      %v1972 = vpop.f32.mrf.mxu0
      %v1973 = vadd.f32 %v507, %v1972
      %v1974 = vpop.f32.mrf.mxu0
      %v1975 = vadd.f32 %v507, %v1974
      %1976 = vmatmul.bf16.gmra.mxu0 %v1229
      %v1977 = vpop.f32.mrf.mxu0
      %v1978 = vadd.f32 %v507, %v1977
      %v1979 = vpop.f32.mrf.mxu0
      %v1980 = vadd.f32 %v507, %v1979
      %1981 = vmatmul.bf16.gmra.mxu0 %v1237
      %v1982 = vpop.f32.mrf.mxu0
      %v1983 = vadd.f32 %v507, %v1982
      %v1984 = vpop.f32.mrf.mxu0
      %v1985 = vadd.f32 %v507, %v1984
      %1986 = vmatmul.bf16.gmra.mxu0 %v1245
      %v1987 = vpop.f32.mrf.mxu0
      %v1988 = vadd.f32 %v507, %v1987
      %v1989 = vpop.f32.mrf.mxu0
      %v1990 = vadd.f32 %v507, %v1989
      %1991 = vmatmul.bf16.gmra.mxu0 %v1253
      %v1992 = vpop.f32.mrf.mxu0
      %v1993 = vadd.f32 %v507, %v1992
      %v1994 = vpop.f32.mrf.mxu0
      %v1995 = vadd.f32 %v507, %v1994
      %1996 = vmatmul.bf16.gmra.mxu0 %v1261
      %v1997 = vpop.f32.mrf.mxu0
      %v1998 = vadd.f32 %v507, %v1997
      %v1999 = vpop.f32.mrf.mxu0
      %v2000 = vadd.f32 %v507, %v1999
      %2001 = vmatmul.bf16.gmra.mxu0 %v1269
      %v2002 = vpop.f32.mrf.mxu0
      %v2003 = vadd.f32 %v507, %v2002
      %v2004 = vpop.f32.mrf.mxu0
      %v2005 = vadd.f32 %v507, %v2004
      %2006 = vmatmul.bf16.gmra.mxu0 %v1277
      %v2007 = vpop.f32.mrf.mxu0
      %v2008 = vadd.f32 %v507, %v2007
      %v2009 = vpop.f32.mrf.mxu0
      %v2010 = vadd.f32 %v507, %v2009
      %2011 = vmatmul.bf16.gmra.mxu0 %v1285
      %v2012 = vpop.f32.mrf.mxu0
      %v2013 = vadd.f32 %v507, %v2012
      %v2014 = vpop.f32.mrf.mxu0
      %v2015 = vadd.f32 %v507, %v2014
      %2016 = vmatmul.bf16.gmra.mxu0 %v1293
      %v2017 = vpop.f32.mrf.mxu0
      %v2018 = vadd.f32 %v507, %v2017
      %v2019 = vpop.f32.mrf.mxu0
      %v2020 = vadd.f32 %v507, %v2019
      %2021 = vmatmul.bf16.gmra.mxu0 %v1301
      %v2022 = vpop.f32.mrf.mxu0
      %v2023 = vadd.f32 %v507, %v2022
      %v2024 = vpop.f32.mrf.mxu0
      %v2025 = vadd.f32 %v507, %v2024
      %2026 = vdwg.mxu0
      %2027 = vmatpush.bf16.msra.mxu0 %v1780
      %2028 = vmatpush.bf16.msra.mxu0 %v1779
      %2029 = vmatpush.bf16.msra.mxu0 %v1778
      %2030 = vmatpush.bf16.msra.mxu0 %v1777
      %2031 = vmatpush.bf16.msra.mxu0 %v1776
      %2032 = vmatpush.bf16.msra.mxu0 %v1775
      %2033 = vmatpush.bf16.msra.mxu0 %v1774
      %2034 = vmatpush.bf16.msra.mxu0 %v1773
      %2035 = vmatmul.bf16.gmra.mxu0 %v1110
      %v2036 = vpop.f32.mrf.mxu0
      %v2037 = vadd.f32 %v1903, %v2036
      %v2038 = vpop.f32.mrf.mxu0
      %v2039 = vadd.f32 %v1905, %v2038
      %2040 = vmatmul.bf16.gmra.mxu0 %v1118
      %v2041 = vpop.f32.mrf.mxu0
      %v2042 = vadd.f32 %v1908, %v2041
      %v2043 = vpop.f32.mrf.mxu0
      %v2044 = vadd.f32 %v1910, %v2043
      %2045 = vmatmul.bf16.gmra.mxu0 %v1126
      %v2046 = vpop.f32.mrf.mxu0
      %v2047 = vadd.f32 %v1913, %v2046
      %v2048 = vpop.f32.mrf.mxu0
      %v2049 = vadd.f32 %v1915, %v2048
      %2050 = vmatmul.bf16.gmra.mxu0 %v1134
      %v2051 = vpop.f32.mrf.mxu0
      %v2052 = vadd.f32 %v1918, %v2051
      %v2053 = vpop.f32.mrf.mxu0
      %v2054 = vadd.f32 %v1920, %v2053
      %2055 = vmatmul.bf16.gmra.mxu0 %v1142
      %v2056 = vpop.f32.mrf.mxu0
      %v2057 = vadd.f32 %v1923, %v2056
      %v2058 = vpop.f32.mrf.mxu0
      %v2059 = vadd.f32 %v1925, %v2058
      %2060 = vmatmul.bf16.gmra.mxu0 %v1150
      %v2061 = vpop.f32.mrf.mxu0
      %v2062 = vadd.f32 %v1928, %v2061
      %v2063 = vpop.f32.mrf.mxu0
      %v2064 = vadd.f32 %v1930, %v2063
      %2065 = vmatmul.bf16.gmra.mxu0 %v1158
      %v2066 = vpop.f32.mrf.mxu0
      %v2067 = vadd.f32 %v1933, %v2066
      %v2068 = vpop.f32.mrf.mxu0
      %v2069 = vadd.f32 %v1935, %v2068
      %2070 = vmatmul.bf16.gmra.mxu0 %v1166
      %v2071 = vpop.f32.mrf.mxu0
      %v2072 = vadd.f32 %v1938, %v2071
      %v2073 = vpop.f32.mrf.mxu0
      %v2074 = vadd.f32 %v1940, %v2073
      %2075 = vmatmul.bf16.gmra.mxu0 %v1174
      %v2076 = vpop.f32.mrf.mxu0
      %v2077 = vadd.f32 %v1943, %v2076
      %v2078 = vpop.f32.mrf.mxu0
      %v2079 = vadd.f32 %v1945, %v2078
      %2080 = vmatmul.bf16.gmra.mxu0 %v1182
      %v2081 = vpop.f32.mrf.mxu0
      %v2082 = vadd.f32 %v1948, %v2081
      %v2083 = vpop.f32.mrf.mxu0
      %v2084 = vadd.f32 %v1950, %v2083
      %2085 = vmatmul.bf16.gmra.mxu0 %v1190
      %v2086 = vpop.f32.mrf.mxu0
      %v2087 = vadd.f32 %v1953, %v2086
      %v2088 = vpop.f32.mrf.mxu0
      %v2089 = vadd.f32 %v1955, %v2088
      %2090 = vmatmul.bf16.gmra.mxu0 %v1198
      %v2091 = vpop.f32.mrf.mxu0
      %v2092 = vadd.f32 %v1958, %v2091
      %v2093 = vpop.f32.mrf.mxu0
      %v2094 = vadd.f32 %v1960, %v2093
      %2095 = vmatmul.bf16.gmra.mxu0 %v1206
      %v2096 = vpop.f32.mrf.mxu0
      %v2097 = vadd.f32 %v1963, %v2096
      %v2098 = vpop.f32.mrf.mxu0
      %v2099 = vadd.f32 %v1965, %v2098
      %2100 = vmatmul.bf16.gmra.mxu0 %v1214
      %v2101 = vpop.f32.mrf.mxu0
      %v2102 = vadd.f32 %v1968, %v2101
      %v2103 = vpop.f32.mrf.mxu0
      %v2104 = vadd.f32 %v1970, %v2103
      %2105 = vmatmul.bf16.gmra.mxu0 %v1222
      %v2106 = vpop.f32.mrf.mxu0
      %v2107 = vadd.f32 %v1973, %v2106
      %v2108 = vpop.f32.mrf.mxu0
      %v2109 = vadd.f32 %v1975, %v2108
      %2110 = vmatmul.bf16.gmra.mxu0 %v1230
      %v2111 = vpop.f32.mrf.mxu0
      %v2112 = vadd.f32 %v1978, %v2111
      %v2113 = vpop.f32.mrf.mxu0
      %v2114 = vadd.f32 %v1980, %v2113
      %2115 = vmatmul.bf16.gmra.mxu0 %v1238
      %v2116 = vpop.f32.mrf.mxu0
      %v2117 = vadd.f32 %v1983, %v2116
      %v2118 = vpop.f32.mrf.mxu0
      %v2119 = vadd.f32 %v1985, %v2118
      %2120 = vmatmul.bf16.gmra.mxu0 %v1246
      %v2121 = vpop.f32.mrf.mxu0
      %v2122 = vadd.f32 %v1988, %v2121
      %v2123 = vpop.f32.mrf.mxu0
      %v2124 = vadd.f32 %v1990, %v2123
      %2125 = vmatmul.bf16.gmra.mxu0 %v1254
      %v2126 = vpop.f32.mrf.mxu0
      %v2127 = vadd.f32 %v1993, %v2126
      %v2128 = vpop.f32.mrf.mxu0
      %v2129 = vadd.f32 %v1995, %v2128
      %2130 = vmatmul.bf16.gmra.mxu0 %v1262
      %v2131 = vpop.f32.mrf.mxu0
      %v2132 = vadd.f32 %v1998, %v2131
      %v2133 = vpop.f32.mrf.mxu0
      %v2134 = vadd.f32 %v2000, %v2133
      %2135 = vmatmul.bf16.gmra.mxu0 %v1270
      %v2136 = vpop.f32.mrf.mxu0
      %v2137 = vadd.f32 %v2003, %v2136
      %v2138 = vpop.f32.mrf.mxu0
      %v2139 = vadd.f32 %v2005, %v2138
      %2140 = vmatmul.bf16.gmra.mxu0 %v1278
      %v2141 = vpop.f32.mrf.mxu0
      %v2142 = vadd.f32 %v2008, %v2141
      %v2143 = vpop.f32.mrf.mxu0
      %v2144 = vadd.f32 %v2010, %v2143
      %2145 = vmatmul.bf16.gmra.mxu0 %v1286
      %v2146 = vpop.f32.mrf.mxu0
      %v2147 = vadd.f32 %v2013, %v2146
      %v2148 = vpop.f32.mrf.mxu0
      %v2149 = vadd.f32 %v2015, %v2148
      %2150 = vmatmul.bf16.gmra.mxu0 %v1294
      %v2151 = vpop.f32.mrf.mxu0
      %v2152 = vadd.f32 %v2018, %v2151
      %v2153 = vpop.f32.mrf.mxu0
      %v2154 = vadd.f32 %v2020, %v2153
      %2155 = vmatmul.bf16.gmra.mxu0 %v1302
      %v2156 = vpop.f32.mrf.mxu0
      %v2157 = vadd.f32 %v2023, %v2156
      %v2158 = vpop.f32.mrf.mxu0
      %v2159 = vadd.f32 %v2025, %v2158
      %2160 = vdwg.mxu0
      %2161 = vmatpush.bf16.msra.mxu0 %v1788
      %2162 = vmatpush.bf16.msra.mxu0 %v1787
      %2163 = vmatpush.bf16.msra.mxu0 %v1786
      %2164 = vmatpush.bf16.msra.mxu0 %v1785
      %2165 = vmatpush.bf16.msra.mxu0 %v1784
      %2166 = vmatpush.bf16.msra.mxu0 %v1783
      %2167 = vmatpush.bf16.msra.mxu0 %v1782
      %2168 = vmatpush.bf16.msra.mxu0 %v1781
      %2169 = vmatmul.bf16.gmra.mxu0 %v1111
      %v2170 = vpop.f32.mrf.mxu0
      %v2171 = vadd.f32 %v2037, %v2170
      %v2172 = vpop.f32.mrf.mxu0
      %v2173 = vadd.f32 %v2039, %v2172
      %2174 = vmatmul.bf16.gmra.mxu0 %v1119
      %v2175 = vpop.f32.mrf.mxu0
      %v2176 = vadd.f32 %v2042, %v2175
      %v2177 = vpop.f32.mrf.mxu0
      %v2178 = vadd.f32 %v2044, %v2177
      %2179 = vmatmul.bf16.gmra.mxu0 %v1127
      %v2180 = vpop.f32.mrf.mxu0
      %v2181 = vadd.f32 %v2047, %v2180
      %v2182 = vpop.f32.mrf.mxu0
      %v2183 = vadd.f32 %v2049, %v2182
      %2184 = vmatmul.bf16.gmra.mxu0 %v1135
      %v2185 = vpop.f32.mrf.mxu0
      %v2186 = vadd.f32 %v2052, %v2185
      %v2187 = vpop.f32.mrf.mxu0
      %v2188 = vadd.f32 %v2054, %v2187
      %2189 = vmatmul.bf16.gmra.mxu0 %v1143
      %v2190 = vpop.f32.mrf.mxu0
      %v2191 = vadd.f32 %v2057, %v2190
      %v2192 = vpop.f32.mrf.mxu0
      %v2193 = vadd.f32 %v2059, %v2192
      %2194 = vmatmul.bf16.gmra.mxu0 %v1151
      %v2195 = vpop.f32.mrf.mxu0
      %v2196 = vadd.f32 %v2062, %v2195
      %v2197 = vpop.f32.mrf.mxu0
      %v2198 = vadd.f32 %v2064, %v2197
      %2199 = vmatmul.bf16.gmra.mxu0 %v1159
      %v2200 = vpop.f32.mrf.mxu0
      %v2201 = vadd.f32 %v2067, %v2200
      %v2202 = vpop.f32.mrf.mxu0
      %v2203 = vadd.f32 %v2069, %v2202
      %2204 = vmatmul.bf16.gmra.mxu0 %v1167
      %v2205 = vpop.f32.mrf.mxu0
      %v2206 = vadd.f32 %v2072, %v2205
      %v2207 = vpop.f32.mrf.mxu0
      %v2208 = vadd.f32 %v2074, %v2207
      %2209 = vmatmul.bf16.gmra.mxu0 %v1175
      %v2210 = vpop.f32.mrf.mxu0
      %v2211 = vadd.f32 %v2077, %v2210
      %v2212 = vpop.f32.mrf.mxu0
      %v2213 = vadd.f32 %v2079, %v2212
      %2214 = vmatmul.bf16.gmra.mxu0 %v1183
      %v2215 = vpop.f32.mrf.mxu0
      %v2216 = vadd.f32 %v2082, %v2215
      %v2217 = vpop.f32.mrf.mxu0
      %v2218 = vadd.f32 %v2084, %v2217
      %2219 = vmatmul.bf16.gmra.mxu0 %v1191
      %v2220 = vpop.f32.mrf.mxu0
      %v2221 = vadd.f32 %v2087, %v2220
      %v2222 = vpop.f32.mrf.mxu0
      %v2223 = vadd.f32 %v2089, %v2222
      %2224 = vmatmul.bf16.gmra.mxu0 %v1199
      %v2225 = vpop.f32.mrf.mxu0
      %v2226 = vadd.f32 %v2092, %v2225
      %v2227 = vpop.f32.mrf.mxu0
      %v2228 = vadd.f32 %v2094, %v2227
      %2229 = vmatmul.bf16.gmra.mxu0 %v1207
      %v2230 = vpop.f32.mrf.mxu0
      %v2231 = vadd.f32 %v2097, %v2230
      %v2232 = vpop.f32.mrf.mxu0
      %v2233 = vadd.f32 %v2099, %v2232
      %2234 = vmatmul.bf16.gmra.mxu0 %v1215
      %v2235 = vpop.f32.mrf.mxu0
      %v2236 = vadd.f32 %v2102, %v2235
      %v2237 = vpop.f32.mrf.mxu0
      %v2238 = vadd.f32 %v2104, %v2237
      %2239 = vmatmul.bf16.gmra.mxu0 %v1223
      %v2240 = vpop.f32.mrf.mxu0
      %v2241 = vadd.f32 %v2107, %v2240
      %v2242 = vpop.f32.mrf.mxu0
      %v2243 = vadd.f32 %v2109, %v2242
      %2244 = vmatmul.bf16.gmra.mxu0 %v1231
      %v2245 = vpop.f32.mrf.mxu0
      %v2246 = vadd.f32 %v2112, %v2245
      %v2247 = vpop.f32.mrf.mxu0
      %v2248 = vadd.f32 %v2114, %v2247
      %2249 = vmatmul.bf16.gmra.mxu0 %v1239
      %v2250 = vpop.f32.mrf.mxu0
      %v2251 = vadd.f32 %v2117, %v2250
      %v2252 = vpop.f32.mrf.mxu0
      %v2253 = vadd.f32 %v2119, %v2252
      %2254 = vmatmul.bf16.gmra.mxu0 %v1247
      %v2255 = vpop.f32.mrf.mxu0
      %v2256 = vadd.f32 %v2122, %v2255
      %v2257 = vpop.f32.mrf.mxu0
      %v2258 = vadd.f32 %v2124, %v2257
      %2259 = vmatmul.bf16.gmra.mxu0 %v1255
      %v2260 = vpop.f32.mrf.mxu0
      %v2261 = vadd.f32 %v2127, %v2260
      %v2262 = vpop.f32.mrf.mxu0
      %v2263 = vadd.f32 %v2129, %v2262
      %2264 = vmatmul.bf16.gmra.mxu0 %v1263
      %v2265 = vpop.f32.mrf.mxu0
      %v2266 = vadd.f32 %v2132, %v2265
      %v2267 = vpop.f32.mrf.mxu0
      %v2268 = vadd.f32 %v2134, %v2267
      %2269 = vmatmul.bf16.gmra.mxu0 %v1271
      %v2270 = vpop.f32.mrf.mxu0
      %v2271 = vadd.f32 %v2137, %v2270
      %v2272 = vpop.f32.mrf.mxu0
      %v2273 = vadd.f32 %v2139, %v2272
      %2274 = vmatmul.bf16.gmra.mxu0 %v1279
      %v2275 = vpop.f32.mrf.mxu0
      %v2276 = vadd.f32 %v2142, %v2275
      %v2277 = vpop.f32.mrf.mxu0
      %v2278 = vadd.f32 %v2144, %v2277
      %2279 = vmatmul.bf16.gmra.mxu0 %v1287
      %v2280 = vpop.f32.mrf.mxu0
      %v2281 = vadd.f32 %v2147, %v2280
      %v2282 = vpop.f32.mrf.mxu0
      %v2283 = vadd.f32 %v2149, %v2282
      %2284 = vmatmul.bf16.gmra.mxu0 %v1295
      %v2285 = vpop.f32.mrf.mxu0
      %v2286 = vadd.f32 %v2152, %v2285
      %v2287 = vpop.f32.mrf.mxu0
      %v2288 = vadd.f32 %v2154, %v2287
      %2289 = vmatmul.bf16.gmra.mxu0 %v1303
      %v2290 = vpop.f32.mrf.mxu0
      %v2291 = vadd.f32 %v2157, %v2290
      %v2292 = vpop.f32.mrf.mxu0
      %v2293 = vadd.f32 %v2159, %v2292
      %2294 = vdwg.mxu0
      %2295 = vmatpush.bf16.msra.mxu0 %v1796
      %2296 = vmatpush.bf16.msra.mxu0 %v1795
      %2297 = vmatpush.bf16.msra.mxu0 %v1794
      %2298 = vmatpush.bf16.msra.mxu0 %v1793
      %2299 = vmatpush.bf16.msra.mxu0 %v1792
      %2300 = vmatpush.bf16.msra.mxu0 %v1791
      %2301 = vmatpush.bf16.msra.mxu0 %v1790
      %2302 = vmatpush.bf16.msra.mxu0 %v1789
      %2303 = vmatmul.bf16.gmra.mxu0 %v1112
      %v2304 = vpop.f32.mrf.mxu0
      %v2305 = vadd.f32 %v2171, %v2304
      %v2306 = vpop.f32.mrf.mxu0
      %v2307 = vadd.f32 %v2173, %v2306
      %2308 = vmatmul.bf16.gmra.mxu0 %v1120
      %v2309 = vpop.f32.mrf.mxu0
      %v2310 = vadd.f32 %v2176, %v2309
      %v2311 = vpop.f32.mrf.mxu0
      %v2312 = vadd.f32 %v2178, %v2311
      %2313 = vmatmul.bf16.gmra.mxu0 %v1128
      %v2314 = vpop.f32.mrf.mxu0
      %v2315 = vadd.f32 %v2181, %v2314
      %v2316 = vpop.f32.mrf.mxu0
      %v2317 = vadd.f32 %v2183, %v2316
      %2318 = vmatmul.bf16.gmra.mxu0 %v1136
      %v2319 = vpop.f32.mrf.mxu0
      %v2320 = vadd.f32 %v2186, %v2319
      %v2321 = vpop.f32.mrf.mxu0
      %v2322 = vadd.f32 %v2188, %v2321
      %2323 = vmatmul.bf16.gmra.mxu0 %v1144
      %v2324 = vpop.f32.mrf.mxu0
      %v2325 = vadd.f32 %v2191, %v2324
      %v2326 = vpop.f32.mrf.mxu0
      %v2327 = vadd.f32 %v2193, %v2326
      %2328 = vmatmul.bf16.gmra.mxu0 %v1152
      %v2329 = vpop.f32.mrf.mxu0
      %v2330 = vadd.f32 %v2196, %v2329
      %v2331 = vpop.f32.mrf.mxu0
      %v2332 = vadd.f32 %v2198, %v2331
      %2333 = vmatmul.bf16.gmra.mxu0 %v1160
      %v2334 = vpop.f32.mrf.mxu0
      %v2335 = vadd.f32 %v2201, %v2334
      %v2336 = vpop.f32.mrf.mxu0
      %v2337 = vadd.f32 %v2203, %v2336
      %2338 = vmatmul.bf16.gmra.mxu0 %v1168
      %v2339 = vpop.f32.mrf.mxu0
      %v2340 = vadd.f32 %v2206, %v2339
      %v2341 = vpop.f32.mrf.mxu0
      %v2342 = vadd.f32 %v2208, %v2341
      %2343 = vmatmul.bf16.gmra.mxu0 %v1176
      %v2344 = vpop.f32.mrf.mxu0
      %v2345 = vadd.f32 %v2211, %v2344
      %v2346 = vpop.f32.mrf.mxu0
      %v2347 = vadd.f32 %v2213, %v2346
      %2348 = vmatmul.bf16.gmra.mxu0 %v1184
      %v2349 = vpop.f32.mrf.mxu0
      %v2350 = vadd.f32 %v2216, %v2349
      %v2351 = vpop.f32.mrf.mxu0
      %v2352 = vadd.f32 %v2218, %v2351
      %2353 = vmatmul.bf16.gmra.mxu0 %v1192
      %v2354 = vpop.f32.mrf.mxu0
      %v2355 = vadd.f32 %v2221, %v2354
      %v2356 = vpop.f32.mrf.mxu0
      %v2357 = vadd.f32 %v2223, %v2356
      %2358 = vmatmul.bf16.gmra.mxu0 %v1200
      %v2359 = vpop.f32.mrf.mxu0
      %v2360 = vadd.f32 %v2226, %v2359
      %v2361 = vpop.f32.mrf.mxu0
      %v2362 = vadd.f32 %v2228, %v2361
      %2363 = vmatmul.bf16.gmra.mxu0 %v1208
      %v2364 = vpop.f32.mrf.mxu0
      %v2365 = vadd.f32 %v2231, %v2364
      %v2366 = vpop.f32.mrf.mxu0
      %v2367 = vadd.f32 %v2233, %v2366
      %2368 = vmatmul.bf16.gmra.mxu0 %v1216
      %v2369 = vpop.f32.mrf.mxu0
      %v2370 = vadd.f32 %v2236, %v2369
      %v2371 = vpop.f32.mrf.mxu0
      %v2372 = vadd.f32 %v2238, %v2371
      %2373 = vmatmul.bf16.gmra.mxu0 %v1224
      %v2374 = vpop.f32.mrf.mxu0
      %v2375 = vadd.f32 %v2241, %v2374
      %v2376 = vpop.f32.mrf.mxu0
      %v2377 = vadd.f32 %v2243, %v2376
      %2378 = vmatmul.bf16.gmra.mxu0 %v1232
      %v2379 = vpop.f32.mrf.mxu0
      %v2380 = vadd.f32 %v2246, %v2379
      %v2381 = vpop.f32.mrf.mxu0
      %v2382 = vadd.f32 %v2248, %v2381
      %2383 = vmatmul.bf16.gmra.mxu0 %v1240
      %v2384 = vpop.f32.mrf.mxu0
      %v2385 = vadd.f32 %v2251, %v2384
      %v2386 = vpop.f32.mrf.mxu0
      %v2387 = vadd.f32 %v2253, %v2386
      %2388 = vmatmul.bf16.gmra.mxu0 %v1248
      %v2389 = vpop.f32.mrf.mxu0
      %v2390 = vadd.f32 %v2256, %v2389
      %v2391 = vpop.f32.mrf.mxu0
      %v2392 = vadd.f32 %v2258, %v2391
      %2393 = vmatmul.bf16.gmra.mxu0 %v1256
      %v2394 = vpop.f32.mrf.mxu0
      %v2395 = vadd.f32 %v2261, %v2394
      %v2396 = vpop.f32.mrf.mxu0
      %v2397 = vadd.f32 %v2263, %v2396
      %2398 = vmatmul.bf16.gmra.mxu0 %v1264
      %v2399 = vpop.f32.mrf.mxu0
      %v2400 = vadd.f32 %v2266, %v2399
      %v2401 = vpop.f32.mrf.mxu0
      %v2402 = vadd.f32 %v2268, %v2401
      %2403 = vmatmul.bf16.gmra.mxu0 %v1272
      %v2404 = vpop.f32.mrf.mxu0
      %v2405 = vadd.f32 %v2271, %v2404
      %v2406 = vpop.f32.mrf.mxu0
      %v2407 = vadd.f32 %v2273, %v2406
      %2408 = vmatmul.bf16.gmra.mxu0 %v1280
      %v2409 = vpop.f32.mrf.mxu0
      %v2410 = vadd.f32 %v2276, %v2409
      %v2411 = vpop.f32.mrf.mxu0
      %v2412 = vadd.f32 %v2278, %v2411
      %2413 = vmatmul.bf16.gmra.mxu0 %v1288
      %v2414 = vpop.f32.mrf.mxu0
      %v2415 = vadd.f32 %v2281, %v2414
      %v2416 = vpop.f32.mrf.mxu0
      %v2417 = vadd.f32 %v2283, %v2416
      %2418 = vmatmul.bf16.gmra.mxu0 %v1296
      %v2419 = vpop.f32.mrf.mxu0
      %v2420 = vadd.f32 %v2286, %v2419
      %v2421 = vpop.f32.mrf.mxu0
      %v2422 = vadd.f32 %v2288, %v2421
      %2423 = vmatmul.bf16.gmra.mxu0 %v1304
      %v2424 = vpop.f32.mrf.mxu0
      %v2425 = vadd.f32 %v2291, %v2424
      %v2426 = vpop.f32.mrf.mxu0
      %v2427 = vadd.f32 %v2293, %v2426
      %2428 = vdwg.mxu0
      %2429 = vmatpush.bf16.msra.mxu0 %v1804
      %2430 = vmatpush.bf16.msra.mxu0 %v1803
      %2431 = vmatpush.bf16.msra.mxu0 %v1802
      %2432 = vmatpush.bf16.msra.mxu0 %v1801
      %2433 = vmatpush.bf16.msra.mxu0 %v1800
      %2434 = vmatpush.bf16.msra.mxu0 %v1799
      %2435 = vmatpush.bf16.msra.mxu0 %v1798
      %2436 = vmatpush.bf16.msra.mxu0 %v1797
      %2437 = vmatmul.bf16.gmra.mxu0 %v1113
      %v2438 = vpop.f32.mrf.mxu0
      %v2439 = vadd.f32 %v2305, %v2438
      %v2440 = vpop.f32.mrf.mxu0
      %v2441 = vadd.f32 %v2307, %v2440
      %2442 = vmatmul.bf16.gmra.mxu0 %v1121
      %v2443 = vpop.f32.mrf.mxu0
      %v2444 = vadd.f32 %v2310, %v2443
      %v2445 = vpop.f32.mrf.mxu0
      %v2446 = vadd.f32 %v2312, %v2445
      %2447 = vmatmul.bf16.gmra.mxu0 %v1129
      %v2448 = vpop.f32.mrf.mxu0
      %v2449 = vadd.f32 %v2315, %v2448
      %v2450 = vpop.f32.mrf.mxu0
      %v2451 = vadd.f32 %v2317, %v2450
      %2452 = vmatmul.bf16.gmra.mxu0 %v1137
      %v2453 = vpop.f32.mrf.mxu0
      %v2454 = vadd.f32 %v2320, %v2453
      %v2455 = vpop.f32.mrf.mxu0
      %v2456 = vadd.f32 %v2322, %v2455
      %2457 = vmatmul.bf16.gmra.mxu0 %v1145
      %v2458 = vpop.f32.mrf.mxu0
      %v2459 = vadd.f32 %v2325, %v2458
      %v2460 = vpop.f32.mrf.mxu0
      %v2461 = vadd.f32 %v2327, %v2460
      %2462 = vmatmul.bf16.gmra.mxu0 %v1153
      %v2463 = vpop.f32.mrf.mxu0
      %v2464 = vadd.f32 %v2330, %v2463
      %v2465 = vpop.f32.mrf.mxu0
      %v2466 = vadd.f32 %v2332, %v2465
      %2467 = vmatmul.bf16.gmra.mxu0 %v1161
      %v2468 = vpop.f32.mrf.mxu0
      %v2469 = vadd.f32 %v2335, %v2468
      %v2470 = vpop.f32.mrf.mxu0
      %v2471 = vadd.f32 %v2337, %v2470
      %2472 = vmatmul.bf16.gmra.mxu0 %v1169
      %v2473 = vpop.f32.mrf.mxu0
      %v2474 = vadd.f32 %v2340, %v2473
      %v2475 = vpop.f32.mrf.mxu0
      %v2476 = vadd.f32 %v2342, %v2475
      %2477 = vmatmul.bf16.gmra.mxu0 %v1177
      %v2478 = vpop.f32.mrf.mxu0
      %v2479 = vadd.f32 %v2345, %v2478
      %v2480 = vpop.f32.mrf.mxu0
      %v2481 = vadd.f32 %v2347, %v2480
      %2482 = vmatmul.bf16.gmra.mxu0 %v1185
      %v2483 = vpop.f32.mrf.mxu0
      %v2484 = vadd.f32 %v2350, %v2483
      %v2485 = vpop.f32.mrf.mxu0
      %v2486 = vadd.f32 %v2352, %v2485
      %2487 = vmatmul.bf16.gmra.mxu0 %v1193
      %v2488 = vpop.f32.mrf.mxu0
      %v2489 = vadd.f32 %v2355, %v2488
      %v2490 = vpop.f32.mrf.mxu0
      %v2491 = vadd.f32 %v2357, %v2490
      %2492 = vmatmul.bf16.gmra.mxu0 %v1201
      %v2493 = vpop.f32.mrf.mxu0
      %v2494 = vadd.f32 %v2360, %v2493
      %v2495 = vpop.f32.mrf.mxu0
      %v2496 = vadd.f32 %v2362, %v2495
      %2497 = vmatmul.bf16.gmra.mxu0 %v1209
      %v2498 = vpop.f32.mrf.mxu0
      %v2499 = vadd.f32 %v2365, %v2498
      %v2500 = vpop.f32.mrf.mxu0
      %v2501 = vadd.f32 %v2367, %v2500
      %2502 = vmatmul.bf16.gmra.mxu0 %v1217
      %v2503 = vpop.f32.mrf.mxu0
      %v2504 = vadd.f32 %v2370, %v2503
      %v2505 = vpop.f32.mrf.mxu0
      %v2506 = vadd.f32 %v2372, %v2505
      %2507 = vmatmul.bf16.gmra.mxu0 %v1225
      %v2508 = vpop.f32.mrf.mxu0
      %v2509 = vadd.f32 %v2375, %v2508
      %v2510 = vpop.f32.mrf.mxu0
      %v2511 = vadd.f32 %v2377, %v2510
      %2512 = vmatmul.bf16.gmra.mxu0 %v1233
      %v2513 = vpop.f32.mrf.mxu0
      %v2514 = vadd.f32 %v2380, %v2513
      %v2515 = vpop.f32.mrf.mxu0
      %v2516 = vadd.f32 %v2382, %v2515
      %2517 = vmatmul.bf16.gmra.mxu0 %v1241
      %v2518 = vpop.f32.mrf.mxu0
      %v2519 = vadd.f32 %v2385, %v2518
      %v2520 = vpop.f32.mrf.mxu0
      %v2521 = vadd.f32 %v2387, %v2520
      %2522 = vmatmul.bf16.gmra.mxu0 %v1249
      %v2523 = vpop.f32.mrf.mxu0
      %v2524 = vadd.f32 %v2390, %v2523
      %v2525 = vpop.f32.mrf.mxu0
      %v2526 = vadd.f32 %v2392, %v2525
      %2527 = vmatmul.bf16.gmra.mxu0 %v1257
      %v2528 = vpop.f32.mrf.mxu0
      %v2529 = vadd.f32 %v2395, %v2528
      %v2530 = vpop.f32.mrf.mxu0
      %v2531 = vadd.f32 %v2397, %v2530
      %2532 = vmatmul.bf16.gmra.mxu0 %v1265
      %v2533 = vpop.f32.mrf.mxu0
      %v2534 = vadd.f32 %v2400, %v2533
      %v2535 = vpop.f32.mrf.mxu0
      %v2536 = vadd.f32 %v2402, %v2535
      %2537 = vmatmul.bf16.gmra.mxu0 %v1273
      %v2538 = vpop.f32.mrf.mxu0
      %v2539 = vadd.f32 %v2405, %v2538
      %v2540 = vpop.f32.mrf.mxu0
      %v2541 = vadd.f32 %v2407, %v2540
      %2542 = vmatmul.bf16.gmra.mxu0 %v1281
      %v2543 = vpop.f32.mrf.mxu0
      %v2544 = vadd.f32 %v2410, %v2543
      %v2545 = vpop.f32.mrf.mxu0
      %v2546 = vadd.f32 %v2412, %v2545
      %2547 = vmatmul.bf16.gmra.mxu0 %v1289
      %v2548 = vpop.f32.mrf.mxu0
      %v2549 = vadd.f32 %v2415, %v2548
      %v2550 = vpop.f32.mrf.mxu0
      %v2551 = vadd.f32 %v2417, %v2550
      %2552 = vmatmul.bf16.gmra.mxu0 %v1297
      %v2553 = vpop.f32.mrf.mxu0
      %v2554 = vadd.f32 %v2420, %v2553
      %v2555 = vpop.f32.mrf.mxu0
      %v2556 = vadd.f32 %v2422, %v2555
      %2557 = vmatmul.bf16.gmra.mxu0 %v1305
      %v2558 = vpop.f32.mrf.mxu0
      %v2559 = vadd.f32 %v2425, %v2558
      %v2560 = vpop.f32.mrf.mxu0
      %v2561 = vadd.f32 %v2427, %v2560
      %2562 = vdwg.mxu0
      %2563 = vmatpush.bf16.msra.mxu0 %v1812
      %2564 = vmatpush.bf16.msra.mxu0 %v1811
      %2565 = vmatpush.bf16.msra.mxu0 %v1810
      %2566 = vmatpush.bf16.msra.mxu0 %v1809
      %2567 = vmatpush.bf16.msra.mxu0 %v1808
      %2568 = vmatpush.bf16.msra.mxu0 %v1807
      %2569 = vmatpush.bf16.msra.mxu0 %v1806
      %2570 = vmatpush.bf16.msra.mxu0 %v1805
      %2571 = vmatmul.bf16.gmra.mxu0 %v1114
      %v2572 = vpop.f32.mrf.mxu0
      %v2573 = vadd.f32 %v2439, %v2572
      %v2574 = vpop.f32.mrf.mxu0
      %v2575 = vadd.f32 %v2441, %v2574
      %2576 = vmatmul.bf16.gmra.mxu0 %v1122
      %v2577 = vpop.f32.mrf.mxu0
      %v2578 = vadd.f32 %v2444, %v2577
      %v2579 = vpop.f32.mrf.mxu0
      %v2580 = vadd.f32 %v2446, %v2579
      %2581 = vmatmul.bf16.gmra.mxu0 %v1130
      %v2582 = vpop.f32.mrf.mxu0
      %v2583 = vadd.f32 %v2449, %v2582
      %v2584 = vpop.f32.mrf.mxu0
      %v2585 = vadd.f32 %v2451, %v2584
      %2586 = vmatmul.bf16.gmra.mxu0 %v1138
      %v2587 = vpop.f32.mrf.mxu0
      %v2588 = vadd.f32 %v2454, %v2587
      %v2589 = vpop.f32.mrf.mxu0
      %v2590 = vadd.f32 %v2456, %v2589
      %2591 = vmatmul.bf16.gmra.mxu0 %v1146
      %v2592 = vpop.f32.mrf.mxu0
      %v2593 = vadd.f32 %v2459, %v2592
      %v2594 = vpop.f32.mrf.mxu0
      %v2595 = vadd.f32 %v2461, %v2594
      %2596 = vmatmul.bf16.gmra.mxu0 %v1154
      %v2597 = vpop.f32.mrf.mxu0
      %v2598 = vadd.f32 %v2464, %v2597
      %v2599 = vpop.f32.mrf.mxu0
      %v2600 = vadd.f32 %v2466, %v2599
      %2601 = vmatmul.bf16.gmra.mxu0 %v1162
      %v2602 = vpop.f32.mrf.mxu0
      %v2603 = vadd.f32 %v2469, %v2602
      %v2604 = vpop.f32.mrf.mxu0
      %v2605 = vadd.f32 %v2471, %v2604
      %2606 = vmatmul.bf16.gmra.mxu0 %v1170
      %v2607 = vpop.f32.mrf.mxu0
      %v2608 = vadd.f32 %v2474, %v2607
      %v2609 = vpop.f32.mrf.mxu0
      %v2610 = vadd.f32 %v2476, %v2609
      %2611 = vmatmul.bf16.gmra.mxu0 %v1178
      %v2612 = vpop.f32.mrf.mxu0
      %v2613 = vadd.f32 %v2479, %v2612
      %v2614 = vpop.f32.mrf.mxu0
      %v2615 = vadd.f32 %v2481, %v2614
      %2616 = vmatmul.bf16.gmra.mxu0 %v1186
      %v2617 = vpop.f32.mrf.mxu0
      %v2618 = vadd.f32 %v2484, %v2617
      %v2619 = vpop.f32.mrf.mxu0
      %v2620 = vadd.f32 %v2486, %v2619
      %2621 = vmatmul.bf16.gmra.mxu0 %v1194
      %v2622 = vpop.f32.mrf.mxu0
      %v2623 = vadd.f32 %v2489, %v2622
      %v2624 = vpop.f32.mrf.mxu0
      %v2625 = vadd.f32 %v2491, %v2624
      %2626 = vmatmul.bf16.gmra.mxu0 %v1202
      %v2627 = vpop.f32.mrf.mxu0
      %v2628 = vadd.f32 %v2494, %v2627
      %v2629 = vpop.f32.mrf.mxu0
      %v2630 = vadd.f32 %v2496, %v2629
      %2631 = vmatmul.bf16.gmra.mxu0 %v1210
      %v2632 = vpop.f32.mrf.mxu0
      %v2633 = vadd.f32 %v2499, %v2632
      %v2634 = vpop.f32.mrf.mxu0
      %v2635 = vadd.f32 %v2501, %v2634
      %2636 = vmatmul.bf16.gmra.mxu0 %v1218
      %v2637 = vpop.f32.mrf.mxu0
      %v2638 = vadd.f32 %v2504, %v2637
      %v2639 = vpop.f32.mrf.mxu0
      %v2640 = vadd.f32 %v2506, %v2639
      %2641 = vmatmul.bf16.gmra.mxu0 %v1226
      %v2642 = vpop.f32.mrf.mxu0
      %v2643 = vadd.f32 %v2509, %v2642
      %v2644 = vpop.f32.mrf.mxu0
      %v2645 = vadd.f32 %v2511, %v2644
      %2646 = vmatmul.bf16.gmra.mxu0 %v1234
      %v2647 = vpop.f32.mrf.mxu0
      %v2648 = vadd.f32 %v2514, %v2647
      %v2649 = vpop.f32.mrf.mxu0
      %v2650 = vadd.f32 %v2516, %v2649
      %2651 = vmatmul.bf16.gmra.mxu0 %v1242
      %v2652 = vpop.f32.mrf.mxu0
      %v2653 = vadd.f32 %v2519, %v2652
      %v2654 = vpop.f32.mrf.mxu0
      %v2655 = vadd.f32 %v2521, %v2654
      %2656 = vmatmul.bf16.gmra.mxu0 %v1250
      %v2657 = vpop.f32.mrf.mxu0
      %v2658 = vadd.f32 %v2524, %v2657
      %v2659 = vpop.f32.mrf.mxu0
      %v2660 = vadd.f32 %v2526, %v2659
      %2661 = vmatmul.bf16.gmra.mxu0 %v1258
      %v2662 = vpop.f32.mrf.mxu0
      %v2663 = vadd.f32 %v2529, %v2662
      %v2664 = vpop.f32.mrf.mxu0
      %v2665 = vadd.f32 %v2531, %v2664
      %2666 = vmatmul.bf16.gmra.mxu0 %v1266
      %v2667 = vpop.f32.mrf.mxu0
      %v2668 = vadd.f32 %v2534, %v2667
      %v2669 = vpop.f32.mrf.mxu0
      %v2670 = vadd.f32 %v2536, %v2669
      %2671 = vmatmul.bf16.gmra.mxu0 %v1274
      %v2672 = vpop.f32.mrf.mxu0
      %v2673 = vadd.f32 %v2539, %v2672
      %v2674 = vpop.f32.mrf.mxu0
      %v2675 = vadd.f32 %v2541, %v2674
      %2676 = vmatmul.bf16.gmra.mxu0 %v1282
      %v2677 = vpop.f32.mrf.mxu0
      %v2678 = vadd.f32 %v2544, %v2677
      %v2679 = vpop.f32.mrf.mxu0
      %v2680 = vadd.f32 %v2546, %v2679
      %2681 = vmatmul.bf16.gmra.mxu0 %v1290
      %v2682 = vpop.f32.mrf.mxu0
      %v2683 = vadd.f32 %v2549, %v2682
      %v2684 = vpop.f32.mrf.mxu0
      %v2685 = vadd.f32 %v2551, %v2684
      %2686 = vmatmul.bf16.gmra.mxu0 %v1298
      %v2687 = vpop.f32.mrf.mxu0
      %v2688 = vadd.f32 %v2554, %v2687
      %v2689 = vpop.f32.mrf.mxu0
      %v2690 = vadd.f32 %v2556, %v2689
      %2691 = vmatmul.bf16.gmra.mxu0 %v1306
      %v2692 = vpop.f32.mrf.mxu0
      %v2693 = vadd.f32 %v2559, %v2692
      %v2694 = vpop.f32.mrf.mxu0
      %v2695 = vadd.f32 %v2561, %v2694
      %2696 = vdwg.mxu0
      %2697 = vmatpush.bf16.msra.mxu0 %v1820
      %2698 = vmatpush.bf16.msra.mxu0 %v1819
      %2699 = vmatpush.bf16.msra.mxu0 %v1818
      %2700 = vmatpush.bf16.msra.mxu0 %v1817
      %2701 = vmatpush.bf16.msra.mxu0 %v1816
      %2702 = vmatpush.bf16.msra.mxu0 %v1815
      %2703 = vmatpush.bf16.msra.mxu0 %v1814
      %2704 = vmatpush.bf16.msra.mxu0 %v1813
      %2705 = vmatmul.bf16.gmra.mxu0 %v1115
      %v2706 = vpop.f32.mrf.mxu0
      %v2707 = vadd.f32 %v2573, %v2706
      %v2708 = vpop.f32.mrf.mxu0
      %v2709 = vadd.f32 %v2575, %v2708
      %2710 = vmatmul.bf16.gmra.mxu0 %v1123
      %v2711 = vpop.f32.mrf.mxu0
      %v2712 = vadd.f32 %v2578, %v2711
      %v2713 = vpop.f32.mrf.mxu0
      %v2714 = vadd.f32 %v2580, %v2713
      %2715 = vmatmul.bf16.gmra.mxu0 %v1131
      %v2716 = vpop.f32.mrf.mxu0
      %v2717 = vadd.f32 %v2583, %v2716
      %v2718 = vpop.f32.mrf.mxu0
      %v2719 = vadd.f32 %v2585, %v2718
      %2720 = vmatmul.bf16.gmra.mxu0 %v1139
      %v2721 = vpop.f32.mrf.mxu0
      %v2722 = vadd.f32 %v2588, %v2721
      %v2723 = vpop.f32.mrf.mxu0
      %v2724 = vadd.f32 %v2590, %v2723
      %2725 = vmatmul.bf16.gmra.mxu0 %v1147
      %v2726 = vpop.f32.mrf.mxu0
      %v2727 = vadd.f32 %v2593, %v2726
      %v2728 = vpop.f32.mrf.mxu0
      %v2729 = vadd.f32 %v2595, %v2728
      %2730 = vmatmul.bf16.gmra.mxu0 %v1155
      %v2731 = vpop.f32.mrf.mxu0
      %v2732 = vadd.f32 %v2598, %v2731
      %v2733 = vpop.f32.mrf.mxu0
      %v2734 = vadd.f32 %v2600, %v2733
      %2735 = vmatmul.bf16.gmra.mxu0 %v1163
      %v2736 = vpop.f32.mrf.mxu0
      %v2737 = vadd.f32 %v2603, %v2736
      %v2738 = vpop.f32.mrf.mxu0
      %v2739 = vadd.f32 %v2605, %v2738
      %2740 = vmatmul.bf16.gmra.mxu0 %v1171
      %v2741 = vpop.f32.mrf.mxu0
      %v2742 = vadd.f32 %v2608, %v2741
      %v2743 = vpop.f32.mrf.mxu0
      %v2744 = vadd.f32 %v2610, %v2743
      %2745 = vmatmul.bf16.gmra.mxu0 %v1179
      %v2746 = vpop.f32.mrf.mxu0
      %v2747 = vadd.f32 %v2613, %v2746
      %v2748 = vpop.f32.mrf.mxu0
      %v2749 = vadd.f32 %v2615, %v2748
      %2750 = vmatmul.bf16.gmra.mxu0 %v1187
      %v2751 = vpop.f32.mrf.mxu0
      %v2752 = vadd.f32 %v2618, %v2751
      %v2753 = vpop.f32.mrf.mxu0
      %v2754 = vadd.f32 %v2620, %v2753
      %2755 = vmatmul.bf16.gmra.mxu0 %v1195
      %v2756 = vpop.f32.mrf.mxu0
      %v2757 = vadd.f32 %v2623, %v2756
      %v2758 = vpop.f32.mrf.mxu0
      %v2759 = vadd.f32 %v2625, %v2758
      %2760 = vmatmul.bf16.gmra.mxu0 %v1203
      %v2761 = vpop.f32.mrf.mxu0
      %v2762 = vadd.f32 %v2628, %v2761
      %v2763 = vpop.f32.mrf.mxu0
      %v2764 = vadd.f32 %v2630, %v2763
      %2765 = vmatmul.bf16.gmra.mxu0 %v1211
      %v2766 = vpop.f32.mrf.mxu0
      %v2767 = vadd.f32 %v2633, %v2766
      %v2768 = vpop.f32.mrf.mxu0
      %v2769 = vadd.f32 %v2635, %v2768
      %2770 = vmatmul.bf16.gmra.mxu0 %v1219
      %v2771 = vpop.f32.mrf.mxu0
      %v2772 = vadd.f32 %v2638, %v2771
      %v2773 = vpop.f32.mrf.mxu0
      %v2774 = vadd.f32 %v2640, %v2773
      %2775 = vmatmul.bf16.gmra.mxu0 %v1227
      %v2776 = vpop.f32.mrf.mxu0
      %v2777 = vadd.f32 %v2643, %v2776
      %v2778 = vpop.f32.mrf.mxu0
      %v2779 = vadd.f32 %v2645, %v2778
      %2780 = vmatmul.bf16.gmra.mxu0 %v1235
      %v2781 = vpop.f32.mrf.mxu0
      %v2782 = vadd.f32 %v2648, %v2781
      %v2783 = vpop.f32.mrf.mxu0
      %v2784 = vadd.f32 %v2650, %v2783
      %2785 = vmatmul.bf16.gmra.mxu0 %v1243
      %v2786 = vpop.f32.mrf.mxu0
      %v2787 = vadd.f32 %v2653, %v2786
      %v2788 = vpop.f32.mrf.mxu0
      %v2789 = vadd.f32 %v2655, %v2788
      %2790 = vmatmul.bf16.gmra.mxu0 %v1251
      %v2791 = vpop.f32.mrf.mxu0
      %v2792 = vadd.f32 %v2658, %v2791
      %v2793 = vpop.f32.mrf.mxu0
      %v2794 = vadd.f32 %v2660, %v2793
      %2795 = vmatmul.bf16.gmra.mxu0 %v1259
      %v2796 = vpop.f32.mrf.mxu0
      %v2797 = vadd.f32 %v2663, %v2796
      %v2798 = vpop.f32.mrf.mxu0
      %v2799 = vadd.f32 %v2665, %v2798
      %2800 = vmatmul.bf16.gmra.mxu0 %v1267
      %v2801 = vpop.f32.mrf.mxu0
      %v2802 = vadd.f32 %v2668, %v2801
      %v2803 = vpop.f32.mrf.mxu0
      %v2804 = vadd.f32 %v2670, %v2803
      %2805 = vmatmul.bf16.gmra.mxu0 %v1275
      %v2806 = vpop.f32.mrf.mxu0
      %v2807 = vadd.f32 %v2673, %v2806
      %v2808 = vpop.f32.mrf.mxu0
      %v2809 = vadd.f32 %v2675, %v2808
      %2810 = vmatmul.bf16.gmra.mxu0 %v1283
      %v2811 = vpop.f32.mrf.mxu0
      %v2812 = vadd.f32 %v2678, %v2811
      %v2813 = vpop.f32.mrf.mxu0
      %v2814 = vadd.f32 %v2680, %v2813
      %2815 = vmatmul.bf16.gmra.mxu0 %v1291
      %v2816 = vpop.f32.mrf.mxu0
      %v2817 = vadd.f32 %v2683, %v2816
      %v2818 = vpop.f32.mrf.mxu0
      %v2819 = vadd.f32 %v2685, %v2818
      %2820 = vmatmul.bf16.gmra.mxu0 %v1299
      %v2821 = vpop.f32.mrf.mxu0
      %v2822 = vadd.f32 %v2688, %v2821
      %v2823 = vpop.f32.mrf.mxu0
      %v2824 = vadd.f32 %v2690, %v2823
      %2825 = vmatmul.bf16.gmra.mxu0 %v1307
      %v2826 = vpop.f32.mrf.mxu0
      %v2827 = vadd.f32 %v2693, %v2826
      %v2828 = vpop.f32.mrf.mxu0
      %v2829 = vadd.f32 %v2695, %v2828
      %2830 = vdwg.mxu0
      %2831 = vmatpush.bf16.msra.mxu0 %v1828
      %2832 = vmatpush.bf16.msra.mxu0 %v1827
      %2833 = vmatpush.bf16.msra.mxu0 %v1826
      %2834 = vmatpush.bf16.msra.mxu0 %v1825
      %2835 = vmatpush.bf16.msra.mxu0 %v1824
      %2836 = vmatpush.bf16.msra.mxu0 %v1823
      %2837 = vmatpush.bf16.msra.mxu0 %v1822
      %2838 = vmatpush.bf16.msra.mxu0 %v1821
      %2839 = vmatmul.bf16.gmra.mxu0 %v1116
      %v2840 = vpop.f32.mrf.mxu0
      %v2841 = vadd.f32 %v2707, %v2840
      %v2842 = vpop.f32.mrf.mxu0
      %v2843 = vadd.f32 %v2709, %v2842
      %2844 = vmatmul.bf16.gmra.mxu0 %v1124
      %v2845 = vpop.f32.mrf.mxu0
      %v2846 = vadd.f32 %v2712, %v2845
      %v2847 = vpop.f32.mrf.mxu0
      %v2848 = vadd.f32 %v2714, %v2847
      %2849 = vmatmul.bf16.gmra.mxu0 %v1132
      %v2850 = vpop.f32.mrf.mxu0
      %v2851 = vadd.f32 %v2717, %v2850
      %v2852 = vpop.f32.mrf.mxu0
      %v2853 = vadd.f32 %v2719, %v2852
      %2854 = vmatmul.bf16.gmra.mxu0 %v1140
      %v2855 = vpop.f32.mrf.mxu0
      %v2856 = vadd.f32 %v2722, %v2855
      %v2857 = vpop.f32.mrf.mxu0
      %v2858 = vadd.f32 %v2724, %v2857
      %2859 = vmatmul.bf16.gmra.mxu0 %v1148
      %v2860 = vpop.f32.mrf.mxu0
      %v2861 = vadd.f32 %v2727, %v2860
      %v2862 = vpop.f32.mrf.mxu0
      %v2863 = vadd.f32 %v2729, %v2862
      %2864 = vmatmul.bf16.gmra.mxu0 %v1156
      %v2865 = vpop.f32.mrf.mxu0
      %v2866 = vadd.f32 %v2732, %v2865
      %v2867 = vpop.f32.mrf.mxu0
      %v2868 = vadd.f32 %v2734, %v2867
      %2869 = vmatmul.bf16.gmra.mxu0 %v1164
      %v2870 = vpop.f32.mrf.mxu0
      %v2871 = vadd.f32 %v2737, %v2870
      %v2872 = vpop.f32.mrf.mxu0
      %v2873 = vadd.f32 %v2739, %v2872
      %2874 = vmatmul.bf16.gmra.mxu0 %v1172
      %v2875 = vpop.f32.mrf.mxu0
      %v2876 = vadd.f32 %v2742, %v2875
      %v2877 = vpop.f32.mrf.mxu0
      %v2878 = vadd.f32 %v2744, %v2877
      %2879 = vmatmul.bf16.gmra.mxu0 %v1180
      %v2880 = vpop.f32.mrf.mxu0
      %v2881 = vadd.f32 %v2747, %v2880
      %v2882 = vpop.f32.mrf.mxu0
      %v2883 = vadd.f32 %v2749, %v2882
      %2884 = vmatmul.bf16.gmra.mxu0 %v1188
      %v2885 = vpop.f32.mrf.mxu0
      %v2886 = vadd.f32 %v2752, %v2885
      %v2887 = vpop.f32.mrf.mxu0
      %v2888 = vadd.f32 %v2754, %v2887
      %2889 = vmatmul.bf16.gmra.mxu0 %v1196
      %v2890 = vpop.f32.mrf.mxu0
      %v2891 = vadd.f32 %v2757, %v2890
      %v2892 = vpop.f32.mrf.mxu0
      %v2893 = vadd.f32 %v2759, %v2892
      %2894 = vmatmul.bf16.gmra.mxu0 %v1204
      %v2895 = vpop.f32.mrf.mxu0
      %v2896 = vadd.f32 %v2762, %v2895
      %v2897 = vpop.f32.mrf.mxu0
      %v2898 = vadd.f32 %v2764, %v2897
      %2899 = vmatmul.bf16.gmra.mxu0 %v1212
      %v2900 = vpop.f32.mrf.mxu0
      %v2901 = vadd.f32 %v2767, %v2900
      %v2902 = vpop.f32.mrf.mxu0
      %v2903 = vadd.f32 %v2769, %v2902
      %2904 = vmatmul.bf16.gmra.mxu0 %v1220
      %v2905 = vpop.f32.mrf.mxu0
      %v2906 = vadd.f32 %v2772, %v2905
      %v2907 = vpop.f32.mrf.mxu0
      %v2908 = vadd.f32 %v2774, %v2907
      %2909 = vmatmul.bf16.gmra.mxu0 %v1228
      %v2910 = vpop.f32.mrf.mxu0
      %v2911 = vadd.f32 %v2777, %v2910
      %v2912 = vpop.f32.mrf.mxu0
      %v2913 = vadd.f32 %v2779, %v2912
      %2914 = vmatmul.bf16.gmra.mxu0 %v1236
      %v2915 = vpop.f32.mrf.mxu0
      %v2916 = vadd.f32 %v2782, %v2915
      %v2917 = vpop.f32.mrf.mxu0
      %v2918 = vadd.f32 %v2784, %v2917
      %2919 = vmatmul.bf16.gmra.mxu0 %v1244
      %v2920 = vpop.f32.mrf.mxu0
      %v2921 = vadd.f32 %v2787, %v2920
      %v2922 = vpop.f32.mrf.mxu0
      %v2923 = vadd.f32 %v2789, %v2922
      %2924 = vmatmul.bf16.gmra.mxu0 %v1252
      %v2925 = vpop.f32.mrf.mxu0
      %v2926 = vadd.f32 %v2792, %v2925
      %v2927 = vpop.f32.mrf.mxu0
      %v2928 = vadd.f32 %v2794, %v2927
      %2929 = vmatmul.bf16.gmra.mxu0 %v1260
      %v2930 = vpop.f32.mrf.mxu0
      %v2931 = vadd.f32 %v2797, %v2930
      %v2932 = vpop.f32.mrf.mxu0
      %v2933 = vadd.f32 %v2799, %v2932
      %2934 = vmatmul.bf16.gmra.mxu0 %v1268
      %v2935 = vpop.f32.mrf.mxu0
      %v2936 = vadd.f32 %v2802, %v2935
      %v2937 = vpop.f32.mrf.mxu0
      %v2938 = vadd.f32 %v2804, %v2937
      %2939 = vmatmul.bf16.gmra.mxu0 %v1276
      %v2940 = vpop.f32.mrf.mxu0
      %v2941 = vadd.f32 %v2807, %v2940
      %v2942 = vpop.f32.mrf.mxu0
      %v2943 = vadd.f32 %v2809, %v2942
      %2944 = vmatmul.bf16.gmra.mxu0 %v1284
      %v2945 = vpop.f32.mrf.mxu0
      %v2946 = vadd.f32 %v2812, %v2945
      %v2947 = vpop.f32.mrf.mxu0
      %v2948 = vadd.f32 %v2814, %v2947
      %2949 = vmatmul.bf16.gmra.mxu0 %v1292
      %v2950 = vpop.f32.mrf.mxu0
      %v2951 = vadd.f32 %v2817, %v2950
      %v2952 = vpop.f32.mrf.mxu0
      %v2953 = vadd.f32 %v2819, %v2952
      %2954 = vmatmul.bf16.gmra.mxu0 %v1300
      %v2955 = vpop.f32.mrf.mxu0
      %v2956 = vadd.f32 %v2822, %v2955
      %v2957 = vpop.f32.mrf.mxu0
      %v2958 = vadd.f32 %v2824, %v2957
      %2959 = vmatmul.bf16.gmra.mxu0 %v1308
      %v2960 = vpop.f32.mrf.mxu0
      %v2961 = vadd.f32 %v2827, %v2960
      %v2962 = vpop.f32.mrf.mxu0
      %v2963 = vadd.f32 %v2829, %v2962
      %2964 = vdwg.mxu0
      %v2965 = vmax.f32 %v2841, 0.0
      %v2966 = vmax.f32 %v2843, 0.0
      %v2967 = vmax.f32 %v2846, 0.0
      %v2968 = vmax.f32 %v2848, 0.0
      %v2969 = vmax.f32 %v2851, 0.0
      %v2970 = vmax.f32 %v2853, 0.0
      %v2971 = vmax.f32 %v2856, 0.0
      %v2972 = vmax.f32 %v2858, 0.0
      %v2973 = vmax.f32 %v2861, 0.0
      %v2974 = vmax.f32 %v2863, 0.0
      %v2975 = vmax.f32 %v2866, 0.0
      %v2976 = vmax.f32 %v2868, 0.0
      %v2977 = vmax.f32 %v2871, 0.0
      %v2978 = vmax.f32 %v2873, 0.0
      %v2979 = vmax.f32 %v2876, 0.0
      %v2980 = vmax.f32 %v2878, 0.0
      %v2981 = vmax.f32 %v2881, 0.0
      %v2982 = vmax.f32 %v2883, 0.0
      %v2983 = vmax.f32 %v2886, 0.0
      %v2984 = vmax.f32 %v2888, 0.0
      %v2985 = vmax.f32 %v2891, 0.0
      %v2986 = vmax.f32 %v2893, 0.0
      %v2987 = vmax.f32 %v2896, 0.0
      %v2988 = vmax.f32 %v2898, 0.0
      %v2989 = vmax.f32 %v2901, 0.0
      %v2990 = vmax.f32 %v2903, 0.0
      %v2991 = vmax.f32 %v2906, 0.0
      %v2992 = vmax.f32 %v2908, 0.0
      %v2993 = vmax.f32 %v2911, 0.0
      %v2994 = vmax.f32 %v2913, 0.0
      %v2995 = vmax.f32 %v2916, 0.0
      %v2996 = vmax.f32 %v2918, 0.0
      %v2997 = vmax.f32 %v2921, 0.0
      %v2998 = vmax.f32 %v2923, 0.0
      %v2999 = vmax.f32 %v2926, 0.0
      %v3000 = vmax.f32 %v2928, 0.0
      %v3001 = vmax.f32 %v2931, 0.0
      %v3002 = vmax.f32 %v2933, 0.0
      %v3003 = vmax.f32 %v2936, 0.0
      %v3004 = vmax.f32 %v2938, 0.0
      %v3005 = vmax.f32 %v2941, 0.0
      %v3006 = vmax.f32 %v2943, 0.0
      %v3007 = vmax.f32 %v2946, 0.0
      %v3008 = vmax.f32 %v2948, 0.0
      %v3009 = vmax.f32 %v2951, 0.0
      %v3010 = vmax.f32 %v2953, 0.0
      %v3011 = vmax.f32 %v2956, 0.0
      %v3012 = vmax.f32 %v2958, 0.0
      %v3013 = vmax.f32 %v2961, 0.0
      %v3014 = vmax.f32 %v2963, 0.0
      %v3015 = vpack.c.bf16 %v2965, %v2965
      %v3016 = vpack.c.bf16 %v2966, %v2966
      %v3017 = vpack.c.bf16 %v2967, %v2967
      %v3018 = vpack.c.bf16 %v2968, %v2968
      %v3019 = vpack.c.bf16 %v2969, %v2969
      %v3020 = vpack.c.bf16 %v2970, %v2970
      %v3021 = vpack.c.bf16 %v2971, %v2971
      %v3022 = vpack.c.bf16 %v2972, %v2972
      %v3023 = vpack.c.bf16 %v2973, %v2973
      %v3024 = vpack.c.bf16 %v2974, %v2974
      %v3025 = vpack.c.bf16 %v2975, %v2975
      %v3026 = vpack.c.bf16 %v2976, %v2976
      %v3027 = vpack.c.bf16 %v2977, %v2977
      %v3028 = vpack.c.bf16 %v2978, %v2978
      %v3029 = vpack.c.bf16 %v2979, %v2979
      %v3030 = vpack.c.bf16 %v2980, %v2980
      %v3031 = vpack.c.bf16 %v2981, %v2981
      %v3032 = vpack.c.bf16 %v2982, %v2982
      %v3033 = vpack.c.bf16 %v2983, %v2983
      %v3034 = vpack.c.bf16 %v2984, %v2984
      %v3035 = vpack.c.bf16 %v2985, %v2985
      %v3036 = vpack.c.bf16 %v2986, %v2986
      %v3037 = vpack.c.bf16 %v2987, %v2987
      %v3038 = vpack.c.bf16 %v2988, %v2988
      %v3039 = vpack.c.bf16 %v2989, %v2989
      %v3040 = vpack.c.bf16 %v2990, %v2990
      %v3041 = vpack.c.bf16 %v2991, %v2991
      %v3042 = vpack.c.bf16 %v2992, %v2992
      %v3043 = vpack.c.bf16 %v2993, %v2993
      %v3044 = vpack.c.bf16 %v2994, %v2994
      %v3045 = vpack.c.bf16 %v2995, %v2995
      %v3046 = vpack.c.bf16 %v2996, %v2996
      %v3047 = vpack.c.bf16 %v2997, %v2997
      %v3048 = vpack.c.bf16 %v2998, %v2998
      %v3049 = vpack.c.bf16 %v2999, %v2999
      %v3050 = vpack.c.bf16 %v3000, %v3000
      %v3051 = vpack.c.bf16 %v3001, %v3001
      %v3052 = vpack.c.bf16 %v3002, %v3002
      %v3053 = vpack.c.bf16 %v3003, %v3003
      %v3054 = vpack.c.bf16 %v3004, %v3004
      %v3055 = vpack.c.bf16 %v3005, %v3005
      %v3056 = vpack.c.bf16 %v3006, %v3006
      %v3057 = vpack.c.bf16 %v3007, %v3007
      %v3058 = vpack.c.bf16 %v3008, %v3008
      %v3059 = vpack.c.bf16 %v3009, %v3009
      %v3060 = vpack.c.bf16 %v3010, %v3010
      %v3061 = vpack.c.bf16 %v3011, %v3011
      %v3062 = vpack.c.bf16 %v3012, %v3012
      %v3063 = vpack.c.bf16 %v3013, %v3013
      %v3064 = vpack.c.bf16 %v3014, %v3014
      %vm3065 = vcmask 125952
      %3066 = vst.msk [vmem:[%s175] sm:$0xf] %vm3065, %v3015
      %3067 = vst.msk [vmem:[%s175 + $0x4] sm:$0xf] %vm3065, %v3016
      %3068 = vst.msk [vmem:[%s175 + $0x8] sm:$0xf] %vm3065, %v3017
      %3069 = vst.msk [vmem:[%s175 + $0xc] sm:$0xf] %vm3065, %v3018
      %3070 = vst.msk [vmem:[%s175 + $0x10] sm:$0xf] %vm3065, %v3019
      %3071 = vst.msk [vmem:[%s175 + $0x14] sm:$0xf] %vm3065, %v3020
      %3072 = vst.msk [vmem:[%s175 + $0x18] sm:$0xf] %vm3065, %v3021
      %3073 = vst.msk [vmem:[%s175 + $0x1c] sm:$0xf] %vm3065, %v3022
      %3074 = vst.msk [vmem:[%s175 + $0x20] sm:$0xf] %vm3065, %v3023
      %3075 = vst.msk [vmem:[%s175 + $0x24] sm:$0xf] %vm3065, %v3024
      %3076 = vst.msk [vmem:[%s175 + $0x28] sm:$0xf] %vm3065, %v3025
      %3077 = vst.msk [vmem:[%s175 + $0x2c] sm:$0xf] %vm3065, %v3026
      %3078 = vst.msk [vmem:[%s175 + $0x30] sm:$0xf] %vm3065, %v3027
      %3079 = vst.msk [vmem:[%s175 + $0x34] sm:$0xf] %vm3065, %v3028
      %3080 = vst.msk [vmem:[%s175 + $0x38] sm:$0xf] %vm3065, %v3029
      %3081 = vst.msk [vmem:[%s175 + $0x3c] sm:$0xf] %vm3065, %v3030
      %3082 = vst.msk [vmem:[%s175 + $0x40] sm:$0xf] %vm3065, %v3031
      %3083 = vst.msk [vmem:[%s175 + $0x44] sm:$0xf] %vm3065, %v3032
      %3084 = vst.msk [vmem:[%s175 + $0x48] sm:$0xf] %vm3065, %v3033
      %3085 = vst.msk [vmem:[%s175 + $0x4c] sm:$0xf] %vm3065, %v3034
      %3086 = vst.msk [vmem:[%s175 + $0x50] sm:$0xf] %vm3065, %v3035
      %3087 = vst.msk [vmem:[%s175 + $0x54] sm:$0xf] %vm3065, %v3036
      %3088 = vst.msk [vmem:[%s175 + $0x58] sm:$0xf] %vm3065, %v3037
      %3089 = vst.msk [vmem:[%s175 + $0x5c] sm:$0xf] %vm3065, %v3038
      %3090 = vst.msk [vmem:[%s175 + $0x60] sm:$0xf] %vm3065, %v3039
      %3091 = vst.msk [vmem:[%s175 + $0x64] sm:$0xf] %vm3065, %v3040
      %3092 = vst.msk [vmem:[%s175 + $0x68] sm:$0xf] %vm3065, %v3041
      %3093 = vst.msk [vmem:[%s175 + $0x6c] sm:$0xf] %vm3065, %v3042
      %3094 = vst.msk [vmem:[%s175 + $0x70] sm:$0xf] %vm3065, %v3043
      %3095 = vst.msk [vmem:[%s175 + $0x74] sm:$0xf] %vm3065, %v3044
      %3096 = vst.msk [vmem:[%s175 + $0x78] sm:$0xf] %vm3065, %v3045
      %3097 = vst.msk [vmem:[%s175 + $0x7c] sm:$0xf] %vm3065, %v3046
      %3098 = vst.msk [vmem:[%s175 + $0x80] sm:$0xf] %vm3065, %v3047
      %3099 = vst.msk [vmem:[%s175 + $0x84] sm:$0xf] %vm3065, %v3048
      %3100 = vst.msk [vmem:[%s175 + $0x88] sm:$0xf] %vm3065, %v3049
      %3101 = vst.msk [vmem:[%s175 + $0x8c] sm:$0xf] %vm3065, %v3050
      %3102 = vst.msk [vmem:[%s175 + $0x90] sm:$0xf] %vm3065, %v3051
      %3103 = vst.msk [vmem:[%s175 + $0x94] sm:$0xf] %vm3065, %v3052
      %3104 = vst.msk [vmem:[%s175 + $0x98] sm:$0xf] %vm3065, %v3053
      %3105 = vst.msk [vmem:[%s175 + $0x9c] sm:$0xf] %vm3065, %v3054
      %3106 = vst.msk [vmem:[%s175 + $0xa0] sm:$0xf] %vm3065, %v3055
      %3107 = vst.msk [vmem:[%s175 + $0xa4] sm:$0xf] %vm3065, %v3056
      %3108 = vst.msk [vmem:[%s175 + $0xa8] sm:$0xf] %vm3065, %v3057
      %3109 = vst.msk [vmem:[%s175 + $0xac] sm:$0xf] %vm3065, %v3058
      %3110 = vst.msk [vmem:[%s175 + $0xb0] sm:$0xf] %vm3065, %v3059
      %3111 = vst.msk [vmem:[%s175 + $0xb4] sm:$0xf] %vm3065, %v3060
      %3112 = vst.msk [vmem:[%s175 + $0xb8] sm:$0xf] %vm3065, %v3061
      %3113 = vst.msk [vmem:[%s175 + $0xbc] sm:$0xf] %vm3065, %v3062
      %3114 = vst.msk [vmem:[%s175 + $0xc0] sm:$0xf] %vm3065, %v3063
      %3115 = vst.msk [vmem:[%s175 + $0xc4] sm:$0xf] %vm3065, %v3064
      %s3116 = smul.u32 50, %s14
      %p3117 = scmp.lt.s32.totalorder %s3116, 99
      %s3118 = scalar_select %p3117, %s3116, 99
      %s3119 = smul.addr %s3118, 4
      %s3120 = scalar_lea.vmem %s3, %s3119
      // Predicated region
      $region33: #{cqnet_forward.5} parent=31 // pred_check
        %p3121 = pneg %p100
      $region34: #{cqnet_forward.5} parent=31 // pred_check_branch
        %3123 = sbr.rel (%p3121) target = $region36
      $region35: #{cqnet_forward.5} parent=31 // pred_region
        %s3124 = smul.u32 50, %s14
      $region36: #{cqnet_forward.5} parent=31 // pred_fallthru
        _
    $region32: #{cqnet_forward.5} parent=5 // pred_fallthru
      _
    %p3125 = scmp.le.s32.totalorder 2, %s9
    // Predicated region
    $region37: #{cqnet_forward.5} parent=5 // pred_check
      %p3126 = pneg %p3125
    $region38: #{cqnet_forward.5} parent=5 // pred_check_branch
      %3128 = sbr.rel (%p3126) target = $region40
    $region39: #{cqnet_forward.5} parent=5 // pred_region
      %s3129 = ssub.s32 %s9, 2
      // Predicated region
      $region41: #{cqnet_forward.5} parent=39 // pred_check
        %p3130 = pneg %p106
      $region42: #{cqnet_forward.5} parent=39 // pred_check_branch
        %3132 = sbr.rel (%p3130) target = $region44
      $region43: #{cqnet_forward.5} parent=39 // pred_region
        %s3133 = smul.u32 50, %s15
        %p3134 = scmp.lt.s32.totalorder %s3133, 99
        %s3135 = scalar_select %p3134, %s3133, 99
        %s3136 = smul.addr %s3135, 4
        %s3137 = scalar_lea.vmem %s3, %s3136
      $region44: #{cqnet_forward.5} parent=39 // pred_fallthru
        _
    $region40: #{cqnet_forward.5} parent=5 // pred_fallthru
      _
  $region6: #{cqnet_forward.5} parent=0 // loop_footer
    %s13 = sadd.s32 1, %s9
  $region7: #{cqnet_forward.5} parent=0 // loop_footer_branch
    %8 = sbr.rel target = $region3
  $region8: #{cqnet_forward.5} parent=0 // loop_exit
    _

// kernel: cqnet_forward.6
$region0: #{cqnet_forward.6}
  #allocation0 [shape = 'u32[]', space=smem, size = 0x4, offset = 0x4, fixed_abs, tag = 'smem constant byte address 0x4 - core index']
  #allocation1 [shape = 'u32[72,128]{1,0:T(1,128)}', space=vmem, size = 0x9000, scoped, tag = 'internal scratch']
  %s0 = inlined_call_operand.vmem [shape: bf16[162,256], index: 0, kind: input, shape index: {}]
  %s1 = inlined_call_operand.vmem [shape: bf16[256,32], index: 1, kind: input, shape index: {}]
  %s2 = inlined_call_operand.vmem [shape: f32[1,32], index: 2, kind: input, shape index: {}]
  %s3 = inlined_call_operand.vmem [shape: bf16[162,32], index: 3, kind: output, shape index: {}]
  %s4 = sld [smem:[#allocation0]]
  $region22: #{cqnet_forward.6} parent=0
    _
  %s6 = ssub.s32 1, %s4
  %s7 = scalar_select 0, %s6, %s4
  // Predicated region
  $region2: #{cqnet_forward.6} parent=0 // pred_check
    _
  $region3: #{cqnet_forward.6} parent=0 // pred_check_branch
    %9 = sbr.rel (0) target = $region5
  $region4: #{cqnet_forward.6} parent=0 // pred_region
    _
  $region5: #{cqnet_forward.6} parent=0 // pred_fallthru
    _
  // Predicated region
  $region6: #{cqnet_forward.6} parent=0 // pred_check
    _
  $region7: #{cqnet_forward.6} parent=0 // pred_check_branch
    %11 = sbr.rel (0) target = $region9
  $region8: #{cqnet_forward.6} parent=0 // pred_region
    _
  $region9: #{cqnet_forward.6} parent=0 // pred_fallthru
    _
  // Predicated region
  $region10: #{cqnet_forward.6} parent=0 // pred_check
    _
  $region11: #{cqnet_forward.6} parent=0 // pred_check_branch
    %13 = sbr.rel (0) target = $region13
  $region12: #{cqnet_forward.6} parent=0 // pred_region
    _
  $region13: #{cqnet_forward.6} parent=0 // pred_fallthru
    _
  %v14 = vld [vmem:[%s0] sm:$0xff]
  %v15 = vld [vmem:[%s0 + $0x8] sm:$0xff]
  %v16 = vld [vmem:[%s0 + $0x10] sm:$0xff]
  %v17 = vld [vmem:[%s0 + $0x18] sm:$0xff]
  %v18 = vld [vmem:[%s0 + $0x20] sm:$0xff]
  %v19 = vld [vmem:[%s0 + $0x28] sm:$0xff]
  %v20 = vld [vmem:[%s0 + $0x30] sm:$0xff]
  %v21 = vld [vmem:[%s0 + $0x38] sm:$0xff]
  %v22 = vld [vmem:[%s0 + $0x40] sm:$0xff]
  %v23 = vld [vmem:[%s0 + $0x48] sm:$0xff]
  %v24 = vld [vmem:[%s0 + $0x50] sm:$0xff]
  %v25 = vld [vmem:[%s0 + $0x58] sm:$0xff]
  %v26 = vld [vmem:[%s0 + $0x60] sm:$0xff]
  %v27 = vld [vmem:[%s0 + $0x68] sm:$0xff]
  %v28 = vld [vmem:[%s0 + $0x70] sm:$0xff]
  %v29 = vld [vmem:[%s0 + $0x78] sm:$0xff]
  %v30 = vld [vmem:[%s0 + $0x80] sm:$0xff]
  %v31 = vld [vmem:[%s0 + $0x88] sm:$0xff]
  %v32 = vld [vmem:[%s0 + $0x90] sm:$0xff]
  %v33 = vld [vmem:[%s0 + $0x98] sm:$0xff]
  %v34 = vld [vmem:[%s0 + $0xa0] sm:$0x11]
  %v35 = vld [vmem:[%s1] sm:$0xf]
  %v36 = vld [vmem:[%s1 + $0x4] sm:$0xf]
  %v37 = vld [vmem:[%s1 + $0x8] sm:$0xf]
  %v38 = vld [vmem:[%s1 + $0xc] sm:$0xf]
  %v39 = vld [vmem:[%s1 + $0x10] sm:$0xf]
  %v40 = vld [vmem:[%s1 + $0x14] sm:$0xf]
  %v41 = vld [vmem:[%s1 + $0x18] sm:$0xf]
  %v42 = vld [vmem:[%s1 + $0x1c] sm:$0xf]
  %v43 = vld [vmem:[%s1 + $0x20] sm:$0xf]
  %v44 = vld [vmem:[%s1 + $0x24] sm:$0xf]
  %v45 = vld [vmem:[%s1 + $0x28] sm:$0xf]
  %v46 = vld [vmem:[%s1 + $0x2c] sm:$0xf]
  %v47 = vld [vmem:[%s1 + $0x30] sm:$0xf]
  %v48 = vld [vmem:[%s1 + $0x34] sm:$0xf]
  %v49 = vld [vmem:[%s1 + $0x38] sm:$0xf]
  %v50 = vld [vmem:[%s1 + $0x3c] sm:$0xf]
  %v51 = vld [vmem:[%s1 + $0x40] sm:$0xf]
  %v52 = vld [vmem:[%s1 + $0x44] sm:$0xf]
  %v53 = vld [vmem:[%s1 + $0x48] sm:$0xf]
  %v54 = vld [vmem:[%s1 + $0x4c] sm:$0xf]
  %v55 = vld [vmem:[%s1 + $0x50] sm:$0xf]
  %v56 = vld [vmem:[%s1 + $0x54] sm:$0xf]
  %v57 = vld [vmem:[%s1 + $0x58] sm:$0xf]
  %v58 = vld [vmem:[%s1 + $0x5c] sm:$0xf]
  %v59 = vld [vmem:[%s1 + $0x60] sm:$0xf]
  %v60 = vld [vmem:[%s1 + $0x64] sm:$0xf]
  %v61 = vld [vmem:[%s1 + $0x68] sm:$0xf]
  %v62 = vld [vmem:[%s1 + $0x6c] sm:$0xf]
  %v63 = vld [vmem:[%s1 + $0x70] sm:$0xf]
  %v64 = vld [vmem:[%s1 + $0x74] sm:$0xf]
  %v65 = vld [vmem:[%s1 + $0x78] sm:$0xf]
  %v66 = vld [vmem:[%s1 + $0x7c] sm:$0xf]
  %v67 = vld [vmem:[%s2] sm:$0x1]
  %v69 = vperm.slane %v67, 0
  %v92 = vunpack.c.l.b16 %v14
  %v93 = vunpack.c.h.b16 %v14
  %v94 = vunpack.c.l.b16 %v15
  %v95 = vunpack.c.h.b16 %v15
  %v96 = vunpack.c.l.b16 %v16
  %v97 = vunpack.c.h.b16 %v16
  %v98 = vunpack.c.l.b16 %v17
  %v99 = vunpack.c.h.b16 %v17
  %v100 = vunpack.c.l.b16 %v18
  %v101 = vunpack.c.h.b16 %v18
  %v102 = vunpack.c.l.b16 %v19
  %v103 = vunpack.c.h.b16 %v19
  %v104 = vunpack.c.l.b16 %v20
  %v105 = vunpack.c.h.b16 %v20
  %v106 = vunpack.c.l.b16 %v21
  %v107 = vunpack.c.h.b16 %v21
  %v108 = vunpack.c.l.b16 %v22
  %v109 = vunpack.c.h.b16 %v22
  %v110 = vunpack.c.l.b16 %v23
  %v111 = vunpack.c.h.b16 %v23
  %v112 = vunpack.c.l.b16 %v24
  %v113 = vunpack.c.h.b16 %v24
  %v114 = vunpack.c.l.b16 %v25
  %v115 = vunpack.c.h.b16 %v25
  %v116 = vunpack.c.l.b16 %v26
  %v117 = vunpack.c.h.b16 %v26
  %v118 = vunpack.c.l.b16 %v27
  %v119 = vunpack.c.h.b16 %v27
  %v120 = vunpack.c.l.b16 %v28
  %v121 = vunpack.c.h.b16 %v28
  %v122 = vunpack.c.l.b16 %v29
  %v123 = vunpack.c.h.b16 %v29
  %v124 = vunpack.c.l.b16 %v30
  %v125 = vunpack.c.h.b16 %v30
  %v126 = vunpack.c.l.b16 %v31
  %v127 = vunpack.c.h.b16 %v31
  %v128 = vunpack.c.l.b16 %v32
  %v129 = vunpack.c.h.b16 %v32
  %v130 = vunpack.c.l.b16 %v33
  %v131 = vunpack.c.h.b16 %v33
  %v132 = vunpack.c.l.b16 %v34
  %v133 = vunpack.c.h.b16 %v34
  %v134 = vpack.c.b16 %v94, %v92
  %v135 = vpack.c.b16 %v95, %v93
  %v136 = vpack.c.b16 %v98, %v96
  %v137 = vpack.c.b16 %v99, %v97
  %v138 = vpack.c.b16 %v102, %v100
  %v139 = vpack.c.b16 %v103, %v101
  %v140 = vpack.c.b16 %v106, %v104
  %v141 = vpack.c.b16 %v107, %v105
  %v142 = vpack.c.b16 %v110, %v108
  %v143 = vpack.c.b16 %v111, %v109
  %v144 = vpack.c.b16 %v114, %v112
  %v145 = vpack.c.b16 %v115, %v113
  %v146 = vpack.c.b16 %v118, %v116
  %v147 = vpack.c.b16 %v119, %v117
  %v148 = vpack.c.b16 %v122, %v120
  %v149 = vpack.c.b16 %v123, %v121
  %v150 = vpack.c.b16 %v126, %v124
  %v151 = vpack.c.b16 %v127, %v125
  %v152 = vpack.c.b16 %v130, %v128
  %v153 = vpack.c.b16 %v131, %v129
  %v154 = vpack.c.b16 %v132, %v132
  %v155 = vpack.c.b16 %v133, %v133
  %v210 = vunpack.c.l.b16 %v35
  %v211 = vunpack.c.l.b16 %v36
  %v212 = vunpack.c.l.b16 %v37
  %v213 = vunpack.c.l.b16 %v38
  %v214 = vunpack.c.l.b16 %v39
  %v215 = vunpack.c.l.b16 %v40
  %v216 = vunpack.c.l.b16 %v41
  %v217 = vunpack.c.l.b16 %v42
  %v218 = vunpack.c.l.b16 %v43
  %v219 = vunpack.c.l.b16 %v44
  %v220 = vunpack.c.l.b16 %v45
  %v221 = vunpack.c.l.b16 %v46
  %v222 = vunpack.c.l.b16 %v47
  %v223 = vunpack.c.l.b16 %v48
  %v224 = vunpack.c.l.b16 %v49
  %v225 = vunpack.c.l.b16 %v50
  %v226 = vunpack.c.l.b16 %v51
  %v227 = vunpack.c.l.b16 %v52
  %v228 = vunpack.c.l.b16 %v53
  %v229 = vunpack.c.l.b16 %v54
  %v230 = vunpack.c.l.b16 %v55
  %v231 = vunpack.c.l.b16 %v56
  %v232 = vunpack.c.l.b16 %v57
  %v233 = vunpack.c.l.b16 %v58
  %v234 = vunpack.c.l.b16 %v59
  %v235 = vunpack.c.l.b16 %v60
  %v236 = vunpack.c.l.b16 %v61
  %v237 = vunpack.c.l.b16 %v62
  %v238 = vunpack.c.l.b16 %v63
  %v239 = vunpack.c.l.b16 %v64
  %v240 = vunpack.c.l.b16 %v65
  %v241 = vunpack.c.l.b16 %v66
  %v242 = vpack.c.b16 %v211, %v210
  %v243 = vpack.c.b16 %v213, %v212
  %v244 = vpack.c.b16 %v215, %v214
  %v245 = vpack.c.b16 %v217, %v216
  %v246 = vpack.c.b16 %v219, %v218
  %v247 = vpack.c.b16 %v221, %v220
  %v248 = vpack.c.b16 %v223, %v222
  %v249 = vpack.c.b16 %v225, %v224
  %v250 = vpack.c.b16 %v227, %v226
  %v251 = vpack.c.b16 %v229, %v228
  %v252 = vpack.c.b16 %v231, %v230
  %v253 = vpack.c.b16 %v233, %v232
  %v254 = vpack.c.b16 %v235, %v234
  %v255 = vpack.c.b16 %v237, %v236
  %v256 = vpack.c.b16 %v239, %v238
  %v257 = vpack.c.b16 %v241, %v240
  %274 = vmatpush.bf16.msra.mxu0 %v249
  %275 = vmatpush.bf16.msra.mxu0 %v248
  %276 = vmatpush.bf16.msra.mxu0 %v247
  %277 = vmatpush.bf16.msra.mxu0 %v246
  %278 = vmatpush.bf16.msra.mxu0 %v245
  %279 = vmatpush.bf16.msra.mxu0 %v244
  %280 = vmatpush.bf16.msra.mxu0 %v243
  %281 = vmatpush.bf16.msra.mxu0 %v242
  %282 = vmatmul.bf16.gmra.mxu0 %v134
  %v283 = vpop.f32.mrf.mxu0
  %v284 = vadd.f32 %v69, %v283
  %v285 = vpop.f32.mrf.mxu0
  %v286 = vadd.f32 %v69, %v285
  %287 = vmatmul.bf16.gmra.mxu0 %v136
  %v288 = vpop.f32.mrf.mxu0
  %v289 = vadd.f32 %v69, %v288
  %v290 = vpop.f32.mrf.mxu0
  %v291 = vadd.f32 %v69, %v290
  %292 = vmatmul.bf16.gmra.mxu0 %v138
  %v293 = vpop.f32.mrf.mxu0
  %v294 = vadd.f32 %v69, %v293
  %v295 = vpop.f32.mrf.mxu0
  %v296 = vadd.f32 %v69, %v295
  %297 = vmatmul.bf16.gmra.mxu0 %v140
  %v298 = vpop.f32.mrf.mxu0
  %v299 = vadd.f32 %v69, %v298
  %v300 = vpop.f32.mrf.mxu0
  %v301 = vadd.f32 %v69, %v300
  %302 = vmatmul.bf16.gmra.mxu0 %v142
  %v303 = vpop.f32.mrf.mxu0
  %v304 = vadd.f32 %v69, %v303
  %v305 = vpop.f32.mrf.mxu0
  %v306 = vadd.f32 %v69, %v305
  %307 = vmatmul.bf16.gmra.mxu0 %v144
  %v308 = vpop.f32.mrf.mxu0
  %v309 = vadd.f32 %v69, %v308
  %v310 = vpop.f32.mrf.mxu0
  %v311 = vadd.f32 %v69, %v310
  %312 = vmatmul.bf16.gmra.mxu0 %v146
  %v313 = vpop.f32.mrf.mxu0
  %v314 = vadd.f32 %v69, %v313
  %v315 = vpop.f32.mrf.mxu0
  %v316 = vadd.f32 %v69, %v315
  %317 = vmatmul.bf16.gmra.mxu0 %v148
  %v318 = vpop.f32.mrf.mxu0
  %v319 = vadd.f32 %v69, %v318
  %v320 = vpop.f32.mrf.mxu0
  %v321 = vadd.f32 %v69, %v320
  %322 = vmatmul.bf16.gmra.mxu0 %v150
  %v323 = vpop.f32.mrf.mxu0
  %v324 = vadd.f32 %v69, %v323
  %v325 = vpop.f32.mrf.mxu0
  %v326 = vadd.f32 %v69, %v325
  %327 = vmatmul.bf16.gmra.mxu0 %v152
  %v328 = vpop.f32.mrf.mxu0
  %v329 = vadd.f32 %v69, %v328
  %v330 = vpop.f32.mrf.mxu0
  %v331 = vadd.f32 %v69, %v330
  %332 = vmatmul.bf16.gmra.mxu0 %v154
  %v333 = vpop.f32.mrf.mxu0
  %v334 = vadd.f32 %v69, %v333
  %v335 = vpop.f32.mrf.mxu0
  %336 = vdwg.mxu0
  %337 = vmatpush.bf16.msra.mxu0 %v257
  %338 = vmatpush.bf16.msra.mxu0 %v256
  %339 = vmatpush.bf16.msra.mxu0 %v255
  %340 = vmatpush.bf16.msra.mxu0 %v254
  %341 = vmatpush.bf16.msra.mxu0 %v253
  %342 = vmatpush.bf16.msra.mxu0 %v252
  %343 = vmatpush.bf16.msra.mxu0 %v251
  %344 = vmatpush.bf16.msra.mxu0 %v250
  %345 = vmatmul.bf16.gmra.mxu0 %v135
  %v346 = vpop.f32.mrf.mxu0
  %v347 = vadd.f32 %v284, %v346
  %v348 = vpop.f32.mrf.mxu0
  %v349 = vadd.f32 %v286, %v348
  %350 = vmatmul.bf16.gmra.mxu0 %v137
  %v351 = vpop.f32.mrf.mxu0
  %v352 = vadd.f32 %v289, %v351
  %v353 = vpop.f32.mrf.mxu0
  %v354 = vadd.f32 %v291, %v353
  %355 = vmatmul.bf16.gmra.mxu0 %v139
  %v356 = vpop.f32.mrf.mxu0
  %v357 = vadd.f32 %v294, %v356
  %v358 = vpop.f32.mrf.mxu0
  %v359 = vadd.f32 %v296, %v358
  %360 = vmatmul.bf16.gmra.mxu0 %v141
  %v361 = vpop.f32.mrf.mxu0
  %v362 = vadd.f32 %v299, %v361
  %v363 = vpop.f32.mrf.mxu0
  %v364 = vadd.f32 %v301, %v363
  %365 = vmatmul.bf16.gmra.mxu0 %v143
  %v366 = vpop.f32.mrf.mxu0
  %v367 = vadd.f32 %v304, %v366
  %v368 = vpop.f32.mrf.mxu0
  %v369 = vadd.f32 %v306, %v368
  %370 = vmatmul.bf16.gmra.mxu0 %v145
  %v371 = vpop.f32.mrf.mxu0
  %v372 = vadd.f32 %v309, %v371
  %v373 = vpop.f32.mrf.mxu0
  %v374 = vadd.f32 %v311, %v373
  %375 = vmatmul.bf16.gmra.mxu0 %v147
  %v376 = vpop.f32.mrf.mxu0
  %v377 = vadd.f32 %v314, %v376
  %v378 = vpop.f32.mrf.mxu0
  %v379 = vadd.f32 %v316, %v378
  %380 = vmatmul.bf16.gmra.mxu0 %v149
  %v381 = vpop.f32.mrf.mxu0
  %v382 = vadd.f32 %v319, %v381
  %v383 = vpop.f32.mrf.mxu0
  %v384 = vadd.f32 %v321, %v383
  %385 = vmatmul.bf16.gmra.mxu0 %v151
  %v386 = vpop.f32.mrf.mxu0
  %v387 = vadd.f32 %v324, %v386
  %v388 = vpop.f32.mrf.mxu0
  %v389 = vadd.f32 %v326, %v388
  %390 = vmatmul.bf16.gmra.mxu0 %v153
  %v391 = vpop.f32.mrf.mxu0
  %v392 = vadd.f32 %v329, %v391
  %v393 = vpop.f32.mrf.mxu0
  %v394 = vadd.f32 %v331, %v393
  %395 = vmatmul.bf16.gmra.mxu0 %v155
  %v396 = vpop.f32.mrf.mxu0
  %v397 = vadd.f32 %v334, %v396
  %v398 = vpop.f32.mrf.mxu0
  %399 = vdwg.mxu0
  %v400 = vmax.f32 %v347, 0.0
  %v401 = vmax.f32 %v349, 0.0
  %v402 = vmax.f32 %v352, 0.0
  %v403 = vmax.f32 %v354, 0.0
  %v404 = vmax.f32 %v357, 0.0
  %v405 = vmax.f32 %v359, 0.0
  %v406 = vmax.f32 %v362, 0.0
  %v407 = vmax.f32 %v364, 0.0
  %v408 = vmax.f32 %v367, 0.0
  %v409 = vmax.f32 %v369, 0.0
  %v410 = vmax.f32 %v372, 0.0
  %v411 = vmax.f32 %v374, 0.0
  %v412 = vmax.f32 %v377, 0.0
  %v413 = vmax.f32 %v379, 0.0
  %v414 = vmax.f32 %v382, 0.0
  %v415 = vmax.f32 %v384, 0.0
  %v416 = vmax.f32 %v387, 0.0
  %v417 = vmax.f32 %v389, 0.0
  %v418 = vmax.f32 %v392, 0.0
  %v419 = vmax.f32 %v394, 0.0
  %v420 = vmax.f32 %v397, 0.0
  %v421 = vpack.c.bf16 %v400, %v400
  %v422 = vpack.c.bf16 %v401, %v401
  %v423 = vpack.c.bf16 %v402, %v402
  %v424 = vpack.c.bf16 %v403, %v403
  %v425 = vpack.c.bf16 %v404, %v404
  %v426 = vpack.c.bf16 %v405, %v405
  %v427 = vpack.c.bf16 %v406, %v406
  %v428 = vpack.c.bf16 %v407, %v407
  %v429 = vpack.c.bf16 %v408, %v408
  %v430 = vpack.c.bf16 %v409, %v409
  %v431 = vpack.c.bf16 %v410, %v410
  %v432 = vpack.c.bf16 %v411, %v411
  %v433 = vpack.c.bf16 %v412, %v412
  %v434 = vpack.c.bf16 %v413, %v413
  %v435 = vpack.c.bf16 %v414, %v414
  %v436 = vpack.c.bf16 %v415, %v415
  %v437 = vpack.c.bf16 %v416, %v416
  %v438 = vpack.c.bf16 %v417, %v417
  %v439 = vpack.c.bf16 %v418, %v418
  %v440 = vpack.c.bf16 %v419, %v419
  %v441 = vpack.c.bf16 %v420, %v420
  %vm442 = vcmask 257024
  %443 = vst.msk [vmem:[%s3] sm:$0xf] %vm442, %v421
  %444 = vst.msk [vmem:[%s3 + $0x4] sm:$0xf] %vm442, %v422
  %445 = vst.msk [vmem:[%s3 + $0x8] sm:$0xf] %vm442, %v423
  %446 = vst.msk [vmem:[%s3 + $0xc] sm:$0xf] %vm442, %v424
  %447 = vst.msk [vmem:[%s3 + $0x10] sm:$0xf] %vm442, %v425
  %448 = vst.msk [vmem:[%s3 + $0x14] sm:$0xf] %vm442, %v426
  %449 = vst.msk [vmem:[%s3 + $0x18] sm:$0xf] %vm442, %v427
  %450 = vst.msk [vmem:[%s3 + $0x1c] sm:$0xf] %vm442, %v428
  %451 = vst.msk [vmem:[%s3 + $0x20] sm:$0xf] %vm442, %v429
  %452 = vst.msk [vmem:[%s3 + $0x24] sm:$0xf] %vm442, %v430
  %453 = vst.msk [vmem:[%s3 + $0x28] sm:$0xf] %vm442, %v431
  %454 = vst.msk [vmem:[%s3 + $0x2c] sm:$0xf] %vm442, %v432
  %455 = vst.msk [vmem:[%s3 + $0x30] sm:$0xf] %vm442, %v433
  %456 = vst.msk [vmem:[%s3 + $0x34] sm:$0xf] %vm442, %v434
  %457 = vst.msk [vmem:[%s3 + $0x38] sm:$0xf] %vm442, %v435
  %458 = vst.msk [vmem:[%s3 + $0x3c] sm:$0xf] %vm442, %v436
  %459 = vst.msk [vmem:[%s3 + $0x40] sm:$0xf] %vm442, %v437
  %460 = vst.msk [vmem:[%s3 + $0x44] sm:$0xf] %vm442, %v438
  %461 = vst.msk [vmem:[%s3 + $0x48] sm:$0xf] %vm442, %v439
  %462 = vst.msk [vmem:[%s3 + $0x4c] sm:$0xf] %vm442, %v440
  %vm463 = vcmask 253952
  %464 = vst.msk [vmem:[%s3 + $0x50] sm:$0x1] %vm463, %v441
  // Predicated region
  $region14: #{cqnet_forward.6} parent=0 // pred_check
    _
  $region15: #{cqnet_forward.6} parent=0 // pred_check_branch
    %466 = sbr.rel (0) target = $region17
  $region16: #{cqnet_forward.6} parent=0 // pred_region
    _
  $region17: #{cqnet_forward.6} parent=0 // pred_fallthru
    _
  // Predicated region
  $region18: #{cqnet_forward.6} parent=0 // pred_check
    _
  $region19: #{cqnet_forward.6} parent=0 // pred_check_branch
    %468 = sbr.rel (0) target = $region21
  $region20: #{cqnet_forward.6} parent=0 // pred_region
    _
  $region21: #{cqnet_forward.6} parent=0 // pred_fallthru
    _

// kernel: cqnet_forward.7
$region0: #{cqnet_forward.7}
  #allocation0 [shape = 'u32[]', space=smem, size = 0x4, offset = 0x4, fixed_abs, tag = 'smem constant byte address 0x4 - core index']
  #allocation1 [shape = 'u32[72,128]{1,0:T(1,128)}', space=vmem, size = 0x9000, scoped, tag = 'internal scratch']
  %s0 = inlined_call_operand.vmem [shape: bf16[2,2592], index: 0, kind: input, shape index: {}]
  %s1 = inlined_call_operand.vmem [shape: bf16[2592,256], index: 1, kind: input, shape index: {}]
  %s2 = inlined_call_operand.vmem [shape: f32[1,256], index: 2, kind: input, shape index: {}]
  %s3 = inlined_call_operand.vmem [shape: bf16[256,6], index: 3, kind: input, shape index: {}]
  %s4 = inlined_call_operand.vmem [shape: f32[1,6], index: 4, kind: input, shape index: {}]
  %s5 = inlined_call_operand.hbm [shape: f32[2,6], index: 5, kind: output, shape index: {}]
  %s6 = sld [smem:[#allocation0]]
  $region30: #{cqnet_forward.7} parent=0
    _
  %s8 = ssub.s32 1, %s6
  %s9 = scalar_select 0, %s8, %s6
  $region1: #{cqnet_forward.7} parent=0
    #allocation2 [shape = 'u8[1024]{0}', space=vmem, size = 0x400, scoped, tag = 'output window, operand 0, single buffered']
    #allocation3 [shape = 's32[1]{0}', space=sflag, size = 0x4, scoped, tag = 'scoped memory for cqnet_forward.7']
    %10 = vsyncpa [#allocation3], 0
    // Predicated region
    $region2: #{cqnet_forward.7} parent=1 // pred_check
      _
    $region3: #{cqnet_forward.7} parent=1 // pred_check_branch
      %12 = sbr.rel (0) target = $region5
    $region4: #{cqnet_forward.7} parent=1 // pred_region
      _
    $region5: #{cqnet_forward.7} parent=1 // pred_fallthru
      _
    // Predicated region
    $region6: #{cqnet_forward.7} parent=1 // pred_check
      _
    $region7: #{cqnet_forward.7} parent=1 // pred_check_branch
      %14 = sbr.rel (0) target = $region9
    $region8: #{cqnet_forward.7} parent=1 // pred_region
      _
    $region9: #{cqnet_forward.7} parent=1 // pred_fallthru
      _
    // Predicated region
    $region10: #{cqnet_forward.7} parent=1 // pred_check
      _
    $region11: #{cqnet_forward.7} parent=1 // pred_check_branch
      %16 = sbr.rel (0) target = $region13
    $region12: #{cqnet_forward.7} parent=1 // pred_region
      _
    $region13: #{cqnet_forward.7} parent=1 // pred_fallthru
      _
    // Predicated region
    $region14: #{cqnet_forward.7} parent=1 // pred_check
      _
    $region15: #{cqnet_forward.7} parent=1 // pred_check_branch
      %18 = sbr.rel (0) target = $region17
    $region16: #{cqnet_forward.7} parent=1 // pred_region
      _
    $region17: #{cqnet_forward.7} parent=1 // pred_fallthru
      _
    // Predicated region
    $region18: #{cqnet_forward.7} parent=1 // pred_check
      _
    $region19: #{cqnet_forward.7} parent=1 // pred_check_branch
      %20 = sbr.rel (0) target = $region21
    $region20: #{cqnet_forward.7} parent=1 // pred_region
      _
    $region21: #{cqnet_forward.7} parent=1 // pred_fallthru
      _
    %v22 = vld [vmem:[%s0] sm:$0xff]
    %v23 = vld [vmem:[%s0 + $0x8] sm:$0xff]
    %v24 = vld [vmem:[%s0 + $0x10] sm:$0x1f]
    %v25 = vld [vmem:[%s1] sm:$0xff]
    %v26 = vld [vmem:[%s1 + $0x8] sm:$0xff]
    %v27 = vld [vmem:[%s1 + $0x10] sm:$0xff]
    %v28 = vld [vmem:[%s1 + $0x18] sm:$0xff]
    %v29 = vld [vmem:[%s1 + $0x20] sm:$0xff]
    %v30 = vld [vmem:[%s1 + $0x28] sm:$0xff]
    %v31 = vld [vmem:[%s1 + $0x30] sm:$0xff]
    %v32 = vld [vmem:[%s1 + $0x38] sm:$0xff]
    %v33 = vld [vmem:[%s1 + $0x40] sm:$0xff]
    %v34 = vld [vmem:[%s1 + $0x48] sm:$0xff]
    %v35 = vld [vmem:[%s1 + $0x50] sm:$0xff]
    %v36 = vld [vmem:[%s1 + $0x58] sm:$0xff]
    %v37 = vld [vmem:[%s1 + $0x60] sm:$0xff]
    %v38 = vld [vmem:[%s1 + $0x68] sm:$0xff]
    %v39 = vld [vmem:[%s1 + $0x70] sm:$0xff]
    %v40 = vld [vmem:[%s1 + $0x78] sm:$0xff]
    %v41 = vld [vmem:[%s1 + $0x80] sm:$0xff]
    %v42 = vld [vmem:[%s1 + $0x88] sm:$0xff]
    %v43 = vld [vmem:[%s1 + $0x90] sm:$0xff]
    %v44 = vld [vmem:[%s1 + $0x98] sm:$0xff]
    %v45 = vld [vmem:[%s1 + $0xa0] sm:$0xff]
    %v46 = vld [vmem:[%s1 + $0xa8] sm:$0xff]
    %v47 = vld [vmem:[%s1 + $0xb0] sm:$0xff]
    %v48 = vld [vmem:[%s1 + $0xb8] sm:$0xff]
    %v49 = vld [vmem:[%s1 + $0xc0] sm:$0xff]
    %v50 = vld [vmem:[%s1 + $0xc8] sm:$0xff]
    %v51 = vld [vmem:[%s1 + $0xd0] sm:$0xff]
    %v52 = vld [vmem:[%s1 + $0xd8] sm:$0xff]
    %v53 = vld [vmem:[%s1 + $0xe0] sm:$0xff]
    %v54 = vld [vmem:[%s1 + $0xe8] sm:$0xff]
    %v55 = vld [vmem:[%s1 + $0xf0] sm:$0xff]
    %v56 = vld [vmem:[%s1 + $0xf8] sm:$0xff]
    %v57 = vld [vmem:[%s1 + $0x100] sm:$0xff]
    %v58 = vld [vmem:[%s1 + $0x108] sm:$0xff]
    %v59 = vld [vmem:[%s1 + $0x110] sm:$0xff]
    %v60 = vld [vmem:[%s1 + $0x118] sm:$0xff]
    %v61 = vld [vmem:[%s1 + $0x120] sm:$0xff]
    %v62 = vld [vmem:[%s1 + $0x128] sm:$0xff]
    %v63 = vld [vmem:[%s1 + $0x130] sm:$0xff]
    %v64 = vld [vmem:[%s1 + $0x138] sm:$0xff]
    %v65 = vld [vmem:[%s1 + $0x140] sm:$0xff]
    %v66 = vld [vmem:[%s1 + $0x148] sm:$0xff]
    %v67 = vld [vmem:[%s1 + $0x150] sm:$0xff]
    %v68 = vld [vmem:[%s1 + $0x158] sm:$0xff]
    %v69 = vld [vmem:[%s1 + $0x160] sm:$0xff]
    %v70 = vld [vmem:[%s1 + $0x168] sm:$0xff]
    %v71 = vld [vmem:[%s1 + $0x170] sm:$0xff]
    %v72 = vld [vmem:[%s1 + $0x178] sm:$0xff]
    %v73 = vld [vmem:[%s1 + $0x180] sm:$0xff]
    %v74 = vld [vmem:[%s1 + $0x188] sm:$0xff]
    %v75 = vld [vmem:[%s1 + $0x190] sm:$0xff]
    %v76 = vld [vmem:[%s1 + $0x198] sm:$0xff]
    %v77 = vld [vmem:[%s1 + $0x1a0] sm:$0xff]
    %v78 = vld [vmem:[%s1 + $0x1a8] sm:$0xff]
    %v79 = vld [vmem:[%s1 + $0x1b0] sm:$0xff]
    %v80 = vld [vmem:[%s1 + $0x1b8] sm:$0xff]
    %v81 = vld [vmem:[%s1 + $0x1c0] sm:$0xff]
    %v82 = vld [vmem:[%s1 + $0x1c8] sm:$0xff]
    %v83 = vld [vmem:[%s1 + $0x1d0] sm:$0xff]
    %v84 = vld [vmem:[%s1 + $0x1d8] sm:$0xff]
    %v85 = vld [vmem:[%s1 + $0x1e0] sm:$0xff]
    %v86 = vld [vmem:[%s1 + $0x1e8] sm:$0xff]
    %v87 = vld [vmem:[%s1 + $0x1f0] sm:$0xff]
    %v88 = vld [vmem:[%s1 + $0x1f8] sm:$0xff]
    %v89 = vld [vmem:[%s1 + $0x200] sm:$0xff]
    %v90 = vld [vmem:[%s1 + $0x208] sm:$0xff]
    %v91 = vld [vmem:[%s1 + $0x210] sm:$0xff]
    %v92 = vld [vmem:[%s1 + $0x218] sm:$0xff]
    %v93 = vld [vmem:[%s1 + $0x220] sm:$0xff]
    %v94 = vld [vmem:[%s1 + $0x228] sm:$0xff]
    %v95 = vld [vmem:[%s1 + $0x230] sm:$0xff]
    %v96 = vld [vmem:[%s1 + $0x238] sm:$0xff]
    %v97 = vld [vmem:[%s1 + $0x240] sm:$0xff]
    %v98 = vld [vmem:[%s1 + $0x248] sm:$0xff]
    %v99 = vld [vmem:[%s1 + $0x250] sm:$0xff]
    %v100 = vld [vmem:[%s1 + $0x258] sm:$0xff]
    %v101 = vld [vmem:[%s1 + $0x260] sm:$0xff]
    %v102 = vld [vmem:[%s1 + $0x268] sm:$0xff]
    %v103 = vld [vmem:[%s1 + $0x270] sm:$0xff]
    %v104 = vld [vmem:[%s1 + $0x278] sm:$0xff]
    %v105 = vld [vmem:[%s1 + $0x280] sm:$0xff]
    %v106 = vld [vmem:[%s1 + $0x288] sm:$0xff]
    %v107 = vld [vmem:[%s1 + $0x290] sm:$0xff]
    %v108 = vld [vmem:[%s1 + $0x298] sm:$0xff]
    %v109 = vld [vmem:[%s1 + $0x2a0] sm:$0xff]
    %v110 = vld [vmem:[%s1 + $0x2a8] sm:$0xff]
    %v111 = vld [vmem:[%s1 + $0x2b0] sm:$0xff]
    %v112 = vld [vmem:[%s1 + $0x2b8] sm:$0xff]
    %v113 = vld [vmem:[%s1 + $0x2c0] sm:$0xff]
    %v114 = vld [vmem:[%s1 + $0x2c8] sm:$0xff]
    %v115 = vld [vmem:[%s1 + $0x2d0] sm:$0xff]
    %v116 = vld [vmem:[%s1 + $0x2d8] sm:$0xff]
    %v117 = vld [vmem:[%s1 + $0x2e0] sm:$0xff]
    %v118 = vld [vmem:[%s1 + $0x2e8] sm:$0xff]
    %v119 = vld [vmem:[%s1 + $0x2f0] sm:$0xff]
    %v120 = vld [vmem:[%s1 + $0x2f8] sm:$0xff]
    %v121 = vld [vmem:[%s1 + $0x300] sm:$0xff]
    %v122 = vld [vmem:[%s1 + $0x308] sm:$0xff]
    %v123 = vld [vmem:[%s1 + $0x310] sm:$0xff]
    %v124 = vld [vmem:[%s1 + $0x318] sm:$0xff]
    %v125 = vld [vmem:[%s1 + $0x320] sm:$0xff]
    %v126 = vld [vmem:[%s1 + $0x328] sm:$0xff]
    %v127 = vld [vmem:[%s1 + $0x330] sm:$0xff]
    %v128 = vld [vmem:[%s1 + $0x338] sm:$0xff]
    %v129 = vld [vmem:[%s1 + $0x340] sm:$0xff]
    %v130 = vld [vmem:[%s1 + $0x348] sm:$0xff]
    %v131 = vld [vmem:[%s1 + $0x350] sm:$0xff]
    %v132 = vld [vmem:[%s1 + $0x358] sm:$0xff]
    %v133 = vld [vmem:[%s1 + $0x360] sm:$0xff]
    %v134 = vld [vmem:[%s1 + $0x368] sm:$0xff]
    %v135 = vld [vmem:[%s1 + $0x370] sm:$0xff]
    %v136 = vld [vmem:[%s1 + $0x378] sm:$0xff]
    %v137 = vld [vmem:[%s1 + $0x380] sm:$0xff]
    %v138 = vld [vmem:[%s1 + $0x388] sm:$0xff]
    %v139 = vld [vmem:[%s1 + $0x390] sm:$0xff]
    %v140 = vld [vmem:[%s1 + $0x398] sm:$0xff]
    %v141 = vld [vmem:[%s1 + $0x3a0] sm:$0xff]
    %v142 = vld [vmem:[%s1 + $0x3a8] sm:$0xff]
    %v143 = vld [vmem:[%s1 + $0x3b0] sm:$0xff]
    %v144 = vld [vmem:[%s1 + $0x3b8] sm:$0xff]
    %v145 = vld [vmem:[%s1 + $0x3c0] sm:$0xff]
    %v146 = vld [vmem:[%s1 + $0x3c8] sm:$0xff]
    %v147 = vld [vmem:[%s1 + $0x3d0] sm:$0xff]
    %v148 = vld [vmem:[%s1 + $0x3d8] sm:$0xff]
    %v149 = vld [vmem:[%s1 + $0x3e0] sm:$0xff]
    %v150 = vld [vmem:[%s1 + $0x3e8] sm:$0xff]
    %v151 = vld [vmem:[%s1 + $0x3f0] sm:$0xff]
    %v152 = vld [vmem:[%s1 + $0x3f8] sm:$0xff]
    %v153 = vld [vmem:[%s1 + $0x400] sm:$0xff]
    %v154 = vld [vmem:[%s1 + $0x408] sm:$0xff]
    %v155 = vld [vmem:[%s1 + $0x410] sm:$0xff]
    %v156 = vld [vmem:[%s1 + $0x418] sm:$0xff]
    %v157 = vld [vmem:[%s1 + $0x420] sm:$0xff]
    %v158 = vld [vmem:[%s1 + $0x428] sm:$0xff]
    %v159 = vld [vmem:[%s1 + $0x430] sm:$0xff]
    %v160 = vld [vmem:[%s1 + $0x438] sm:$0xff]
    %v161 = vld [vmem:[%s1 + $0x440] sm:$0xff]
    %v162 = vld [vmem:[%s1 + $0x448] sm:$0xff]
    %v163 = vld [vmem:[%s1 + $0x450] sm:$0xff]
    %v164 = vld [vmem:[%s1 + $0x458] sm:$0xff]
    %v165 = vld [vmem:[%s1 + $0x460] sm:$0xff]
    %v166 = vld [vmem:[%s1 + $0x468] sm:$0xff]
    %v167 = vld [vmem:[%s1 + $0x470] sm:$0xff]
    %v168 = vld [vmem:[%s1 + $0x478] sm:$0xff]
    %v169 = vld [vmem:[%s1 + $0x480] sm:$0xff]
    %v170 = vld [vmem:[%s1 + $0x488] sm:$0xff]
    %v171 = vld [vmem:[%s1 + $0x490] sm:$0xff]
    %v172 = vld [vmem:[%s1 + $0x498] sm:$0xff]
    %v173 = vld [vmem:[%s1 + $0x4a0] sm:$0xff]
    %v174 = vld [vmem:[%s1 + $0x4a8] sm:$0xff]
    %v175 = vld [vmem:[%s1 + $0x4b0] sm:$0xff]
    %v176 = vld [vmem:[%s1 + $0x4b8] sm:$0xff]
    %v177 = vld [vmem:[%s1 + $0x4c0] sm:$0xff]
    %v178 = vld [vmem:[%s1 + $0x4c8] sm:$0xff]
    %v179 = vld [vmem:[%s1 + $0x4d0] sm:$0xff]
    %v180 = vld [vmem:[%s1 + $0x4d8] sm:$0xff]
    %v181 = vld [vmem:[%s1 + $0x4e0] sm:$0xff]
    %v182 = vld [vmem:[%s1 + $0x4e8] sm:$0xff]
    %v183 = vld [vmem:[%s1 + $0x4f0] sm:$0xff]
    %v184 = vld [vmem:[%s1 + $0x4f8] sm:$0xff]
    %v185 = vld [vmem:[%s1 + $0x500] sm:$0xff]
    %v186 = vld [vmem:[%s1 + $0x508] sm:$0xff]
    %v187 = vld [vmem:[%s1 + $0x510] sm:$0xff]
    %v188 = vld [vmem:[%s1 + $0x518] sm:$0xff]
    %v189 = vld [vmem:[%s1 + $0x520] sm:$0xff]
    %v190 = vld [vmem:[%s1 + $0x528] sm:$0xff]
    %v191 = vld [vmem:[%s1 + $0x530] sm:$0xff]
    %v192 = vld [vmem:[%s1 + $0x538] sm:$0xff]
    %v193 = vld [vmem:[%s1 + $0x540] sm:$0xff]
    %v194 = vld [vmem:[%s1 + $0x548] sm:$0xff]
    %v195 = vld [vmem:[%s1 + $0x550] sm:$0xff]
    %v196 = vld [vmem:[%s1 + $0x558] sm:$0xff]
    %v197 = vld [vmem:[%s1 + $0x560] sm:$0xff]
    %v198 = vld [vmem:[%s1 + $0x568] sm:$0xff]
    %v199 = vld [vmem:[%s1 + $0x570] sm:$0xff]
    %v200 = vld [vmem:[%s1 + $0x578] sm:$0xff]
    %v201 = vld [vmem:[%s1 + $0x580] sm:$0xff]
    %v202 = vld [vmem:[%s1 + $0x588] sm:$0xff]
    %v203 = vld [vmem:[%s1 + $0x590] sm:$0xff]
    %v204 = vld [vmem:[%s1 + $0x598] sm:$0xff]
    %v205 = vld [vmem:[%s1 + $0x5a0] sm:$0xff]
    %v206 = vld [vmem:[%s1 + $0x5a8] sm:$0xff]
    %v207 = vld [vmem:[%s1 + $0x5b0] sm:$0xff]
    %v208 = vld [vmem:[%s1 + $0x5b8] sm:$0xff]
    %v209 = vld [vmem:[%s1 + $0x5c0] sm:$0xff]
    %v210 = vld [vmem:[%s1 + $0x5c8] sm:$0xff]
    %v211 = vld [vmem:[%s1 + $0x5d0] sm:$0xff]
    %v212 = vld [vmem:[%s1 + $0x5d8] sm:$0xff]
    %v213 = vld [vmem:[%s1 + $0x5e0] sm:$0xff]
    %v214 = vld [vmem:[%s1 + $0x5e8] sm:$0xff]
    %v215 = vld [vmem:[%s1 + $0x5f0] sm:$0xff]
    %v216 = vld [vmem:[%s1 + $0x5f8] sm:$0xff]
    %v217 = vld [vmem:[%s1 + $0x600] sm:$0xff]
    %v218 = vld [vmem:[%s1 + $0x608] sm:$0xff]
    %v219 = vld [vmem:[%s1 + $0x610] sm:$0xff]
    %v220 = vld [vmem:[%s1 + $0x618] sm:$0xff]
    %v221 = vld [vmem:[%s1 + $0x620] sm:$0xff]
    %v222 = vld [vmem:[%s1 + $0x628] sm:$0xff]
    %v223 = vld [vmem:[%s1 + $0x630] sm:$0xff]
    %v224 = vld [vmem:[%s1 + $0x638] sm:$0xff]
    %v225 = vld [vmem:[%s1 + $0x640] sm:$0xff]
    %v226 = vld [vmem:[%s1 + $0x648] sm:$0xff]
    %v227 = vld [vmem:[%s1 + $0x650] sm:$0xff]
    %v228 = vld [vmem:[%s1 + $0x658] sm:$0xff]
    %v229 = vld [vmem:[%s1 + $0x660] sm:$0xff]
    %v230 = vld [vmem:[%s1 + $0x668] sm:$0xff]
    %v231 = vld [vmem:[%s1 + $0x670] sm:$0xff]
    %v232 = vld [vmem:[%s1 + $0x678] sm:$0xff]
    %v233 = vld [vmem:[%s1 + $0x680] sm:$0xff]
    %v234 = vld [vmem:[%s1 + $0x688] sm:$0xff]
    %v235 = vld [vmem:[%s1 + $0x690] sm:$0xff]
    %v236 = vld [vmem:[%s1 + $0x698] sm:$0xff]
    %v237 = vld [vmem:[%s1 + $0x6a0] sm:$0xff]
    %v238 = vld [vmem:[%s1 + $0x6a8] sm:$0xff]
    %v239 = vld [vmem:[%s1 + $0x6b0] sm:$0xff]
    %v240 = vld [vmem:[%s1 + $0x6b8] sm:$0xff]
    %v241 = vld [vmem:[%s1 + $0x6c0] sm:$0xff]
    %v242 = vld [vmem:[%s1 + $0x6c8] sm:$0xff]
    %v243 = vld [vmem:[%s1 + $0x6d0] sm:$0xff]
    %v244 = vld [vmem:[%s1 + $0x6d8] sm:$0xff]
    %v245 = vld [vmem:[%s1 + $0x6e0] sm:$0xff]
    %v246 = vld [vmem:[%s1 + $0x6e8] sm:$0xff]
    %v247 = vld [vmem:[%s1 + $0x6f0] sm:$0xff]
    %v248 = vld [vmem:[%s1 + $0x6f8] sm:$0xff]
    %v249 = vld [vmem:[%s1 + $0x700] sm:$0xff]
    %v250 = vld [vmem:[%s1 + $0x708] sm:$0xff]
    %v251 = vld [vmem:[%s1 + $0x710] sm:$0xff]
    %v252 = vld [vmem:[%s1 + $0x718] sm:$0xff]
    %v253 = vld [vmem:[%s1 + $0x720] sm:$0xff]
    %v254 = vld [vmem:[%s1 + $0x728] sm:$0xff]
    %v255 = vld [vmem:[%s1 + $0x730] sm:$0xff]
    %v256 = vld [vmem:[%s1 + $0x738] sm:$0xff]
    %v257 = vld [vmem:[%s1 + $0x740] sm:$0xff]
    %v258 = vld [vmem:[%s1 + $0x748] sm:$0xff]
    %v259 = vld [vmem:[%s1 + $0x750] sm:$0xff]
    %v260 = vld [vmem:[%s1 + $0x758] sm:$0xff]
    %v261 = vld [vmem:[%s1 + $0x760] sm:$0xff]
    %v262 = vld [vmem:[%s1 + $0x768] sm:$0xff]
    %v263 = vld [vmem:[%s1 + $0x770] sm:$0xff]
    %v264 = vld [vmem:[%s1 + $0x778] sm:$0xff]
    %v265 = vld [vmem:[%s1 + $0x780] sm:$0xff]
    %v266 = vld [vmem:[%s1 + $0x788] sm:$0xff]
    %v267 = vld [vmem:[%s1 + $0x790] sm:$0xff]
    %v268 = vld [vmem:[%s1 + $0x798] sm:$0xff]
    %v269 = vld [vmem:[%s1 + $0x7a0] sm:$0xff]
    %v270 = vld [vmem:[%s1 + $0x7a8] sm:$0xff]
    %v271 = vld [vmem:[%s1 + $0x7b0] sm:$0xff]
    %v272 = vld [vmem:[%s1 + $0x7b8] sm:$0xff]
    %v273 = vld [vmem:[%s1 + $0x7c0] sm:$0xff]
    %v274 = vld [vmem:[%s1 + $0x7c8] sm:$0xff]
    %v275 = vld [vmem:[%s1 + $0x7d0] sm:$0xff]
    %v276 = vld [vmem:[%s1 + $0x7d8] sm:$0xff]
    %v277 = vld [vmem:[%s1 + $0x7e0] sm:$0xff]
    %v278 = vld [vmem:[%s1 + $0x7e8] sm:$0xff]
    %v279 = vld [vmem:[%s1 + $0x7f0] sm:$0xff]
    %v280 = vld [vmem:[%s1 + $0x7f8] sm:$0xff]
    %v281 = vld [vmem:[%s1 + $0x800] sm:$0xff]
    %v282 = vld [vmem:[%s1 + $0x808] sm:$0xff]
    %v283 = vld [vmem:[%s1 + $0x810] sm:$0xff]
    %v284 = vld [vmem:[%s1 + $0x818] sm:$0xff]
    %v285 = vld [vmem:[%s1 + $0x820] sm:$0xff]
    %v286 = vld [vmem:[%s1 + $0x828] sm:$0xff]
    %v287 = vld [vmem:[%s1 + $0x830] sm:$0xff]
    %v288 = vld [vmem:[%s1 + $0x838] sm:$0xff]
    %v289 = vld [vmem:[%s1 + $0x840] sm:$0xff]
    %v290 = vld [vmem:[%s1 + $0x848] sm:$0xff]
    %v291 = vld [vmem:[%s1 + $0x850] sm:$0xff]
    %v292 = vld [vmem:[%s1 + $0x858] sm:$0xff]
    %v293 = vld [vmem:[%s1 + $0x860] sm:$0xff]
    %v294 = vld [vmem:[%s1 + $0x868] sm:$0xff]
    %v295 = vld [vmem:[%s1 + $0x870] sm:$0xff]
    %v296 = vld [vmem:[%s1 + $0x878] sm:$0xff]
    %v297 = vld [vmem:[%s1 + $0x880] sm:$0xff]
    %v298 = vld [vmem:[%s1 + $0x888] sm:$0xff]
    %v299 = vld [vmem:[%s1 + $0x890] sm:$0xff]
    %v300 = vld [vmem:[%s1 + $0x898] sm:$0xff]
    %v301 = vld [vmem:[%s1 + $0x8a0] sm:$0xff]
    %v302 = vld [vmem:[%s1 + $0x8a8] sm:$0xff]
    %v303 = vld [vmem:[%s1 + $0x8b0] sm:$0xff]
    %v304 = vld [vmem:[%s1 + $0x8b8] sm:$0xff]
    %v305 = vld [vmem:[%s1 + $0x8c0] sm:$0xff]
    %v306 = vld [vmem:[%s1 + $0x8c8] sm:$0xff]
    %v307 = vld [vmem:[%s1 + $0x8d0] sm:$0xff]
    %v308 = vld [vmem:[%s1 + $0x8d8] sm:$0xff]
    %v309 = vld [vmem:[%s1 + $0x8e0] sm:$0xff]
    %v310 = vld [vmem:[%s1 + $0x8e8] sm:$0xff]
    %v311 = vld [vmem:[%s1 + $0x8f0] sm:$0xff]
    %v312 = vld [vmem:[%s1 + $0x8f8] sm:$0xff]
    %v313 = vld [vmem:[%s1 + $0x900] sm:$0xff]
    %v314 = vld [vmem:[%s1 + $0x908] sm:$0xff]
    %v315 = vld [vmem:[%s1 + $0x910] sm:$0xff]
    %v316 = vld [vmem:[%s1 + $0x918] sm:$0xff]
    %v317 = vld [vmem:[%s1 + $0x920] sm:$0xff]
    %v318 = vld [vmem:[%s1 + $0x928] sm:$0xff]
    %v319 = vld [vmem:[%s1 + $0x930] sm:$0xff]
    %v320 = vld [vmem:[%s1 + $0x938] sm:$0xff]
    %v321 = vld [vmem:[%s1 + $0x940] sm:$0xff]
    %v322 = vld [vmem:[%s1 + $0x948] sm:$0xff]
    %v323 = vld [vmem:[%s1 + $0x950] sm:$0xff]
    %v324 = vld [vmem:[%s1 + $0x958] sm:$0xff]
    %v325 = vld [vmem:[%s1 + $0x960] sm:$0xff]
    %v326 = vld [vmem:[%s1 + $0x968] sm:$0xff]
    %v327 = vld [vmem:[%s1 + $0x970] sm:$0xff]
    %v328 = vld [vmem:[%s1 + $0x978] sm:$0xff]
    %v329 = vld [vmem:[%s1 + $0x980] sm:$0xff]
    %v330 = vld [vmem:[%s1 + $0x988] sm:$0xff]
    %v331 = vld [vmem:[%s1 + $0x990] sm:$0xff]
    %v332 = vld [vmem:[%s1 + $0x998] sm:$0xff]
    %v333 = vld [vmem:[%s1 + $0x9a0] sm:$0xff]
    %v334 = vld [vmem:[%s1 + $0x9a8] sm:$0xff]
    %v335 = vld [vmem:[%s1 + $0x9b0] sm:$0xff]
    %v336 = vld [vmem:[%s1 + $0x9b8] sm:$0xff]
    %v337 = vld [vmem:[%s1 + $0x9c0] sm:$0xff]
    %v338 = vld [vmem:[%s1 + $0x9c8] sm:$0xff]
    %v339 = vld [vmem:[%s1 + $0x9d0] sm:$0xff]
    %v340 = vld [vmem:[%s1 + $0x9d8] sm:$0xff]
    %v341 = vld [vmem:[%s1 + $0x9e0] sm:$0xff]
    %v342 = vld [vmem:[%s1 + $0x9e8] sm:$0xff]
    %v343 = vld [vmem:[%s1 + $0x9f0] sm:$0xff]
    %v344 = vld [vmem:[%s1 + $0x9f8] sm:$0xff]
    %v345 = vld [vmem:[%s1 + $0xa00] sm:$0xff]
    %v346 = vld [vmem:[%s1 + $0xa08] sm:$0xff]
    %v347 = vld [vmem:[%s1 + $0xa10] sm:$0xff]
    %v348 = vld [vmem:[%s1 + $0xa18] sm:$0xff]
    %v349 = vld [vmem:[%s2] sm:$0x3]
    %v351 = vperm.slane %v349, 0
    %v352 = vperm.slane %v349, 1
    %356 = vst [vmem:[#allocation1] ss:$9 sm:$0xff] %v22
    %v357 = vld [vmem:[#allocation1] sm:$0xff]
    %v358 = vld [vmem:[#allocation1 + $0x9] sm:$0xff]
    %v359 = vld [vmem:[#allocation1 + $0x12] sm:$0xff]
    %v360 = vld [vmem:[#allocation1 + $0x1b] sm:$0xff]
    %v361 = vld [vmem:[#allocation1 + $0x24] sm:$0xff]
    %v362 = vld [vmem:[#allocation1 + $0x2d] sm:$0xff]
    %v363 = vld [vmem:[#allocation1 + $0x36] sm:$0xff]
    %v364 = vld [vmem:[#allocation1 + $0x3f] sm:$0xff]
    %366 = vst [vmem:[#allocation1] ss:$9 sm:$0xff] %v23
    %v367 = vld [vmem:[#allocation1] sm:$0xff]
    %v368 = vld [vmem:[#allocation1 + $0x9] sm:$0xff]
    %v369 = vld [vmem:[#allocation1 + $0x12] sm:$0xff]
    %v370 = vld [vmem:[#allocation1 + $0x1b] sm:$0xff]
    %v371 = vld [vmem:[#allocation1 + $0x24] sm:$0xff]
    %v372 = vld [vmem:[#allocation1 + $0x2d] sm:$0xff]
    %v373 = vld [vmem:[#allocation1 + $0x36] sm:$0xff]
    %v374 = vld [vmem:[#allocation1 + $0x3f] sm:$0xff]
    %376 = vst [vmem:[#allocation1] ss:$9 sm:$0xff] %v24
    %v377 = vld [vmem:[#allocation1] sm:$0xff]
    %v378 = vld [vmem:[#allocation1 + $0x9] sm:$0xff]
    %v379 = vld [vmem:[#allocation1 + $0x12] sm:$0xff]
    %v380 = vld [vmem:[#allocation1 + $0x1b] sm:$0xff]
    %v381 = vld [vmem:[#allocation1 + $0x24] sm:$0xff]
    %v726 = vunpack.c.l.b16 %v25
    %v727 = vunpack.c.h.b16 %v25
    %v728 = vunpack.c.l.b16 %v26
    %v729 = vunpack.c.h.b16 %v26
    %v730 = vunpack.c.l.b16 %v27
    %v731 = vunpack.c.h.b16 %v27
    %v732 = vunpack.c.l.b16 %v28
    %v733 = vunpack.c.h.b16 %v28
    %v734 = vunpack.c.l.b16 %v29
    %v735 = vunpack.c.h.b16 %v29
    %v736 = vunpack.c.l.b16 %v30
    %v737 = vunpack.c.h.b16 %v30
    %v738 = vunpack.c.l.b16 %v31
    %v739 = vunpack.c.h.b16 %v31
    %v740 = vunpack.c.l.b16 %v32
    %v741 = vunpack.c.h.b16 %v32
    %v742 = vunpack.c.l.b16 %v33
    %v743 = vunpack.c.h.b16 %v33
    %v744 = vunpack.c.l.b16 %v34
    %v745 = vunpack.c.h.b16 %v34
    %v746 = vunpack.c.l.b16 %v35
    %v747 = vunpack.c.h.b16 %v35
    %v748 = vunpack.c.l.b16 %v36
    %v749 = vunpack.c.h.b16 %v36
    %v750 = vunpack.c.l.b16 %v37
    %v751 = vunpack.c.h.b16 %v37
    %v752 = vunpack.c.l.b16 %v38
    %v753 = vunpack.c.h.b16 %v38
    %v754 = vunpack.c.l.b16 %v39
    %v755 = vunpack.c.h.b16 %v39
    %v756 = vunpack.c.l.b16 %v40
    %v757 = vunpack.c.h.b16 %v40
    %v758 = vunpack.c.l.b16 %v41
    %v759 = vunpack.c.h.b16 %v41
    %v760 = vunpack.c.l.b16 %v42
    %v761 = vunpack.c.h.b16 %v42
    %v762 = vunpack.c.l.b16 %v43
    %v763 = vunpack.c.h.b16 %v43
    %v764 = vunpack.c.l.b16 %v44
    %v765 = vunpack.c.h.b16 %v44
    %v766 = vunpack.c.l.b16 %v45
    %v767 = vunpack.c.h.b16 %v45
    %v768 = vunpack.c.l.b16 %v46
    %v769 = vunpack.c.h.b16 %v46
    %v770 = vunpack.c.l.b16 %v47
    %v771 = vunpack.c.h.b16 %v47
    %v772 = vunpack.c.l.b16 %v48
    %v773 = vunpack.c.h.b16 %v48
    %v774 = vunpack.c.l.b16 %v49
    %v775 = vunpack.c.h.b16 %v49
    %v776 = vunpack.c.l.b16 %v50
    %v777 = vunpack.c.h.b16 %v50
    %v778 = vunpack.c.l.b16 %v51
    %v779 = vunpack.c.h.b16 %v51
    %v780 = vunpack.c.l.b16 %v52
    %v781 = vunpack.c.h.b16 %v52
    %v782 = vunpack.c.l.b16 %v53
    %v783 = vunpack.c.h.b16 %v53
    %v784 = vunpack.c.l.b16 %v54
    %v785 = vunpack.c.h.b16 %v54
    %v786 = vunpack.c.l.b16 %v55
    %v787 = vunpack.c.h.b16 %v55
    %v788 = vunpack.c.l.b16 %v56
    %v789 = vunpack.c.h.b16 %v56
    %v790 = vunpack.c.l.b16 %v57
    %v791 = vunpack.c.h.b16 %v57
    %v792 = vunpack.c.l.b16 %v58
    %v793 = vunpack.c.h.b16 %v58
    %v794 = vunpack.c.l.b16 %v59
    %v795 = vunpack.c.h.b16 %v59
    %v796 = vunpack.c.l.b16 %v60
    %v797 = vunpack.c.h.b16 %v60
    %v798 = vunpack.c.l.b16 %v61
    %v799 = vunpack.c.h.b16 %v61
    %v800 = vunpack.c.l.b16 %v62
    %v801 = vunpack.c.h.b16 %v62
    %v802 = vunpack.c.l.b16 %v63
    %v803 = vunpack.c.h.b16 %v63
    %v804 = vunpack.c.l.b16 %v64
    %v805 = vunpack.c.h.b16 %v64
    %v806 = vunpack.c.l.b16 %v65
    %v807 = vunpack.c.h.b16 %v65
    %v808 = vunpack.c.l.b16 %v66
    %v809 = vunpack.c.h.b16 %v66
    %v810 = vunpack.c.l.b16 %v67
    %v811 = vunpack.c.h.b16 %v67
    %v812 = vunpack.c.l.b16 %v68
    %v813 = vunpack.c.h.b16 %v68
    %v814 = vunpack.c.l.b16 %v69
    %v815 = vunpack.c.h.b16 %v69
    %v816 = vunpack.c.l.b16 %v70
    %v817 = vunpack.c.h.b16 %v70
    %v818 = vunpack.c.l.b16 %v71
    %v819 = vunpack.c.h.b16 %v71
    %v820 = vunpack.c.l.b16 %v72
    %v821 = vunpack.c.h.b16 %v72
    %v822 = vunpack.c.l.b16 %v73
    %v823 = vunpack.c.h.b16 %v73
    %v824 = vunpack.c.l.b16 %v74
    %v825 = vunpack.c.h.b16 %v74
    %v826 = vunpack.c.l.b16 %v75
    %v827 = vunpack.c.h.b16 %v75
    %v828 = vunpack.c.l.b16 %v76
    %v829 = vunpack.c.h.b16 %v76
    %v830 = vunpack.c.l.b16 %v77
    %v831 = vunpack.c.h.b16 %v77
    %v832 = vunpack.c.l.b16 %v78
    %v833 = vunpack.c.h.b16 %v78
    %v834 = vunpack.c.l.b16 %v79
    %v835 = vunpack.c.h.b16 %v79
    %v836 = vunpack.c.l.b16 %v80
    %v837 = vunpack.c.h.b16 %v80
    %v838 = vunpack.c.l.b16 %v81
    %v839 = vunpack.c.h.b16 %v81
    %v840 = vunpack.c.l.b16 %v82
    %v841 = vunpack.c.h.b16 %v82
    %v842 = vunpack.c.l.b16 %v83
    %v843 = vunpack.c.h.b16 %v83
    %v844 = vunpack.c.l.b16 %v84
    %v845 = vunpack.c.h.b16 %v84
    %v846 = vunpack.c.l.b16 %v85
    %v847 = vunpack.c.h.b16 %v85
    %v848 = vunpack.c.l.b16 %v86
    %v849 = vunpack.c.h.b16 %v86
    %v850 = vunpack.c.l.b16 %v87
    %v851 = vunpack.c.h.b16 %v87
    %v852 = vunpack.c.l.b16 %v88
    %v853 = vunpack.c.h.b16 %v88
    %v854 = vunpack.c.l.b16 %v89
    %v855 = vunpack.c.h.b16 %v89
    %v856 = vunpack.c.l.b16 %v90
    %v857 = vunpack.c.h.b16 %v90
    %v858 = vunpack.c.l.b16 %v91
    %v859 = vunpack.c.h.b16 %v91
    %v860 = vunpack.c.l.b16 %v92
    %v861 = vunpack.c.h.b16 %v92
    %v862 = vunpack.c.l.b16 %v93
    %v863 = vunpack.c.h.b16 %v93
    %v864 = vunpack.c.l.b16 %v94
    %v865 = vunpack.c.h.b16 %v94
    %v866 = vunpack.c.l.b16 %v95
    %v867 = vunpack.c.h.b16 %v95
    %v868 = vunpack.c.l.b16 %v96
    %v869 = vunpack.c.h.b16 %v96
    %v870 = vunpack.c.l.b16 %v97
    %v871 = vunpack.c.h.b16 %v97
    %v872 = vunpack.c.l.b16 %v98
    %v873 = vunpack.c.h.b16 %v98
    %v874 = vunpack.c.l.b16 %v99
    %v875 = vunpack.c.h.b16 %v99
    %v876 = vunpack.c.l.b16 %v100
    %v877 = vunpack.c.h.b16 %v100
    %v878 = vunpack.c.l.b16 %v101
    %v879 = vunpack.c.h.b16 %v101
    %v880 = vunpack.c.l.b16 %v102
    %v881 = vunpack.c.h.b16 %v102
    %v882 = vunpack.c.l.b16 %v103
    %v883 = vunpack.c.h.b16 %v103
    %v884 = vunpack.c.l.b16 %v104
    %v885 = vunpack.c.h.b16 %v104
    %v886 = vunpack.c.l.b16 %v105
    %v887 = vunpack.c.h.b16 %v105
    %v888 = vunpack.c.l.b16 %v106
    %v889 = vunpack.c.h.b16 %v106
    %v890 = vunpack.c.l.b16 %v107
    %v891 = vunpack.c.h.b16 %v107
    %v892 = vunpack.c.l.b16 %v108
    %v893 = vunpack.c.h.b16 %v108
    %v894 = vunpack.c.l.b16 %v109
    %v895 = vunpack.c.h.b16 %v109
    %v896 = vunpack.c.l.b16 %v110
    %v897 = vunpack.c.h.b16 %v110
    %v898 = vunpack.c.l.b16 %v111
    %v899 = vunpack.c.h.b16 %v111
    %v900 = vunpack.c.l.b16 %v112
    %v901 = vunpack.c.h.b16 %v112
    %v902 = vunpack.c.l.b16 %v113
    %v903 = vunpack.c.h.b16 %v113
    %v904 = vunpack.c.l.b16 %v114
    %v905 = vunpack.c.h.b16 %v114
    %v906 = vunpack.c.l.b16 %v115
    %v907 = vunpack.c.h.b16 %v115
    %v908 = vunpack.c.l.b16 %v116
    %v909 = vunpack.c.h.b16 %v116
    %v910 = vunpack.c.l.b16 %v117
    %v911 = vunpack.c.h.b16 %v117
    %v912 = vunpack.c.l.b16 %v118
    %v913 = vunpack.c.h.b16 %v118
    %v914 = vunpack.c.l.b16 %v119
    %v915 = vunpack.c.h.b16 %v119
    %v916 = vunpack.c.l.b16 %v120
    %v917 = vunpack.c.h.b16 %v120
    %v918 = vunpack.c.l.b16 %v121
    %v919 = vunpack.c.h.b16 %v121
    %v920 = vunpack.c.l.b16 %v122
    %v921 = vunpack.c.h.b16 %v122
    %v922 = vunpack.c.l.b16 %v123
    %v923 = vunpack.c.h.b16 %v123
    %v924 = vunpack.c.l.b16 %v124
    %v925 = vunpack.c.h.b16 %v124
    %v926 = vunpack.c.l.b16 %v125
    %v927 = vunpack.c.h.b16 %v125
    %v928 = vunpack.c.l.b16 %v126
    %v929 = vunpack.c.h.b16 %v126
    %v930 = vunpack.c.l.b16 %v127
    %v931 = vunpack.c.h.b16 %v127
    %v932 = vunpack.c.l.b16 %v128
    %v933 = vunpack.c.h.b16 %v128
    %v934 = vunpack.c.l.b16 %v129
    %v935 = vunpack.c.h.b16 %v129
    %v936 = vunpack.c.l.b16 %v130
    %v937 = vunpack.c.h.b16 %v130
    %v938 = vunpack.c.l.b16 %v131
    %v939 = vunpack.c.h.b16 %v131
    %v940 = vunpack.c.l.b16 %v132
    %v941 = vunpack.c.h.b16 %v132
    %v942 = vunpack.c.l.b16 %v133
    %v943 = vunpack.c.h.b16 %v133
    %v944 = vunpack.c.l.b16 %v134
    %v945 = vunpack.c.h.b16 %v134
    %v946 = vunpack.c.l.b16 %v135
    %v947 = vunpack.c.h.b16 %v135
    %v948 = vunpack.c.l.b16 %v136
    %v949 = vunpack.c.h.b16 %v136
    %v950 = vunpack.c.l.b16 %v137
    %v951 = vunpack.c.h.b16 %v137
    %v952 = vunpack.c.l.b16 %v138
    %v953 = vunpack.c.h.b16 %v138
    %v954 = vunpack.c.l.b16 %v139
    %v955 = vunpack.c.h.b16 %v139
    %v956 = vunpack.c.l.b16 %v140
    %v957 = vunpack.c.h.b16 %v140
    %v958 = vunpack.c.l.b16 %v141
    %v959 = vunpack.c.h.b16 %v141
    %v960 = vunpack.c.l.b16 %v142
    %v961 = vunpack.c.h.b16 %v142
    %v962 = vunpack.c.l.b16 %v143
    %v963 = vunpack.c.h.b16 %v143
    %v964 = vunpack.c.l.b16 %v144
    %v965 = vunpack.c.h.b16 %v144
    %v966 = vunpack.c.l.b16 %v145
    %v967 = vunpack.c.h.b16 %v145
    %v968 = vunpack.c.l.b16 %v146
    %v969 = vunpack.c.h.b16 %v146
    %v970 = vunpack.c.l.b16 %v147
    %v971 = vunpack.c.h.b16 %v147
    %v972 = vunpack.c.l.b16 %v148
    %v973 = vunpack.c.h.b16 %v148
    %v974 = vunpack.c.l.b16 %v149
    %v975 = vunpack.c.h.b16 %v149
    %v976 = vunpack.c.l.b16 %v150
    %v977 = vunpack.c.h.b16 %v150
    %v978 = vunpack.c.l.b16 %v151
    %v979 = vunpack.c.h.b16 %v151
    %v980 = vunpack.c.l.b16 %v152
    %v981 = vunpack.c.h.b16 %v152
    %v982 = vunpack.c.l.b16 %v153
    %v983 = vunpack.c.h.b16 %v153
    %v984 = vunpack.c.l.b16 %v154
    %v985 = vunpack.c.h.b16 %v154
    %v986 = vunpack.c.l.b16 %v155
    %v987 = vunpack.c.h.b16 %v155
    %v988 = vunpack.c.l.b16 %v156
    %v989 = vunpack.c.h.b16 %v156
    %v990 = vunpack.c.l.b16 %v157
    %v991 = vunpack.c.h.b16 %v157
    %v992 = vunpack.c.l.b16 %v158
    %v993 = vunpack.c.h.b16 %v158
    %v994 = vunpack.c.l.b16 %v159
    %v995 = vunpack.c.h.b16 %v159
    %v996 = vunpack.c.l.b16 %v160
    %v997 = vunpack.c.h.b16 %v160
    %v998 = vunpack.c.l.b16 %v161
    %v999 = vunpack.c.h.b16 %v161
    %v1000 = vunpack.c.l.b16 %v162
    %v1001 = vunpack.c.h.b16 %v162
    %v1002 = vunpack.c.l.b16 %v163
    %v1003 = vunpack.c.h.b16 %v163
    %v1004 = vunpack.c.l.b16 %v164
    %v1005 = vunpack.c.h.b16 %v164
    %v1006 = vunpack.c.l.b16 %v165
    %v1007 = vunpack.c.h.b16 %v165
    %v1008 = vunpack.c.l.b16 %v166
    %v1009 = vunpack.c.h.b16 %v166
    %v1010 = vunpack.c.l.b16 %v167
    %v1011 = vunpack.c.h.b16 %v167
    %v1012 = vunpack.c.l.b16 %v168
    %v1013 = vunpack.c.h.b16 %v168
    %v1014 = vunpack.c.l.b16 %v169
    %v1015 = vunpack.c.h.b16 %v169
    %v1016 = vunpack.c.l.b16 %v170
    %v1017 = vunpack.c.h.b16 %v170
    %v1018 = vunpack.c.l.b16 %v171
    %v1019 = vunpack.c.h.b16 %v171
    %v1020 = vunpack.c.l.b16 %v172
    %v1021 = vunpack.c.h.b16 %v172
    %v1022 = vunpack.c.l.b16 %v173
    %v1023 = vunpack.c.h.b16 %v173
    %v1024 = vunpack.c.l.b16 %v174
    %v1025 = vunpack.c.h.b16 %v174
    %v1026 = vunpack.c.l.b16 %v175
    %v1027 = vunpack.c.h.b16 %v175
    %v1028 = vunpack.c.l.b16 %v176
    %v1029 = vunpack.c.h.b16 %v176
    %v1030 = vunpack.c.l.b16 %v177
    %v1031 = vunpack.c.h.b16 %v177
    %v1032 = vunpack.c.l.b16 %v178
    %v1033 = vunpack.c.h.b16 %v178
    %v1034 = vunpack.c.l.b16 %v179
    %v1035 = vunpack.c.h.b16 %v179
    %v1036 = vunpack.c.l.b16 %v180
    %v1037 = vunpack.c.h.b16 %v180
    %v1038 = vunpack.c.l.b16 %v181
    %v1039 = vunpack.c.h.b16 %v181
    %v1040 = vunpack.c.l.b16 %v182
    %v1041 = vunpack.c.h.b16 %v182
    %v1042 = vunpack.c.l.b16 %v183
    %v1043 = vunpack.c.h.b16 %v183
    %v1044 = vunpack.c.l.b16 %v184
    %v1045 = vunpack.c.h.b16 %v184
    %v1046 = vunpack.c.l.b16 %v185
    %v1047 = vunpack.c.h.b16 %v185
    %v1048 = vunpack.c.l.b16 %v186
    %v1049 = vunpack.c.h.b16 %v186
    %v1050 = vunpack.c.l.b16 %v187
    %v1051 = vunpack.c.h.b16 %v187
    %v1052 = vunpack.c.l.b16 %v188
    %v1053 = vunpack.c.h.b16 %v188
    %v1054 = vunpack.c.l.b16 %v189
    %v1055 = vunpack.c.h.b16 %v189
    %v1056 = vunpack.c.l.b16 %v190
    %v1057 = vunpack.c.h.b16 %v190
    %v1058 = vunpack.c.l.b16 %v191
    %v1059 = vunpack.c.h.b16 %v191
    %v1060 = vunpack.c.l.b16 %v192
    %v1061 = vunpack.c.h.b16 %v192
    %v1062 = vunpack.c.l.b16 %v193
    %v1063 = vunpack.c.h.b16 %v193
    %v1064 = vunpack.c.l.b16 %v194
    %v1065 = vunpack.c.h.b16 %v194
    %v1066 = vunpack.c.l.b16 %v195
    %v1067 = vunpack.c.h.b16 %v195
    %v1068 = vunpack.c.l.b16 %v196
    %v1069 = vunpack.c.h.b16 %v196
    %v1070 = vunpack.c.l.b16 %v197
    %v1071 = vunpack.c.h.b16 %v197
    %v1072 = vunpack.c.l.b16 %v198
    %v1073 = vunpack.c.h.b16 %v198
    %v1074 = vunpack.c.l.b16 %v199
    %v1075 = vunpack.c.h.b16 %v199
    %v1076 = vunpack.c.l.b16 %v200
    %v1077 = vunpack.c.h.b16 %v200
    %v1078 = vunpack.c.l.b16 %v201
    %v1079 = vunpack.c.h.b16 %v201
    %v1080 = vunpack.c.l.b16 %v202
    %v1081 = vunpack.c.h.b16 %v202
    %v1082 = vunpack.c.l.b16 %v203
    %v1083 = vunpack.c.h.b16 %v203
    %v1084 = vunpack.c.l.b16 %v204
    %v1085 = vunpack.c.h.b16 %v204
    %v1086 = vunpack.c.l.b16 %v205
    %v1087 = vunpack.c.h.b16 %v205
    %v1088 = vunpack.c.l.b16 %v206
    %v1089 = vunpack.c.h.b16 %v206
    %v1090 = vunpack.c.l.b16 %v207
    %v1091 = vunpack.c.h.b16 %v207
    %v1092 = vunpack.c.l.b16 %v208
    %v1093 = vunpack.c.h.b16 %v208
    %v1094 = vunpack.c.l.b16 %v209
    %v1095 = vunpack.c.h.b16 %v209
    %v1096 = vunpack.c.l.b16 %v210
    %v1097 = vunpack.c.h.b16 %v210
    %v1098 = vunpack.c.l.b16 %v211
    %v1099 = vunpack.c.h.b16 %v211
    %v1100 = vunpack.c.l.b16 %v212
    %v1101 = vunpack.c.h.b16 %v212
    %v1102 = vunpack.c.l.b16 %v213
    %v1103 = vunpack.c.h.b16 %v213
    %v1104 = vunpack.c.l.b16 %v214
    %v1105 = vunpack.c.h.b16 %v214
    %v1106 = vunpack.c.l.b16 %v215
    %v1107 = vunpack.c.h.b16 %v215
    %v1108 = vunpack.c.l.b16 %v216
    %v1109 = vunpack.c.h.b16 %v216
    %v1110 = vunpack.c.l.b16 %v217
    %v1111 = vunpack.c.h.b16 %v217
    %v1112 = vunpack.c.l.b16 %v218
    %v1113 = vunpack.c.h.b16 %v218
    %v1114 = vunpack.c.l.b16 %v219
    %v1115 = vunpack.c.h.b16 %v219
    %v1116 = vunpack.c.l.b16 %v220
    %v1117 = vunpack.c.h.b16 %v220
    %v1118 = vunpack.c.l.b16 %v221
    %v1119 = vunpack.c.h.b16 %v221
    %v1120 = vunpack.c.l.b16 %v222
    %v1121 = vunpack.c.h.b16 %v222
    %v1122 = vunpack.c.l.b16 %v223
    %v1123 = vunpack.c.h.b16 %v223
    %v1124 = vunpack.c.l.b16 %v224
    %v1125 = vunpack.c.h.b16 %v224
    %v1126 = vunpack.c.l.b16 %v225
    %v1127 = vunpack.c.h.b16 %v225
    %v1128 = vunpack.c.l.b16 %v226
    %v1129 = vunpack.c.h.b16 %v226
    %v1130 = vunpack.c.l.b16 %v227
    %v1131 = vunpack.c.h.b16 %v227
    %v1132 = vunpack.c.l.b16 %v228
    %v1133 = vunpack.c.h.b16 %v228
    %v1134 = vunpack.c.l.b16 %v229
    %v1135 = vunpack.c.h.b16 %v229
    %v1136 = vunpack.c.l.b16 %v230
    %v1137 = vunpack.c.h.b16 %v230
    %v1138 = vunpack.c.l.b16 %v231
    %v1139 = vunpack.c.h.b16 %v231
    %v1140 = vunpack.c.l.b16 %v232
    %v1141 = vunpack.c.h.b16 %v232
    %v1142 = vunpack.c.l.b16 %v233
    %v1143 = vunpack.c.h.b16 %v233
    %v1144 = vunpack.c.l.b16 %v234
    %v1145 = vunpack.c.h.b16 %v234
    %v1146 = vunpack.c.l.b16 %v235
    %v1147 = vunpack.c.h.b16 %v235
    %v1148 = vunpack.c.l.b16 %v236
    %v1149 = vunpack.c.h.b16 %v236
    %v1150 = vunpack.c.l.b16 %v237
    %v1151 = vunpack.c.h.b16 %v237
    %v1152 = vunpack.c.l.b16 %v238
    %v1153 = vunpack.c.h.b16 %v238
    %v1154 = vunpack.c.l.b16 %v239
    %v1155 = vunpack.c.h.b16 %v239
    %v1156 = vunpack.c.l.b16 %v240
    %v1157 = vunpack.c.h.b16 %v240
    %v1158 = vunpack.c.l.b16 %v241
    %v1159 = vunpack.c.h.b16 %v241
    %v1160 = vunpack.c.l.b16 %v242
    %v1161 = vunpack.c.h.b16 %v242
    %v1162 = vunpack.c.l.b16 %v243
    %v1163 = vunpack.c.h.b16 %v243
    %v1164 = vunpack.c.l.b16 %v244
    %v1165 = vunpack.c.h.b16 %v244
    %v1166 = vunpack.c.l.b16 %v245
    %v1167 = vunpack.c.h.b16 %v245
    %v1168 = vunpack.c.l.b16 %v246
    %v1169 = vunpack.c.h.b16 %v246
    %v1170 = vunpack.c.l.b16 %v247
    %v1171 = vunpack.c.h.b16 %v247
    %v1172 = vunpack.c.l.b16 %v248
    %v1173 = vunpack.c.h.b16 %v248
    %v1174 = vunpack.c.l.b16 %v249
    %v1175 = vunpack.c.h.b16 %v249
    %v1176 = vunpack.c.l.b16 %v250
    %v1177 = vunpack.c.h.b16 %v250
    %v1178 = vunpack.c.l.b16 %v251
    %v1179 = vunpack.c.h.b16 %v251
    %v1180 = vunpack.c.l.b16 %v252
    %v1181 = vunpack.c.h.b16 %v252
    %v1182 = vunpack.c.l.b16 %v253
    %v1183 = vunpack.c.h.b16 %v253
    %v1184 = vunpack.c.l.b16 %v254
    %v1185 = vunpack.c.h.b16 %v254
    %v1186 = vunpack.c.l.b16 %v255
    %v1187 = vunpack.c.h.b16 %v255
    %v1188 = vunpack.c.l.b16 %v256
    %v1189 = vunpack.c.h.b16 %v256
    %v1190 = vunpack.c.l.b16 %v257
    %v1191 = vunpack.c.h.b16 %v257
    %v1192 = vunpack.c.l.b16 %v258
    %v1193 = vunpack.c.h.b16 %v258
    %v1194 = vunpack.c.l.b16 %v259
    %v1195 = vunpack.c.h.b16 %v259
    %v1196 = vunpack.c.l.b16 %v260
    %v1197 = vunpack.c.h.b16 %v260
    %v1198 = vunpack.c.l.b16 %v261
    %v1199 = vunpack.c.h.b16 %v261
    %v1200 = vunpack.c.l.b16 %v262
    %v1201 = vunpack.c.h.b16 %v262
    %v1202 = vunpack.c.l.b16 %v263
    %v1203 = vunpack.c.h.b16 %v263
    %v1204 = vunpack.c.l.b16 %v264
    %v1205 = vunpack.c.h.b16 %v264
    %v1206 = vunpack.c.l.b16 %v265
    %v1207 = vunpack.c.h.b16 %v265
    %v1208 = vunpack.c.l.b16 %v266
    %v1209 = vunpack.c.h.b16 %v266
    %v1210 = vunpack.c.l.b16 %v267
    %v1211 = vunpack.c.h.b16 %v267
    %v1212 = vunpack.c.l.b16 %v268
    %v1213 = vunpack.c.h.b16 %v268
    %v1214 = vunpack.c.l.b16 %v269
    %v1215 = vunpack.c.h.b16 %v269
    %v1216 = vunpack.c.l.b16 %v270
    %v1217 = vunpack.c.h.b16 %v270
    %v1218 = vunpack.c.l.b16 %v271
    %v1219 = vunpack.c.h.b16 %v271
    %v1220 = vunpack.c.l.b16 %v272
    %v1221 = vunpack.c.h.b16 %v272
    %v1222 = vunpack.c.l.b16 %v273
    %v1223 = vunpack.c.h.b16 %v273
    %v1224 = vunpack.c.l.b16 %v274
    %v1225 = vunpack.c.h.b16 %v274
    %v1226 = vunpack.c.l.b16 %v275
    %v1227 = vunpack.c.h.b16 %v275
    %v1228 = vunpack.c.l.b16 %v276
    %v1229 = vunpack.c.h.b16 %v276
    %v1230 = vunpack.c.l.b16 %v277
    %v1231 = vunpack.c.h.b16 %v277
    %v1232 = vunpack.c.l.b16 %v278
    %v1233 = vunpack.c.h.b16 %v278
    %v1234 = vunpack.c.l.b16 %v279
    %v1235 = vunpack.c.h.b16 %v279
    %v1236 = vunpack.c.l.b16 %v280
    %v1237 = vunpack.c.h.b16 %v280
    %v1238 = vunpack.c.l.b16 %v281
    %v1239 = vunpack.c.h.b16 %v281
    %v1240 = vunpack.c.l.b16 %v282
    %v1241 = vunpack.c.h.b16 %v282
    %v1242 = vunpack.c.l.b16 %v283
    %v1243 = vunpack.c.h.b16 %v283
    %v1244 = vunpack.c.l.b16 %v284
    %v1245 = vunpack.c.h.b16 %v284
    %v1246 = vunpack.c.l.b16 %v285
    %v1247 = vunpack.c.h.b16 %v285
    %v1248 = vunpack.c.l.b16 %v286
    %v1249 = vunpack.c.h.b16 %v286
    %v1250 = vunpack.c.l.b16 %v287
    %v1251 = vunpack.c.h.b16 %v287
    %v1252 = vunpack.c.l.b16 %v288
    %v1253 = vunpack.c.h.b16 %v288
    %v1254 = vunpack.c.l.b16 %v289
    %v1255 = vunpack.c.h.b16 %v289
    %v1256 = vunpack.c.l.b16 %v290
    %v1257 = vunpack.c.h.b16 %v290
    %v1258 = vunpack.c.l.b16 %v291
    %v1259 = vunpack.c.h.b16 %v291
    %v1260 = vunpack.c.l.b16 %v292
    %v1261 = vunpack.c.h.b16 %v292
    %v1262 = vunpack.c.l.b16 %v293
    %v1263 = vunpack.c.h.b16 %v293
    %v1264 = vunpack.c.l.b16 %v294
    %v1265 = vunpack.c.h.b16 %v294
    %v1266 = vunpack.c.l.b16 %v295
    %v1267 = vunpack.c.h.b16 %v295
    %v1268 = vunpack.c.l.b16 %v296
    %v1269 = vunpack.c.h.b16 %v296
    %v1270 = vunpack.c.l.b16 %v297
    %v1271 = vunpack.c.h.b16 %v297
    %v1272 = vunpack.c.l.b16 %v298
    %v1273 = vunpack.c.h.b16 %v298
    %v1274 = vunpack.c.l.b16 %v299
    %v1275 = vunpack.c.h.b16 %v299
    %v1276 = vunpack.c.l.b16 %v300
    %v1277 = vunpack.c.h.b16 %v300
    %v1278 = vunpack.c.l.b16 %v301
    %v1279 = vunpack.c.h.b16 %v301
    %v1280 = vunpack.c.l.b16 %v302
    %v1281 = vunpack.c.h.b16 %v302
    %v1282 = vunpack.c.l.b16 %v303
    %v1283 = vunpack.c.h.b16 %v303
    %v1284 = vunpack.c.l.b16 %v304
    %v1285 = vunpack.c.h.b16 %v304
    %v1286 = vunpack.c.l.b16 %v305
    %v1287 = vunpack.c.h.b16 %v305
    %v1288 = vunpack.c.l.b16 %v306
    %v1289 = vunpack.c.h.b16 %v306
    %v1290 = vunpack.c.l.b16 %v307
    %v1291 = vunpack.c.h.b16 %v307
    %v1292 = vunpack.c.l.b16 %v308
    %v1293 = vunpack.c.h.b16 %v308
    %v1294 = vunpack.c.l.b16 %v309
    %v1295 = vunpack.c.h.b16 %v309
    %v1296 = vunpack.c.l.b16 %v310
    %v1297 = vunpack.c.h.b16 %v310
    %v1298 = vunpack.c.l.b16 %v311
    %v1299 = vunpack.c.h.b16 %v311
    %v1300 = vunpack.c.l.b16 %v312
    %v1301 = vunpack.c.h.b16 %v312
    %v1302 = vunpack.c.l.b16 %v313
    %v1303 = vunpack.c.h.b16 %v313
    %v1304 = vunpack.c.l.b16 %v314
    %v1305 = vunpack.c.h.b16 %v314
    %v1306 = vunpack.c.l.b16 %v315
    %v1307 = vunpack.c.h.b16 %v315
    %v1308 = vunpack.c.l.b16 %v316
    %v1309 = vunpack.c.h.b16 %v316
    %v1310 = vunpack.c.l.b16 %v317
    %v1311 = vunpack.c.h.b16 %v317
    %v1312 = vunpack.c.l.b16 %v318
    %v1313 = vunpack.c.h.b16 %v318
    %v1314 = vunpack.c.l.b16 %v319
    %v1315 = vunpack.c.h.b16 %v319
    %v1316 = vunpack.c.l.b16 %v320
    %v1317 = vunpack.c.h.b16 %v320
    %v1318 = vunpack.c.l.b16 %v321
    %v1319 = vunpack.c.h.b16 %v321
    %v1320 = vunpack.c.l.b16 %v322
    %v1321 = vunpack.c.h.b16 %v322
    %v1322 = vunpack.c.l.b16 %v323
    %v1323 = vunpack.c.h.b16 %v323
    %v1324 = vunpack.c.l.b16 %v324
    %v1325 = vunpack.c.h.b16 %v324
    %v1326 = vunpack.c.l.b16 %v325
    %v1327 = vunpack.c.h.b16 %v325
    %v1328 = vunpack.c.l.b16 %v326
    %v1329 = vunpack.c.h.b16 %v326
    %v1330 = vunpack.c.l.b16 %v327
    %v1331 = vunpack.c.h.b16 %v327
    %v1332 = vunpack.c.l.b16 %v328
    %v1333 = vunpack.c.h.b16 %v328
    %v1334 = vunpack.c.l.b16 %v329
    %v1335 = vunpack.c.h.b16 %v329
    %v1336 = vunpack.c.l.b16 %v330
    %v1337 = vunpack.c.h.b16 %v330
    %v1338 = vunpack.c.l.b16 %v331
    %v1339 = vunpack.c.h.b16 %v331
    %v1340 = vunpack.c.l.b16 %v332
    %v1341 = vunpack.c.h.b16 %v332
    %v1342 = vunpack.c.l.b16 %v333
    %v1343 = vunpack.c.h.b16 %v333
    %v1344 = vunpack.c.l.b16 %v334
    %v1345 = vunpack.c.h.b16 %v334
    %v1346 = vunpack.c.l.b16 %v335
    %v1347 = vunpack.c.h.b16 %v335
    %v1348 = vunpack.c.l.b16 %v336
    %v1349 = vunpack.c.h.b16 %v336
    %v1350 = vunpack.c.l.b16 %v337
    %v1351 = vunpack.c.h.b16 %v337
    %v1352 = vunpack.c.l.b16 %v338
    %v1353 = vunpack.c.h.b16 %v338
    %v1354 = vunpack.c.l.b16 %v339
    %v1355 = vunpack.c.h.b16 %v339
    %v1356 = vunpack.c.l.b16 %v340
    %v1357 = vunpack.c.h.b16 %v340
    %v1358 = vunpack.c.l.b16 %v341
    %v1359 = vunpack.c.h.b16 %v341
    %v1360 = vunpack.c.l.b16 %v342
    %v1361 = vunpack.c.h.b16 %v342
    %v1362 = vunpack.c.l.b16 %v343
    %v1363 = vunpack.c.h.b16 %v343
    %v1364 = vunpack.c.l.b16 %v344
    %v1365 = vunpack.c.h.b16 %v344
    %v1366 = vunpack.c.l.b16 %v345
    %v1367 = vunpack.c.h.b16 %v345
    %v1368 = vunpack.c.l.b16 %v346
    %v1369 = vunpack.c.h.b16 %v346
    %v1370 = vunpack.c.l.b16 %v347
    %v1371 = vunpack.c.h.b16 %v347
    %v1372 = vunpack.c.l.b16 %v348
    %v1373 = vunpack.c.h.b16 %v348
    %v1374 = vpack.c.b16 %v728, %v726
    %v1375 = vpack.c.b16 %v729, %v727
    %v1376 = vpack.c.b16 %v732, %v730
    %v1377 = vpack.c.b16 %v733, %v731
    %v1378 = vpack.c.b16 %v736, %v734
    %v1379 = vpack.c.b16 %v737, %v735
    %v1380 = vpack.c.b16 %v740, %v738
    %v1381 = vpack.c.b16 %v741, %v739
    %v1382 = vpack.c.b16 %v744, %v742
    %v1383 = vpack.c.b16 %v745, %v743
    %v1384 = vpack.c.b16 %v748, %v746
    %v1385 = vpack.c.b16 %v749, %v747
    %v1386 = vpack.c.b16 %v752, %v750
    %v1387 = vpack.c.b16 %v753, %v751
    %v1388 = vpack.c.b16 %v756, %v754
    %v1389 = vpack.c.b16 %v757, %v755
    %v1390 = vpack.c.b16 %v760, %v758
    %v1391 = vpack.c.b16 %v761, %v759
    %v1392 = vpack.c.b16 %v764, %v762
    %v1393 = vpack.c.b16 %v765, %v763
    %v1394 = vpack.c.b16 %v768, %v766
    %v1395 = vpack.c.b16 %v769, %v767
    %v1396 = vpack.c.b16 %v772, %v770
    %v1397 = vpack.c.b16 %v773, %v771
    %v1398 = vpack.c.b16 %v776, %v774
    %v1399 = vpack.c.b16 %v777, %v775
    %v1400 = vpack.c.b16 %v780, %v778
    %v1401 = vpack.c.b16 %v781, %v779
    %v1402 = vpack.c.b16 %v784, %v782
    %v1403 = vpack.c.b16 %v785, %v783
    %v1404 = vpack.c.b16 %v788, %v786
    %v1405 = vpack.c.b16 %v789, %v787
    %v1406 = vpack.c.b16 %v792, %v790
    %v1407 = vpack.c.b16 %v793, %v791
    %v1408 = vpack.c.b16 %v796, %v794
    %v1409 = vpack.c.b16 %v797, %v795
    %v1410 = vpack.c.b16 %v800, %v798
    %v1411 = vpack.c.b16 %v801, %v799
    %v1412 = vpack.c.b16 %v804, %v802
    %v1413 = vpack.c.b16 %v805, %v803
    %v1414 = vpack.c.b16 %v808, %v806
    %v1415 = vpack.c.b16 %v809, %v807
    %v1416 = vpack.c.b16 %v812, %v810
    %v1417 = vpack.c.b16 %v813, %v811
    %v1418 = vpack.c.b16 %v816, %v814
    %v1419 = vpack.c.b16 %v817, %v815
    %v1420 = vpack.c.b16 %v820, %v818
    %v1421 = vpack.c.b16 %v821, %v819
    %v1422 = vpack.c.b16 %v824, %v822
    %v1423 = vpack.c.b16 %v825, %v823
    %v1424 = vpack.c.b16 %v828, %v826
    %v1425 = vpack.c.b16 %v829, %v827
    %v1426 = vpack.c.b16 %v832, %v830
    %v1427 = vpack.c.b16 %v833, %v831
    %v1428 = vpack.c.b16 %v836, %v834
    %v1429 = vpack.c.b16 %v837, %v835
    %v1430 = vpack.c.b16 %v840, %v838
    %v1431 = vpack.c.b16 %v841, %v839
    %v1432 = vpack.c.b16 %v844, %v842
    %v1433 = vpack.c.b16 %v845, %v843
    %v1434 = vpack.c.b16 %v848, %v846
    %v1435 = vpack.c.b16 %v849, %v847
    %v1436 = vpack.c.b16 %v852, %v850
    %v1437 = vpack.c.b16 %v853, %v851
    %v1438 = vpack.c.b16 %v856, %v854
    %v1439 = vpack.c.b16 %v857, %v855
    %v1440 = vpack.c.b16 %v860, %v858
    %v1441 = vpack.c.b16 %v861, %v859
    %v1442 = vpack.c.b16 %v864, %v862
    %v1443 = vpack.c.b16 %v865, %v863
    %v1444 = vpack.c.b16 %v868, %v866
    %v1445 = vpack.c.b16 %v869, %v867
    %v1446 = vpack.c.b16 %v872, %v870
    %v1447 = vpack.c.b16 %v873, %v871
    %v1448 = vpack.c.b16 %v876, %v874
    %v1449 = vpack.c.b16 %v877, %v875
    %v1450 = vpack.c.b16 %v880, %v878
    %v1451 = vpack.c.b16 %v881, %v879
    %v1452 = vpack.c.b16 %v884, %v882
    %v1453 = vpack.c.b16 %v885, %v883
    %v1454 = vpack.c.b16 %v888, %v886
    %v1455 = vpack.c.b16 %v889, %v887
    %v1456 = vpack.c.b16 %v892, %v890
    %v1457 = vpack.c.b16 %v893, %v891
    %v1458 = vpack.c.b16 %v896, %v894
    %v1459 = vpack.c.b16 %v897, %v895
    %v1460 = vpack.c.b16 %v900, %v898
    %v1461 = vpack.c.b16 %v901, %v899
    %v1462 = vpack.c.b16 %v904, %v902
    %v1463 = vpack.c.b16 %v905, %v903
    %v1464 = vpack.c.b16 %v908, %v906
    %v1465 = vpack.c.b16 %v909, %v907
    %v1466 = vpack.c.b16 %v912, %v910
    %v1467 = vpack.c.b16 %v913, %v911
    %v1468 = vpack.c.b16 %v916, %v914
    %v1469 = vpack.c.b16 %v917, %v915
    %v1470 = vpack.c.b16 %v920, %v918
    %v1471 = vpack.c.b16 %v921, %v919
    %v1472 = vpack.c.b16 %v924, %v922
    %v1473 = vpack.c.b16 %v925, %v923
    %v1474 = vpack.c.b16 %v928, %v926
    %v1475 = vpack.c.b16 %v929, %v927
    %v1476 = vpack.c.b16 %v932, %v930
    %v1477 = vpack.c.b16 %v933, %v931
    %v1478 = vpack.c.b16 %v936, %v934
    %v1479 = vpack.c.b16 %v937, %v935
    %v1480 = vpack.c.b16 %v940, %v938
    %v1481 = vpack.c.b16 %v941, %v939
    %v1482 = vpack.c.b16 %v944, %v942
    %v1483 = vpack.c.b16 %v945, %v943
    %v1484 = vpack.c.b16 %v948, %v946
    %v1485 = vpack.c.b16 %v949, %v947
    %v1486 = vpack.c.b16 %v952, %v950
    %v1487 = vpack.c.b16 %v953, %v951
    %v1488 = vpack.c.b16 %v956, %v954
    %v1489 = vpack.c.b16 %v957, %v955
    %v1490 = vpack.c.b16 %v960, %v958
    %v1491 = vpack.c.b16 %v961, %v959
    %v1492 = vpack.c.b16 %v964, %v962
    %v1493 = vpack.c.b16 %v965, %v963
    %v1494 = vpack.c.b16 %v968, %v966
    %v1495 = vpack.c.b16 %v969, %v967
    %v1496 = vpack.c.b16 %v972, %v970
    %v1497 = vpack.c.b16 %v973, %v971
    %v1498 = vpack.c.b16 %v976, %v974
    %v1499 = vpack.c.b16 %v977, %v975
    %v1500 = vpack.c.b16 %v980, %v978
    %v1501 = vpack.c.b16 %v981, %v979
    %v1502 = vpack.c.b16 %v984, %v982
    %v1503 = vpack.c.b16 %v985, %v983
    %v1504 = vpack.c.b16 %v988, %v986
    %v1505 = vpack.c.b16 %v989, %v987
    %v1506 = vpack.c.b16 %v992, %v990
    %v1507 = vpack.c.b16 %v993, %v991
    %v1508 = vpack.c.b16 %v996, %v994
    %v1509 = vpack.c.b16 %v997, %v995
    %v1510 = vpack.c.b16 %v1000, %v998
    %v1511 = vpack.c.b16 %v1001, %v999
    %v1512 = vpack.c.b16 %v1004, %v1002
    %v1513 = vpack.c.b16 %v1005, %v1003
    %v1514 = vpack.c.b16 %v1008, %v1006
    %v1515 = vpack.c.b16 %v1009, %v1007
    %v1516 = vpack.c.b16 %v1012, %v1010
    %v1517 = vpack.c.b16 %v1013, %v1011
    %v1518 = vpack.c.b16 %v1016, %v1014
    %v1519 = vpack.c.b16 %v1017, %v1015
    %v1520 = vpack.c.b16 %v1020, %v1018
    %v1521 = vpack.c.b16 %v1021, %v1019
    %v1522 = vpack.c.b16 %v1024, %v1022
    %v1523 = vpack.c.b16 %v1025, %v1023
    %v1524 = vpack.c.b16 %v1028, %v1026
    %v1525 = vpack.c.b16 %v1029, %v1027
    %v1526 = vpack.c.b16 %v1032, %v1030
    %v1527 = vpack.c.b16 %v1033, %v1031
    %v1528 = vpack.c.b16 %v1036, %v1034
    %v1529 = vpack.c.b16 %v1037, %v1035
    %v1530 = vpack.c.b16 %v1040, %v1038
    %v1531 = vpack.c.b16 %v1041, %v1039
    %v1532 = vpack.c.b16 %v1044, %v1042
    %v1533 = vpack.c.b16 %v1045, %v1043
    %v1534 = vpack.c.b16 %v1048, %v1046
    %v1535 = vpack.c.b16 %v1049, %v1047
    %v1536 = vpack.c.b16 %v1052, %v1050
    %v1537 = vpack.c.b16 %v1053, %v1051
    %v1538 = vpack.c.b16 %v1056, %v1054
    %v1539 = vpack.c.b16 %v1057, %v1055
    %v1540 = vpack.c.b16 %v1060, %v1058
    %v1541 = vpack.c.b16 %v1061, %v1059
    %v1542 = vpack.c.b16 %v1064, %v1062
    %v1543 = vpack.c.b16 %v1065, %v1063
    %v1544 = vpack.c.b16 %v1068, %v1066
    %v1545 = vpack.c.b16 %v1069, %v1067
    %v1546 = vpack.c.b16 %v1072, %v1070
    %v1547 = vpack.c.b16 %v1073, %v1071
    %v1548 = vpack.c.b16 %v1076, %v1074
    %v1549 = vpack.c.b16 %v1077, %v1075
    %v1550 = vpack.c.b16 %v1080, %v1078
    %v1551 = vpack.c.b16 %v1081, %v1079
    %v1552 = vpack.c.b16 %v1084, %v1082
    %v1553 = vpack.c.b16 %v1085, %v1083
    %v1554 = vpack.c.b16 %v1088, %v1086
    %v1555 = vpack.c.b16 %v1089, %v1087
    %v1556 = vpack.c.b16 %v1092, %v1090
    %v1557 = vpack.c.b16 %v1093, %v1091
    %v1558 = vpack.c.b16 %v1096, %v1094
    %v1559 = vpack.c.b16 %v1097, %v1095
    %v1560 = vpack.c.b16 %v1100, %v1098
    %v1561 = vpack.c.b16 %v1101, %v1099
    %v1562 = vpack.c.b16 %v1104, %v1102
    %v1563 = vpack.c.b16 %v1105, %v1103
    %v1564 = vpack.c.b16 %v1108, %v1106
    %v1565 = vpack.c.b16 %v1109, %v1107
    %v1566 = vpack.c.b16 %v1112, %v1110
    %v1567 = vpack.c.b16 %v1113, %v1111
    %v1568 = vpack.c.b16 %v1116, %v1114
    %v1569 = vpack.c.b16 %v1117, %v1115
    %v1570 = vpack.c.b16 %v1120, %v1118
    %v1571 = vpack.c.b16 %v1121, %v1119
    %v1572 = vpack.c.b16 %v1124, %v1122
    %v1573 = vpack.c.b16 %v1125, %v1123
    %v1574 = vpack.c.b16 %v1128, %v1126
    %v1575 = vpack.c.b16 %v1129, %v1127
    %v1576 = vpack.c.b16 %v1132, %v1130
    %v1577 = vpack.c.b16 %v1133, %v1131
    %v1578 = vpack.c.b16 %v1136, %v1134
    %v1579 = vpack.c.b16 %v1137, %v1135
    %v1580 = vpack.c.b16 %v1140, %v1138
    %v1581 = vpack.c.b16 %v1141, %v1139
    %v1582 = vpack.c.b16 %v1144, %v1142
    %v1583 = vpack.c.b16 %v1145, %v1143
    %v1584 = vpack.c.b16 %v1148, %v1146
    %v1585 = vpack.c.b16 %v1149, %v1147
    %v1586 = vpack.c.b16 %v1152, %v1150
    %v1587 = vpack.c.b16 %v1153, %v1151
    %v1588 = vpack.c.b16 %v1156, %v1154
    %v1589 = vpack.c.b16 %v1157, %v1155
    %v1590 = vpack.c.b16 %v1160, %v1158
    %v1591 = vpack.c.b16 %v1161, %v1159
    %v1592 = vpack.c.b16 %v1164, %v1162
    %v1593 = vpack.c.b16 %v1165, %v1163
    %v1594 = vpack.c.b16 %v1168, %v1166
    %v1595 = vpack.c.b16 %v1169, %v1167
    %v1596 = vpack.c.b16 %v1172, %v1170
    %v1597 = vpack.c.b16 %v1173, %v1171
    %v1598 = vpack.c.b16 %v1176, %v1174
    %v1599 = vpack.c.b16 %v1177, %v1175
    %v1600 = vpack.c.b16 %v1180, %v1178
    %v1601 = vpack.c.b16 %v1181, %v1179
    %v1602 = vpack.c.b16 %v1184, %v1182
    %v1603 = vpack.c.b16 %v1185, %v1183
    %v1604 = vpack.c.b16 %v1188, %v1186
    %v1605 = vpack.c.b16 %v1189, %v1187
    %v1606 = vpack.c.b16 %v1192, %v1190
    %v1607 = vpack.c.b16 %v1193, %v1191
    %v1608 = vpack.c.b16 %v1196, %v1194
    %v1609 = vpack.c.b16 %v1197, %v1195
    %v1610 = vpack.c.b16 %v1200, %v1198
    %v1611 = vpack.c.b16 %v1201, %v1199
    %v1612 = vpack.c.b16 %v1204, %v1202
    %v1613 = vpack.c.b16 %v1205, %v1203
    %v1614 = vpack.c.b16 %v1208, %v1206
    %v1615 = vpack.c.b16 %v1209, %v1207
    %v1616 = vpack.c.b16 %v1212, %v1210
    %v1617 = vpack.c.b16 %v1213, %v1211
    %v1618 = vpack.c.b16 %v1216, %v1214
    %v1619 = vpack.c.b16 %v1217, %v1215
    %v1620 = vpack.c.b16 %v1220, %v1218
    %v1621 = vpack.c.b16 %v1221, %v1219
    %v1622 = vpack.c.b16 %v1224, %v1222
    %v1623 = vpack.c.b16 %v1225, %v1223
    %v1624 = vpack.c.b16 %v1228, %v1226
    %v1625 = vpack.c.b16 %v1229, %v1227
    %v1626 = vpack.c.b16 %v1232, %v1230
    %v1627 = vpack.c.b16 %v1233, %v1231
    %v1628 = vpack.c.b16 %v1236, %v1234
    %v1629 = vpack.c.b16 %v1237, %v1235
    %v1630 = vpack.c.b16 %v1240, %v1238
    %v1631 = vpack.c.b16 %v1241, %v1239
    %v1632 = vpack.c.b16 %v1244, %v1242
    %v1633 = vpack.c.b16 %v1245, %v1243
    %v1634 = vpack.c.b16 %v1248, %v1246
    %v1635 = vpack.c.b16 %v1249, %v1247
    %v1636 = vpack.c.b16 %v1252, %v1250
    %v1637 = vpack.c.b16 %v1253, %v1251
    %v1638 = vpack.c.b16 %v1256, %v1254
    %v1639 = vpack.c.b16 %v1257, %v1255
    %v1640 = vpack.c.b16 %v1260, %v1258
    %v1641 = vpack.c.b16 %v1261, %v1259
    %v1642 = vpack.c.b16 %v1264, %v1262
    %v1643 = vpack.c.b16 %v1265, %v1263
    %v1644 = vpack.c.b16 %v1268, %v1266
    %v1645 = vpack.c.b16 %v1269, %v1267
    %v1646 = vpack.c.b16 %v1272, %v1270
    %v1647 = vpack.c.b16 %v1273, %v1271
    %v1648 = vpack.c.b16 %v1276, %v1274
    %v1649 = vpack.c.b16 %v1277, %v1275
    %v1650 = vpack.c.b16 %v1280, %v1278
    %v1651 = vpack.c.b16 %v1281, %v1279
    %v1652 = vpack.c.b16 %v1284, %v1282
    %v1653 = vpack.c.b16 %v1285, %v1283
    %v1654 = vpack.c.b16 %v1288, %v1286
    %v1655 = vpack.c.b16 %v1289, %v1287
    %v1656 = vpack.c.b16 %v1292, %v1290
    %v1657 = vpack.c.b16 %v1293, %v1291
    %v1658 = vpack.c.b16 %v1296, %v1294
    %v1659 = vpack.c.b16 %v1297, %v1295
    %v1660 = vpack.c.b16 %v1300, %v1298
    %v1661 = vpack.c.b16 %v1301, %v1299
    %v1662 = vpack.c.b16 %v1304, %v1302
    %v1663 = vpack.c.b16 %v1305, %v1303
    %v1664 = vpack.c.b16 %v1308, %v1306
    %v1665 = vpack.c.b16 %v1309, %v1307
    %v1666 = vpack.c.b16 %v1312, %v1310
    %v1667 = vpack.c.b16 %v1313, %v1311
    %v1668 = vpack.c.b16 %v1316, %v1314
    %v1669 = vpack.c.b16 %v1317, %v1315
    %v1670 = vpack.c.b16 %v1320, %v1318
    %v1671 = vpack.c.b16 %v1321, %v1319
    %v1672 = vpack.c.b16 %v1324, %v1322
    %v1673 = vpack.c.b16 %v1325, %v1323
    %v1674 = vpack.c.b16 %v1328, %v1326
    %v1675 = vpack.c.b16 %v1329, %v1327
    %v1676 = vpack.c.b16 %v1332, %v1330
    %v1677 = vpack.c.b16 %v1333, %v1331
    %v1678 = vpack.c.b16 %v1336, %v1334
    %v1679 = vpack.c.b16 %v1337, %v1335
    %v1680 = vpack.c.b16 %v1340, %v1338
    %v1681 = vpack.c.b16 %v1341, %v1339
    %v1682 = vpack.c.b16 %v1344, %v1342
    %v1683 = vpack.c.b16 %v1345, %v1343
    %v1684 = vpack.c.b16 %v1348, %v1346
    %v1685 = vpack.c.b16 %v1349, %v1347
    %v1686 = vpack.c.b16 %v1352, %v1350
    %v1687 = vpack.c.b16 %v1353, %v1351
    %v1688 = vpack.c.b16 %v1356, %v1354
    %v1689 = vpack.c.b16 %v1357, %v1355
    %v1690 = vpack.c.b16 %v1360, %v1358
    %v1691 = vpack.c.b16 %v1361, %v1359
    %v1692 = vpack.c.b16 %v1364, %v1362
    %v1693 = vpack.c.b16 %v1365, %v1363
    %v1694 = vpack.c.b16 %v1368, %v1366
    %v1695 = vpack.c.b16 %v1369, %v1367
    %v1696 = vpack.c.b16 %v1372, %v1370
    %v1697 = vpack.c.b16 %v1373, %v1371
    %vm2022 = vcmask 261120
    %v2023 = vsel %vm2022, %v381, 0
    %2025 = vmatpush.bf16.msra.mxu0 %v1388
    %2026 = vmatpush.bf16.msra.mxu0 %v1386
    %2027 = vmatpush.bf16.msra.mxu0 %v1384
    %2028 = vmatpush.bf16.msra.mxu0 %v1382
    %2029 = vmatpush.bf16.msra.mxu0 %v1380
    %2030 = vmatpush.bf16.msra.mxu0 %v1378
    %2031 = vmatpush.bf16.msra.mxu0 %v1376
    %2032 = vmatpush.bf16.msra.mxu0 %v1374
    %2033 = vmatmul.bf16.gmra.mxu0 %v357
    %v2034 = vpop.f32.mrf.mxu0
    %v2035 = vadd.f32 %v351, %v2034
    %v2036 = vpop.f32.mrf.mxu0
    %2037 = vdwg.mxu0
    %2038 = vmatpush.bf16.msra.mxu0 %v1404
    %2039 = vmatpush.bf16.msra.mxu0 %v1402
    %2040 = vmatpush.bf16.msra.mxu0 %v1400
    %2041 = vmatpush.bf16.msra.mxu0 %v1398
    %2042 = vmatpush.bf16.msra.mxu0 %v1396
    %2043 = vmatpush.bf16.msra.mxu0 %v1394
    %2044 = vmatpush.bf16.msra.mxu0 %v1392
    %2045 = vmatpush.bf16.msra.mxu0 %v1390
    %2046 = vmatmul.bf16.gmra.mxu0 %v358
    %v2047 = vpop.f32.mrf.mxu0
    %v2048 = vadd.f32 %v2035, %v2047
    %v2049 = vpop.f32.mrf.mxu0
    %2050 = vdwg.mxu0
    %2051 = vmatpush.bf16.msra.mxu0 %v1420
    %2052 = vmatpush.bf16.msra.mxu0 %v1418
    %2053 = vmatpush.bf16.msra.mxu0 %v1416
    %2054 = vmatpush.bf16.msra.mxu0 %v1414
    %2055 = vmatpush.bf16.msra.mxu0 %v1412
    %2056 = vmatpush.bf16.msra.mxu0 %v1410
    %2057 = vmatpush.bf16.msra.mxu0 %v1408
    %2058 = vmatpush.bf16.msra.mxu0 %v1406
    %2059 = vmatmul.bf16.gmra.mxu0 %v359
    %v2060 = vpop.f32.mrf.mxu0
    %v2061 = vadd.f32 %v2048, %v2060
    %v2062 = vpop.f32.mrf.mxu0
    %2063 = vdwg.mxu0
    %2064 = vmatpush.bf16.msra.mxu0 %v1436
    %2065 = vmatpush.bf16.msra.mxu0 %v1434
    %2066 = vmatpush.bf16.msra.mxu0 %v1432
    %2067 = vmatpush.bf16.msra.mxu0 %v1430
    %2068 = vmatpush.bf16.msra.mxu0 %v1428
    %2069 = vmatpush.bf16.msra.mxu0 %v1426
    %2070 = vmatpush.bf16.msra.mxu0 %v1424
    %2071 = vmatpush.bf16.msra.mxu0 %v1422
    %2072 = vmatmul.bf16.gmra.mxu0 %v360
    %v2073 = vpop.f32.mrf.mxu0
    %v2074 = vadd.f32 %v2061, %v2073
    %v2075 = vpop.f32.mrf.mxu0
    %2076 = vdwg.mxu0
    %2077 = vmatpush.bf16.msra.mxu0 %v1452
    %2078 = vmatpush.bf16.msra.mxu0 %v1450
    %2079 = vmatpush.bf16.msra.mxu0 %v1448
    %2080 = vmatpush.bf16.msra.mxu0 %v1446
    %2081 = vmatpush.bf16.msra.mxu0 %v1444
    %2082 = vmatpush.bf16.msra.mxu0 %v1442
    %2083 = vmatpush.bf16.msra.mxu0 %v1440
    %2084 = vmatpush.bf16.msra.mxu0 %v1438
    %2085 = vmatmul.bf16.gmra.mxu0 %v361
    %v2086 = vpop.f32.mrf.mxu0
    %v2087 = vadd.f32 %v2074, %v2086
    %v2088 = vpop.f32.mrf.mxu0
    %2089 = vdwg.mxu0
    %2090 = vmatpush.bf16.msra.mxu0 %v1468
    %2091 = vmatpush.bf16.msra.mxu0 %v1466
    %2092 = vmatpush.bf16.msra.mxu0 %v1464
    %2093 = vmatpush.bf16.msra.mxu0 %v1462
    %2094 = vmatpush.bf16.msra.mxu0 %v1460
    %2095 = vmatpush.bf16.msra.mxu0 %v1458
    %2096 = vmatpush.bf16.msra.mxu0 %v1456
    %2097 = vmatpush.bf16.msra.mxu0 %v1454
    %2098 = vmatmul.bf16.gmra.mxu0 %v362
    %v2099 = vpop.f32.mrf.mxu0
    %v2100 = vadd.f32 %v2087, %v2099
    %v2101 = vpop.f32.mrf.mxu0
    %2102 = vdwg.mxu0
    %2103 = vmatpush.bf16.msra.mxu0 %v1484
    %2104 = vmatpush.bf16.msra.mxu0 %v1482
    %2105 = vmatpush.bf16.msra.mxu0 %v1480
    %2106 = vmatpush.bf16.msra.mxu0 %v1478
    %2107 = vmatpush.bf16.msra.mxu0 %v1476
    %2108 = vmatpush.bf16.msra.mxu0 %v1474
    %2109 = vmatpush.bf16.msra.mxu0 %v1472
    %2110 = vmatpush.bf16.msra.mxu0 %v1470
    %2111 = vmatmul.bf16.gmra.mxu0 %v363
    %v2112 = vpop.f32.mrf.mxu0
    %v2113 = vadd.f32 %v2100, %v2112
    %v2114 = vpop.f32.mrf.mxu0
    %2115 = vdwg.mxu0
    %2116 = vmatpush.bf16.msra.mxu0 %v1500
    %2117 = vmatpush.bf16.msra.mxu0 %v1498
    %2118 = vmatpush.bf16.msra.mxu0 %v1496
    %2119 = vmatpush.bf16.msra.mxu0 %v1494
    %2120 = vmatpush.bf16.msra.mxu0 %v1492
    %2121 = vmatpush.bf16.msra.mxu0 %v1490
    %2122 = vmatpush.bf16.msra.mxu0 %v1488
    %2123 = vmatpush.bf16.msra.mxu0 %v1486
    %2124 = vmatmul.bf16.gmra.mxu0 %v364
    %v2125 = vpop.f32.mrf.mxu0
    %v2126 = vadd.f32 %v2113, %v2125
    %v2127 = vpop.f32.mrf.mxu0
    %2128 = vdwg.mxu0
    %2129 = vmatpush.bf16.msra.mxu0 %v1516
    %2130 = vmatpush.bf16.msra.mxu0 %v1514
    %2131 = vmatpush.bf16.msra.mxu0 %v1512
    %2132 = vmatpush.bf16.msra.mxu0 %v1510
    %2133 = vmatpush.bf16.msra.mxu0 %v1508
    %2134 = vmatpush.bf16.msra.mxu0 %v1506
    %2135 = vmatpush.bf16.msra.mxu0 %v1504
    %2136 = vmatpush.bf16.msra.mxu0 %v1502
    %2137 = vmatmul.bf16.gmra.mxu0 %v367
    %v2138 = vpop.f32.mrf.mxu0
    %v2139 = vadd.f32 %v2126, %v2138
    %v2140 = vpop.f32.mrf.mxu0
    %2141 = vdwg.mxu0
    %2142 = vmatpush.bf16.msra.mxu0 %v1532
    %2143 = vmatpush.bf16.msra.mxu0 %v1530
    %2144 = vmatpush.bf16.msra.mxu0 %v1528
    %2145 = vmatpush.bf16.msra.mxu0 %v1526
    %2146 = vmatpush.bf16.msra.mxu0 %v1524
    %2147 = vmatpush.bf16.msra.mxu0 %v1522
    %2148 = vmatpush.bf16.msra.mxu0 %v1520
    %2149 = vmatpush.bf16.msra.mxu0 %v1518
    %2150 = vmatmul.bf16.gmra.mxu0 %v368
    %v2151 = vpop.f32.mrf.mxu0
    %v2152 = vadd.f32 %v2139, %v2151
    %v2153 = vpop.f32.mrf.mxu0
    %2154 = vdwg.mxu0
    %2155 = vmatpush.bf16.msra.mxu0 %v1548
    %2156 = vmatpush.bf16.msra.mxu0 %v1546
    %2157 = vmatpush.bf16.msra.mxu0 %v1544
    %2158 = vmatpush.bf16.msra.mxu0 %v1542
    %2159 = vmatpush.bf16.msra.mxu0 %v1540
    %2160 = vmatpush.bf16.msra.mxu0 %v1538
    %2161 = vmatpush.bf16.msra.mxu0 %v1536
    %2162 = vmatpush.bf16.msra.mxu0 %v1534
    %2163 = vmatmul.bf16.gmra.mxu0 %v369
    %v2164 = vpop.f32.mrf.mxu0
    %v2165 = vadd.f32 %v2152, %v2164
    %v2166 = vpop.f32.mrf.mxu0
    %2167 = vdwg.mxu0
    %2168 = vmatpush.bf16.msra.mxu0 %v1564
    %2169 = vmatpush.bf16.msra.mxu0 %v1562
    %2170 = vmatpush.bf16.msra.mxu0 %v1560
    %2171 = vmatpush.bf16.msra.mxu0 %v1558
    %2172 = vmatpush.bf16.msra.mxu0 %v1556
    %2173 = vmatpush.bf16.msra.mxu0 %v1554
    %2174 = vmatpush.bf16.msra.mxu0 %v1552
    %2175 = vmatpush.bf16.msra.mxu0 %v1550
    %2176 = vmatmul.bf16.gmra.mxu0 %v370
    %v2177 = vpop.f32.mrf.mxu0
    %v2178 = vadd.f32 %v2165, %v2177
    %v2179 = vpop.f32.mrf.mxu0
    %2180 = vdwg.mxu0
    %2181 = vmatpush.bf16.msra.mxu0 %v1580
    %2182 = vmatpush.bf16.msra.mxu0 %v1578
    %2183 = vmatpush.bf16.msra.mxu0 %v1576
    %2184 = vmatpush.bf16.msra.mxu0 %v1574
    %2185 = vmatpush.bf16.msra.mxu0 %v1572
    %2186 = vmatpush.bf16.msra.mxu0 %v1570
    %2187 = vmatpush.bf16.msra.mxu0 %v1568
    %2188 = vmatpush.bf16.msra.mxu0 %v1566
    %2189 = vmatmul.bf16.gmra.mxu0 %v371
    %v2190 = vpop.f32.mrf.mxu0
    %v2191 = vadd.f32 %v2178, %v2190
    %v2192 = vpop.f32.mrf.mxu0
    %2193 = vdwg.mxu0
    %2194 = vmatpush.bf16.msra.mxu0 %v1596
    %2195 = vmatpush.bf16.msra.mxu0 %v1594
    %2196 = vmatpush.bf16.msra.mxu0 %v1592
    %2197 = vmatpush.bf16.msra.mxu0 %v1590
    %2198 = vmatpush.bf16.msra.mxu0 %v1588
    %2199 = vmatpush.bf16.msra.mxu0 %v1586
    %2200 = vmatpush.bf16.msra.mxu0 %v1584
    %2201 = vmatpush.bf16.msra.mxu0 %v1582
    %2202 = vmatmul.bf16.gmra.mxu0 %v372
    %v2203 = vpop.f32.mrf.mxu0
    %v2204 = vadd.f32 %v2191, %v2203
    %v2205 = vpop.f32.mrf.mxu0
    %2206 = vdwg.mxu0
    %2207 = vmatpush.bf16.msra.mxu0 %v1612
    %2208 = vmatpush.bf16.msra.mxu0 %v1610
    %2209 = vmatpush.bf16.msra.mxu0 %v1608
    %2210 = vmatpush.bf16.msra.mxu0 %v1606
    %2211 = vmatpush.bf16.msra.mxu0 %v1604
    %2212 = vmatpush.bf16.msra.mxu0 %v1602
    %2213 = vmatpush.bf16.msra.mxu0 %v1600
    %2214 = vmatpush.bf16.msra.mxu0 %v1598
    %2215 = vmatmul.bf16.gmra.mxu0 %v373
    %v2216 = vpop.f32.mrf.mxu0
    %v2217 = vadd.f32 %v2204, %v2216
    %v2218 = vpop.f32.mrf.mxu0
    %2219 = vdwg.mxu0
    %2220 = vmatpush.bf16.msra.mxu0 %v1628
    %2221 = vmatpush.bf16.msra.mxu0 %v1626
    %2222 = vmatpush.bf16.msra.mxu0 %v1624
    %2223 = vmatpush.bf16.msra.mxu0 %v1622
    %2224 = vmatpush.bf16.msra.mxu0 %v1620
    %2225 = vmatpush.bf16.msra.mxu0 %v1618
    %2226 = vmatpush.bf16.msra.mxu0 %v1616
    %2227 = vmatpush.bf16.msra.mxu0 %v1614
    %2228 = vmatmul.bf16.gmra.mxu0 %v374
    %v2229 = vpop.f32.mrf.mxu0
    %v2230 = vadd.f32 %v2217, %v2229
    %v2231 = vpop.f32.mrf.mxu0
    %2232 = vdwg.mxu0
    %2233 = vmatpush.bf16.msra.mxu0 %v1644
    %2234 = vmatpush.bf16.msra.mxu0 %v1642
    %2235 = vmatpush.bf16.msra.mxu0 %v1640
    %2236 = vmatpush.bf16.msra.mxu0 %v1638
    %2237 = vmatpush.bf16.msra.mxu0 %v1636
    %2238 = vmatpush.bf16.msra.mxu0 %v1634
    %2239 = vmatpush.bf16.msra.mxu0 %v1632
    %2240 = vmatpush.bf16.msra.mxu0 %v1630
    %2241 = vmatmul.bf16.gmra.mxu0 %v377
    %v2242 = vpop.f32.mrf.mxu0
    %v2243 = vadd.f32 %v2230, %v2242
    %v2244 = vpop.f32.mrf.mxu0
    %2245 = vdwg.mxu0
    %2246 = vmatpush.bf16.msra.mxu0 %v1660
    %2247 = vmatpush.bf16.msra.mxu0 %v1658
    %2248 = vmatpush.bf16.msra.mxu0 %v1656
    %2249 = vmatpush.bf16.msra.mxu0 %v1654
    %2250 = vmatpush.bf16.msra.mxu0 %v1652
    %2251 = vmatpush.bf16.msra.mxu0 %v1650
    %2252 = vmatpush.bf16.msra.mxu0 %v1648
    %2253 = vmatpush.bf16.msra.mxu0 %v1646
    %2254 = vmatmul.bf16.gmra.mxu0 %v378
    %v2255 = vpop.f32.mrf.mxu0
    %v2256 = vadd.f32 %v2243, %v2255
    %v2257 = vpop.f32.mrf.mxu0
    %2258 = vdwg.mxu0
    %2259 = vmatpush.bf16.msra.mxu0 %v1676
    %2260 = vmatpush.bf16.msra.mxu0 %v1674
    %2261 = vmatpush.bf16.msra.mxu0 %v1672
    %2262 = vmatpush.bf16.msra.mxu0 %v1670
    %2263 = vmatpush.bf16.msra.mxu0 %v1668
    %2264 = vmatpush.bf16.msra.mxu0 %v1666
    %2265 = vmatpush.bf16.msra.mxu0 %v1664
    %2266 = vmatpush.bf16.msra.mxu0 %v1662
    %2267 = vmatmul.bf16.gmra.mxu0 %v379
    %v2268 = vpop.f32.mrf.mxu0
    %v2269 = vadd.f32 %v2256, %v2268
    %v2270 = vpop.f32.mrf.mxu0
    %2271 = vdwg.mxu0
    %2272 = vmatpush.bf16.msra.mxu0 %v1692
    %2273 = vmatpush.bf16.msra.mxu0 %v1690
    %2274 = vmatpush.bf16.msra.mxu0 %v1688
    %2275 = vmatpush.bf16.msra.mxu0 %v1686
    %2276 = vmatpush.bf16.msra.mxu0 %v1684
    %2277 = vmatpush.bf16.msra.mxu0 %v1682
    %2278 = vmatpush.bf16.msra.mxu0 %v1680
    %2279 = vmatpush.bf16.msra.mxu0 %v1678
    %2280 = vmatmul.bf16.gmra.mxu0 %v380
    %v2281 = vpop.f32.mrf.mxu0
    %v2282 = vadd.f32 %v2269, %v2281
    %v2283 = vpop.f32.mrf.mxu0
    %2284 = vdwg.mxu0
    %2285 = vmatpush.bf16.msra.mxu0 0
    %2286 = vmatpush.bf16.msra.mxu0 0
    %2287 = vmatpush.bf16.msra.mxu0 0
    %2288 = vmatpush.bf16.msra.mxu0 0
    %2289 = vmatpush.bf16.msra.mxu0 0
    %2290 = vmatpush.bf16.msra.mxu0 0
    %2291 = vmatpush.bf16.msra.mxu0 %v1696
    %2292 = vmatpush.bf16.msra.mxu0 %v1694
    %2293 = vmatmul.bf16.gmra.mxu0 %v2023
    %v2294 = vpop.f32.mrf.mxu0
    %v2295 = vadd.f32 %v2282, %v2294
    %v2296 = vpop.f32.mrf.mxu0
    %2297 = vdwg.mxu0
    %2298 = vmatpush.bf16.msra.mxu0 %v1389
    %2299 = vmatpush.bf16.msra.mxu0 %v1387
    %2300 = vmatpush.bf16.msra.mxu0 %v1385
    %2301 = vmatpush.bf16.msra.mxu0 %v1383
    %2302 = vmatpush.bf16.msra.mxu0 %v1381
    %2303 = vmatpush.bf16.msra.mxu0 %v1379
    %2304 = vmatpush.bf16.msra.mxu0 %v1377
    %2305 = vmatpush.bf16.msra.mxu0 %v1375
    %2306 = vmatmul.bf16.gmra.mxu0 %v357
    %v2307 = vpop.f32.mrf.mxu0
    %v2308 = vadd.f32 %v352, %v2307
    %v2309 = vpop.f32.mrf.mxu0
    %2310 = vdwg.mxu0
    %2311 = vmatpush.bf16.msra.mxu0 %v1405
    %2312 = vmatpush.bf16.msra.mxu0 %v1403
    %2313 = vmatpush.bf16.msra.mxu0 %v1401
    %2314 = vmatpush.bf16.msra.mxu0 %v1399
    %2315 = vmatpush.bf16.msra.mxu0 %v1397
    %2316 = vmatpush.bf16.msra.mxu0 %v1395
    %2317 = vmatpush.bf16.msra.mxu0 %v1393
    %2318 = vmatpush.bf16.msra.mxu0 %v1391
    %2319 = vmatmul.bf16.gmra.mxu0 %v358
    %v2320 = vpop.f32.mrf.mxu0
    %v2321 = vadd.f32 %v2308, %v2320
    %v2322 = vpop.f32.mrf.mxu0
    %2323 = vdwg.mxu0
    %2324 = vmatpush.bf16.msra.mxu0 %v1421
    %2325 = vmatpush.bf16.msra.mxu0 %v1419
    %2326 = vmatpush.bf16.msra.mxu0 %v1417
    %2327 = vmatpush.bf16.msra.mxu0 %v1415
    %2328 = vmatpush.bf16.msra.mxu0 %v1413
    %2329 = vmatpush.bf16.msra.mxu0 %v1411
    %2330 = vmatpush.bf16.msra.mxu0 %v1409
    %2331 = vmatpush.bf16.msra.mxu0 %v1407
    %2332 = vmatmul.bf16.gmra.mxu0 %v359
    %v2333 = vpop.f32.mrf.mxu0
    %v2334 = vadd.f32 %v2321, %v2333
    %v2335 = vpop.f32.mrf.mxu0
    %2336 = vdwg.mxu0
    %2337 = vmatpush.bf16.msra.mxu0 %v1437
    %2338 = vmatpush.bf16.msra.mxu0 %v1435
    %2339 = vmatpush.bf16.msra.mxu0 %v1433
    %2340 = vmatpush.bf16.msra.mxu0 %v1431
    %2341 = vmatpush.bf16.msra.mxu0 %v1429
    %2342 = vmatpush.bf16.msra.mxu0 %v1427
    %2343 = vmatpush.bf16.msra.mxu0 %v1425
    %2344 = vmatpush.bf16.msra.mxu0 %v1423
    %2345 = vmatmul.bf16.gmra.mxu0 %v360
    %v2346 = vpop.f32.mrf.mxu0
    %v2347 = vadd.f32 %v2334, %v2346
    %v2348 = vpop.f32.mrf.mxu0
    %2349 = vdwg.mxu0
    %2350 = vmatpush.bf16.msra.mxu0 %v1453
    %2351 = vmatpush.bf16.msra.mxu0 %v1451
    %2352 = vmatpush.bf16.msra.mxu0 %v1449
    %2353 = vmatpush.bf16.msra.mxu0 %v1447
    %2354 = vmatpush.bf16.msra.mxu0 %v1445
    %2355 = vmatpush.bf16.msra.mxu0 %v1443
    %2356 = vmatpush.bf16.msra.mxu0 %v1441
    %2357 = vmatpush.bf16.msra.mxu0 %v1439
    %2358 = vmatmul.bf16.gmra.mxu0 %v361
    %v2359 = vpop.f32.mrf.mxu0
    %v2360 = vadd.f32 %v2347, %v2359
    %v2361 = vpop.f32.mrf.mxu0
    %2362 = vdwg.mxu0
    %2363 = vmatpush.bf16.msra.mxu0 %v1469
    %2364 = vmatpush.bf16.msra.mxu0 %v1467
    %2365 = vmatpush.bf16.msra.mxu0 %v1465
    %2366 = vmatpush.bf16.msra.mxu0 %v1463
    %2367 = vmatpush.bf16.msra.mxu0 %v1461
    %2368 = vmatpush.bf16.msra.mxu0 %v1459
    %2369 = vmatpush.bf16.msra.mxu0 %v1457
    %2370 = vmatpush.bf16.msra.mxu0 %v1455
    %2371 = vmatmul.bf16.gmra.mxu0 %v362
    %v2372 = vpop.f32.mrf.mxu0
    %v2373 = vadd.f32 %v2360, %v2372
    %v2374 = vpop.f32.mrf.mxu0
    %2375 = vdwg.mxu0
    %2376 = vmatpush.bf16.msra.mxu0 %v1485
    %2377 = vmatpush.bf16.msra.mxu0 %v1483
    %2378 = vmatpush.bf16.msra.mxu0 %v1481
    %2379 = vmatpush.bf16.msra.mxu0 %v1479
    %2380 = vmatpush.bf16.msra.mxu0 %v1477
    %2381 = vmatpush.bf16.msra.mxu0 %v1475
    %2382 = vmatpush.bf16.msra.mxu0 %v1473
    %2383 = vmatpush.bf16.msra.mxu0 %v1471
    %2384 = vmatmul.bf16.gmra.mxu0 %v363
    %v2385 = vpop.f32.mrf.mxu0
    %v2386 = vadd.f32 %v2373, %v2385
    %v2387 = vpop.f32.mrf.mxu0
    %2388 = vdwg.mxu0
    %2389 = vmatpush.bf16.msra.mxu0 %v1501
    %2390 = vmatpush.bf16.msra.mxu0 %v1499
    %2391 = vmatpush.bf16.msra.mxu0 %v1497
    %2392 = vmatpush.bf16.msra.mxu0 %v1495
    %2393 = vmatpush.bf16.msra.mxu0 %v1493
    %2394 = vmatpush.bf16.msra.mxu0 %v1491
    %2395 = vmatpush.bf16.msra.mxu0 %v1489
    %2396 = vmatpush.bf16.msra.mxu0 %v1487
    %2397 = vmatmul.bf16.gmra.mxu0 %v364
    %v2398 = vpop.f32.mrf.mxu0
    %v2399 = vadd.f32 %v2386, %v2398
    %v2400 = vpop.f32.mrf.mxu0
    %2401 = vdwg.mxu0
    %2402 = vmatpush.bf16.msra.mxu0 %v1517
    %2403 = vmatpush.bf16.msra.mxu0 %v1515
    %2404 = vmatpush.bf16.msra.mxu0 %v1513
    %2405 = vmatpush.bf16.msra.mxu0 %v1511
    %2406 = vmatpush.bf16.msra.mxu0 %v1509
    %2407 = vmatpush.bf16.msra.mxu0 %v1507
    %2408 = vmatpush.bf16.msra.mxu0 %v1505
    %2409 = vmatpush.bf16.msra.mxu0 %v1503
    %2410 = vmatmul.bf16.gmra.mxu0 %v367
    %v2411 = vpop.f32.mrf.mxu0
    %v2412 = vadd.f32 %v2399, %v2411
    %v2413 = vpop.f32.mrf.mxu0
    %2414 = vdwg.mxu0
    %2415 = vmatpush.bf16.msra.mxu0 %v1533
    %2416 = vmatpush.bf16.msra.mxu0 %v1531
    %2417 = vmatpush.bf16.msra.mxu0 %v1529
    %2418 = vmatpush.bf16.msra.mxu0 %v1527
    %2419 = vmatpush.bf16.msra.mxu0 %v1525
    %2420 = vmatpush.bf16.msra.mxu0 %v1523
    %2421 = vmatpush.bf16.msra.mxu0 %v1521
    %2422 = vmatpush.bf16.msra.mxu0 %v1519
    %2423 = vmatmul.bf16.gmra.mxu0 %v368
    %v2424 = vpop.f32.mrf.mxu0
    %v2425 = vadd.f32 %v2412, %v2424
    %v2426 = vpop.f32.mrf.mxu0
    %2427 = vdwg.mxu0
    %2428 = vmatpush.bf16.msra.mxu0 %v1549
    %2429 = vmatpush.bf16.msra.mxu0 %v1547
    %2430 = vmatpush.bf16.msra.mxu0 %v1545
    %2431 = vmatpush.bf16.msra.mxu0 %v1543
    %2432 = vmatpush.bf16.msra.mxu0 %v1541
    %2433 = vmatpush.bf16.msra.mxu0 %v1539
    %2434 = vmatpush.bf16.msra.mxu0 %v1537
    %2435 = vmatpush.bf16.msra.mxu0 %v1535
    %2436 = vmatmul.bf16.gmra.mxu0 %v369
    %v2437 = vpop.f32.mrf.mxu0
    %v2438 = vadd.f32 %v2425, %v2437
    %v2439 = vpop.f32.mrf.mxu0
    %2440 = vdwg.mxu0
    %2441 = vmatpush.bf16.msra.mxu0 %v1565
    %2442 = vmatpush.bf16.msra.mxu0 %v1563
    %2443 = vmatpush.bf16.msra.mxu0 %v1561
    %2444 = vmatpush.bf16.msra.mxu0 %v1559
    %2445 = vmatpush.bf16.msra.mxu0 %v1557
    %2446 = vmatpush.bf16.msra.mxu0 %v1555
    %2447 = vmatpush.bf16.msra.mxu0 %v1553
    %2448 = vmatpush.bf16.msra.mxu0 %v1551
    %2449 = vmatmul.bf16.gmra.mxu0 %v370
    %v2450 = vpop.f32.mrf.mxu0
    %v2451 = vadd.f32 %v2438, %v2450
    %v2452 = vpop.f32.mrf.mxu0
    %2453 = vdwg.mxu0
    %2454 = vmatpush.bf16.msra.mxu0 %v1581
    %2455 = vmatpush.bf16.msra.mxu0 %v1579
    %2456 = vmatpush.bf16.msra.mxu0 %v1577
    %2457 = vmatpush.bf16.msra.mxu0 %v1575
    %2458 = vmatpush.bf16.msra.mxu0 %v1573
    %2459 = vmatpush.bf16.msra.mxu0 %v1571
    %2460 = vmatpush.bf16.msra.mxu0 %v1569
    %2461 = vmatpush.bf16.msra.mxu0 %v1567
    %2462 = vmatmul.bf16.gmra.mxu0 %v371
    %v2463 = vpop.f32.mrf.mxu0
    %v2464 = vadd.f32 %v2451, %v2463
    %v2465 = vpop.f32.mrf.mxu0
    %2466 = vdwg.mxu0
    %2467 = vmatpush.bf16.msra.mxu0 %v1597
    %2468 = vmatpush.bf16.msra.mxu0 %v1595
    %2469 = vmatpush.bf16.msra.mxu0 %v1593
    %2470 = vmatpush.bf16.msra.mxu0 %v1591
    %2471 = vmatpush.bf16.msra.mxu0 %v1589
    %2472 = vmatpush.bf16.msra.mxu0 %v1587
    %2473 = vmatpush.bf16.msra.mxu0 %v1585
    %2474 = vmatpush.bf16.msra.mxu0 %v1583
    %2475 = vmatmul.bf16.gmra.mxu0 %v372
    %v2476 = vpop.f32.mrf.mxu0
    %v2477 = vadd.f32 %v2464, %v2476
    %v2478 = vpop.f32.mrf.mxu0
    %2479 = vdwg.mxu0
    %2480 = vmatpush.bf16.msra.mxu0 %v1613
    %2481 = vmatpush.bf16.msra.mxu0 %v1611
    %2482 = vmatpush.bf16.msra.mxu0 %v1609
    %2483 = vmatpush.bf16.msra.mxu0 %v1607
    %2484 = vmatpush.bf16.msra.mxu0 %v1605
    %2485 = vmatpush.bf16.msra.mxu0 %v1603
    %2486 = vmatpush.bf16.msra.mxu0 %v1601
    %2487 = vmatpush.bf16.msra.mxu0 %v1599
    %2488 = vmatmul.bf16.gmra.mxu0 %v373
    %v2489 = vpop.f32.mrf.mxu0
    %v2490 = vadd.f32 %v2477, %v2489
    %v2491 = vpop.f32.mrf.mxu0
    %2492 = vdwg.mxu0
    %2493 = vmatpush.bf16.msra.mxu0 %v1629
    %2494 = vmatpush.bf16.msra.mxu0 %v1627
    %2495 = vmatpush.bf16.msra.mxu0 %v1625
    %2496 = vmatpush.bf16.msra.mxu0 %v1623
    %2497 = vmatpush.bf16.msra.mxu0 %v1621
    %2498 = vmatpush.bf16.msra.mxu0 %v1619
    %2499 = vmatpush.bf16.msra.mxu0 %v1617
    %2500 = vmatpush.bf16.msra.mxu0 %v1615
    %2501 = vmatmul.bf16.gmra.mxu0 %v374
    %v2502 = vpop.f32.mrf.mxu0
    %v2503 = vadd.f32 %v2490, %v2502
    %v2504 = vpop.f32.mrf.mxu0
    %2505 = vdwg.mxu0
    %2506 = vmatpush.bf16.msra.mxu0 %v1645
    %2507 = vmatpush.bf16.msra.mxu0 %v1643
    %2508 = vmatpush.bf16.msra.mxu0 %v1641
    %2509 = vmatpush.bf16.msra.mxu0 %v1639
    %2510 = vmatpush.bf16.msra.mxu0 %v1637
    %2511 = vmatpush.bf16.msra.mxu0 %v1635
    %2512 = vmatpush.bf16.msra.mxu0 %v1633
    %2513 = vmatpush.bf16.msra.mxu0 %v1631
    %2514 = vmatmul.bf16.gmra.mxu0 %v377
    %v2515 = vpop.f32.mrf.mxu0
    %v2516 = vadd.f32 %v2503, %v2515
    %v2517 = vpop.f32.mrf.mxu0
    %2518 = vdwg.mxu0
    %2519 = vmatpush.bf16.msra.mxu0 %v1661
    %2520 = vmatpush.bf16.msra.mxu0 %v1659
    %2521 = vmatpush.bf16.msra.mxu0 %v1657
    %2522 = vmatpush.bf16.msra.mxu0 %v1655
    %2523 = vmatpush.bf16.msra.mxu0 %v1653
    %2524 = vmatpush.bf16.msra.mxu0 %v1651
    %2525 = vmatpush.bf16.msra.mxu0 %v1649
    %2526 = vmatpush.bf16.msra.mxu0 %v1647
    %2527 = vmatmul.bf16.gmra.mxu0 %v378
    %v2528 = vpop.f32.mrf.mxu0
    %v2529 = vadd.f32 %v2516, %v2528
    %v2530 = vpop.f32.mrf.mxu0
    %2531 = vdwg.mxu0
    %2532 = vmatpush.bf16.msra.mxu0 %v1677
    %2533 = vmatpush.bf16.msra.mxu0 %v1675
    %2534 = vmatpush.bf16.msra.mxu0 %v1673
    %2535 = vmatpush.bf16.msra.mxu0 %v1671
    %2536 = vmatpush.bf16.msra.mxu0 %v1669
    %2537 = vmatpush.bf16.msra.mxu0 %v1667
    %2538 = vmatpush.bf16.msra.mxu0 %v1665
    %2539 = vmatpush.bf16.msra.mxu0 %v1663
    %2540 = vmatmul.bf16.gmra.mxu0 %v379
    %v2541 = vpop.f32.mrf.mxu0
    %v2542 = vadd.f32 %v2529, %v2541
    %v2543 = vpop.f32.mrf.mxu0
    %2544 = vdwg.mxu0
    %2545 = vmatpush.bf16.msra.mxu0 %v1693
    %2546 = vmatpush.bf16.msra.mxu0 %v1691
    %2547 = vmatpush.bf16.msra.mxu0 %v1689
    %2548 = vmatpush.bf16.msra.mxu0 %v1687
    %2549 = vmatpush.bf16.msra.mxu0 %v1685
    %2550 = vmatpush.bf16.msra.mxu0 %v1683
    %2551 = vmatpush.bf16.msra.mxu0 %v1681
    %2552 = vmatpush.bf16.msra.mxu0 %v1679
    %2553 = vmatmul.bf16.gmra.mxu0 %v380
    %v2554 = vpop.f32.mrf.mxu0
    %v2555 = vadd.f32 %v2542, %v2554
    %v2556 = vpop.f32.mrf.mxu0
    %2557 = vdwg.mxu0
    %2558 = vmatpush.bf16.msra.mxu0 0
    %2559 = vmatpush.bf16.msra.mxu0 0
    %2560 = vmatpush.bf16.msra.mxu0 0
    %2561 = vmatpush.bf16.msra.mxu0 0
    %2562 = vmatpush.bf16.msra.mxu0 0
    %2563 = vmatpush.bf16.msra.mxu0 0
    %2564 = vmatpush.bf16.msra.mxu0 %v1697
    %2565 = vmatpush.bf16.msra.mxu0 %v1695
    %2566 = vmatmul.bf16.gmra.mxu0 %v2023
    %v2567 = vpop.f32.mrf.mxu0
    %v2568 = vadd.f32 %v2555, %v2567
    %v2569 = vpop.f32.mrf.mxu0
    %2570 = vdwg.mxu0
    %v2571 = vmax.f32 %v2295, 0.0
    %v2572 = vmax.f32 %v2568, 0.0
    %v2573 = vpack.c.bf16 %v2571, %v2571
    %v2574 = vpack.c.bf16 %v2572, %v2572
    %v2575 = vld [vmem:[%s3] sm:$0xf]
    %v2576 = vld [vmem:[%s3 + $0x4] sm:$0xf]
    %v2577 = vld [vmem:[%s3 + $0x8] sm:$0xf]
    %v2578 = vld [vmem:[%s3 + $0xc] sm:$0xf]
    %v2579 = vld [vmem:[%s3 + $0x10] sm:$0xf]
    %v2580 = vld [vmem:[%s3 + $0x14] sm:$0xf]
    %v2581 = vld [vmem:[%s3 + $0x18] sm:$0xf]
    %v2582 = vld [vmem:[%s3 + $0x1c] sm:$0xf]
    %v2583 = vld [vmem:[%s3 + $0x20] sm:$0xf]
    %v2584 = vld [vmem:[%s3 + $0x24] sm:$0xf]
    %v2585 = vld [vmem:[%s3 + $0x28] sm:$0xf]
    %v2586 = vld [vmem:[%s3 + $0x2c] sm:$0xf]
    %v2587 = vld [vmem:[%s3 + $0x30] sm:$0xf]
    %v2588 = vld [vmem:[%s3 + $0x34] sm:$0xf]
    %v2589 = vld [vmem:[%s3 + $0x38] sm:$0xf]
    %v2590 = vld [vmem:[%s3 + $0x3c] sm:$0xf]
    %v2591 = vld [vmem:[%s3 + $0x40] sm:$0xf]
    %v2592 = vld [vmem:[%s3 + $0x44] sm:$0xf]
    %v2593 = vld [vmem:[%s3 + $0x48] sm:$0xf]
    %v2594 = vld [vmem:[%s3 + $0x4c] sm:$0xf]
    %v2595 = vld [vmem:[%s3 + $0x50] sm:$0xf]
    %v2596 = vld [vmem:[%s3 + $0x54] sm:$0xf]
    %v2597 = vld [vmem:[%s3 + $0x58] sm:$0xf]
    %v2598 = vld [vmem:[%s3 + $0x5c] sm:$0xf]
    %v2599 = vld [vmem:[%s3 + $0x60] sm:$0xf]
    %v2600 = vld [vmem:[%s3 + $0x64] sm:$0xf]
    %v2601 = vld [vmem:[%s3 + $0x68] sm:$0xf]
    %v2602 = vld [vmem:[%s3 + $0x6c] sm:$0xf]
    %v2603 = vld [vmem:[%s3 + $0x70] sm:$0xf]
    %v2604 = vld [vmem:[%s3 + $0x74] sm:$0xf]
    %v2605 = vld [vmem:[%s3 + $0x78] sm:$0xf]
    %v2606 = vld [vmem:[%s3 + $0x7c] sm:$0xf]
    %v2607 = vld [vmem:[%s4] sm:$0x1]
    %v2609 = vperm.slane %v2607, 0
    %v2643 = vunpack.c.l.b16 %v2575
    %v2644 = vunpack.c.l.b16 %v2576
    %v2645 = vunpack.c.l.b16 %v2577
    %v2646 = vunpack.c.l.b16 %v2578
    %v2647 = vunpack.c.l.b16 %v2579
    %v2648 = vunpack.c.l.b16 %v2580
    %v2649 = vunpack.c.l.b16 %v2581
    %v2650 = vunpack.c.l.b16 %v2582
    %v2651 = vunpack.c.l.b16 %v2583
    %v2652 = vunpack.c.l.b16 %v2584
    %v2653 = vunpack.c.l.b16 %v2585
    %v2654 = vunpack.c.l.b16 %v2586
    %v2655 = vunpack.c.l.b16 %v2587
    %v2656 = vunpack.c.l.b16 %v2588
    %v2657 = vunpack.c.l.b16 %v2589
    %v2658 = vunpack.c.l.b16 %v2590
    %v2659 = vunpack.c.l.b16 %v2591
    %v2660 = vunpack.c.l.b16 %v2592
    %v2661 = vunpack.c.l.b16 %v2593
    %v2662 = vunpack.c.l.b16 %v2594
    %v2663 = vunpack.c.l.b16 %v2595
    %v2664 = vunpack.c.l.b16 %v2596
    %v2665 = vunpack.c.l.b16 %v2597
    %v2666 = vunpack.c.l.b16 %v2598
    %v2667 = vunpack.c.l.b16 %v2599
    %v2668 = vunpack.c.l.b16 %v2600
    %v2669 = vunpack.c.l.b16 %v2601
    %v2670 = vunpack.c.l.b16 %v2602
    %v2671 = vunpack.c.l.b16 %v2603
    %v2672 = vunpack.c.l.b16 %v2604
    %v2673 = vunpack.c.l.b16 %v2605
    %v2674 = vunpack.c.l.b16 %v2606
    %v2675 = vpack.c.b16 %v2644, %v2643
    %v2676 = vpack.c.b16 %v2646, %v2645
    %v2677 = vpack.c.b16 %v2648, %v2647
    %v2678 = vpack.c.b16 %v2650, %v2649
    %v2679 = vpack.c.b16 %v2652, %v2651
    %v2680 = vpack.c.b16 %v2654, %v2653
    %v2681 = vpack.c.b16 %v2656, %v2655
    %v2682 = vpack.c.b16 %v2658, %v2657
    %v2683 = vpack.c.b16 %v2660, %v2659
    %v2684 = vpack.c.b16 %v2662, %v2661
    %v2685 = vpack.c.b16 %v2664, %v2663
    %v2686 = vpack.c.b16 %v2666, %v2665
    %v2687 = vpack.c.b16 %v2668, %v2667
    %v2688 = vpack.c.b16 %v2670, %v2669
    %v2689 = vpack.c.b16 %v2672, %v2671
    %v2690 = vpack.c.b16 %v2674, %v2673
    %2707 = vmatpush.bf16.msra.mxu0 %v2682
    %2708 = vmatpush.bf16.msra.mxu0 %v2681
    %2709 = vmatpush.bf16.msra.mxu0 %v2680
    %2710 = vmatpush.bf16.msra.mxu0 %v2679
    %2711 = vmatpush.bf16.msra.mxu0 %v2678
    %2712 = vmatpush.bf16.msra.mxu0 %v2677
    %2713 = vmatpush.bf16.msra.mxu0 %v2676
    %2714 = vmatpush.bf16.msra.mxu0 %v2675
    %2715 = vmatmul.bf16.gmra.mxu0 %v2573
    %v2716 = vpop.f32.mrf.mxu0
    %v2717 = vadd.f32 %v2609, %v2716
    %v2718 = vpop.f32.mrf.mxu0
    %2719 = vdwg.mxu0
    %2720 = vmatpush.bf16.msra.mxu0 %v2690
    %2721 = vmatpush.bf16.msra.mxu0 %v2689
    %2722 = vmatpush.bf16.msra.mxu0 %v2688
    %2723 = vmatpush.bf16.msra.mxu0 %v2687
    %2724 = vmatpush.bf16.msra.mxu0 %v2686
    %2725 = vmatpush.bf16.msra.mxu0 %v2685
    %2726 = vmatpush.bf16.msra.mxu0 %v2684
    %2727 = vmatpush.bf16.msra.mxu0 %v2683
    %2728 = vmatmul.bf16.gmra.mxu0 %v2574
    %v2729 = vpop.f32.mrf.mxu0
    %v2730 = vadd.f32 %v2717, %v2729
    %v2731 = vpop.f32.mrf.mxu0
    %2732 = vdwg.mxu0
    %vm2733 = vcmask 41984
    %2734 = vst.msk [vmem:[#allocation2] sm:$0x3] %vm2733, %v2730
    // Predicated region
    $region22: #{cqnet_forward.7} parent=1 // pred_check
      _
    $region23: #{cqnet_forward.7} parent=1 // pred_check_branch
      %2736 = sbr.rel (0) target = $region25
    $region24: #{cqnet_forward.7} parent=1 // pred_region
      %2738 = vsyncadd [#allocation3], 0
      %s2740 = sshll.u32 [#allocation2], 4
      %s2741 = int_to_ptr.vmem [resolvable:$true] %s2740
      %s2742 = sshll.u32 %s5, 4
      %s2743 = int_to_ptr.hbm [resolvable:$true] %s2742
      %2745 = dma.vmem_to_hbm [thread:$0]  %s2741, 32, %s2743, [#allocation3]
    $region25: #{cqnet_forward.7} parent=1 // pred_fallthru
      _
    // Predicated region
    $region26: #{cqnet_forward.7} parent=1 // pred_check
      _
    $region27: #{cqnet_forward.7} parent=1 // pred_check_branch
      %2747 = sbr.rel (0) target = $region29
    $region28: #{cqnet_forward.7} parent=1 // pred_region
      %2749 = dma.done [#allocation3], 32
    $region29: #{cqnet_forward.7} parent=1 // pred_fallthru
      _
    %2750 = vsyncpa [#allocation3], 1

</llo_original>
